<compile_context>
chip_gen: v7x
topology: tpu7x:2x2x1
jax: 0.10.0
libtpu: 0.0.40
codegen_flags: <defaults>
</compile_context>

<pallas_src>
import functools

import numpy as np
import jax
import jax.numpy as jnp
from jax import lax
from jax.experimental import pallas as pl
from jax.experimental.pallas import tpu as pltpu


# ----------------------------------------------------------------------------- in-kernel math
def _erf_f32(x):
    # Single-precision rational erf approximation (matches f32 erf to rounding precision).
    x = jnp.clip(x, -4.0, 4.0)
    x2 = x * x
    a = jnp.float32(-2.72614225801306e-10)
    a = a * x2 + jnp.float32(2.77068142495902e-08)
    a = a * x2 + jnp.float32(-2.10102402082508e-06)
    a = a * x2 + jnp.float32(-5.69250639462346e-05)
    a = a * x2 + jnp.float32(-7.34990630326855e-04)
    a = a * x2 + jnp.float32(-2.95459980854025e-03)
    a = a * x2 + jnp.float32(-1.60960333262415e-02)
    a = a * x
    b = jnp.float32(-1.45660718464996e-05)
    b = b * x2 + jnp.float32(-2.13374055278905e-04)
    b = b * x2 + jnp.float32(-1.68282697438203e-03)
    b = b * x2 + jnp.float32(-7.37332916720468e-03)
    b = b * x2 + jnp.float32(-1.42647390514189e-02)
    return a / b


def _layernorm(x, gamma, beta, eps=1e-5):
    mu = jnp.mean(x, axis=-1, keepdims=True)
    var = jnp.mean(jnp.square(x - mu), axis=-1, keepdims=True)
    return (x - mu) * lax.rsqrt(var + eps) * gamma + beta


# ----------------------------------------------------------------------------- fused kernel
def _swin_seq_kernel(x_ref, bias_ref,
                     ln1g_ref, ln1b_ref, wqk_ref, bqk_ref, wvo_ref, bvo_ref,
                     ln2g_ref, ln2b_ref, w1_ref, b1_ref, w2_ref, b2_ref,
                     o_ref, *, num_blocks, num_heads, head_dim):
    """All 4 Swin blocks + final 0.2-blend for ONE image, fully VMEM/vreg-resident.

    x_ref:    (1, L, C)           one image's tokens (raster order)
    bias_ref: (nb, nH, L, L)      token-order additive bias: cross-window -1e9,
                                  rel.-pos. bias (+ -100 shift mask) inside windows
    weights:  stacked over the block dim (leading size nb=4); Wo pre-folded into Wv.
    """
    x0 = x_ref[0]                                          # (L, C)
    C = x0.shape[-1]
    cur = x0

    for i in range(num_blocks):                            # static unroll (4 blocks)
        # ---- W-MSA branch: window structure lives entirely in the additive bias ----
        xn = _layernorm(cur, ln1g_ref[i], ln1b_ref[i])                     # norm1
        qk = jnp.dot(xn, wqk_ref[i],
                     preferred_element_type=jnp.float32) + bqk_ref[i]      # (L, 2C)

        attn = jnp.zeros_like(cur)                         # (L, C) accumulator
        for h in range(num_heads):                         # static, tiny
            lo = h * head_dim
            hi = lo + head_dim
            qh = qk[:, lo:hi]                              # scale pre-folded into Wq
            kh = qk[:, C + lo:C + hi]
            s = lax.dot_general(qh, kh, (((1,), (1,)), ((), ())),
                                preferred_element_type=jnp.float32)        # (L, L)
            s = s + bias_ref[i, h]                         # windows + rel-pos + shift mask
            s = s - jnp.max(s, axis=-1, keepdims=True)
            e = jnp.exp(s)
            p = e / jnp.sum(e, axis=-1, keepdims=True)     # exact division (parity + fold)
            vh = jnp.dot(xn, wvo_ref[i, h],
                         preferred_element_type=jnp.float32)               # (L, C) = xn @ (Wv_h Wo_h)
            attn = attn + jnp.dot(p, vh, preferred_element_type=jnp.float32)
        cur = cur + attn + bvo_ref[i]                      # residual 1 (bv@Wo + bo folded)

        # ---- MLP branch --------------------------------------------------------------
        xn2 = _layernorm(cur, ln2g_ref[i], ln2b_ref[i])                    # norm2
        hmid = jnp.dot(xn2, w1_ref[i],
                       preferred_element_type=jnp.float32) + b1_ref[i]
        hmid = 0.5 * hmid * (1.0 + _erf_f32(hmid * jnp.float32(0.7071067811865476)))
        cur = cur + jnp.dot(hmid, w2_ref[i],
                            preferred_element_type=jnp.float32) + b2_ref[i]

    o_ref[0] = cur * jnp.float32(0.2) + x0                 # residual-in-residual blend
    # TODO(synk): dropout / attn_drop / drop_path are rate-0 identities in this module.


# ----------------------------------------------------------------------------- wrapper
def transformer_sequence_pallas(x, stacked, *, num_heads, head_dim):
    B, L, C = x.shape

    weights = (stacked["attn_bias"],
               stacked["ln1_g"], stacked["ln1_b"], stacked["wqk"], stacked["bqk"],
               stacked["wvo"], stacked["bvo"],
               stacked["ln2_g"], stacked["ln2_b"], stacked["w1"], stacked["b1"],
               stacked["w2"], stacked["b2"])

    def const_spec(a):
        nd = a.ndim
        return pl.BlockSpec(tuple(a.shape), lambda b, _nd=nd: (0,) * _nd)

    kern = functools.partial(_swin_seq_kernel,
                             num_blocks=stacked["wqk"].shape[0],
                             num_heads=num_heads, head_dim=head_dim)

    out = pl.pallas_call(
        kern,
        out_shape=jax.ShapeDtypeStruct((B, L, C), jnp.float32),
        grid=(B,),                                          # one image per grid step
        in_specs=[pl.BlockSpec((1, L, C), lambda b: (b, 0, 0))]
                 + [const_spec(a) for a in weights],
        out_specs=pl.BlockSpec((1, L, C), lambda b: (b, 0, 0)),
        compiler_params=pltpu.CompilerParams(dimension_semantics=("parallel",)),
    )(x, *weights)
    return out


# ----------------------------------------------------------------------------- static glue
def _relative_position_index(ws):
    coords = np.stack(np.meshgrid(np.arange(ws), np.arange(ws), indexing="ij"))
    flat = coords.reshape(2, -1)
    rel = (flat[:, :, None] - flat[:, None, :]).transpose(1, 2, 0).astype(np.int64)
    rel[:, :, 0] += ws - 1
    rel[:, :, 1] += ws - 1
    rel[:, :, 0] *= 2 * ws - 1
    return rel.sum(-1)                                      # (N, N)


def relative_position_bias(table, ws, num_heads):
    idx = _relative_position_index(ws)
    N = ws * ws
    tbl = np.asarray(table)
    bias = tbl[idx.reshape(-1)].reshape(N, N, num_heads)
    return np.transpose(bias, (2, 0, 1)).astype(np.float32)  # (nH, N, N)


def build_token_order_bias(rpb, H, W, ws, shift, neg=-1e9):
    """(nH, L, L) additive attention bias in raster token order for one image.

    Folds (a) the cyclic shift + window partition (cross-window pairs get -1e9),
    (b) the relative-position bias, (c) the SW-MSA -100 region mask.  Exactly
    reproduces window-partitioned attention without any in-kernel permutation."""
    nH = rpb.shape[0]
    L = H * W
    nWc = W // ws
    img_mask = np.zeros((H, W), np.int32)
    if shift > 0:
        slices = (slice(0, -ws), slice(-ws, -shift), slice(-shift, None))
        cnt = 0
        for hs in slices:
            for wsl in slices:
                img_mask[hs, wsl] = cnt
                cnt += 1
    win_id = np.zeros((L,), np.int64)
    win_pos = np.zeros((L,), np.int64)
    region = np.zeros((L,), np.int64)
    for r in range(H):
        for c in range(W):
            t = r * W + c
            rs = (r - shift) % H            # position after torch.roll(x, (-shift,-shift))
            cs = (c - shift) % W
            win_id[t] = (rs // ws) * nWc + (cs // ws)
            win_pos[t] = (rs % ws) * ws + (cs % ws)
            region[t] = img_mask[rs, cs]
    bias = np.full((nH, L, L), np.float32(neg), dtype=np.float32)
    for i in range(L):
        for j in range(L):
            if win_id[i] == win_id[j]:
                v = rpb[:, win_pos[i], win_pos[j]].copy()
                if region[i] != region[j]:
                    v = v - np.float32(100.0)
                bias[:, i, j] = v
    return jnp.asarray(bias)


# ----------------------------------------------------------------------------- params
def init_block_params(key, dim, num_heads, window_size, mlp_ratio=4):
    hid = dim * mlp_ratio
    n_rel = (2 * window_size - 1) ** 2
    ks = jax.random.split(key, 7)
    s = jnp.float32(0.02)
    zc = jnp.zeros((1, dim), jnp.float32)
    return dict(
        ln1_g=jnp.ones((1, dim), jnp.float32), ln1_b=zc,
        wq=s * jax.random.normal(ks[0], (dim, dim), jnp.float32), bq=zc,
        wk=s * jax.random.normal(ks[1], (dim, dim), jnp.float32), bk=zc,
        wv=s * jax.random.normal(ks[2], (dim, dim), jnp.float32), bv=zc,
        wo=s * jax.random.normal(ks[3], (dim, dim), jnp.float32), bo=zc,
        rpb_table=s * jax.random.normal(ks[4], (n_rel, num_heads), jnp.float32),
        ln2_g=jnp.ones((1, dim), jnp.float32), ln2_b=zc,
        w1=s * jax.random.normal(ks[5], (dim, hid), jnp.float32),
        b1=jnp.zeros((1, hid), jnp.float32),
        w2=s * jax.random.normal(ks[6], (hid, dim), jnp.float32),
        b2=zc,
    )


def pack_params(params_list, token_biases, num_heads, head_dim):
    """Stack per-block params; pack QK, fold the scale into Wq/bq and Wo into Wv (exact)."""
    scale = jnp.float32(head_dim ** -0.5)

    def stack(fn):
        return jnp.stack([fn(p) for p in params_list], axis=0)

    def wvo(p):
        parts = []
        for h in range(num_heads):
            sl = slice(h * head_dim, (h + 1) * head_dim)
            parts.append(p["wv"][:, sl] @ p["wo"][sl, :])    # (C, C) per head
        return jnp.stack(parts, axis=0)                       # (nH, C, C)

    return dict(
        attn_bias=jnp.stack(token_biases, axis=0),            # (nb, nH, L, L)
        ln1_g=stack(lambda p: p["ln1_g"]), ln1_b=stack(lambda p: p["ln1_b"]),
        wqk=stack(lambda p: jnp.concatenate([p["wq"] * scale, p["wk"]], axis=1)),
        bqk=stack(lambda p: jnp.concatenate([p["bq"] * scale, p["bk"]], axis=1)),
        wvo=stack(wvo),                                        # (nb, nH, C, C)
        bvo=stack(lambda p: p["bv"] @ p["wo"] + p["bo"]),      # (nb, 1, C)
        ln2_g=stack(lambda p: p["ln2_g"]), ln2_b=stack(lambda p: p["ln2_b"]),
        w1=stack(lambda p: p["w1"]), b1=stack(lambda p: p["b1"]),
        w2=stack(lambda p: p["w2"]), b2=stack(lambda p: p["b2"]),
    )


# ----------------------------------------------------------------------------- main
if __name__ == "__main__":
    dim, input_size, num_head, window_size = 32, 8, 2, 4
    B = 2
    H = W = input_size
    L = H * W
    ws = window_size
    head_dim = dim // num_head

    key = jax.random.PRNGKey(0)
    kx, kp = jax.random.split(key)
    x = jax.random.normal(kx, (B, L, dim), jnp.float32)

    shifts = [0, ws // 2, 0, ws // 2]                       # rdb1..rdb4

    params = [init_block_params(jax.random.fold_in(kp, i), dim, num_head, ws)
              for i in range(4)]

    # Per-block token-order attention bias (cross-window mask + rel-pos bias + shift mask),
    # shared across the batch (so no cross-image -1e9 block is ever materialized).
    token_biases = []
    for p, s in zip(params, shifts):
        rpb = relative_position_bias(p["rpb_table"], ws, num_head)       # (nH, N, N)
        token_biases.append(build_token_order_bias(rpb, H, W, ws, s))    # (nH, L, L)

    stacked = pack_params(params, token_biases, num_head, head_dim)

    @jax.jit
    def transformer_sequence(x):
        return transformer_sequence_pallas(x, stacked,
                                           num_heads=num_head, head_dim=head_dim)

    y = transformer_sequence(x)
    jax.block_until_ready(y)
    assert y.shape == (B, L, dim) and bool(jnp.all(jnp.isfinite(y)))
    print("KERNEL_OK")
</pallas_src>

<mosaic_0001>
module attributes {stable_mosaic.version = 11 : i64} {
  func.func @_swin_seq_kernel(%arg0: i32, %arg1: memref<1x64x32xf32, #tpu.memory_space<vmem>>, %arg2: memref<4x2x64x64xf32, #tpu.memory_space<vmem>>, %arg3: memref<4x1x32xf32, #tpu.memory_space<vmem>>, %arg4: memref<4x1x32xf32, #tpu.memory_space<vmem>>, %arg5: memref<4x32x64xf32, #tpu.memory_space<vmem>>, %arg6: memref<4x1x64xf32, #tpu.memory_space<vmem>>, %arg7: memref<4x2x32x32xf32, #tpu.memory_space<vmem>>, %arg8: memref<4x1x32xf32, #tpu.memory_space<vmem>>, %arg9: memref<4x1x32xf32, #tpu.memory_space<vmem>>, %arg10: memref<4x1x32xf32, #tpu.memory_space<vmem>>, %arg11: memref<4x32x128xf32, #tpu.memory_space<vmem>>, %arg12: memref<4x1x128xf32, #tpu.memory_space<vmem>>, %arg13: memref<4x128x32xf32, #tpu.memory_space<vmem>>, %arg14: memref<4x1x32xf32, #tpu.memory_space<vmem>>, %arg15: memref<1x64x32xf32, #tpu.memory_space<vmem>>) attributes {dimension_semantics = [#tpu.dimension_semantics<parallel>], iteration_bounds = array<i64: 2>, scalar_prefetch = 0 : i64, scratch_operands = 0 : i64, tpu.core_type = #tpu.core_type<tc>, window_params = [{transform_indices = @transform_0, window_bounds = array<i64: 1, 64, 32>}, {pipeline_mode = #tpu.pipeline_mode<synchronous>, transform_indices = @transform_1, window_bounds = array<i64: 4, 2, 64, 64>}, {pipeline_mode = #tpu.pipeline_mode<synchronous>, transform_indices = @transform_2, window_bounds = array<i64: 4, 1, 32>}, {pipeline_mode = #tpu.pipeline_mode<synchronous>, transform_indices = @transform_3, window_bounds = array<i64: 4, 1, 32>}, {pipeline_mode = #tpu.pipeline_mode<synchronous>, transform_indices = @transform_4, window_bounds = array<i64: 4, 32, 64>}, {pipeline_mode = #tpu.pipeline_mode<synchronous>, transform_indices = @transform_5, window_bounds = array<i64: 4, 1, 64>}, {pipeline_mode = #tpu.pipeline_mode<synchronous>, transform_indices = @transform_6, window_bounds = array<i64: 4, 2, 32, 32>}, {pipeline_mode = #tpu.pipeline_mode<synchronous>, transform_indices = @transform_7, window_bounds = array<i64: 4, 1, 32>}, {pipeline_mode = #tpu.pipeline_mode<synchronous>, transform_indices = @transform_8, window_bounds = array<i64: 4, 1, 32>}, {pipeline_mode = #tpu.pipeline_mode<synchronous>, transform_indices = @transform_9, window_bounds = array<i64: 4, 1, 32>}, {pipeline_mode = #tpu.pipeline_mode<synchronous>, transform_indices = @transform_10, window_bounds = array<i64: 4, 32, 128>}, {pipeline_mode = #tpu.pipeline_mode<synchronous>, transform_indices = @transform_11, window_bounds = array<i64: 4, 1, 128>}, {pipeline_mode = #tpu.pipeline_mode<synchronous>, transform_indices = @transform_12, window_bounds = array<i64: 4, 128, 32>}, {pipeline_mode = #tpu.pipeline_mode<synchronous>, transform_indices = @transform_13, window_bounds = array<i64: 4, 1, 32>}, {transform_indices = @transform_14, window_bounds = array<i64: 1, 64, 32>}]} {
    %c0 = arith.constant 0 : index
    %c0_0 = arith.constant 0 : index
    %c0_1 = arith.constant 0 : index
    %0 = vector.load %arg1[%c0, %c0_0, %c0_1] : memref<1x64x32xf32, #tpu.memory_space<vmem>>, vector<1x64x32xf32>
    %1 = vector.shape_cast %0 : vector<1x64x32xf32> to vector<64x32xf32>
    %c0_2 = arith.constant 0 : index
    %c0_3 = arith.constant 0 : index
    %c0_4 = arith.constant 0 : index
    %2 = vector.load %arg3[%c0_2, %c0_3, %c0_4] : memref<4x1x32xf32, #tpu.memory_space<vmem>>, vector<1x1x32xf32>
    %3 = vector.shape_cast %2 : vector<1x1x32xf32> to vector<1x32xf32>
    %c0_5 = arith.constant 0 : index
    %c0_6 = arith.constant 0 : index
    %c0_7 = arith.constant 0 : index
    %4 = vector.load %arg4[%c0_5, %c0_6, %c0_7] : memref<4x1x32xf32, #tpu.memory_space<vmem>>, vector<1x1x32xf32>
    %5 = vector.shape_cast %4 : vector<1x1x32xf32> to vector<1x32xf32>
    %cst = arith.constant dense<0.000000e+00> : vector<64xf32>
    %6 = vector.multi_reduction <add>, %1, %cst [1] : vector<64x32xf32> to vector<64xf32>
    %7 = vector.shape_cast %6 : vector<64xf32> to vector<64x1xf32>
    %cst_8 = arith.constant 3.200000e+01 : f32
    %8 = vector.broadcast %cst_8 : f32 to vector<64x1xf32>
    %9 = arith.divf %7, %8 : vector<64x1xf32>
    %10 = vector.broadcast %9 : vector<64x1xf32> to vector<64x32xf32>
    %11 = arith.subf %1, %10 : vector<64x32xf32>
    %12 = arith.mulf %11, %11 : vector<64x32xf32>
    %cst_9 = arith.constant dense<0.000000e+00> : vector<64xf32>
    %13 = vector.multi_reduction <add>, %12, %cst_9 [1] : vector<64x32xf32> to vector<64xf32>
    %14 = vector.shape_cast %13 : vector<64xf32> to vector<64x1xf32>
    %cst_10 = arith.constant 3.200000e+01 : f32
    %15 = vector.broadcast %cst_10 : f32 to vector<64x1xf32>
    %16 = arith.divf %14, %15 : vector<64x1xf32>
    %17 = vector.broadcast %9 : vector<64x1xf32> to vector<64x32xf32>
    %18 = arith.subf %1, %17 : vector<64x32xf32>
    %cst_11 = arith.constant 9.99999974E-6 : f32
    %19 = vector.broadcast %cst_11 : f32 to vector<64x1xf32>
    %20 = arith.addf %16, %19 : vector<64x1xf32>
    %21 = math.rsqrt %20 : vector<64x1xf32>
    %22 = vector.broadcast %21 : vector<64x1xf32> to vector<64x32xf32>
    %23 = arith.mulf %18, %22 : vector<64x32xf32>
    %24 = vector.broadcast %3 : vector<1x32xf32> to vector<64x32xf32>
    %25 = arith.mulf %23, %24 : vector<64x32xf32>
    %26 = vector.broadcast %5 : vector<1x32xf32> to vector<64x32xf32>
    %27 = arith.addf %25, %26 : vector<64x32xf32>
    %c0_12 = arith.constant 0 : index
    %c0_13 = arith.constant 0 : index
    %c0_14 = arith.constant 0 : index
    %28 = vector.load %arg5[%c0_12, %c0_13, %c0_14] : memref<4x32x64xf32, #tpu.memory_space<vmem>>, vector<1x32x64xf32>
    %29 = vector.shape_cast %28 : vector<1x32x64xf32> to vector<32x64xf32>
    %cst_15 = arith.constant dense<0.000000e+00> : vector<64x64xf32>
    %30 = tpu.matmul %27, %29, %cst_15 {dimension_numbers = #tpu.dot_dimension_numbers<[1], [0], [0], [1], [0, 0, 1, 1], [], []>} : vector<64x32xf32>, vector<32x64xf32>, vector<64x64xf32> -> vector<64x64xf32>
    %c0_16 = arith.constant 0 : index
    %c0_17 = arith.constant 0 : index
    %c0_18 = arith.constant 0 : index
    %31 = vector.load %arg6[%c0_16, %c0_17, %c0_18] : memref<4x1x64xf32, #tpu.memory_space<vmem>>, vector<1x1x64xf32>
    %32 = vector.shape_cast %31 : vector<1x1x64xf32> to vector<1x64xf32>
    %33 = vector.broadcast %32 : vector<1x64xf32> to vector<64x64xf32>
    %34 = arith.addf %30, %33 : vector<64x64xf32>
    %cst_19 = arith.constant 0.000000e+00 : f32
    %35 = vector.broadcast %cst_19 : f32 to vector<64x32xf32>
    %36 = vector.extract_strided_slice %34 {offsets = [0, 0], sizes = [64, 16], strides = [1, 1]} : vector<64x64xf32> to vector<64x16xf32>
    %37 = vector.extract_strided_slice %34 {offsets = [0, 32], sizes = [64, 16], strides = [1, 1]} : vector<64x64xf32> to vector<64x16xf32>
    %cst_20 = arith.constant dense<0.000000e+00> : vector<64x64xf32>
    %38 = tpu.matmul %36, %37, %cst_20 {dimension_numbers = #tpu.dot_dimension_numbers<[1], [1], [0], [0], [0, 0, 1, 0], [], []>} : vector<64x16xf32>, vector<64x16xf32>, vector<64x64xf32> -> vector<64x64xf32>
    %c0_21 = arith.constant 0 : index
    %c0_22 = arith.constant 0 : index
    %c0_23 = arith.constant 0 : index
    %c0_24 = arith.constant 0 : index
    %39 = vector.load %arg2[%c0_21, %c0_22, %c0_23, %c0_24] : memref<4x2x64x64xf32, #tpu.memory_space<vmem>>, vector<1x1x64x64xf32>
    %40 = vector.shape_cast %39 : vector<1x1x64x64xf32> to vector<64x64xf32>
    %41 = arith.addf %38, %40 : vector<64x64xf32>
    %cst_25 = arith.constant dense<0xFF800000> : vector<64xf32>
    %42 = vector.multi_reduction <maximumf>, %41, %cst_25 [1] : vector<64x64xf32> to vector<64xf32>
    %43 = vector.shape_cast %42 : vector<64xf32> to vector<64x1xf32>
    %44 = vector.broadcast %43 : vector<64x1xf32> to vector<64x64xf32>
    %45 = arith.subf %41, %44 : vector<64x64xf32>
    %46 = math.exp %45 : vector<64x64xf32>
    %cst_26 = arith.constant dense<0.000000e+00> : vector<64xf32>
    %47 = vector.multi_reduction <add>, %46, %cst_26 [1] : vector<64x64xf32> to vector<64xf32>
    %48 = vector.shape_cast %47 : vector<64xf32> to vector<64x1xf32>
    %49 = vector.broadcast %48 : vector<64x1xf32> to vector<64x64xf32>
    %50 = arith.divf %46, %49 : vector<64x64xf32>
    %c0_27 = arith.constant 0 : index
    %c0_28 = arith.constant 0 : index
    %c0_29 = arith.constant 0 : index
    %c0_30 = arith.constant 0 : index
    %51 = vector.load %arg7[%c0_27, %c0_28, %c0_29, %c0_30] : memref<4x2x32x32xf32, #tpu.memory_space<vmem>>, vector<1x1x32x32xf32>
    %52 = vector.shape_cast %51 : vector<1x1x32x32xf32> to vector<32x32xf32>
    %cst_31 = arith.constant dense<0.000000e+00> : vector<64x32xf32>
    %53 = tpu.matmul %27, %52, %cst_31 {dimension_numbers = #tpu.dot_dimension_numbers<[1], [0], [0], [1], [0, 0, 1, 1], [], []>} : vector<64x32xf32>, vector<32x32xf32>, vector<64x32xf32> -> vector<64x32xf32>
    %cst_32 = arith.constant dense<0.000000e+00> : vector<64x32xf32>
    %54 = tpu.matmul %50, %53, %cst_32 {dimension_numbers = #tpu.dot_dimension_numbers<[1], [0], [0], [1], [0, 0, 1, 1], [], []>} : vector<64x64xf32>, vector<64x32xf32>, vector<64x32xf32> -> vector<64x32xf32>
    %55 = arith.addf %35, %54 : vector<64x32xf32>
    %56 = vector.extract_strided_slice %34 {offsets = [0, 16], sizes = [64, 16], strides = [1, 1]} : vector<64x64xf32> to vector<64x16xf32>
    %57 = vector.extract_strided_slice %34 {offsets = [0, 48], sizes = [64, 16], strides = [1, 1]} : vector<64x64xf32> to vector<64x16xf32>
    %cst_33 = arith.constant dense<0.000000e+00> : vector<64x64xf32>
    %58 = tpu.matmul %56, %57, %cst_33 {dimension_numbers = #tpu.dot_dimension_numbers<[1], [1], [0], [0], [0, 0, 1, 0], [], []>} : vector<64x16xf32>, vector<64x16xf32>, vector<64x64xf32> -> vector<64x64xf32>
    %c0_34 = arith.constant 0 : index
    %c1 = arith.constant 1 : index
    %c0_35 = arith.constant 0 : index
    %c0_36 = arith.constant 0 : index
    %59 = vector.load %arg2[%c0_34, %c1, %c0_35, %c0_36] : memref<4x2x64x64xf32, #tpu.memory_space<vmem>>, vector<1x1x64x64xf32>
    %60 = vector.shape_cast %59 : vector<1x1x64x64xf32> to vector<64x64xf32>
    %61 = arith.addf %58, %60 : vector<64x64xf32>
    %cst_37 = arith.constant dense<0xFF800000> : vector<64xf32>
    %62 = vector.multi_reduction <maximumf>, %61, %cst_37 [1] : vector<64x64xf32> to vector<64xf32>
    %63 = vector.shape_cast %62 : vector<64xf32> to vector<64x1xf32>
    %64 = vector.broadcast %63 : vector<64x1xf32> to vector<64x64xf32>
    %65 = arith.subf %61, %64 : vector<64x64xf32>
    %66 = math.exp %65 : vector<64x64xf32>
    %cst_38 = arith.constant dense<0.000000e+00> : vector<64xf32>
    %67 = vector.multi_reduction <add>, %66, %cst_38 [1] : vector<64x64xf32> to vector<64xf32>
    %68 = vector.shape_cast %67 : vector<64xf32> to vector<64x1xf32>
    %69 = vector.broadcast %68 : vector<64x1xf32> to vector<64x64xf32>
    %70 = arith.divf %66, %69 : vector<64x64xf32>
    %c0_39 = arith.constant 0 : index
    %c1_40 = arith.constant 1 : index
    %c0_41 = arith.constant 0 : index
    %c0_42 = arith.constant 0 : index
    %71 = vector.load %arg7[%c0_39, %c1_40, %c0_41, %c0_42] : memref<4x2x32x32xf32, #tpu.memory_space<vmem>>, vector<1x1x32x32xf32>
    %72 = vector.shape_cast %71 : vector<1x1x32x32xf32> to vector<32x32xf32>
    %cst_43 = arith.constant dense<0.000000e+00> : vector<64x32xf32>
    %73 = tpu.matmul %27, %72, %cst_43 {dimension_numbers = #tpu.dot_dimension_numbers<[1], [0], [0], [1], [0, 0, 1, 1], [], []>} : vector<64x32xf32>, vector<32x32xf32>, vector<64x32xf32> -> vector<64x32xf32>
    %cst_44 = arith.constant dense<0.000000e+00> : vector<64x32xf32>
    %74 = tpu.matmul %70, %73, %cst_44 {dimension_numbers = #tpu.dot_dimension_numbers<[1], [0], [0], [1], [0, 0, 1, 1], [], []>} : vector<64x64xf32>, vector<64x32xf32>, vector<64x32xf32> -> vector<64x32xf32>
    %75 = arith.addf %55, %74 : vector<64x32xf32>
    %76 = arith.addf %1, %75 : vector<64x32xf32>
    %c0_45 = arith.constant 0 : index
    %c0_46 = arith.constant 0 : index
    %c0_47 = arith.constant 0 : index
    %77 = vector.load %arg8[%c0_45, %c0_46, %c0_47] : memref<4x1x32xf32, #tpu.memory_space<vmem>>, vector<1x1x32xf32>
    %78 = vector.shape_cast %77 : vector<1x1x32xf32> to vector<1x32xf32>
    %79 = vector.broadcast %78 : vector<1x32xf32> to vector<64x32xf32>
    %80 = arith.addf %76, %79 : vector<64x32xf32>
    %c0_48 = arith.constant 0 : index
    %c0_49 = arith.constant 0 : index
    %c0_50 = arith.constant 0 : index
    %81 = vector.load %arg9[%c0_48, %c0_49, %c0_50] : memref<4x1x32xf32, #tpu.memory_space<vmem>>, vector<1x1x32xf32>
    %82 = vector.shape_cast %81 : vector<1x1x32xf32> to vector<1x32xf32>
    %c0_51 = arith.constant 0 : index
    %c0_52 = arith.constant 0 : index
    %c0_53 = arith.constant 0 : index
    %83 = vector.load %arg10[%c0_51, %c0_52, %c0_53] : memref<4x1x32xf32, #tpu.memory_space<vmem>>, vector<1x1x32xf32>
    %84 = vector.shape_cast %83 : vector<1x1x32xf32> to vector<1x32xf32>
    %cst_54 = arith.constant dense<0.000000e+00> : vector<64xf32>
    %85 = vector.multi_reduction <add>, %80, %cst_54 [1] : vector<64x32xf32> to vector<64xf32>
    %86 = vector.shape_cast %85 : vector<64xf32> to vector<64x1xf32>
    %cst_55 = arith.constant 3.200000e+01 : f32
    %87 = vector.broadcast %cst_55 : f32 to vector<64x1xf32>
    %88 = arith.divf %86, %87 : vector<64x1xf32>
    %89 = vector.broadcast %88 : vector<64x1xf32> to vector<64x32xf32>
    %90 = arith.subf %80, %89 : vector<64x32xf32>
    %91 = arith.mulf %90, %90 : vector<64x32xf32>
    %cst_56 = arith.constant dense<0.000000e+00> : vector<64xf32>
    %92 = vector.multi_reduction <add>, %91, %cst_56 [1] : vector<64x32xf32> to vector<64xf32>
    %93 = vector.shape_cast %92 : vector<64xf32> to vector<64x1xf32>
    %cst_57 = arith.constant 3.200000e+01 : f32
    %94 = vector.broadcast %cst_57 : f32 to vector<64x1xf32>
    %95 = arith.divf %93, %94 : vector<64x1xf32>
    %96 = vector.broadcast %88 : vector<64x1xf32> to vector<64x32xf32>
    %97 = arith.subf %80, %96 : vector<64x32xf32>
    %cst_58 = arith.constant 9.99999974E-6 : f32
    %98 = vector.broadcast %cst_58 : f32 to vector<64x1xf32>
    %99 = arith.addf %95, %98 : vector<64x1xf32>
    %100 = math.rsqrt %99 : vector<64x1xf32>
    %101 = vector.broadcast %100 : vector<64x1xf32> to vector<64x32xf32>
    %102 = arith.mulf %97, %101 : vector<64x32xf32>
    %103 = vector.broadcast %82 : vector<1x32xf32> to vector<64x32xf32>
    %104 = arith.mulf %102, %103 : vector<64x32xf32>
    %105 = vector.broadcast %84 : vector<1x32xf32> to vector<64x32xf32>
    %106 = arith.addf %104, %105 : vector<64x32xf32>
    %c0_59 = arith.constant 0 : index
    %c0_60 = arith.constant 0 : index
    %c0_61 = arith.constant 0 : index
    %107 = vector.load %arg11[%c0_59, %c0_60, %c0_61] : memref<4x32x128xf32, #tpu.memory_space<vmem>>, vector<1x32x128xf32>
    %108 = vector.shape_cast %107 : vector<1x32x128xf32> to vector<32x128xf32>
    %cst_62 = arith.constant dense<0.000000e+00> : vector<64x128xf32>
    %109 = tpu.matmul %106, %108, %cst_62 {dimension_numbers = #tpu.dot_dimension_numbers<[1], [0], [0], [1], [0, 0, 1, 1], [], []>} : vector<64x32xf32>, vector<32x128xf32>, vector<64x128xf32> -> vector<64x128xf32>
    %c0_63 = arith.constant 0 : index
    %c0_64 = arith.constant 0 : index
    %c0_65 = arith.constant 0 : index
    %110 = vector.load %arg12[%c0_63, %c0_64, %c0_65] : memref<4x1x128xf32, #tpu.memory_space<vmem>>, vector<1x1x128xf32>
    %111 = vector.shape_cast %110 : vector<1x1x128xf32> to vector<1x128xf32>
    %112 = vector.broadcast %111 : vector<1x128xf32> to vector<64x128xf32>
    %113 = arith.addf %109, %112 : vector<64x128xf32>
    %cst_66 = arith.constant 5.000000e-01 : f32
    %114 = vector.broadcast %cst_66 : f32 to vector<64x128xf32>
    %115 = arith.mulf %114, %113 : vector<64x128xf32>
    %cst_67 = arith.constant 0.707106769 : f32
    %116 = vector.broadcast %cst_67 : f32 to vector<64x128xf32>
    %117 = arith.mulf %113, %116 : vector<64x128xf32>
    %cst_68 = arith.constant -4.000000e+00 : f32
    %cst_69 = arith.constant 4.000000e+00 : f32
    %118 = vector.broadcast %cst_68 : f32 to vector<64x128xf32>
    %119 = arith.maximumf %118, %117 : vector<64x128xf32>
    %120 = vector.broadcast %cst_69 : f32 to vector<64x128xf32>
    %121 = arith.minimumf %120, %119 : vector<64x128xf32>
    %122 = arith.mulf %121, %121 : vector<64x128xf32>
    %cst_70 = arith.constant -2.72614237E-10 : f32
    %123 = vector.broadcast %cst_70 : f32 to vector<64x128xf32>
    %124 = arith.mulf %123, %122 : vector<64x128xf32>
    %cst_71 = arith.constant 2.77068146E-8 : f32
    %125 = vector.broadcast %cst_71 : f32 to vector<64x128xf32>
    %126 = arith.addf %124, %125 : vector<64x128xf32>
    %127 = arith.mulf %126, %122 : vector<64x128xf32>
    %cst_72 = arith.constant -2.10102394E-6 : f32
    %128 = vector.broadcast %cst_72 : f32 to vector<64x128xf32>
    %129 = arith.addf %127, %128 : vector<64x128xf32>
    %130 = arith.mulf %129, %122 : vector<64x128xf32>
    %cst_73 = arith.constant -5.69250624E-5 : f32
    %131 = vector.broadcast %cst_73 : f32 to vector<64x128xf32>
    %132 = arith.addf %130, %131 : vector<64x128xf32>
    %133 = arith.mulf %132, %122 : vector<64x128xf32>
    %cst_74 = arith.constant -7.34990637E-4 : f32
    %134 = vector.broadcast %cst_74 : f32 to vector<64x128xf32>
    %135 = arith.addf %133, %134 : vector<64x128xf32>
    %136 = arith.mulf %135, %122 : vector<64x128xf32>
    %cst_75 = arith.constant -2.954600e-03 : f32
    %137 = vector.broadcast %cst_75 : f32 to vector<64x128xf32>
    %138 = arith.addf %136, %137 : vector<64x128xf32>
    %139 = arith.mulf %138, %122 : vector<64x128xf32>
    %cst_76 = arith.constant -0.0160960332 : f32
    %140 = vector.broadcast %cst_76 : f32 to vector<64x128xf32>
    %141 = arith.addf %139, %140 : vector<64x128xf32>
    %142 = arith.mulf %141, %121 : vector<64x128xf32>
    %cst_77 = arith.constant -1.45660715E-5 : f32
    %143 = vector.broadcast %cst_77 : f32 to vector<64x128xf32>
    %144 = arith.mulf %143, %122 : vector<64x128xf32>
    %cst_78 = arith.constant -2.13374049E-4 : f32
    %145 = vector.broadcast %cst_78 : f32 to vector<64x128xf32>
    %146 = arith.addf %144, %145 : vector<64x128xf32>
    %147 = arith.mulf %146, %122 : vector<64x128xf32>
    %cst_79 = arith.constant -0.00168282702 : f32
    %148 = vector.broadcast %cst_79 : f32 to vector<64x128xf32>
    %149 = arith.addf %147, %148 : vector<64x128xf32>
    %150 = arith.mulf %149, %122 : vector<64x128xf32>
    %cst_80 = arith.constant -0.00737332925 : f32
    %151 = vector.broadcast %cst_80 : f32 to vector<64x128xf32>
    %152 = arith.addf %150, %151 : vector<64x128xf32>
    %153 = arith.mulf %152, %122 : vector<64x128xf32>
    %cst_81 = arith.constant -0.0142647391 : f32
    %154 = vector.broadcast %cst_81 : f32 to vector<64x128xf32>
    %155 = arith.addf %153, %154 : vector<64x128xf32>
    %156 = arith.divf %142, %155 : vector<64x128xf32>
    %cst_82 = arith.constant 1.000000e+00 : f32
    %157 = vector.broadcast %cst_82 : f32 to vector<64x128xf32>
    %158 = arith.addf %157, %156 : vector<64x128xf32>
    %159 = arith.mulf %115, %158 : vector<64x128xf32>
    %c0_83 = arith.constant 0 : index
    %c0_84 = arith.constant 0 : index
    %c0_85 = arith.constant 0 : index
    %160 = vector.load %arg13[%c0_83, %c0_84, %c0_85] : memref<4x128x32xf32, #tpu.memory_space<vmem>>, vector<1x128x32xf32>
    %161 = vector.shape_cast %160 : vector<1x128x32xf32> to vector<128x32xf32>
    %cst_86 = arith.constant dense<0.000000e+00> : vector<64x32xf32>
    %162 = tpu.matmul %159, %161, %cst_86 {dimension_numbers = #tpu.dot_dimension_numbers<[1], [0], [0], [1], [0, 0, 1, 1], [], []>} : vector<64x128xf32>, vector<128x32xf32>, vector<64x32xf32> -> vector<64x32xf32>
    %163 = arith.addf %80, %162 : vector<64x32xf32>
    %c0_87 = arith.constant 0 : index
    %c0_88 = arith.constant 0 : index
    %c0_89 = arith.constant 0 : index
    %164 = vector.load %arg14[%c0_87, %c0_88, %c0_89] : memref<4x1x32xf32, #tpu.memory_space<vmem>>, vector<1x1x32xf32>
    %165 = vector.shape_cast %164 : vector<1x1x32xf32> to vector<1x32xf32>
    %166 = vector.broadcast %165 : vector<1x32xf32> to vector<64x32xf32>
    %167 = arith.addf %163, %166 : vector<64x32xf32>
    %c1_90 = arith.constant 1 : index
    %c0_91 = arith.constant 0 : index
    %c0_92 = arith.constant 0 : index
    %168 = vector.load %arg3[%c1_90, %c0_91, %c0_92] : memref<4x1x32xf32, #tpu.memory_space<vmem>>, vector<1x1x32xf32>
    %169 = vector.shape_cast %168 : vector<1x1x32xf32> to vector<1x32xf32>
    %c1_93 = arith.constant 1 : index
    %c0_94 = arith.constant 0 : index
    %c0_95 = arith.constant 0 : index
    %170 = vector.load %arg4[%c1_93, %c0_94, %c0_95] : memref<4x1x32xf32, #tpu.memory_space<vmem>>, vector<1x1x32xf32>
    %171 = vector.shape_cast %170 : vector<1x1x32xf32> to vector<1x32xf32>
    %cst_96 = arith.constant dense<0.000000e+00> : vector<64xf32>
    %172 = vector.multi_reduction <add>, %167, %cst_96 [1] : vector<64x32xf32> to vector<64xf32>
    %173 = vector.shape_cast %172 : vector<64xf32> to vector<64x1xf32>
    %cst_97 = arith.constant 3.200000e+01 : f32
    %174 = vector.broadcast %cst_97 : f32 to vector<64x1xf32>
    %175 = arith.divf %173, %174 : vector<64x1xf32>
    %176 = vector.broadcast %175 : vector<64x1xf32> to vector<64x32xf32>
    %177 = arith.subf %167, %176 : vector<64x32xf32>
    %178 = arith.mulf %177, %177 : vector<64x32xf32>
    %cst_98 = arith.constant dense<0.000000e+00> : vector<64xf32>
    %179 = vector.multi_reduction <add>, %178, %cst_98 [1] : vector<64x32xf32> to vector<64xf32>
    %180 = vector.shape_cast %179 : vector<64xf32> to vector<64x1xf32>
    %cst_99 = arith.constant 3.200000e+01 : f32
    %181 = vector.broadcast %cst_99 : f32 to vector<64x1xf32>
    %182 = arith.divf %180, %181 : vector<64x1xf32>
    %183 = vector.broadcast %175 : vector<64x1xf32> to vector<64x32xf32>
    %184 = arith.subf %167, %183 : vector<64x32xf32>
    %cst_100 = arith.constant 9.99999974E-6 : f32
    %185 = vector.broadcast %cst_100 : f32 to vector<64x1xf32>
    %186 = arith.addf %182, %185 : vector<64x1xf32>
    %187 = math.rsqrt %186 : vector<64x1xf32>
    %188 = vector.broadcast %187 : vector<64x1xf32> to vector<64x32xf32>
    %189 = arith.mulf %184, %188 : vector<64x32xf32>
    %190 = vector.broadcast %169 : vector<1x32xf32> to vector<64x32xf32>
    %191 = arith.mulf %189, %190 : vector<64x32xf32>
    %192 = vector.broadcast %171 : vector<1x32xf32> to vector<64x32xf32>
    %193 = arith.addf %191, %192 : vector<64x32xf32>
    %c1_101 = arith.constant 1 : index
    %c0_102 = arith.constant 0 : index
    %c0_103 = arith.constant 0 : index
    %194 = vector.load %arg5[%c1_101, %c0_102, %c0_103] : memref<4x32x64xf32, #tpu.memory_space<vmem>>, vector<1x32x64xf32>
    %195 = vector.shape_cast %194 : vector<1x32x64xf32> to vector<32x64xf32>
    %cst_104 = arith.constant dense<0.000000e+00> : vector<64x64xf32>
    %196 = tpu.matmul %193, %195, %cst_104 {dimension_numbers = #tpu.dot_dimension_numbers<[1], [0], [0], [1], [0, 0, 1, 1], [], []>} : vector<64x32xf32>, vector<32x64xf32>, vector<64x64xf32> -> vector<64x64xf32>
    %c1_105 = arith.constant 1 : index
    %c0_106 = arith.constant 0 : index
    %c0_107 = arith.constant 0 : index
    %197 = vector.load %arg6[%c1_105, %c0_106, %c0_107] : memref<4x1x64xf32, #tpu.memory_space<vmem>>, vector<1x1x64xf32>
    %198 = vector.shape_cast %197 : vector<1x1x64xf32> to vector<1x64xf32>
    %199 = vector.broadcast %198 : vector<1x64xf32> to vector<64x64xf32>
    %200 = arith.addf %196, %199 : vector<64x64xf32>
    %cst_108 = arith.constant 0.000000e+00 : f32
    %201 = vector.broadcast %cst_108 : f32 to vector<64x32xf32>
    %202 = vector.extract_strided_slice %200 {offsets = [0, 0], sizes = [64, 16], strides = [1, 1]} : vector<64x64xf32> to vector<64x16xf32>
    %203 = vector.extract_strided_slice %200 {offsets = [0, 32], sizes = [64, 16], strides = [1, 1]} : vector<64x64xf32> to vector<64x16xf32>
    %cst_109 = arith.constant dense<0.000000e+00> : vector<64x64xf32>
    %204 = tpu.matmul %202, %203, %cst_109 {dimension_numbers = #tpu.dot_dimension_numbers<[1], [1], [0], [0], [0, 0, 1, 0], [], []>} : vector<64x16xf32>, vector<64x16xf32>, vector<64x64xf32> -> vector<64x64xf32>
    %c1_110 = arith.constant 1 : index
    %c0_111 = arith.constant 0 : index
    %c0_112 = arith.constant 0 : index
    %c0_113 = arith.constant 0 : index
    %205 = vector.load %arg2[%c1_110, %c0_111, %c0_112, %c0_113] : memref<4x2x64x64xf32, #tpu.memory_space<vmem>>, vector<1x1x64x64xf32>
    %206 = vector.shape_cast %205 : vector<1x1x64x64xf32> to vector<64x64xf32>
    %207 = arith.addf %204, %206 : vector<64x64xf32>
    %cst_114 = arith.constant dense<0xFF800000> : vector<64xf32>
    %208 = vector.multi_reduction <maximumf>, %207, %cst_114 [1] : vector<64x64xf32> to vector<64xf32>
    %209 = vector.shape_cast %208 : vector<64xf32> to vector<64x1xf32>
    %210 = vector.broadcast %209 : vector<64x1xf32> to vector<64x64xf32>
    %211 = arith.subf %207, %210 : vector<64x64xf32>
    %212 = math.exp %211 : vector<64x64xf32>
    %cst_115 = arith.constant dense<0.000000e+00> : vector<64xf32>
    %213 = vector.multi_reduction <add>, %212, %cst_115 [1] : vector<64x64xf32> to vector<64xf32>
    %214 = vector.shape_cast %213 : vector<64xf32> to vector<64x1xf32>
    %215 = vector.broadcast %214 : vector<64x1xf32> to vector<64x64xf32>
    %216 = arith.divf %212, %215 : vector<64x64xf32>
    %c1_116 = arith.constant 1 : index
    %c0_117 = arith.constant 0 : index
    %c0_118 = arith.constant 0 : index
    %c0_119 = arith.constant 0 : index
    %217 = vector.load %arg7[%c1_116, %c0_117, %c0_118, %c0_119] : memref<4x2x32x32xf32, #tpu.memory_space<vmem>>, vector<1x1x32x32xf32>
    %218 = vector.shape_cast %217 : vector<1x1x32x32xf32> to vector<32x32xf32>
    %cst_120 = arith.constant dense<0.000000e+00> : vector<64x32xf32>
    %219 = tpu.matmul %193, %218, %cst_120 {dimension_numbers = #tpu.dot_dimension_numbers<[1], [0], [0], [1], [0, 0, 1, 1], [], []>} : vector<64x32xf32>, vector<32x32xf32>, vector<64x32xf32> -> vector<64x32xf32>
    %cst_121 = arith.constant dense<0.000000e+00> : vector<64x32xf32>
    %220 = tpu.matmul %216, %219, %cst_121 {dimension_numbers = #tpu.dot_dimension_numbers<[1], [0], [0], [1], [0, 0, 1, 1], [], []>} : vector<64x64xf32>, vector<64x32xf32>, vector<64x32xf32> -> vector<64x32xf32>
    %221 = arith.addf %201, %220 : vector<64x32xf32>
    %222 = vector.extract_strided_slice %200 {offsets = [0, 16], sizes = [64, 16], strides = [1, 1]} : vector<64x64xf32> to vector<64x16xf32>
    %223 = vector.extract_strided_slice %200 {offsets = [0, 48], sizes = [64, 16], strides = [1, 1]} : vector<64x64xf32> to vector<64x16xf32>
    %cst_122 = arith.constant dense<0.000000e+00> : vector<64x64xf32>
    %224 = tpu.matmul %222, %223, %cst_122 {dimension_numbers = #tpu.dot_dimension_numbers<[1], [1], [0], [0], [0, 0, 1, 0], [], []>} : vector<64x16xf32>, vector<64x16xf32>, vector<64x64xf32> -> vector<64x64xf32>
    %c1_123 = arith.constant 1 : index
    %c1_124 = arith.constant 1 : index
    %c0_125 = arith.constant 0 : index
    %c0_126 = arith.constant 0 : index
    %225 = vector.load %arg2[%c1_123, %c1_124, %c0_125, %c0_126] : memref<4x2x64x64xf32, #tpu.memory_space<vmem>>, vector<1x1x64x64xf32>
    %226 = vector.shape_cast %225 : vector<1x1x64x64xf32> to vector<64x64xf32>
    %227 = arith.addf %224, %226 : vector<64x64xf32>
    %cst_127 = arith.constant dense<0xFF800000> : vector<64xf32>
    %228 = vector.multi_reduction <maximumf>, %227, %cst_127 [1] : vector<64x64xf32> to vector<64xf32>
    %229 = vector.shape_cast %228 : vector<64xf32> to vector<64x1xf32>
    %230 = vector.broadcast %229 : vector<64x1xf32> to vector<64x64xf32>
    %231 = arith.subf %227, %230 : vector<64x64xf32>
    %232 = math.exp %231 : vector<64x64xf32>
    %cst_128 = arith.constant dense<0.000000e+00> : vector<64xf32>
    %233 = vector.multi_reduction <add>, %232, %cst_128 [1] : vector<64x64xf32> to vector<64xf32>
    %234 = vector.shape_cast %233 : vector<64xf32> to vector<64x1xf32>
    %235 = vector.broadcast %234 : vector<64x1xf32> to vector<64x64xf32>
    %236 = arith.divf %232, %235 : vector<64x64xf32>
    %c1_129 = arith.constant 1 : index
    %c1_130 = arith.constant 1 : index
    %c0_131 = arith.constant 0 : index
    %c0_132 = arith.constant 0 : index
    %237 = vector.load %arg7[%c1_129, %c1_130, %c0_131, %c0_132] : memref<4x2x32x32xf32, #tpu.memory_space<vmem>>, vector<1x1x32x32xf32>
    %238 = vector.shape_cast %237 : vector<1x1x32x32xf32> to vector<32x32xf32>
    %cst_133 = arith.constant dense<0.000000e+00> : vector<64x32xf32>
    %239 = tpu.matmul %193, %238, %cst_133 {dimension_numbers = #tpu.dot_dimension_numbers<[1], [0], [0], [1], [0, 0, 1, 1], [], []>} : vector<64x32xf32>, vector<32x32xf32>, vector<64x32xf32> -> vector<64x32xf32>
    %cst_134 = arith.constant dense<0.000000e+00> : vector<64x32xf32>
    %240 = tpu.matmul %236, %239, %cst_134 {dimension_numbers = #tpu.dot_dimension_numbers<[1], [0], [0], [1], [0, 0, 1, 1], [], []>} : vector<64x64xf32>, vector<64x32xf32>, vector<64x32xf32> -> vector<64x32xf32>
    %241 = arith.addf %221, %240 : vector<64x32xf32>
    %242 = arith.addf %167, %241 : vector<64x32xf32>
    %c1_135 = arith.constant 1 : index
    %c0_136 = arith.constant 0 : index
    %c0_137 = arith.constant 0 : index
    %243 = vector.load %arg8[%c1_135, %c0_136, %c0_137] : memref<4x1x32xf32, #tpu.memory_space<vmem>>, vector<1x1x32xf32>
    %244 = vector.shape_cast %243 : vector<1x1x32xf32> to vector<1x32xf32>
    %245 = vector.broadcast %244 : vector<1x32xf32> to vector<64x32xf32>
    %246 = arith.addf %242, %245 : vector<64x32xf32>
    %c1_138 = arith.constant 1 : index
    %c0_139 = arith.constant 0 : index
    %c0_140 = arith.constant 0 : index
    %247 = vector.load %arg9[%c1_138, %c0_139, %c0_140] : memref<4x1x32xf32, #tpu.memory_space<vmem>>, vector<1x1x32xf32>
    %248 = vector.shape_cast %247 : vector<1x1x32xf32> to vector<1x32xf32>
    %c1_141 = arith.constant 1 : index
    %c0_142 = arith.constant 0 : index
    %c0_143 = arith.constant 0 : index
    %249 = vector.load %arg10[%c1_141, %c0_142, %c0_143] : memref<4x1x32xf32, #tpu.memory_space<vmem>>, vector<1x1x32xf32>
    %250 = vector.shape_cast %249 : vector<1x1x32xf32> to vector<1x32xf32>
    %cst_144 = arith.constant dense<0.000000e+00> : vector<64xf32>
    %251 = vector.multi_reduction <add>, %246, %cst_144 [1] : vector<64x32xf32> to vector<64xf32>
    %252 = vector.shape_cast %251 : vector<64xf32> to vector<64x1xf32>
    %cst_145 = arith.constant 3.200000e+01 : f32
    %253 = vector.broadcast %cst_145 : f32 to vector<64x1xf32>
    %254 = arith.divf %252, %253 : vector<64x1xf32>
    %255 = vector.broadcast %254 : vector<64x1xf32> to vector<64x32xf32>
    %256 = arith.subf %246, %255 : vector<64x32xf32>
    %257 = arith.mulf %256, %256 : vector<64x32xf32>
    %cst_146 = arith.constant dense<0.000000e+00> : vector<64xf32>
    %258 = vector.multi_reduction <add>, %257, %cst_146 [1] : vector<64x32xf32> to vector<64xf32>
    %259 = vector.shape_cast %258 : vector<64xf32> to vector<64x1xf32>
    %cst_147 = arith.constant 3.200000e+01 : f32
    %260 = vector.broadcast %cst_147 : f32 to vector<64x1xf32>
    %261 = arith.divf %259, %260 : vector<64x1xf32>
    %262 = vector.broadcast %254 : vector<64x1xf32> to vector<64x32xf32>
    %263 = arith.subf %246, %262 : vector<64x32xf32>
    %cst_148 = arith.constant 9.99999974E-6 : f32
    %264 = vector.broadcast %cst_148 : f32 to vector<64x1xf32>
    %265 = arith.addf %261, %264 : vector<64x1xf32>
    %266 = math.rsqrt %265 : vector<64x1xf32>
    %267 = vector.broadcast %266 : vector<64x1xf32> to vector<64x32xf32>
    %268 = arith.mulf %263, %267 : vector<64x32xf32>
    %269 = vector.broadcast %248 : vector<1x32xf32> to vector<64x32xf32>
    %270 = arith.mulf %268, %269 : vector<64x32xf32>
    %271 = vector.broadcast %250 : vector<1x32xf32> to vector<64x32xf32>
    %272 = arith.addf %270, %271 : vector<64x32xf32>
    %c1_149 = arith.constant 1 : index
    %c0_150 = arith.constant 0 : index
    %c0_151 = arith.constant 0 : index
    %273 = vector.load %arg11[%c1_149, %c0_150, %c0_151] : memref<4x32x128xf32, #tpu.memory_space<vmem>>, vector<1x32x128xf32>
    %274 = vector.shape_cast %273 : vector<1x32x128xf32> to vector<32x128xf32>
    %cst_152 = arith.constant dense<0.000000e+00> : vector<64x128xf32>
    %275 = tpu.matmul %272, %274, %cst_152 {dimension_numbers = #tpu.dot_dimension_numbers<[1], [0], [0], [1], [0, 0, 1, 1], [], []>} : vector<64x32xf32>, vector<32x128xf32>, vector<64x128xf32> -> vector<64x128xf32>
    %c1_153 = arith.constant 1 : index
    %c0_154 = arith.constant 0 : index
    %c0_155 = arith.constant 0 : index
    %276 = vector.load %arg12[%c1_153, %c0_154, %c0_155] : memref<4x1x128xf32, #tpu.memory_space<vmem>>, vector<1x1x128xf32>
    %277 = vector.shape_cast %276 : vector<1x1x128xf32> to vector<1x128xf32>
    %278 = vector.broadcast %277 : vector<1x128xf32> to vector<64x128xf32>
    %279 = arith.addf %275, %278 : vector<64x128xf32>
    %cst_156 = arith.constant 5.000000e-01 : f32
    %280 = vector.broadcast %cst_156 : f32 to vector<64x128xf32>
    %281 = arith.mulf %280, %279 : vector<64x128xf32>
    %cst_157 = arith.constant 0.707106769 : f32
    %282 = vector.broadcast %cst_157 : f32 to vector<64x128xf32>
    %283 = arith.mulf %279, %282 : vector<64x128xf32>
    %cst_158 = arith.constant -4.000000e+00 : f32
    %cst_159 = arith.constant 4.000000e+00 : f32
    %284 = vector.broadcast %cst_158 : f32 to vector<64x128xf32>
    %285 = arith.maximumf %284, %283 : vector<64x128xf32>
    %286 = vector.broadcast %cst_159 : f32 to vector<64x128xf32>
    %287 = arith.minimumf %286, %285 : vector<64x128xf32>
    %288 = arith.mulf %287, %287 : vector<64x128xf32>
    %cst_160 = arith.constant -2.72614237E-10 : f32
    %289 = vector.broadcast %cst_160 : f32 to vector<64x128xf32>
    %290 = arith.mulf %289, %288 : vector<64x128xf32>
    %cst_161 = arith.constant 2.77068146E-8 : f32
    %291 = vector.broadcast %cst_161 : f32 to vector<64x128xf32>
    %292 = arith.addf %290, %291 : vector<64x128xf32>
    %293 = arith.mulf %292, %288 : vector<64x128xf32>
    %cst_162 = arith.constant -2.10102394E-6 : f32
    %294 = vector.broadcast %cst_162 : f32 to vector<64x128xf32>
    %295 = arith.addf %293, %294 : vector<64x128xf32>
    %296 = arith.mulf %295, %288 : vector<64x128xf32>
    %cst_163 = arith.constant -5.69250624E-5 : f32
    %297 = vector.broadcast %cst_163 : f32 to vector<64x128xf32>
    %298 = arith.addf %296, %297 : vector<64x128xf32>
    %299 = arith.mulf %298, %288 : vector<64x128xf32>
    %cst_164 = arith.constant -7.34990637E-4 : f32
    %300 = vector.broadcast %cst_164 : f32 to vector<64x128xf32>
    %301 = arith.addf %299, %300 : vector<64x128xf32>
    %302 = arith.mulf %301, %288 : vector<64x128xf32>
    %cst_165 = arith.constant -2.954600e-03 : f32
    %303 = vector.broadcast %cst_165 : f32 to vector<64x128xf32>
    %304 = arith.addf %302, %303 : vector<64x128xf32>
    %305 = arith.mulf %304, %288 : vector<64x128xf32>
    %cst_166 = arith.constant -0.0160960332 : f32
    %306 = vector.broadcast %cst_166 : f32 to vector<64x128xf32>
    %307 = arith.addf %305, %306 : vector<64x128xf32>
    %308 = arith.mulf %307, %287 : vector<64x128xf32>
    %cst_167 = arith.constant -1.45660715E-5 : f32
    %309 = vector.broadcast %cst_167 : f32 to vector<64x128xf32>
    %310 = arith.mulf %309, %288 : vector<64x128xf32>
    %cst_168 = arith.constant -2.13374049E-4 : f32
    %311 = vector.broadcast %cst_168 : f32 to vector<64x128xf32>
    %312 = arith.addf %310, %311 : vector<64x128xf32>
    %313 = arith.mulf %312, %288 : vector<64x128xf32>
    %cst_169 = arith.constant -0.00168282702 : f32
    %314 = vector.broadcast %cst_169 : f32 to vector<64x128xf32>
    %315 = arith.addf %313, %314 : vector<64x128xf32>
    %316 = arith.mulf %315, %288 : vector<64x128xf32>
    %cst_170 = arith.constant -0.00737332925 : f32
    %317 = vector.broadcast %cst_170 : f32 to vector<64x128xf32>
    %318 = arith.addf %316, %317 : vector<64x128xf32>
    %319 = arith.mulf %318, %288 : vector<64x128xf32>
    %cst_171 = arith.constant -0.0142647391 : f32
    %320 = vector.broadcast %cst_171 : f32 to vector<64x128xf32>
    %321 = arith.addf %319, %320 : vector<64x128xf32>
    %322 = arith.divf %308, %321 : vector<64x128xf32>
    %cst_172 = arith.constant 1.000000e+00 : f32
    %323 = vector.broadcast %cst_172 : f32 to vector<64x128xf32>
    %324 = arith.addf %323, %322 : vector<64x128xf32>
    %325 = arith.mulf %281, %324 : vector<64x128xf32>
    %c1_173 = arith.constant 1 : index
    %c0_174 = arith.constant 0 : index
    %c0_175 = arith.constant 0 : index
    %326 = vector.load %arg13[%c1_173, %c0_174, %c0_175] : memref<4x128x32xf32, #tpu.memory_space<vmem>>, vector<1x128x32xf32>
    %327 = vector.shape_cast %326 : vector<1x128x32xf32> to vector<128x32xf32>
    %cst_176 = arith.constant dense<0.000000e+00> : vector<64x32xf32>
    %328 = tpu.matmul %325, %327, %cst_176 {dimension_numbers = #tpu.dot_dimension_numbers<[1], [0], [0], [1], [0, 0, 1, 1], [], []>} : vector<64x128xf32>, vector<128x32xf32>, vector<64x32xf32> -> vector<64x32xf32>
    %329 = arith.addf %246, %328 : vector<64x32xf32>
    %c1_177 = arith.constant 1 : index
    %c0_178 = arith.constant 0 : index
    %c0_179 = arith.constant 0 : index
    %330 = vector.load %arg14[%c1_177, %c0_178, %c0_179] : memref<4x1x32xf32, #tpu.memory_space<vmem>>, vector<1x1x32xf32>
    %331 = vector.shape_cast %330 : vector<1x1x32xf32> to vector<1x32xf32>
    %332 = vector.broadcast %331 : vector<1x32xf32> to vector<64x32xf32>
    %333 = arith.addf %329, %332 : vector<64x32xf32>
    %c2 = arith.constant 2 : index
    %c0_180 = arith.constant 0 : index
    %c0_181 = arith.constant 0 : index
    %334 = vector.load %arg3[%c2, %c0_180, %c0_181] : memref<4x1x32xf32, #tpu.memory_space<vmem>>, vector<1x1x32xf32>
    %335 = vector.shape_cast %334 : vector<1x1x32xf32> to vector<1x32xf32>
    %c2_182 = arith.constant 2 : index
    %c0_183 = arith.constant 0 : index
    %c0_184 = arith.constant 0 : index
    %336 = vector.load %arg4[%c2_182, %c0_183, %c0_184] : memref<4x1x32xf32, #tpu.memory_space<vmem>>, vector<1x1x32xf32>
    %337 = vector.shape_cast %336 : vector<1x1x32xf32> to vector<1x32xf32>
    %cst_185 = arith.constant dense<0.000000e+00> : vector<64xf32>
    %338 = vector.multi_reduction <add>, %333, %cst_185 [1] : vector<64x32xf32> to vector<64xf32>
    %339 = vector.shape_cast %338 : vector<64xf32> to vector<64x1xf32>
    %cst_186 = arith.constant 3.200000e+01 : f32
    %340 = vector.broadcast %cst_186 : f32 to vector<64x1xf32>
    %341 = arith.divf %339, %340 : vector<64x1xf32>
    %342 = vector.broadcast %341 : vector<64x1xf32> to vector<64x32xf32>
    %343 = arith.subf %333, %342 : vector<64x32xf32>
    %344 = arith.mulf %343, %343 : vector<64x32xf32>
    %cst_187 = arith.constant dense<0.000000e+00> : vector<64xf32>
    %345 = vector.multi_reduction <add>, %344, %cst_187 [1] : vector<64x32xf32> to vector<64xf32>
    %346 = vector.shape_cast %345 : vector<64xf32> to vector<64x1xf32>
    %cst_188 = arith.constant 3.200000e+01 : f32
    %347 = vector.broadcast %cst_188 : f32 to vector<64x1xf32>
    %348 = arith.divf %346, %347 : vector<64x1xf32>
    %349 = vector.broadcast %341 : vector<64x1xf32> to vector<64x32xf32>
    %350 = arith.subf %333, %349 : vector<64x32xf32>
    %cst_189 = arith.constant 9.99999974E-6 : f32
    %351 = vector.broadcast %cst_189 : f32 to vector<64x1xf32>
    %352 = arith.addf %348, %351 : vector<64x1xf32>
    %353 = math.rsqrt %352 : vector<64x1xf32>
    %354 = vector.broadcast %353 : vector<64x1xf32> to vector<64x32xf32>
    %355 = arith.mulf %350, %354 : vector<64x32xf32>
    %356 = vector.broadcast %335 : vector<1x32xf32> to vector<64x32xf32>
    %357 = arith.mulf %355, %356 : vector<64x32xf32>
    %358 = vector.broadcast %337 : vector<1x32xf32> to vector<64x32xf32>
    %359 = arith.addf %357, %358 : vector<64x32xf32>
    %c2_190 = arith.constant 2 : index
    %c0_191 = arith.constant 0 : index
    %c0_192 = arith.constant 0 : index
    %360 = vector.load %arg5[%c2_190, %c0_191, %c0_192] : memref<4x32x64xf32, #tpu.memory_space<vmem>>, vector<1x32x64xf32>
    %361 = vector.shape_cast %360 : vector<1x32x64xf32> to vector<32x64xf32>
    %cst_193 = arith.constant dense<0.000000e+00> : vector<64x64xf32>
    %362 = tpu.matmul %359, %361, %cst_193 {dimension_numbers = #tpu.dot_dimension_numbers<[1], [0], [0], [1], [0, 0, 1, 1], [], []>} : vector<64x32xf32>, vector<32x64xf32>, vector<64x64xf32> -> vector<64x64xf32>
    %c2_194 = arith.constant 2 : index
    %c0_195 = arith.constant 0 : index
    %c0_196 = arith.constant 0 : index
    %363 = vector.load %arg6[%c2_194, %c0_195, %c0_196] : memref<4x1x64xf32, #tpu.memory_space<vmem>>, vector<1x1x64xf32>
    %364 = vector.shape_cast %363 : vector<1x1x64xf32> to vector<1x64xf32>
    %365 = vector.broadcast %364 : vector<1x64xf32> to vector<64x64xf32>
    %366 = arith.addf %362, %365 : vector<64x64xf32>
    %cst_197 = arith.constant 0.000000e+00 : f32
    %367 = vector.broadcast %cst_197 : f32 to vector<64x32xf32>
    %368 = vector.extract_strided_slice %366 {offsets = [0, 0], sizes = [64, 16], strides = [1, 1]} : vector<64x64xf32> to vector<64x16xf32>
    %369 = vector.extract_strided_slice %366 {offsets = [0, 32], sizes = [64, 16], strides = [1, 1]} : vector<64x64xf32> to vector<64x16xf32>
    %cst_198 = arith.constant dense<0.000000e+00> : vector<64x64xf32>
    %370 = tpu.matmul %368, %369, %cst_198 {dimension_numbers = #tpu.dot_dimension_numbers<[1], [1], [0], [0], [0, 0, 1, 0], [], []>} : vector<64x16xf32>, vector<64x16xf32>, vector<64x64xf32> -> vector<64x64xf32>
    %c2_199 = arith.constant 2 : index
    %c0_200 = arith.constant 0 : index
    %c0_201 = arith.constant 0 : index
    %c0_202 = arith.constant 0 : index
    %371 = vector.load %arg2[%c2_199, %c0_200, %c0_201, %c0_202] : memref<4x2x64x64xf32, #tpu.memory_space<vmem>>, vector<1x1x64x64xf32>
    %372 = vector.shape_cast %371 : vector<1x1x64x64xf32> to vector<64x64xf32>
    %373 = arith.addf %370, %372 : vector<64x64xf32>
    %cst_203 = arith.constant dense<0xFF800000> : vector<64xf32>
    %374 = vector.multi_reduction <maximumf>, %373, %cst_203 [1] : vector<64x64xf32> to vector<64xf32>
    %375 = vector.shape_cast %374 : vector<64xf32> to vector<64x1xf32>
    %376 = vector.broadcast %375 : vector<64x1xf32> to vector<64x64xf32>
    %377 = arith.subf %373, %376 : vector<64x64xf32>
    %378 = math.exp %377 : vector<64x64xf32>
    %cst_204 = arith.constant dense<0.000000e+00> : vector<64xf32>
    %379 = vector.multi_reduction <add>, %378, %cst_204 [1] : vector<64x64xf32> to vector<64xf32>
    %380 = vector.shape_cast %379 : vector<64xf32> to vector<64x1xf32>
    %381 = vector.broadcast %380 : vector<64x1xf32> to vector<64x64xf32>
    %382 = arith.divf %378, %381 : vector<64x64xf32>
    %c2_205 = arith.constant 2 : index
    %c0_206 = arith.constant 0 : index
    %c0_207 = arith.constant 0 : index
    %c0_208 = arith.constant 0 : index
    %383 = vector.load %arg7[%c2_205, %c0_206, %c0_207, %c0_208] : memref<4x2x32x32xf32, #tpu.memory_space<vmem>>, vector<1x1x32x32xf32>
    %384 = vector.shape_cast %383 : vector<1x1x32x32xf32> to vector<32x32xf32>
    %cst_209 = arith.constant dense<0.000000e+00> : vector<64x32xf32>
    %385 = tpu.matmul %359, %384, %cst_209 {dimension_numbers = #tpu.dot_dimension_numbers<[1], [0], [0], [1], [0, 0, 1, 1], [], []>} : vector<64x32xf32>, vector<32x32xf32>, vector<64x32xf32> -> vector<64x32xf32>
    %cst_210 = arith.constant dense<0.000000e+00> : vector<64x32xf32>
    %386 = tpu.matmul %382, %385, %cst_210 {dimension_numbers = #tpu.dot_dimension_numbers<[1], [0], [0], [1], [0, 0, 1, 1], [], []>} : vector<64x64xf32>, vector<64x32xf32>, vector<64x32xf32> -> vector<64x32xf32>
    %387 = arith.addf %367, %386 : vector<64x32xf32>
    %388 = vector.extract_strided_slice %366 {offsets = [0, 16], sizes = [64, 16], strides = [1, 1]} : vector<64x64xf32> to vector<64x16xf32>
    %389 = vector.extract_strided_slice %366 {offsets = [0, 48], sizes = [64, 16], strides = [1, 1]} : vector<64x64xf32> to vector<64x16xf32>
    %cst_211 = arith.constant dense<0.000000e+00> : vector<64x64xf32>
    %390 = tpu.matmul %388, %389, %cst_211 {dimension_numbers = #tpu.dot_dimension_numbers<[1], [1], [0], [0], [0, 0, 1, 0], [], []>} : vector<64x16xf32>, vector<64x16xf32>, vector<64x64xf32> -> vector<64x64xf32>
    %c2_212 = arith.constant 2 : index
    %c1_213 = arith.constant 1 : index
    %c0_214 = arith.constant 0 : index
    %c0_215 = arith.constant 0 : index
    %391 = vector.load %arg2[%c2_212, %c1_213, %c0_214, %c0_215] : memref<4x2x64x64xf32, #tpu.memory_space<vmem>>, vector<1x1x64x64xf32>
    %392 = vector.shape_cast %391 : vector<1x1x64x64xf32> to vector<64x64xf32>
    %393 = arith.addf %390, %392 : vector<64x64xf32>
    %cst_216 = arith.constant dense<0xFF800000> : vector<64xf32>
    %394 = vector.multi_reduction <maximumf>, %393, %cst_216 [1] : vector<64x64xf32> to vector<64xf32>
    %395 = vector.shape_cast %394 : vector<64xf32> to vector<64x1xf32>
    %396 = vector.broadcast %395 : vector<64x1xf32> to vector<64x64xf32>
    %397 = arith.subf %393, %396 : vector<64x64xf32>
    %398 = math.exp %397 : vector<64x64xf32>
    %cst_217 = arith.constant dense<0.000000e+00> : vector<64xf32>
    %399 = vector.multi_reduction <add>, %398, %cst_217 [1] : vector<64x64xf32> to vector<64xf32>
    %400 = vector.shape_cast %399 : vector<64xf32> to vector<64x1xf32>
    %401 = vector.broadcast %400 : vector<64x1xf32> to vector<64x64xf32>
    %402 = arith.divf %398, %401 : vector<64x64xf32>
    %c2_218 = arith.constant 2 : index
    %c1_219 = arith.constant 1 : index
    %c0_220 = arith.constant 0 : index
    %c0_221 = arith.constant 0 : index
    %403 = vector.load %arg7[%c2_218, %c1_219, %c0_220, %c0_221] : memref<4x2x32x32xf32, #tpu.memory_space<vmem>>, vector<1x1x32x32xf32>
    %404 = vector.shape_cast %403 : vector<1x1x32x32xf32> to vector<32x32xf32>
    %cst_222 = arith.constant dense<0.000000e+00> : vector<64x32xf32>
    %405 = tpu.matmul %359, %404, %cst_222 {dimension_numbers = #tpu.dot_dimension_numbers<[1], [0], [0], [1], [0, 0, 1, 1], [], []>} : vector<64x32xf32>, vector<32x32xf32>, vector<64x32xf32> -> vector<64x32xf32>
    %cst_223 = arith.constant dense<0.000000e+00> : vector<64x32xf32>
    %406 = tpu.matmul %402, %405, %cst_223 {dimension_numbers = #tpu.dot_dimension_numbers<[1], [0], [0], [1], [0, 0, 1, 1], [], []>} : vector<64x64xf32>, vector<64x32xf32>, vector<64x32xf32> -> vector<64x32xf32>
    %407 = arith.addf %387, %406 : vector<64x32xf32>
    %408 = arith.addf %333, %407 : vector<64x32xf32>
    %c2_224 = arith.constant 2 : index
    %c0_225 = arith.constant 0 : index
    %c0_226 = arith.constant 0 : index
    %409 = vector.load %arg8[%c2_224, %c0_225, %c0_226] : memref<4x1x32xf32, #tpu.memory_space<vmem>>, vector<1x1x32xf32>
    %410 = vector.shape_cast %409 : vector<1x1x32xf32> to vector<1x32xf32>
    %411 = vector.broadcast %410 : vector<1x32xf32> to vector<64x32xf32>
    %412 = arith.addf %408, %411 : vector<64x32xf32>
    %c2_227 = arith.constant 2 : index
    %c0_228 = arith.constant 0 : index
    %c0_229 = arith.constant 0 : index
    %413 = vector.load %arg9[%c2_227, %c0_228, %c0_229] : memref<4x1x32xf32, #tpu.memory_space<vmem>>, vector<1x1x32xf32>
    %414 = vector.shape_cast %413 : vector<1x1x32xf32> to vector<1x32xf32>
    %c2_230 = arith.constant 2 : index
    %c0_231 = arith.constant 0 : index
    %c0_232 = arith.constant 0 : index
    %415 = vector.load %arg10[%c2_230, %c0_231, %c0_232] : memref<4x1x32xf32, #tpu.memory_space<vmem>>, vector<1x1x32xf32>
    %416 = vector.shape_cast %415 : vector<1x1x32xf32> to vector<1x32xf32>
    %cst_233 = arith.constant dense<0.000000e+00> : vector<64xf32>
    %417 = vector.multi_reduction <add>, %412, %cst_233 [1] : vector<64x32xf32> to vector<64xf32>
    %418 = vector.shape_cast %417 : vector<64xf32> to vector<64x1xf32>
    %cst_234 = arith.constant 3.200000e+01 : f32
    %419 = vector.broadcast %cst_234 : f32 to vector<64x1xf32>
    %420 = arith.divf %418, %419 : vector<64x1xf32>
    %421 = vector.broadcast %420 : vector<64x1xf32> to vector<64x32xf32>
    %422 = arith.subf %412, %421 : vector<64x32xf32>
    %423 = arith.mulf %422, %422 : vector<64x32xf32>
    %cst_235 = arith.constant dense<0.000000e+00> : vector<64xf32>
    %424 = vector.multi_reduction <add>, %423, %cst_235 [1] : vector<64x32xf32> to vector<64xf32>
    %425 = vector.shape_cast %424 : vector<64xf32> to vector<64x1xf32>
    %cst_236 = arith.constant 3.200000e+01 : f32
    %426 = vector.broadcast %cst_236 : f32 to vector<64x1xf32>
    %427 = arith.divf %425, %426 : vector<64x1xf32>
    %428 = vector.broadcast %420 : vector<64x1xf32> to vector<64x32xf32>
    %429 = arith.subf %412, %428 : vector<64x32xf32>
    %cst_237 = arith.constant 9.99999974E-6 : f32
    %430 = vector.broadcast %cst_237 : f32 to vector<64x1xf32>
    %431 = arith.addf %427, %430 : vector<64x1xf32>
    %432 = math.rsqrt %431 : vector<64x1xf32>
    %433 = vector.broadcast %432 : vector<64x1xf32> to vector<64x32xf32>
    %434 = arith.mulf %429, %433 : vector<64x32xf32>
    %435 = vector.broadcast %414 : vector<1x32xf32> to vector<64x32xf32>
    %436 = arith.mulf %434, %435 : vector<64x32xf32>
    %437 = vector.broadcast %416 : vector<1x32xf32> to vector<64x32xf32>
    %438 = arith.addf %436, %437 : vector<64x32xf32>
    %c2_238 = arith.constant 2 : index
    %c0_239 = arith.constant 0 : index
    %c0_240 = arith.constant 0 : index
    %439 = vector.load %arg11[%c2_238, %c0_239, %c0_240] : memref<4x32x128xf32, #tpu.memory_space<vmem>>, vector<1x32x128xf32>
    %440 = vector.shape_cast %439 : vector<1x32x128xf32> to vector<32x128xf32>
    %cst_241 = arith.constant dense<0.000000e+00> : vector<64x128xf32>
    %441 = tpu.matmul %438, %440, %cst_241 {dimension_numbers = #tpu.dot_dimension_numbers<[1], [0], [0], [1], [0, 0, 1, 1], [], []>} : vector<64x32xf32>, vector<32x128xf32>, vector<64x128xf32> -> vector<64x128xf32>
    %c2_242 = arith.constant 2 : index
    %c0_243 = arith.constant 0 : index
    %c0_244 = arith.constant 0 : index
    %442 = vector.load %arg12[%c2_242, %c0_243, %c0_244] : memref<4x1x128xf32, #tpu.memory_space<vmem>>, vector<1x1x128xf32>
    %443 = vector.shape_cast %442 : vector<1x1x128xf32> to vector<1x128xf32>
    %444 = vector.broadcast %443 : vector<1x128xf32> to vector<64x128xf32>
    %445 = arith.addf %441, %444 : vector<64x128xf32>
    %cst_245 = arith.constant 5.000000e-01 : f32
    %446 = vector.broadcast %cst_245 : f32 to vector<64x128xf32>
    %447 = arith.mulf %446, %445 : vector<64x128xf32>
    %cst_246 = arith.constant 0.707106769 : f32
    %448 = vector.broadcast %cst_246 : f32 to vector<64x128xf32>
    %449 = arith.mulf %445, %448 : vector<64x128xf32>
    %cst_247 = arith.constant -4.000000e+00 : f32
    %cst_248 = arith.constant 4.000000e+00 : f32
    %450 = vector.broadcast %cst_247 : f32 to vector<64x128xf32>
    %451 = arith.maximumf %450, %449 : vector<64x128xf32>
    %452 = vector.broadcast %cst_248 : f32 to vector<64x128xf32>
    %453 = arith.minimumf %452, %451 : vector<64x128xf32>
    %454 = arith.mulf %453, %453 : vector<64x128xf32>
    %cst_249 = arith.constant -2.72614237E-10 : f32
    %455 = vector.broadcast %cst_249 : f32 to vector<64x128xf32>
    %456 = arith.mulf %455, %454 : vector<64x128xf32>
    %cst_250 = arith.constant 2.77068146E-8 : f32
    %457 = vector.broadcast %cst_250 : f32 to vector<64x128xf32>
    %458 = arith.addf %456, %457 : vector<64x128xf32>
    %459 = arith.mulf %458, %454 : vector<64x128xf32>
    %cst_251 = arith.constant -2.10102394E-6 : f32
    %460 = vector.broadcast %cst_251 : f32 to vector<64x128xf32>
    %461 = arith.addf %459, %460 : vector<64x128xf32>
    %462 = arith.mulf %461, %454 : vector<64x128xf32>
    %cst_252 = arith.constant -5.69250624E-5 : f32
    %463 = vector.broadcast %cst_252 : f32 to vector<64x128xf32>
    %464 = arith.addf %462, %463 : vector<64x128xf32>
    %465 = arith.mulf %464, %454 : vector<64x128xf32>
    %cst_253 = arith.constant -7.34990637E-4 : f32
    %466 = vector.broadcast %cst_253 : f32 to vector<64x128xf32>
    %467 = arith.addf %465, %466 : vector<64x128xf32>
    %468 = arith.mulf %467, %454 : vector<64x128xf32>
    %cst_254 = arith.constant -2.954600e-03 : f32
    %469 = vector.broadcast %cst_254 : f32 to vector<64x128xf32>
    %470 = arith.addf %468, %469 : vector<64x128xf32>
    %471 = arith.mulf %470, %454 : vector<64x128xf32>
    %cst_255 = arith.constant -0.0160960332 : f32
    %472 = vector.broadcast %cst_255 : f32 to vector<64x128xf32>
    %473 = arith.addf %471, %472 : vector<64x128xf32>
    %474 = arith.mulf %473, %453 : vector<64x128xf32>
    %cst_256 = arith.constant -1.45660715E-5 : f32
    %475 = vector.broadcast %cst_256 : f32 to vector<64x128xf32>
    %476 = arith.mulf %475, %454 : vector<64x128xf32>
    %cst_257 = arith.constant -2.13374049E-4 : f32
    %477 = vector.broadcast %cst_257 : f32 to vector<64x128xf32>
    %478 = arith.addf %476, %477 : vector<64x128xf32>
    %479 = arith.mulf %478, %454 : vector<64x128xf32>
    %cst_258 = arith.constant -0.00168282702 : f32
    %480 = vector.broadcast %cst_258 : f32 to vector<64x128xf32>
    %481 = arith.addf %479, %480 : vector<64x128xf32>
    %482 = arith.mulf %481, %454 : vector<64x128xf32>
    %cst_259 = arith.constant -0.00737332925 : f32
    %483 = vector.broadcast %cst_259 : f32 to vector<64x128xf32>
    %484 = arith.addf %482, %483 : vector<64x128xf32>
    %485 = arith.mulf %484, %454 : vector<64x128xf32>
    %cst_260 = arith.constant -0.0142647391 : f32
    %486 = vector.broadcast %cst_260 : f32 to vector<64x128xf32>
    %487 = arith.addf %485, %486 : vector<64x128xf32>
    %488 = arith.divf %474, %487 : vector<64x128xf32>
    %cst_261 = arith.constant 1.000000e+00 : f32
    %489 = vector.broadcast %cst_261 : f32 to vector<64x128xf32>
    %490 = arith.addf %489, %488 : vector<64x128xf32>
    %491 = arith.mulf %447, %490 : vector<64x128xf32>
    %c2_262 = arith.constant 2 : index
    %c0_263 = arith.constant 0 : index
    %c0_264 = arith.constant 0 : index
    %492 = vector.load %arg13[%c2_262, %c0_263, %c0_264] : memref<4x128x32xf32, #tpu.memory_space<vmem>>, vector<1x128x32xf32>
    %493 = vector.shape_cast %492 : vector<1x128x32xf32> to vector<128x32xf32>
    %cst_265 = arith.constant dense<0.000000e+00> : vector<64x32xf32>
    %494 = tpu.matmul %491, %493, %cst_265 {dimension_numbers = #tpu.dot_dimension_numbers<[1], [0], [0], [1], [0, 0, 1, 1], [], []>} : vector<64x128xf32>, vector<128x32xf32>, vector<64x32xf32> -> vector<64x32xf32>
    %495 = arith.addf %412, %494 : vector<64x32xf32>
    %c2_266 = arith.constant 2 : index
    %c0_267 = arith.constant 0 : index
    %c0_268 = arith.constant 0 : index
    %496 = vector.load %arg14[%c2_266, %c0_267, %c0_268] : memref<4x1x32xf32, #tpu.memory_space<vmem>>, vector<1x1x32xf32>
    %497 = vector.shape_cast %496 : vector<1x1x32xf32> to vector<1x32xf32>
    %498 = vector.broadcast %497 : vector<1x32xf32> to vector<64x32xf32>
    %499 = arith.addf %495, %498 : vector<64x32xf32>
    %c3 = arith.constant 3 : index
    %c0_269 = arith.constant 0 : index
    %c0_270 = arith.constant 0 : index
    %500 = vector.load %arg3[%c3, %c0_269, %c0_270] : memref<4x1x32xf32, #tpu.memory_space<vmem>>, vector<1x1x32xf32>
    %501 = vector.shape_cast %500 : vector<1x1x32xf32> to vector<1x32xf32>
    %c3_271 = arith.constant 3 : index
    %c0_272 = arith.constant 0 : index
    %c0_273 = arith.constant 0 : index
    %502 = vector.load %arg4[%c3_271, %c0_272, %c0_273] : memref<4x1x32xf32, #tpu.memory_space<vmem>>, vector<1x1x32xf32>
    %503 = vector.shape_cast %502 : vector<1x1x32xf32> to vector<1x32xf32>
    %cst_274 = arith.constant dense<0.000000e+00> : vector<64xf32>
    %504 = vector.multi_reduction <add>, %499, %cst_274 [1] : vector<64x32xf32> to vector<64xf32>
    %505 = vector.shape_cast %504 : vector<64xf32> to vector<64x1xf32>
    %cst_275 = arith.constant 3.200000e+01 : f32
    %506 = vector.broadcast %cst_275 : f32 to vector<64x1xf32>
    %507 = arith.divf %505, %506 : vector<64x1xf32>
    %508 = vector.broadcast %507 : vector<64x1xf32> to vector<64x32xf32>
    %509 = arith.subf %499, %508 : vector<64x32xf32>
    %510 = arith.mulf %509, %509 : vector<64x32xf32>
    %cst_276 = arith.constant dense<0.000000e+00> : vector<64xf32>
    %511 = vector.multi_reduction <add>, %510, %cst_276 [1] : vector<64x32xf32> to vector<64xf32>
    %512 = vector.shape_cast %511 : vector<64xf32> to vector<64x1xf32>
    %cst_277 = arith.constant 3.200000e+01 : f32
    %513 = vector.broadcast %cst_277 : f32 to vector<64x1xf32>
    %514 = arith.divf %512, %513 : vector<64x1xf32>
    %515 = vector.broadcast %507 : vector<64x1xf32> to vector<64x32xf32>
    %516 = arith.subf %499, %515 : vector<64x32xf32>
    %cst_278 = arith.constant 9.99999974E-6 : f32
    %517 = vector.broadcast %cst_278 : f32 to vector<64x1xf32>
    %518 = arith.addf %514, %517 : vector<64x1xf32>
    %519 = math.rsqrt %518 : vector<64x1xf32>
    %520 = vector.broadcast %519 : vector<64x1xf32> to vector<64x32xf32>
    %521 = arith.mulf %516, %520 : vector<64x32xf32>
    %522 = vector.broadcast %501 : vector<1x32xf32> to vector<64x32xf32>
    %523 = arith.mulf %521, %522 : vector<64x32xf32>
    %524 = vector.broadcast %503 : vector<1x32xf32> to vector<64x32xf32>
    %525 = arith.addf %523, %524 : vector<64x32xf32>
    %c3_279 = arith.constant 3 : index
    %c0_280 = arith.constant 0 : index
    %c0_281 = arith.constant 0 : index
    %526 = vector.load %arg5[%c3_279, %c0_280, %c0_281] : memref<4x32x64xf32, #tpu.memory_space<vmem>>, vector<1x32x64xf32>
    %527 = vector.shape_cast %526 : vector<1x32x64xf32> to vector<32x64xf32>
    %cst_282 = arith.constant dense<0.000000e+00> : vector<64x64xf32>
    %528 = tpu.matmul %525, %527, %cst_282 {dimension_numbers = #tpu.dot_dimension_numbers<[1], [0], [0], [1], [0, 0, 1, 1], [], []>} : vector<64x32xf32>, vector<32x64xf32>, vector<64x64xf32> -> vector<64x64xf32>
    %c3_283 = arith.constant 3 : index
    %c0_284 = arith.constant 0 : index
    %c0_285 = arith.constant 0 : index
    %529 = vector.load %arg6[%c3_283, %c0_284, %c0_285] : memref<4x1x64xf32, #tpu.memory_space<vmem>>, vector<1x1x64xf32>
    %530 = vector.shape_cast %529 : vector<1x1x64xf32> to vector<1x64xf32>
    %531 = vector.broadcast %530 : vector<1x64xf32> to vector<64x64xf32>
    %532 = arith.addf %528, %531 : vector<64x64xf32>
    %cst_286 = arith.constant 0.000000e+00 : f32
    %533 = vector.broadcast %cst_286 : f32 to vector<64x32xf32>
    %534 = vector.extract_strided_slice %532 {offsets = [0, 0], sizes = [64, 16], strides = [1, 1]} : vector<64x64xf32> to vector<64x16xf32>
    %535 = vector.extract_strided_slice %532 {offsets = [0, 32], sizes = [64, 16], strides = [1, 1]} : vector<64x64xf32> to vector<64x16xf32>
    %cst_287 = arith.constant dense<0.000000e+00> : vector<64x64xf32>
    %536 = tpu.matmul %534, %535, %cst_287 {dimension_numbers = #tpu.dot_dimension_numbers<[1], [1], [0], [0], [0, 0, 1, 0], [], []>} : vector<64x16xf32>, vector<64x16xf32>, vector<64x64xf32> -> vector<64x64xf32>
    %c3_288 = arith.constant 3 : index
    %c0_289 = arith.constant 0 : index
    %c0_290 = arith.constant 0 : index
    %c0_291 = arith.constant 0 : index
    %537 = vector.load %arg2[%c3_288, %c0_289, %c0_290, %c0_291] : memref<4x2x64x64xf32, #tpu.memory_space<vmem>>, vector<1x1x64x64xf32>
    %538 = vector.shape_cast %537 : vector<1x1x64x64xf32> to vector<64x64xf32>
    %539 = arith.addf %536, %538 : vector<64x64xf32>
    %cst_292 = arith.constant dense<0xFF800000> : vector<64xf32>
    %540 = vector.multi_reduction <maximumf>, %539, %cst_292 [1] : vector<64x64xf32> to vector<64xf32>
    %541 = vector.shape_cast %540 : vector<64xf32> to vector<64x1xf32>
    %542 = vector.broadcast %541 : vector<64x1xf32> to vector<64x64xf32>
    %543 = arith.subf %539, %542 : vector<64x64xf32>
    %544 = math.exp %543 : vector<64x64xf32>
    %cst_293 = arith.constant dense<0.000000e+00> : vector<64xf32>
    %545 = vector.multi_reduction <add>, %544, %cst_293 [1] : vector<64x64xf32> to vector<64xf32>
    %546 = vector.shape_cast %545 : vector<64xf32> to vector<64x1xf32>
    %547 = vector.broadcast %546 : vector<64x1xf32> to vector<64x64xf32>
    %548 = arith.divf %544, %547 : vector<64x64xf32>
    %c3_294 = arith.constant 3 : index
    %c0_295 = arith.constant 0 : index
    %c0_296 = arith.constant 0 : index
    %c0_297 = arith.constant 0 : index
    %549 = vector.load %arg7[%c3_294, %c0_295, %c0_296, %c0_297] : memref<4x2x32x32xf32, #tpu.memory_space<vmem>>, vector<1x1x32x32xf32>
    %550 = vector.shape_cast %549 : vector<1x1x32x32xf32> to vector<32x32xf32>
    %cst_298 = arith.constant dense<0.000000e+00> : vector<64x32xf32>
    %551 = tpu.matmul %525, %550, %cst_298 {dimension_numbers = #tpu.dot_dimension_numbers<[1], [0], [0], [1], [0, 0, 1, 1], [], []>} : vector<64x32xf32>, vector<32x32xf32>, vector<64x32xf32> -> vector<64x32xf32>
    %cst_299 = arith.constant dense<0.000000e+00> : vector<64x32xf32>
    %552 = tpu.matmul %548, %551, %cst_299 {dimension_numbers = #tpu.dot_dimension_numbers<[1], [0], [0], [1], [0, 0, 1, 1], [], []>} : vector<64x64xf32>, vector<64x32xf32>, vector<64x32xf32> -> vector<64x32xf32>
    %553 = arith.addf %533, %552 : vector<64x32xf32>
    %554 = vector.extract_strided_slice %532 {offsets = [0, 16], sizes = [64, 16], strides = [1, 1]} : vector<64x64xf32> to vector<64x16xf32>
    %555 = vector.extract_strided_slice %532 {offsets = [0, 48], sizes = [64, 16], strides = [1, 1]} : vector<64x64xf32> to vector<64x16xf32>
    %cst_300 = arith.constant dense<0.000000e+00> : vector<64x64xf32>
    %556 = tpu.matmul %554, %555, %cst_300 {dimension_numbers = #tpu.dot_dimension_numbers<[1], [1], [0], [0], [0, 0, 1, 0], [], []>} : vector<64x16xf32>, vector<64x16xf32>, vector<64x64xf32> -> vector<64x64xf32>
    %c3_301 = arith.constant 3 : index
    %c1_302 = arith.constant 1 : index
    %c0_303 = arith.constant 0 : index
    %c0_304 = arith.constant 0 : index
    %557 = vector.load %arg2[%c3_301, %c1_302, %c0_303, %c0_304] : memref<4x2x64x64xf32, #tpu.memory_space<vmem>>, vector<1x1x64x64xf32>
    %558 = vector.shape_cast %557 : vector<1x1x64x64xf32> to vector<64x64xf32>
    %559 = arith.addf %556, %558 : vector<64x64xf32>
    %cst_305 = arith.constant dense<0xFF800000> : vector<64xf32>
    %560 = vector.multi_reduction <maximumf>, %559, %cst_305 [1] : vector<64x64xf32> to vector<64xf32>
    %561 = vector.shape_cast %560 : vector<64xf32> to vector<64x1xf32>
    %562 = vector.broadcast %561 : vector<64x1xf32> to vector<64x64xf32>
    %563 = arith.subf %559, %562 : vector<64x64xf32>
    %564 = math.exp %563 : vector<64x64xf32>
    %cst_306 = arith.constant dense<0.000000e+00> : vector<64xf32>
    %565 = vector.multi_reduction <add>, %564, %cst_306 [1] : vector<64x64xf32> to vector<64xf32>
    %566 = vector.shape_cast %565 : vector<64xf32> to vector<64x1xf32>
    %567 = vector.broadcast %566 : vector<64x1xf32> to vector<64x64xf32>
    %568 = arith.divf %564, %567 : vector<64x64xf32>
    %c3_307 = arith.constant 3 : index
    %c1_308 = arith.constant 1 : index
    %c0_309 = arith.constant 0 : index
    %c0_310 = arith.constant 0 : index
    %569 = vector.load %arg7[%c3_307, %c1_308, %c0_309, %c0_310] : memref<4x2x32x32xf32, #tpu.memory_space<vmem>>, vector<1x1x32x32xf32>
    %570 = vector.shape_cast %569 : vector<1x1x32x32xf32> to vector<32x32xf32>
    %cst_311 = arith.constant dense<0.000000e+00> : vector<64x32xf32>
    %571 = tpu.matmul %525, %570, %cst_311 {dimension_numbers = #tpu.dot_dimension_numbers<[1], [0], [0], [1], [0, 0, 1, 1], [], []>} : vector<64x32xf32>, vector<32x32xf32>, vector<64x32xf32> -> vector<64x32xf32>
    %cst_312 = arith.constant dense<0.000000e+00> : vector<64x32xf32>
    %572 = tpu.matmul %568, %571, %cst_312 {dimension_numbers = #tpu.dot_dimension_numbers<[1], [0], [0], [1], [0, 0, 1, 1], [], []>} : vector<64x64xf32>, vector<64x32xf32>, vector<64x32xf32> -> vector<64x32xf32>
    %573 = arith.addf %553, %572 : vector<64x32xf32>
    %574 = arith.addf %499, %573 : vector<64x32xf32>
    %c3_313 = arith.constant 3 : index
    %c0_314 = arith.constant 0 : index
    %c0_315 = arith.constant 0 : index
    %575 = vector.load %arg8[%c3_313, %c0_314, %c0_315] : memref<4x1x32xf32, #tpu.memory_space<vmem>>, vector<1x1x32xf32>
    %576 = vector.shape_cast %575 : vector<1x1x32xf32> to vector<1x32xf32>
    %577 = vector.broadcast %576 : vector<1x32xf32> to vector<64x32xf32>
    %578 = arith.addf %574, %577 : vector<64x32xf32>
    %c3_316 = arith.constant 3 : index
    %c0_317 = arith.constant 0 : index
    %c0_318 = arith.constant 0 : index
    %579 = vector.load %arg9[%c3_316, %c0_317, %c0_318] : memref<4x1x32xf32, #tpu.memory_space<vmem>>, vector<1x1x32xf32>
    %580 = vector.shape_cast %579 : vector<1x1x32xf32> to vector<1x32xf32>
    %c3_319 = arith.constant 3 : index
    %c0_320 = arith.constant 0 : index
    %c0_321 = arith.constant 0 : index
    %581 = vector.load %arg10[%c3_319, %c0_320, %c0_321] : memref<4x1x32xf32, #tpu.memory_space<vmem>>, vector<1x1x32xf32>
    %582 = vector.shape_cast %581 : vector<1x1x32xf32> to vector<1x32xf32>
    %cst_322 = arith.constant dense<0.000000e+00> : vector<64xf32>
    %583 = vector.multi_reduction <add>, %578, %cst_322 [1] : vector<64x32xf32> to vector<64xf32>
    %584 = vector.shape_cast %583 : vector<64xf32> to vector<64x1xf32>
    %cst_323 = arith.constant 3.200000e+01 : f32
    %585 = vector.broadcast %cst_323 : f32 to vector<64x1xf32>
    %586 = arith.divf %584, %585 : vector<64x1xf32>
    %587 = vector.broadcast %586 : vector<64x1xf32> to vector<64x32xf32>
    %588 = arith.subf %578, %587 : vector<64x32xf32>
    %589 = arith.mulf %588, %588 : vector<64x32xf32>
    %cst_324 = arith.constant dense<0.000000e+00> : vector<64xf32>
    %590 = vector.multi_reduction <add>, %589, %cst_324 [1] : vector<64x32xf32> to vector<64xf32>
    %591 = vector.shape_cast %590 : vector<64xf32> to vector<64x1xf32>
    %cst_325 = arith.constant 3.200000e+01 : f32
    %592 = vector.broadcast %cst_325 : f32 to vector<64x1xf32>
    %593 = arith.divf %591, %592 : vector<64x1xf32>
    %594 = vector.broadcast %586 : vector<64x1xf32> to vector<64x32xf32>
    %595 = arith.subf %578, %594 : vector<64x32xf32>
    %cst_326 = arith.constant 9.99999974E-6 : f32
    %596 = vector.broadcast %cst_326 : f32 to vector<64x1xf32>
    %597 = arith.addf %593, %596 : vector<64x1xf32>
    %598 = math.rsqrt %597 : vector<64x1xf32>
    %599 = vector.broadcast %598 : vector<64x1xf32> to vector<64x32xf32>
    %600 = arith.mulf %595, %599 : vector<64x32xf32>
    %601 = vector.broadcast %580 : vector<1x32xf32> to vector<64x32xf32>
    %602 = arith.mulf %600, %601 : vector<64x32xf32>
    %603 = vector.broadcast %582 : vector<1x32xf32> to vector<64x32xf32>
    %604 = arith.addf %602, %603 : vector<64x32xf32>
    %c3_327 = arith.constant 3 : index
    %c0_328 = arith.constant 0 : index
    %c0_329 = arith.constant 0 : index
    %605 = vector.load %arg11[%c3_327, %c0_328, %c0_329] : memref<4x32x128xf32, #tpu.memory_space<vmem>>, vector<1x32x128xf32>
    %606 = vector.shape_cast %605 : vector<1x32x128xf32> to vector<32x128xf32>
    %cst_330 = arith.constant dense<0.000000e+00> : vector<64x128xf32>
    %607 = tpu.matmul %604, %606, %cst_330 {dimension_numbers = #tpu.dot_dimension_numbers<[1], [0], [0], [1], [0, 0, 1, 1], [], []>} : vector<64x32xf32>, vector<32x128xf32>, vector<64x128xf32> -> vector<64x128xf32>
    %c3_331 = arith.constant 3 : index
    %c0_332 = arith.constant 0 : index
    %c0_333 = arith.constant 0 : index
    %608 = vector.load %arg12[%c3_331, %c0_332, %c0_333] : memref<4x1x128xf32, #tpu.memory_space<vmem>>, vector<1x1x128xf32>
    %609 = vector.shape_cast %608 : vector<1x1x128xf32> to vector<1x128xf32>
    %610 = vector.broadcast %609 : vector<1x128xf32> to vector<64x128xf32>
    %611 = arith.addf %607, %610 : vector<64x128xf32>
    %cst_334 = arith.constant 5.000000e-01 : f32
    %612 = vector.broadcast %cst_334 : f32 to vector<64x128xf32>
    %613 = arith.mulf %612, %611 : vector<64x128xf32>
    %cst_335 = arith.constant 0.707106769 : f32
    %614 = vector.broadcast %cst_335 : f32 to vector<64x128xf32>
    %615 = arith.mulf %611, %614 : vector<64x128xf32>
    %cst_336 = arith.constant -4.000000e+00 : f32
    %cst_337 = arith.constant 4.000000e+00 : f32
    %616 = vector.broadcast %cst_336 : f32 to vector<64x128xf32>
    %617 = arith.maximumf %616, %615 : vector<64x128xf32>
    %618 = vector.broadcast %cst_337 : f32 to vector<64x128xf32>
    %619 = arith.minimumf %618, %617 : vector<64x128xf32>
    %620 = arith.mulf %619, %619 : vector<64x128xf32>
    %cst_338 = arith.constant -2.72614237E-10 : f32
    %621 = vector.broadcast %cst_338 : f32 to vector<64x128xf32>
    %622 = arith.mulf %621, %620 : vector<64x128xf32>
    %cst_339 = arith.constant 2.77068146E-8 : f32
    %623 = vector.broadcast %cst_339 : f32 to vector<64x128xf32>
    %624 = arith.addf %622, %623 : vector<64x128xf32>
    %625 = arith.mulf %624, %620 : vector<64x128xf32>
    %cst_340 = arith.constant -2.10102394E-6 : f32
    %626 = vector.broadcast %cst_340 : f32 to vector<64x128xf32>
    %627 = arith.addf %625, %626 : vector<64x128xf32>
    %628 = arith.mulf %627, %620 : vector<64x128xf32>
    %cst_341 = arith.constant -5.69250624E-5 : f32
    %629 = vector.broadcast %cst_341 : f32 to vector<64x128xf32>
    %630 = arith.addf %628, %629 : vector<64x128xf32>
    %631 = arith.mulf %630, %620 : vector<64x128xf32>
    %cst_342 = arith.constant -7.34990637E-4 : f32
    %632 = vector.broadcast %cst_342 : f32 to vector<64x128xf32>
    %633 = arith.addf %631, %632 : vector<64x128xf32>
    %634 = arith.mulf %633, %620 : vector<64x128xf32>
    %cst_343 = arith.constant -2.954600e-03 : f32
    %635 = vector.broadcast %cst_343 : f32 to vector<64x128xf32>
    %636 = arith.addf %634, %635 : vector<64x128xf32>
    %637 = arith.mulf %636, %620 : vector<64x128xf32>
    %cst_344 = arith.constant -0.0160960332 : f32
    %638 = vector.broadcast %cst_344 : f32 to vector<64x128xf32>
    %639 = arith.addf %637, %638 : vector<64x128xf32>
    %640 = arith.mulf %639, %619 : vector<64x128xf32>
    %cst_345 = arith.constant -1.45660715E-5 : f32
    %641 = vector.broadcast %cst_345 : f32 to vector<64x128xf32>
    %642 = arith.mulf %641, %620 : vector<64x128xf32>
    %cst_346 = arith.constant -2.13374049E-4 : f32
    %643 = vector.broadcast %cst_346 : f32 to vector<64x128xf32>
    %644 = arith.addf %642, %643 : vector<64x128xf32>
    %645 = arith.mulf %644, %620 : vector<64x128xf32>
    %cst_347 = arith.constant -0.00168282702 : f32
    %646 = vector.broadcast %cst_347 : f32 to vector<64x128xf32>
    %647 = arith.addf %645, %646 : vector<64x128xf32>
    %648 = arith.mulf %647, %620 : vector<64x128xf32>
    %cst_348 = arith.constant -0.00737332925 : f32
    %649 = vector.broadcast %cst_348 : f32 to vector<64x128xf32>
    %650 = arith.addf %648, %649 : vector<64x128xf32>
    %651 = arith.mulf %650, %620 : vector<64x128xf32>
    %cst_349 = arith.constant -0.0142647391 : f32
    %652 = vector.broadcast %cst_349 : f32 to vector<64x128xf32>
    %653 = arith.addf %651, %652 : vector<64x128xf32>
    %654 = arith.divf %640, %653 : vector<64x128xf32>
    %cst_350 = arith.constant 1.000000e+00 : f32
    %655 = vector.broadcast %cst_350 : f32 to vector<64x128xf32>
    %656 = arith.addf %655, %654 : vector<64x128xf32>
    %657 = arith.mulf %613, %656 : vector<64x128xf32>
    %c3_351 = arith.constant 3 : index
    %c0_352 = arith.constant 0 : index
    %c0_353 = arith.constant 0 : index
    %658 = vector.load %arg13[%c3_351, %c0_352, %c0_353] : memref<4x128x32xf32, #tpu.memory_space<vmem>>, vector<1x128x32xf32>
    %659 = vector.shape_cast %658 : vector<1x128x32xf32> to vector<128x32xf32>
    %cst_354 = arith.constant dense<0.000000e+00> : vector<64x32xf32>
    %660 = tpu.matmul %657, %659, %cst_354 {dimension_numbers = #tpu.dot_dimension_numbers<[1], [0], [0], [1], [0, 0, 1, 1], [], []>} : vector<64x128xf32>, vector<128x32xf32>, vector<64x32xf32> -> vector<64x32xf32>
    %661 = arith.addf %578, %660 : vector<64x32xf32>
    %c3_355 = arith.constant 3 : index
    %c0_356 = arith.constant 0 : index
    %c0_357 = arith.constant 0 : index
    %662 = vector.load %arg14[%c3_355, %c0_356, %c0_357] : memref<4x1x32xf32, #tpu.memory_space<vmem>>, vector<1x1x32xf32>
    %663 = vector.shape_cast %662 : vector<1x1x32xf32> to vector<1x32xf32>
    %664 = vector.broadcast %663 : vector<1x32xf32> to vector<64x32xf32>
    %665 = arith.addf %661, %664 : vector<64x32xf32>
    %cst_358 = arith.constant 2.000000e-01 : f32
    %666 = vector.broadcast %cst_358 : f32 to vector<64x32xf32>
    %667 = arith.mulf %665, %666 : vector<64x32xf32>
    %668 = arith.addf %667, %1 : vector<64x32xf32>
    %c0_359 = arith.constant 0 : index
    %c0_360 = arith.constant 0 : index
    %c0_361 = arith.constant 0 : index
    %669 = vector.load %arg15[%c0_359, %c0_360, %c0_361] : memref<1x64x32xf32, #tpu.memory_space<vmem>>, vector<1x64x32xf32>
    %670 = vector.shape_cast %669 : vector<1x64x32xf32> to vector<64x32xf32>
    %671 = vector.shape_cast %668 : vector<64x32xf32> to vector<1x64x32xf32>
    tpu.vector_store %arg15[%c0_359, %c0_360, %c0_361], %671 {strides = array<i32>} : memref<1x64x32xf32, #tpu.memory_space<vmem>>, vector<1x64x32xf32>,
    return
  }
  func.func @transform_0(%arg0: i32) -> (i32, i32, i32) {
    %c0_i32 = arith.constant 0 : i32
    %c0_i32_0 = arith.constant 0 : i32
    %c0_i32_1 = arith.constant 0 : i32
    return %arg0, %c0_i32, %c0_i32_0 : i32, i32, i32
  }
  func.func @transform_1(%arg0: i32) -> (i32, i32, i32, i32) {
    %c0_i32 = arith.constant 0 : i32
    %c0_i32_0 = arith.constant 0 : i32
    %c0_i32_1 = arith.constant 0 : i32
    %c0_i32_2 = arith.constant 0 : i32
    %c0_i32_3 = arith.constant 0 : i32
    return %c0_i32, %c0_i32_0, %c0_i32_1, %c0_i32_2 : i32, i32, i32, i32
  }
  func.func @transform_2(%arg0: i32) -> (i32, i32, i32) {
    %c0_i32 = arith.constant 0 : i32
    %c0_i32_0 = arith.constant 0 : i32
    %c0_i32_1 = arith.constant 0 : i32
    %c0_i32_2 = arith.constant 0 : i32
    return %c0_i32, %c0_i32_0, %c0_i32_1 : i32, i32, i32
  }
  func.func @transform_3(%arg0: i32) -> (i32, i32, i32) {
    %c0_i32 = arith.constant 0 : i32
    %c0_i32_0 = arith.constant 0 : i32
    %c0_i32_1 = arith.constant 0 : i32
    %c0_i32_2 = arith.constant 0 : i32
    return %c0_i32, %c0_i32_0, %c0_i32_1 : i32, i32, i32
  }
  func.func @transform_4(%arg0: i32) -> (i32, i32, i32) {
    %c0_i32 = arith.constant 0 : i32
    %c0_i32_0 = arith.constant 0 : i32
    %c0_i32_1 = arith.constant 0 : i32
    %c0_i32_2 = arith.constant 0 : i32
    return %c0_i32, %c0_i32_0, %c0_i32_1 : i32, i32, i32
  }
  func.func @transform_5(%arg0: i32) -> (i32, i32, i32) {
    %c0_i32 = arith.constant 0 : i32
    %c0_i32_0 = arith.constant 0 : i32
    %c0_i32_1 = arith.constant 0 : i32
    %c0_i32_2 = arith.constant 0 : i32
    return %c0_i32, %c0_i32_0, %c0_i32_1 : i32, i32, i32
  }
  func.func @transform_6(%arg0: i32) -> (i32, i32, i32, i32) {
    %c0_i32 = arith.constant 0 : i32
    %c0_i32_0 = arith.constant 0 : i32
    %c0_i32_1 = arith.constant 0 : i32
    %c0_i32_2 = arith.constant 0 : i32
    %c0_i32_3 = arith.constant 0 : i32
    return %c0_i32, %c0_i32_0, %c0_i32_1, %c0_i32_2 : i32, i32, i32, i32
  }
  func.func @transform_7(%arg0: i32) -> (i32, i32, i32) {
    %c0_i32 = arith.constant 0 : i32
    %c0_i32_0 = arith.constant 0 : i32
    %c0_i32_1 = arith.constant 0 : i32
    %c0_i32_2 = arith.constant 0 : i32
    return %c0_i32, %c0_i32_0, %c0_i32_1 : i32, i32, i32
  }
  func.func @transform_8(%arg0: i32) -> (i32, i32, i32) {
    %c0_i32 = arith.constant 0 : i32
    %c0_i32_0 = arith.constant 0 : i32
    %c0_i32_1 = arith.constant 0 : i32
    %c0_i32_2 = arith.constant 0 : i32
    return %c0_i32, %c0_i32_0, %c0_i32_1 : i32, i32, i32
  }
  func.func @transform_9(%arg0: i32) -> (i32, i32, i32) {
    %c0_i32 = arith.constant 0 : i32
    %c0_i32_0 = arith.constant 0 : i32
    %c0_i32_1 = arith.constant 0 : i32
    %c0_i32_2 = arith.constant 0 : i32
    return %c0_i32, %c0_i32_0, %c0_i32_1 : i32, i32, i32
  }
  func.func @transform_10(%arg0: i32) -> (i32, i32, i32) {
    %c0_i32 = arith.constant 0 : i32
    %c0_i32_0 = arith.constant 0 : i32
    %c0_i32_1 = arith.constant 0 : i32
    %c0_i32_2 = arith.constant 0 : i32
    return %c0_i32, %c0_i32_0, %c0_i32_1 : i32, i32, i32
  }
  func.func @transform_11(%arg0: i32) -> (i32, i32, i32) {
    %c0_i32 = arith.constant 0 : i32
    %c0_i32_0 = arith.constant 0 : i32
    %c0_i32_1 = arith.constant 0 : i32
    %c0_i32_2 = arith.constant 0 : i32
    return %c0_i32, %c0_i32_0, %c0_i32_1 : i32, i32, i32
  }
  func.func @transform_12(%arg0: i32) -> (i32, i32, i32) {
    %c0_i32 = arith.constant 0 : i32
    %c0_i32_0 = arith.constant 0 : i32
    %c0_i32_1 = arith.constant 0 : i32
    %c0_i32_2 = arith.constant 0 : i32
    return %c0_i32, %c0_i32_0, %c0_i32_1 : i32, i32, i32
  }
  func.func @transform_13(%arg0: i32) -> (i32, i32, i32) {
    %c0_i32 = arith.constant 0 : i32
    %c0_i32_0 = arith.constant 0 : i32
    %c0_i32_1 = arith.constant 0 : i32
    %c0_i32_2 = arith.constant 0 : i32
    return %c0_i32, %c0_i32_0, %c0_i32_1 : i32, i32, i32
  }
  func.func @transform_14(%arg0: i32) -> (i32, i32, i32) {
    %c0_i32 = arith.constant 0 : i32
    %c0_i32_0 = arith.constant 0 : i32
    %c0_i32_1 = arith.constant 0 : i32
    return %arg0, %c0_i32, %c0_i32_0 : i32, i32, i32
  }
}

</mosaic_0001>

<llo_original>
// kernel: transformer_sequence.1
$region0: #{transformer_sequence.1}
  #allocation0 [shape = 'u32[]', space=smem, size = 0x4, offset = 0x4, fixed_abs, tag = 'smem constant byte address 0x4 - core index']
  #allocation1 [shape = 'u32[144,128]{1,0:T(1,128)}', space=vmem, size = 0x12000, scoped, tag = 'internal scratch']
  %s0 = inlined_call_operand.vmem [shape: f32[2,64,32], index: 0, kind: input, shape index: {}]
  %s1 = inlined_call_operand.hbm [shape: f32[4,2,64,64], index: 1, kind: input, shape index: {}]
  %s2 = inlined_call_operand.vmem [shape: f32[4,1,32], index: 2, kind: input, shape index: {}, may-alias: {2,8}]
  %s3 = inlined_call_operand.vmem [shape: f32[4,1,32], index: 3, kind: input, shape index: {}, may-alias: {3,7,9,13}]
  %s4 = inlined_call_operand.hbm [shape: f32[4,32,64], index: 4, kind: input, shape index: {}]
  %s5 = inlined_call_operand.vmem [shape: f32[4,1,64], index: 5, kind: input, shape index: {}]
  %s6 = inlined_call_operand.hbm [shape: f32[4,2,32,32], index: 6, kind: input, shape index: {}]
  %s7 = inlined_call_operand.vmem [shape: f32[4,1,32], index: 7, kind: input, shape index: {}, may-alias: {3,7,9,13}]
  %s8 = inlined_call_operand.vmem [shape: f32[4,1,32], index: 8, kind: input, shape index: {}, may-alias: {2,8}]
  %s9 = inlined_call_operand.vmem [shape: f32[4,1,32], index: 9, kind: input, shape index: {}, may-alias: {3,7,9,13}]
  %s10 = inlined_call_operand.vmem [shape: f32[4,32,128], index: 10, kind: input, shape index: {}]
  %s11 = inlined_call_operand.vmem [shape: f32[4,1,128], index: 11, kind: input, shape index: {}]
  %s12 = inlined_call_operand.hbm [shape: f32[4,128,32], index: 12, kind: input, shape index: {}]
  %s13 = inlined_call_operand.vmem [shape: f32[4,1,32], index: 13, kind: input, shape index: {}, may-alias: {3,7,9,13}]
  %s14 = inlined_call_operand.vmem [shape: f32[2,64,32], index: 14, kind: output, shape index: {}]
  %s15 = sld [smem:[#allocation0]]
  $region105: #{transformer_sequence.1} parent=0
    _
  %s17 = ssub.s32 1, %s15
  %s18 = scalar_select 0, %s17, %s15
  $region1: #{transformer_sequence.1} parent=0
    #allocation2 [shape = 'u8[262144]{0}', space=vmem, size = 0x40000, scoped, tag = 'input window, operand 1, single buffered']
    #allocation3 [shape = 's32[2]{0}', space=sflag, size = 0x8, scoped, tag = 'scoped memory for transformer_sequence.1']
    #allocation4 [shape = 'u8[65536]{0}', space=vmem, size = 0x10000, scoped, tag = 'input window, operand 4, single buffered']
    #allocation5 [shape = 's32[1]{0}', space=sflag, size = 0x4, scoped, tag = 'scoped memory for transformer_sequence.1']
    #allocation6 [shape = 'u8[131072]{0}', space=vmem, size = 0x20000, scoped, tag = 'input window, operand 6, single buffered']
    #allocation7 [shape = 'u8[262144]{0}', space=vmem, size = 0x40000, scoped, tag = 'input window, operand 12, single buffered']
    #allocation8 [shape = 's32[1]{0}', space=sflag, size = 0x4, scoped, tag = 'scoped memory for transformer_sequence.1']
    %19 = vsyncpa [#allocation3], 0
    %20 = vsyncpa [#allocation5], 0
    %21 = vsyncpa [#allocation8], 0
    loop: start=0, step=1, limit=4
    $region2: #{transformer_sequence.1} parent=1 // loop_pre_header
      _
    $region3: #{transformer_sequence.1} parent=1 // loop_header
      %s23 = sphi 0, %s27
      %p24 = scmp.ge.s32.totalorder %s23, 4
      %s33 = sphi 0, %s35
      %s36 = sphi 0, %s33
      %s37 = sphi 0, %s36
      %s53 = sphi 0, %s37
      %s57 = sphi 0, %s57
      %s59 = sphi 0, %s57
      %s60 = sphi 0, %s59
      %s74 = sphi 0, %s60
      %s78 = sphi 0, %s78
      %s80 = sphi 0, %s78
      %s81 = sphi 0, %s80
      %s95 = sphi 0, %s81
      %s99 = sphi 0, %s99
      %s101 = sphi 0, %s99
      %s102 = sphi 0, %s101
      %s116 = sphi 0, %s102
      %s120 = sphi 0, %s120
      %s122 = sphi 0, %s120
      %s123 = sphi 0, %s122
      %s137 = sphi 0, %s123
      %s141 = sphi 0, %s141
      %s143 = sphi 0, %s141
      %s144 = sphi 0, %s143
      %s158 = sphi 0, %s144
      %s162 = sphi 0, %s162
      %s164 = sphi 0, %s162
      %s165 = sphi 0, %s164
      %s179 = sphi 0, %s165
      %s183 = sphi 0, %s183
      %s185 = sphi 0, %s183
      %s186 = sphi 0, %s185
      %s200 = sphi 0, %s186
      %s204 = sphi 0, %s204
      %s206 = sphi 0, %s204
      %s207 = sphi 0, %s206
      %s221 = sphi 0, %s207
      %s225 = sphi 0, %s225
      %s227 = sphi 0, %s225
      %s228 = sphi 0, %s227
      %s242 = sphi 0, %s228
      %s246 = sphi 0, %s246
      %s248 = sphi 0, %s246
      %s249 = sphi 0, %s248
      %s263 = sphi 0, %s249
      %s267 = sphi 0, %s267
      %s269 = sphi 0, %s267
      %s270 = sphi 0, %s269
      %s284 = sphi 0, %s270
      %s288 = sphi 0, %s288
      %s290 = sphi 0, %s288
      %s291 = sphi 0, %s290
      %s305 = sphi 0, %s291
      %s309 = sphi 0, %s309
      %s311 = sphi 0, %s309
      %s312 = sphi 0, %s311
      %s326 = sphi 0, %s312
      %s332 = sphi 0, %s334
      %s335 = sphi 0, %s332
      %s336 = sphi 0, %s335
      %s352 = sphi 0, %s336
    $region4: #{transformer_sequence.1} parent=1 // loop_header_branch
      %26 = sbr.rel (%p24) target = $region8
    $region5: #{transformer_sequence.1} parent=1 // loop_body
      %s28 = ssub.s32 %s23, 1
      %s29 = ssub.s32 %s23, 2
      %s30 = sadd.s32 %s23, 1
      %s31 = ssub.s32 %s23, %s30
      %p32 = scmp.eq.s32.totalorder %s31, 0
      %s34 = sadd.s32 %s33, 1
      %s35 = scalar_select %p32, %s33, %s34
      %p38 = pneg %p32
      %p39 = scmp.eq.s32.totalorder %s23, 1
      %p40 = por %p38, %p39
      %p41 = scmp.ne.s32.totalorder %s33, %s36
      %p42 = scmp.eq.s32.totalorder %s23, 0
      %p43 = por %p41, %p42
      %p44 = scmp.ne.s32.totalorder %s33, %s36
      %p45 = scmp.eq.s32.totalorder %s28, 1
      %p46 = por %p44, %p45
      %p47 = scmp.ne.s32.totalorder %s36, %s37
      %p48 = scmp.eq.s32.totalorder %s28, 0
      %p49 = por %p47, %p48
      %p50 = scmp.ne.s32.totalorder %s36, %s37
      %p51 = scmp.eq.s32.totalorder %s29, 1
      %p52 = por %p50, %p51
      %p54 = scmp.ne.s32.totalorder %s37, %s53
      %p55 = scmp.eq.s32.totalorder %s29, 0
      %p56 = por %p54, %p55
      %s58 = sadd.s32 %s57, 1
      %p61 = scmp.eq.s32.totalorder %s23, 1
      %p62 = scmp.ne.s32.totalorder %s57, %s59
      %p63 = scmp.eq.s32.totalorder %s23, 0
      %p64 = por %p62, %p63
      %p65 = scmp.ne.s32.totalorder %s57, %s59
      %p66 = scmp.eq.s32.totalorder %s28, 1
      %p67 = por %p65, %p66
      %p68 = scmp.ne.s32.totalorder %s59, %s60
      %p69 = scmp.eq.s32.totalorder %s28, 0
      %p70 = por %p68, %p69
      %p71 = scmp.ne.s32.totalorder %s59, %s60
      %p72 = scmp.eq.s32.totalorder %s29, 1
      %p73 = por %p71, %p72
      %p75 = scmp.ne.s32.totalorder %s60, %s74
      %p76 = scmp.eq.s32.totalorder %s29, 0
      %p77 = por %p75, %p76
      %s79 = sadd.s32 %s78, 1
      %p82 = scmp.eq.s32.totalorder %s23, 1
      %p83 = scmp.ne.s32.totalorder %s78, %s80
      %p84 = scmp.eq.s32.totalorder %s23, 0
      %p85 = por %p83, %p84
      %p86 = scmp.ne.s32.totalorder %s78, %s80
      %p87 = scmp.eq.s32.totalorder %s28, 1
      %p88 = por %p86, %p87
      %p89 = scmp.ne.s32.totalorder %s80, %s81
      %p90 = scmp.eq.s32.totalorder %s28, 0
      %p91 = por %p89, %p90
      %p92 = scmp.ne.s32.totalorder %s80, %s81
      %p93 = scmp.eq.s32.totalorder %s29, 1
      %p94 = por %p92, %p93
      %p96 = scmp.ne.s32.totalorder %s81, %s95
      %p97 = scmp.eq.s32.totalorder %s29, 0
      %p98 = por %p96, %p97
      %s100 = sadd.s32 %s99, 1
      %p103 = scmp.eq.s32.totalorder %s23, 1
      %p104 = scmp.ne.s32.totalorder %s99, %s101
      %p105 = scmp.eq.s32.totalorder %s23, 0
      %p106 = por %p104, %p105
      %p107 = scmp.ne.s32.totalorder %s99, %s101
      %p108 = scmp.eq.s32.totalorder %s28, 1
      %p109 = por %p107, %p108
      %p110 = scmp.ne.s32.totalorder %s101, %s102
      %p111 = scmp.eq.s32.totalorder %s28, 0
      %p112 = por %p110, %p111
      %p113 = scmp.ne.s32.totalorder %s101, %s102
      %p114 = scmp.eq.s32.totalorder %s29, 1
      %p115 = por %p113, %p114
      %p117 = scmp.ne.s32.totalorder %s102, %s116
      %p118 = scmp.eq.s32.totalorder %s29, 0
      %p119 = por %p117, %p118
      %s121 = sadd.s32 %s120, 1
      %p124 = scmp.eq.s32.totalorder %s23, 1
      %p125 = scmp.ne.s32.totalorder %s120, %s122
      %p126 = scmp.eq.s32.totalorder %s23, 0
      %p127 = por %p125, %p126
      %p128 = scmp.ne.s32.totalorder %s120, %s122
      %p129 = scmp.eq.s32.totalorder %s28, 1
      %p130 = por %p128, %p129
      %p131 = scmp.ne.s32.totalorder %s122, %s123
      %p132 = scmp.eq.s32.totalorder %s28, 0
      %p133 = por %p131, %p132
      %p134 = scmp.ne.s32.totalorder %s122, %s123
      %p135 = scmp.eq.s32.totalorder %s29, 1
      %p136 = por %p134, %p135
      %p138 = scmp.ne.s32.totalorder %s123, %s137
      %p139 = scmp.eq.s32.totalorder %s29, 0
      %p140 = por %p138, %p139
      %s142 = sadd.s32 %s141, 1
      %p145 = scmp.eq.s32.totalorder %s23, 1
      %p146 = scmp.ne.s32.totalorder %s141, %s143
      %p147 = scmp.eq.s32.totalorder %s23, 0
      %p148 = por %p146, %p147
      %p149 = scmp.ne.s32.totalorder %s141, %s143
      %p150 = scmp.eq.s32.totalorder %s28, 1
      %p151 = por %p149, %p150
      %p152 = scmp.ne.s32.totalorder %s143, %s144
      %p153 = scmp.eq.s32.totalorder %s28, 0
      %p154 = por %p152, %p153
      %p155 = scmp.ne.s32.totalorder %s143, %s144
      %p156 = scmp.eq.s32.totalorder %s29, 1
      %p157 = por %p155, %p156
      %p159 = scmp.ne.s32.totalorder %s144, %s158
      %p160 = scmp.eq.s32.totalorder %s29, 0
      %p161 = por %p159, %p160
      %s163 = sadd.s32 %s162, 1
      %p166 = scmp.eq.s32.totalorder %s23, 1
      %p167 = scmp.ne.s32.totalorder %s162, %s164
      %p168 = scmp.eq.s32.totalorder %s23, 0
      %p169 = por %p167, %p168
      %p170 = scmp.ne.s32.totalorder %s162, %s164
      %p171 = scmp.eq.s32.totalorder %s28, 1
      %p172 = por %p170, %p171
      %p173 = scmp.ne.s32.totalorder %s164, %s165
      %p174 = scmp.eq.s32.totalorder %s28, 0
      %p175 = por %p173, %p174
      %p176 = scmp.ne.s32.totalorder %s164, %s165
      %p177 = scmp.eq.s32.totalorder %s29, 1
      %p178 = por %p176, %p177
      %p180 = scmp.ne.s32.totalorder %s165, %s179
      %p181 = scmp.eq.s32.totalorder %s29, 0
      %p182 = por %p180, %p181
      %s184 = sadd.s32 %s183, 1
      %p187 = scmp.eq.s32.totalorder %s23, 1
      %p188 = scmp.ne.s32.totalorder %s183, %s185
      %p189 = scmp.eq.s32.totalorder %s23, 0
      %p190 = por %p188, %p189
      %p191 = scmp.ne.s32.totalorder %s183, %s185
      %p192 = scmp.eq.s32.totalorder %s28, 1
      %p193 = por %p191, %p192
      %p194 = scmp.ne.s32.totalorder %s185, %s186
      %p195 = scmp.eq.s32.totalorder %s28, 0
      %p196 = por %p194, %p195
      %p197 = scmp.ne.s32.totalorder %s185, %s186
      %p198 = scmp.eq.s32.totalorder %s29, 1
      %p199 = por %p197, %p198
      %p201 = scmp.ne.s32.totalorder %s186, %s200
      %p202 = scmp.eq.s32.totalorder %s29, 0
      %p203 = por %p201, %p202
      %s205 = sadd.s32 %s204, 1
      %p208 = scmp.eq.s32.totalorder %s23, 1
      %p209 = scmp.ne.s32.totalorder %s204, %s206
      %p210 = scmp.eq.s32.totalorder %s23, 0
      %p211 = por %p209, %p210
      %p212 = scmp.ne.s32.totalorder %s204, %s206
      %p213 = scmp.eq.s32.totalorder %s28, 1
      %p214 = por %p212, %p213
      %p215 = scmp.ne.s32.totalorder %s206, %s207
      %p216 = scmp.eq.s32.totalorder %s28, 0
      %p217 = por %p215, %p216
      %p218 = scmp.ne.s32.totalorder %s206, %s207
      %p219 = scmp.eq.s32.totalorder %s29, 1
      %p220 = por %p218, %p219
      %p222 = scmp.ne.s32.totalorder %s207, %s221
      %p223 = scmp.eq.s32.totalorder %s29, 0
      %p224 = por %p222, %p223
      %s226 = sadd.s32 %s225, 1
      %p229 = scmp.eq.s32.totalorder %s23, 1
      %p230 = scmp.ne.s32.totalorder %s225, %s227
      %p231 = scmp.eq.s32.totalorder %s23, 0
      %p232 = por %p230, %p231
      %p233 = scmp.ne.s32.totalorder %s225, %s227
      %p234 = scmp.eq.s32.totalorder %s28, 1
      %p235 = por %p233, %p234
      %p236 = scmp.ne.s32.totalorder %s227, %s228
      %p237 = scmp.eq.s32.totalorder %s28, 0
      %p238 = por %p236, %p237
      %p239 = scmp.ne.s32.totalorder %s227, %s228
      %p240 = scmp.eq.s32.totalorder %s29, 1
      %p241 = por %p239, %p240
      %p243 = scmp.ne.s32.totalorder %s228, %s242
      %p244 = scmp.eq.s32.totalorder %s29, 0
      %p245 = por %p243, %p244
      %s247 = sadd.s32 %s246, 1
      %p250 = scmp.eq.s32.totalorder %s23, 1
      %p251 = scmp.ne.s32.totalorder %s246, %s248
      %p252 = scmp.eq.s32.totalorder %s23, 0
      %p253 = por %p251, %p252
      %p254 = scmp.ne.s32.totalorder %s246, %s248
      %p255 = scmp.eq.s32.totalorder %s28, 1
      %p256 = por %p254, %p255
      %p257 = scmp.ne.s32.totalorder %s248, %s249
      %p258 = scmp.eq.s32.totalorder %s28, 0
      %p259 = por %p257, %p258
      %p260 = scmp.ne.s32.totalorder %s248, %s249
      %p261 = scmp.eq.s32.totalorder %s29, 1
      %p262 = por %p260, %p261
      %p264 = scmp.ne.s32.totalorder %s249, %s263
      %p265 = scmp.eq.s32.totalorder %s29, 0
      %p266 = por %p264, %p265
      %s268 = sadd.s32 %s267, 1
      %p271 = scmp.eq.s32.totalorder %s23, 1
      %p272 = scmp.ne.s32.totalorder %s267, %s269
      %p273 = scmp.eq.s32.totalorder %s23, 0
      %p274 = por %p272, %p273
      %p275 = scmp.ne.s32.totalorder %s267, %s269
      %p276 = scmp.eq.s32.totalorder %s28, 1
      %p277 = por %p275, %p276
      %p278 = scmp.ne.s32.totalorder %s269, %s270
      %p279 = scmp.eq.s32.totalorder %s28, 0
      %p280 = por %p278, %p279
      %p281 = scmp.ne.s32.totalorder %s269, %s270
      %p282 = scmp.eq.s32.totalorder %s29, 1
      %p283 = por %p281, %p282
      %p285 = scmp.ne.s32.totalorder %s270, %s284
      %p286 = scmp.eq.s32.totalorder %s29, 0
      %p287 = por %p285, %p286
      %s289 = sadd.s32 %s288, 1
      %p292 = scmp.eq.s32.totalorder %s23, 1
      %p293 = scmp.ne.s32.totalorder %s288, %s290
      %p294 = scmp.eq.s32.totalorder %s23, 0
      %p295 = por %p293, %p294
      %p296 = scmp.ne.s32.totalorder %s288, %s290
      %p297 = scmp.eq.s32.totalorder %s28, 1
      %p298 = por %p296, %p297
      %p299 = scmp.ne.s32.totalorder %s290, %s291
      %p300 = scmp.eq.s32.totalorder %s28, 0
      %p301 = por %p299, %p300
      %p302 = scmp.ne.s32.totalorder %s290, %s291
      %p303 = scmp.eq.s32.totalorder %s29, 1
      %p304 = por %p302, %p303
      %p306 = scmp.ne.s32.totalorder %s291, %s305
      %p307 = scmp.eq.s32.totalorder %s29, 0
      %p308 = por %p306, %p307
      %s310 = sadd.s32 %s309, 1
      %p313 = scmp.eq.s32.totalorder %s23, 1
      %p314 = scmp.ne.s32.totalorder %s309, %s311
      %p315 = scmp.eq.s32.totalorder %s23, 0
      %p316 = por %p314, %p315
      %p317 = scmp.ne.s32.totalorder %s309, %s311
      %p318 = scmp.eq.s32.totalorder %s28, 1
      %p319 = por %p317, %p318
      %p320 = scmp.ne.s32.totalorder %s311, %s312
      %p321 = scmp.eq.s32.totalorder %s28, 0
      %p322 = por %p320, %p321
      %p323 = scmp.ne.s32.totalorder %s311, %s312
      %p324 = scmp.eq.s32.totalorder %s29, 1
      %p325 = por %p323, %p324
      %p327 = scmp.ne.s32.totalorder %s312, %s326
      %p328 = scmp.eq.s32.totalorder %s29, 0
      %p329 = por %p327, %p328
      %s330 = ssub.s32 %s23, %s30
      %p331 = scmp.eq.s32.totalorder %s330, 0
      %s333 = sadd.s32 %s332, 1
      %s334 = scalar_select %p331, %s332, %s333
      %p337 = pneg %p331
      %p338 = scmp.eq.s32.totalorder %s23, 1
      %p339 = por %p337, %p338
      %p340 = scmp.ne.s32.totalorder %s332, %s335
      %p341 = scmp.eq.s32.totalorder %s23, 0
      %p342 = por %p340, %p341
      %p343 = scmp.ne.s32.totalorder %s332, %s335
      %p344 = scmp.eq.s32.totalorder %s28, 1
      %p345 = por %p343, %p344
      %p346 = scmp.ne.s32.totalorder %s335, %s336
      %p347 = scmp.eq.s32.totalorder %s28, 0
      %p348 = por %p346, %p347
      %p349 = scmp.ne.s32.totalorder %s335, %s336
      %p350 = scmp.eq.s32.totalorder %s29, 1
      %p351 = por %p349, %p350
      %p353 = scmp.ne.s32.totalorder %s336, %s352
      %p354 = scmp.eq.s32.totalorder %s29, 0
      %p355 = por %p353, %p354
      %p356 = scmp.le.s32.totalorder 1, %s23
      %p357 = scmp.lt.s32.totalorder %s23, 3
      %p358 = pnand %p356, %p357
      %p359 = pneg %p358
      // Predicated region
      $region9: #{transformer_sequence.1} parent=5 // pred_check
        _
      $region10: #{transformer_sequence.1} parent=5 // pred_check_branch
        %361 = sbr.rel (%p358) target = $region12
      $region11: #{transformer_sequence.1} parent=5 // pred_region
        %s362 = ssub.s32 %s23, 1
        // Predicated region
        $region13: #{transformer_sequence.1} parent=11 // pred_check
          %p363 = pneg %p70
        $region14: #{transformer_sequence.1} parent=11 // pred_check_branch
          %365 = sbr.rel (%p363) target = $region16
        $region15: #{transformer_sequence.1} parent=11 // pred_region
          %s367 = ssub.s32 8192, 8192
          %368 = vsyncadd [#allocation3], %s367
          %s369 = sshll.u32 [#allocation2], 4
          %s370 = int_to_ptr.vmem [resolvable:$true] %s369
          %375 = dma.hbm_to_vmem [thread:$0]  %s1, 8192, %s370, [#allocation3], 128, 128, 8
        $region16: #{transformer_sequence.1} parent=11 // pred_fallthru
          _
        // Predicated region
        $region17: #{transformer_sequence.1} parent=11 // pred_check
          %p376 = pneg %p91
        $region18: #{transformer_sequence.1} parent=11 // pred_check_branch
          %378 = sbr.rel (%p376) target = $region20
        $region19: #{transformer_sequence.1} parent=11 // pred_region
          _
        $region20: #{transformer_sequence.1} parent=11 // pred_fallthru
          _
        // Predicated region
        $region21: #{transformer_sequence.1} parent=11 // pred_check
          %p379 = pneg %p112
        $region22: #{transformer_sequence.1} parent=11 // pred_check_branch
          %381 = sbr.rel (%p379) target = $region24
        $region23: #{transformer_sequence.1} parent=11 // pred_region
          _
        $region24: #{transformer_sequence.1} parent=11 // pred_fallthru
          _
        // Predicated region
        $region25: #{transformer_sequence.1} parent=11 // pred_check
          %p382 = pneg %p133
        $region26: #{transformer_sequence.1} parent=11 // pred_check_branch
          %384 = sbr.rel (%p382) target = $region28
        $region27: #{transformer_sequence.1} parent=11 // pred_region
          %s386 = ssub.s32 2048, 2048
          %387 = vsyncadd [#allocation5], %s386
          %s388 = sshll.u32 [#allocation4], 4
          %s389 = int_to_ptr.vmem [resolvable:$true] %s388
          %394 = dma.hbm_to_vmem [thread:$0]  %s4, 2048, %s389, [#allocation5], 128, 128, 8
        $region28: #{transformer_sequence.1} parent=11 // pred_fallthru
          _
        // Predicated region
        $region29: #{transformer_sequence.1} parent=11 // pred_check
          %p395 = pneg %p154
        $region30: #{transformer_sequence.1} parent=11 // pred_check_branch
          %397 = sbr.rel (%p395) target = $region32
        $region31: #{transformer_sequence.1} parent=11 // pred_region
          _
        $region32: #{transformer_sequence.1} parent=11 // pred_fallthru
          _
        // Predicated region
        $region33: #{transformer_sequence.1} parent=11 // pred_check
          %p398 = pneg %p175
        $region34: #{transformer_sequence.1} parent=11 // pred_check_branch
          %400 = sbr.rel (%p398) target = $region36
        $region35: #{transformer_sequence.1} parent=11 // pred_region
          %s402 = ssub.s32 4096, 4096
          %403 = vsyncadd [#allocation5], %s402
          %s404 = sshll.u32 [#allocation6], 4
          %s405 = int_to_ptr.vmem [resolvable:$true] %s404
          %410 = dma.hbm_to_vmem [thread:$0]  %s6, 4096, %s405, [#allocation5], 128, 128, 8
        $region36: #{transformer_sequence.1} parent=11 // pred_fallthru
          _
        // Predicated region
        $region37: #{transformer_sequence.1} parent=11 // pred_check
          %p411 = pneg %p196
        $region38: #{transformer_sequence.1} parent=11 // pred_check_branch
          %413 = sbr.rel (%p411) target = $region40
        $region39: #{transformer_sequence.1} parent=11 // pred_region
          _
        $region40: #{transformer_sequence.1} parent=11 // pred_fallthru
          _
        // Predicated region
        $region41: #{transformer_sequence.1} parent=11 // pred_check
          %p414 = pneg %p217
        $region42: #{transformer_sequence.1} parent=11 // pred_check_branch
          %416 = sbr.rel (%p414) target = $region44
        $region43: #{transformer_sequence.1} parent=11 // pred_region
          _
        $region44: #{transformer_sequence.1} parent=11 // pred_fallthru
          _
        // Predicated region
        $region45: #{transformer_sequence.1} parent=11 // pred_check
          %p417 = pneg %p238
        $region46: #{transformer_sequence.1} parent=11 // pred_check_branch
          %419 = sbr.rel (%p417) target = $region48
        $region47: #{transformer_sequence.1} parent=11 // pred_region
          _
        $region48: #{transformer_sequence.1} parent=11 // pred_fallthru
          _
        // Predicated region
        $region49: #{transformer_sequence.1} parent=11 // pred_check
          %p420 = pneg %p259
        $region50: #{transformer_sequence.1} parent=11 // pred_check_branch
          %422 = sbr.rel (%p420) target = $region52
        $region51: #{transformer_sequence.1} parent=11 // pred_region
          _
        $region52: #{transformer_sequence.1} parent=11 // pred_fallthru
          _
        // Predicated region
        $region53: #{transformer_sequence.1} parent=11 // pred_check
          %p423 = pneg %p280
        $region54: #{transformer_sequence.1} parent=11 // pred_check_branch
          %425 = sbr.rel (%p423) target = $region56
        $region55: #{transformer_sequence.1} parent=11 // pred_region
          _
        $region56: #{transformer_sequence.1} parent=11 // pred_fallthru
          _
        // Predicated region
        $region57: #{transformer_sequence.1} parent=11 // pred_check
          %p426 = pneg %p301
        $region58: #{transformer_sequence.1} parent=11 // pred_check_branch
          %428 = sbr.rel (%p426) target = $region60
        $region59: #{transformer_sequence.1} parent=11 // pred_region
          %s430 = ssub.s32 8192, 8192
          %431 = vsyncadd [#allocation8], %s430
          %s432 = sshll.u32 [#allocation7], 4
          %s433 = int_to_ptr.vmem [resolvable:$true] %s432
          %438 = dma.hbm_to_vmem [thread:$0]  %s12, 8192, %s433, [#allocation8], 128, 128, 8
        $region60: #{transformer_sequence.1} parent=11 // pred_fallthru
          _
        // Predicated region
        $region61: #{transformer_sequence.1} parent=11 // pred_check
          %p439 = pneg %p322
        $region62: #{transformer_sequence.1} parent=11 // pred_check_branch
          %441 = sbr.rel (%p439) target = $region64
        $region63: #{transformer_sequence.1} parent=11 // pred_region
          _
        $region64: #{transformer_sequence.1} parent=11 // pred_fallthru
          _
      $region12: #{transformer_sequence.1} parent=5 // pred_fallthru
        _
      %p442 = scmp.lt.s32.totalorder %s23, 2
      // Predicated region
      $region65: #{transformer_sequence.1} parent=5 // pred_check
        %p443 = pneg %p442
      $region66: #{transformer_sequence.1} parent=5 // pred_check_branch
        %445 = sbr.rel (%p443) target = $region68
      $region67: #{transformer_sequence.1} parent=5 // pred_region
        // Predicated region
        $region69: #{transformer_sequence.1} parent=67 // pred_check
          %p446 = pneg %p43
        $region70: #{transformer_sequence.1} parent=67 // pred_check_branch
          %448 = sbr.rel (%p446) target = $region72
        $region71: #{transformer_sequence.1} parent=67 // pred_region
          %p449 = scmp.lt.s32.totalorder %s23, 1
          %s450 = scalar_select %p449, %s23, 1
          %s451 = smul.addr %s450, 8
          %s452 = smul.addr %s451, 8
          %s453 = scalar_lea.vmem %s0, %s452
        $region72: #{transformer_sequence.1} parent=67 // pred_fallthru
          _
      $region68: #{transformer_sequence.1} parent=5 // pred_fallthru
        _
      %p454 = scmp.le.s32.totalorder 1, %s23
      %p455 = scmp.lt.s32.totalorder %s23, 3
      %p456 = pnand %p454, %p455
      %p457 = pneg %p456
      // Predicated region
      $region73: #{transformer_sequence.1} parent=5 // pred_check
        _
      $region74: #{transformer_sequence.1} parent=5 // pred_check_branch
        %459 = sbr.rel (%p456) target = $region76
      $region75: #{transformer_sequence.1} parent=5 // pred_region
        %s460 = ssub.s32 %s23, 1
        // Predicated region
        $region77: #{transformer_sequence.1} parent=75 // pred_check
          %p461 = pneg %p70
        $region78: #{transformer_sequence.1} parent=75 // pred_check_branch
          %463 = sbr.rel (%p461) target = $region80
        $region79: #{transformer_sequence.1} parent=75 // pred_region
          %464 = dma.done [#allocation3], 8192
        $region80: #{transformer_sequence.1} parent=75 // pred_fallthru
          _
        // Predicated region
        $region81: #{transformer_sequence.1} parent=75 // pred_check
          %p465 = pneg %p133
        $region82: #{transformer_sequence.1} parent=75 // pred_check_branch
          %467 = sbr.rel (%p465) target = $region84
        $region83: #{transformer_sequence.1} parent=75 // pred_region
          %468 = dma.done [#allocation5], 2048
        $region84: #{transformer_sequence.1} parent=75 // pred_fallthru
          _
        // Predicated region
        $region85: #{transformer_sequence.1} parent=75 // pred_check
          %p469 = pneg %p175
        $region86: #{transformer_sequence.1} parent=75 // pred_check_branch
          %471 = sbr.rel (%p469) target = $region88
        $region87: #{transformer_sequence.1} parent=75 // pred_region
          %472 = dma.done [#allocation5], 4096
        $region88: #{transformer_sequence.1} parent=75 // pred_fallthru
          _
        // Predicated region
        $region89: #{transformer_sequence.1} parent=75 // pred_check
          %p473 = pneg %p301
        $region90: #{transformer_sequence.1} parent=75 // pred_check_branch
          %475 = sbr.rel (%p473) target = $region92
        $region91: #{transformer_sequence.1} parent=75 // pred_region
          %476 = dma.done [#allocation8], 8192
        $region92: #{transformer_sequence.1} parent=75 // pred_fallthru
          _
        %p477 = scmp.lt.s32.totalorder %s28, 1
        %s478 = scalar_select %p477, %s28, 1
        %s479 = smul.addr %s478, 8
        %s480 = smul.addr %s479, 8
        %s481 = scalar_lea.vmem %s0, %s480
        %p482 = pneg %p49
        %p483 = pneg %p46
        %p484 = pneg %p70
        %p485 = pneg %p67
        %p486 = pneg %p91
        %p487 = pneg %p88
        %p488 = pneg %p112
        %p489 = pneg %p109
        %p490 = pneg %p133
        %p491 = pneg %p130
        %p492 = pneg %p154
        %p493 = pneg %p151
        %p494 = pneg %p175
        %p495 = pneg %p172
        %p496 = pneg %p196
        %p497 = pneg %p193
        %p498 = pneg %p217
        %p499 = pneg %p214
        %p500 = pneg %p238
        %p501 = pneg %p235
        %p502 = pneg %p259
        %p503 = pneg %p256
        %p504 = pneg %p280
        %p505 = pneg %p277
        %p506 = pneg %p301
        %p507 = pneg %p298
        %p508 = pneg %p322
        %p509 = pneg %p319
        %p510 = pneg %p348
        %p511 = pneg %p345
        %p512 = scmp.lt.s32.totalorder %s28, 1
        %s513 = scalar_select %p512, %s28, 1
        %s514 = smul.addr %s513, 8
        %s515 = smul.addr %s514, 8
        %s516 = scalar_lea.vmem %s14, %s515
        %p517 = scmp.lt.s32.totalorder %s28, 1
        %s518 = scalar_select %p517, %s28, 1
        %s519 = smul.addr %s518, 8
        %s520 = smul.addr %s519, 8
        %s521 = scalar_lea.vmem %s0, %s520
        %p522 = scmp.lt.s32.totalorder %s28, 1
        %s523 = scalar_select %p522, %s28, 1
        %s524 = smul.addr %s523, 8
        %s525 = smul.addr %s524, 8
        %s526 = scalar_lea.vmem %s14, %s525
        %v527 = vld [vmem:[%s521] sm:$0xff]
        %v528 = vld [vmem:[%s521 + $0x8] sm:$0xff]
        %v529 = vld [vmem:[%s521 + $0x10] sm:$0xff]
        %v530 = vld [vmem:[%s521 + $0x18] sm:$0xff]
        %v531 = vld [vmem:[%s521 + $0x20] sm:$0xff]
        %v532 = vld [vmem:[%s521 + $0x28] sm:$0xff]
        %v533 = vld [vmem:[%s521 + $0x30] sm:$0xff]
        %v534 = vld [vmem:[%s521 + $0x38] sm:$0xff]
        %v535 = vld [vmem:[%s2] sm:$0x1]
        %v536 = vld [vmem:[%s3] sm:$0x1]
        %vm537 = vcmask 261120
        %v538 = vsel %vm537, %v527, 0.0
        %539 = vadd.xlane.f32.xlu0 %v538
        %v540 = vpop.xlane.xlu0 %539
        %v541 = vsel %vm537, %v528, 0.0
        %542 = vadd.xlane.f32.xlu0 %v541
        %v543 = vpop.xlane.xlu0 %542
        %v544 = vsel %vm537, %v529, 0.0
        %545 = vadd.xlane.f32.xlu0 %v544
        %v546 = vpop.xlane.xlu0 %545
        %v547 = vsel %vm537, %v530, 0.0
        %548 = vadd.xlane.f32.xlu0 %v547
        %v549 = vpop.xlane.xlu0 %548
        %v550 = vsel %vm537, %v531, 0.0
        %551 = vadd.xlane.f32.xlu0 %v550
        %v552 = vpop.xlane.xlu0 %551
        %v553 = vsel %vm537, %v532, 0.0
        %554 = vadd.xlane.f32.xlu0 %v553
        %v555 = vpop.xlane.xlu0 %554
        %v556 = vsel %vm537, %v533, 0.0
        %557 = vadd.xlane.f32.xlu0 %v556
        %v558 = vpop.xlane.xlu0 %557
        %v559 = vsel %vm537, %v534, 0.0
        %560 = vadd.xlane.f32.xlu0 %v559
        %v561 = vpop.xlane.xlu0 %560
        %v562 = vrcp.pop 32.0
        %v563 = vmul.f32 %v540, %v562
        %v564 = vmul.f32 %v543, %v562
        %v565 = vmul.f32 %v546, %v562
        %v566 = vmul.f32 %v549, %v562
        %v567 = vmul.f32 %v552, %v562
        %v568 = vmul.f32 %v555, %v562
        %v569 = vmul.f32 %v558, %v562
        %v570 = vmul.f32 %v561, %v562
        %v571 = vsub.f32 %v527, %v563
        %v572 = vsub.f32 %v528, %v564
        %v573 = vsub.f32 %v529, %v565
        %v574 = vsub.f32 %v530, %v566
        %v575 = vsub.f32 %v531, %v567
        %v576 = vsub.f32 %v532, %v568
        %v577 = vsub.f32 %v533, %v569
        %v578 = vsub.f32 %v534, %v570
        %v579 = vmul.f32 %v571, %v571
        %v580 = vmul.f32 %v572, %v572
        %v581 = vmul.f32 %v573, %v573
        %v582 = vmul.f32 %v574, %v574
        %v583 = vmul.f32 %v575, %v575
        %v584 = vmul.f32 %v576, %v576
        %v585 = vmul.f32 %v577, %v577
        %v586 = vmul.f32 %v578, %v578
        %v587 = vsel %vm537, %v579, 0.0
        %588 = vadd.xlane.f32.xlu0 %v587
        %v589 = vpop.xlane.xlu0 %588
        %v590 = vsel %vm537, %v580, 0.0
        %591 = vadd.xlane.f32.xlu0 %v590
        %v592 = vpop.xlane.xlu0 %591
        %v593 = vsel %vm537, %v581, 0.0
        %594 = vadd.xlane.f32.xlu0 %v593
        %v595 = vpop.xlane.xlu0 %594
        %v596 = vsel %vm537, %v582, 0.0
        %597 = vadd.xlane.f32.xlu0 %v596
        %v598 = vpop.xlane.xlu0 %597
        %v599 = vsel %vm537, %v583, 0.0
        %600 = vadd.xlane.f32.xlu0 %v599
        %v601 = vpop.xlane.xlu0 %600
        %v602 = vsel %vm537, %v584, 0.0
        %603 = vadd.xlane.f32.xlu0 %v602
        %v604 = vpop.xlane.xlu0 %603
        %v605 = vsel %vm537, %v585, 0.0
        %606 = vadd.xlane.f32.xlu0 %v605
        %v607 = vpop.xlane.xlu0 %606
        %v608 = vsel %vm537, %v586, 0.0
        %609 = vadd.xlane.f32.xlu0 %v608
        %v610 = vpop.xlane.xlu0 %609
        %v611 = vmul.f32 %v589, %v562
        %v612 = vmul.f32 %v592, %v562
        %v613 = vmul.f32 %v595, %v562
        %v614 = vmul.f32 %v598, %v562
        %v615 = vmul.f32 %v601, %v562
        %v616 = vmul.f32 %v604, %v562
        %v617 = vmul.f32 %v607, %v562
        %v618 = vmul.f32 %v610, %v562
        %v619 = vadd.f32 %v611, 1e-05
        %v620 = vadd.f32 %v612, 1e-05
        %v621 = vadd.f32 %v613, 1e-05
        %v622 = vadd.f32 %v614, 1e-05
        %v623 = vadd.f32 %v615, 1e-05
        %v624 = vadd.f32 %v616, 1e-05
        %v625 = vadd.f32 %v617, 1e-05
        %v626 = vadd.f32 %v618, 1e-05
        %v627 = vrsqrt.pop %v619
        %v628 = vrsqrt.pop %v620
        %v629 = vrsqrt.pop %v621
        %v630 = vrsqrt.pop %v622
        %v631 = vrsqrt.pop %v623
        %v632 = vrsqrt.pop %v624
        %v633 = vrsqrt.pop %v625
        %v634 = vrsqrt.pop %v626
        %v635 = vmul.f32 %v571, %v627
        %v636 = vmul.f32 %v572, %v628
        %v637 = vmul.f32 %v573, %v629
        %v638 = vmul.f32 %v574, %v630
        %v639 = vmul.f32 %v575, %v631
        %v640 = vmul.f32 %v576, %v632
        %v641 = vmul.f32 %v577, %v633
        %v642 = vmul.f32 %v578, %v634
        %v644 = vlaneseq
        %v645 = vshrl.u32 %v644, 7
        %v646 = vsub.s32 0, %v645
        %v647 = vrot.slane %v535, %v646
        %v649 = vmul.f32 %v635, %v647
        %v650 = vmul.f32 %v636, %v647
        %v651 = vmul.f32 %v637, %v647
        %v652 = vmul.f32 %v638, %v647
        %v653 = vmul.f32 %v639, %v647
        %v654 = vmul.f32 %v640, %v647
        %v655 = vmul.f32 %v641, %v647
        %v656 = vmul.f32 %v642, %v647
        %v658 = vlaneseq
        %v659 = vshrl.u32 %v658, 7
        %v660 = vsub.s32 0, %v659
        %v661 = vrot.slane %v536, %v660
        %v663 = vadd.f32 %v649, %v661
        %v664 = vadd.f32 %v650, %v661
        %v665 = vadd.f32 %v651, %v661
        %v666 = vadd.f32 %v652, %v661
        %v667 = vadd.f32 %v653, %v661
        %v668 = vadd.f32 %v654, %v661
        %v669 = vadd.f32 %v655, %v661
        %v670 = vadd.f32 %v656, %v661
        %v671 = vld [vmem:[#allocation4] sm:$0xff]
        %v672 = vld [vmem:[#allocation4 + $0x8] sm:$0xff]
        %v673 = vld [vmem:[#allocation4 + $0x10] sm:$0xff]
        %v674 = vld [vmem:[#allocation4 + $0x18] sm:$0xff]
        %v675 = vld [vmem:[%s5] sm:$0x1]
        %v677 = vlaneseq
        %v678 = vshrl.u32 %v677, 7
        %v679 = vsub.s32 0, %v678
        %v680 = vrot.slane %v675, %v679
        %v683 = vsel %vm537, %v663, 0
        %v686 = vsel %vm537, %v664, 0
        %v689 = vsel %vm537, %v665, 0
        %v692 = vsel %vm537, %v666, 0
        %v695 = vsel %vm537, %v667, 0
        %v698 = vsel %vm537, %v668, 0
        %v701 = vsel %vm537, %v669, 0
        %v704 = vsel %vm537, %v670, 0
        %706 = vmatprep.subr.mxu0 0.0
        %707 = vmatpush1.msra.mxu0 %v671
        %708 = vmatprep.subr.mxu0 0.0
        %709 = vmatpush1.msra.mxu0 %v672
        %710 = vmatprep.subr.mxu0 0.0
        %711 = vmatpush1.msra.mxu0 %v673
        %712 = vmatprep.subr.mxu0 0.0
        %713 = vmatpush1.msra.mxu0 %v674
        %714 = vmatprep.subr.mxu0 0.0
        %715 = vmatpush1.msra.mxu0 0.0
        %716 = vmatprep.subr.mxu0 0.0
        %717 = vmatpush1.msra.mxu0 0.0
        %718 = vmatprep.subr.mxu0 0.0
        %719 = vmatpush1.msra.mxu0 0.0
        %720 = vmatprep.subr.mxu0 0.0
        %721 = vmatpush1.msra.mxu0 0.0
        %722 = vmatprep.subr.mxu0 0.0
        %723 = vmatpush1.msra.mxu0 0.0
        %724 = vmatprep.subr.mxu0 0.0
        %725 = vmatpush1.msra.mxu0 0.0
        %726 = vmatprep.subr.mxu0 0.0
        %727 = vmatpush1.msra.mxu0 0.0
        %728 = vmatprep.subr.mxu0 0.0
        %729 = vmatpush1.msra.mxu0 0.0
        %730 = vmatprep.subr.mxu0 0.0
        %731 = vmatpush1.msra.mxu0 0.0
        %732 = vmatprep.subr.mxu0 0.0
        %733 = vmatpush1.msra.mxu0 0.0
        %734 = vmatprep.subr.mxu0 0.0
        %735 = vmatpush1.msra.mxu0 0.0
        %736 = vmatprep.subr.mxu0 0.0
        %737 = vmatpush1.msra.mxu0 0.0
        %738 = vmatprep.subr.mxu0 0.0
        %739 = vmatpush1.msra.mxu0 0.0
        %740 = vmatprep.subr.mxu0 0.0
        %741 = vmatpush1.msra.mxu0 0.0
        %742 = vmatprep.subr.mxu0 0.0
        %743 = vmatpush1.msra.mxu0 0.0
        %744 = vmatprep.subr.mxu0 0.0
        %745 = vmatpush1.msra.mxu0 0.0
        %746 = vmatprep.subr.mxu0 0.0
        %747 = vmatpush1.msra.mxu0 0.0
        %748 = vmatprep.subr.mxu0 0.0
        %749 = vmatpush1.msra.mxu0 0.0
        %750 = vmatprep.subr.mxu0 0.0
        %751 = vmatpush1.msra.mxu0 0.0
        %752 = vmatprep.subr.mxu0 0.0
        %753 = vmatpush1.msra.mxu0 0.0
        %754 = vmatprep.subr.mxu0 0.0
        %755 = vmatpush1.msra.mxu0 0.0
        %756 = vmatprep.subr.mxu0 0.0
        %757 = vmatpush1.msra.mxu0 0.0
        %758 = vmatprep.subr.mxu0 0.0
        %759 = vmatpush1.msra.mxu0 0.0
        %760 = vmatprep.subr.mxu0 0.0
        %761 = vmatpush1.msra.mxu0 0.0
        %762 = vmatprep.subr.mxu0 0.0
        %763 = vmatpush1.msra.mxu0 0.0
        %764 = vmatprep.subr.mxu0 0.0
        %765 = vmatpush1.msra.mxu0 0.0
        %766 = vmatprep.subr.mxu0 0.0
        %767 = vmatpush1.msra.mxu0 0.0
        %768 = vmatprep.subr.mxu0 0.0
        %769 = vmatpush1.msra.mxu0 0.0
        %770 = vmatprep.mubr.f32.mxu0 0.0
        %771 = vmatmul.mubr.f32.gmra.mrb[0].mxu0 %v683
        %v772 = vpop.f32.mrb[0].mxu0
        %v773 = vadd.f32 %v680, %v772
        %v774 = vpop.f32.mrb[0].mxu0
        %775 = vmatprep.mubr.f32.mxu0 0.0
        %776 = vmatmul.mubr.f32.gmra.mrb[0].mxu0 %v686
        %v777 = vpop.f32.mrb[0].mxu0
        %v778 = vadd.f32 %v680, %v777
        %v779 = vpop.f32.mrb[0].mxu0
        %780 = vmatprep.mubr.f32.mxu0 0.0
        %781 = vmatmul.mubr.f32.gmra.mrb[0].mxu0 %v689
        %v782 = vpop.f32.mrb[0].mxu0
        %v783 = vadd.f32 %v680, %v782
        %v784 = vpop.f32.mrb[0].mxu0
        %785 = vmatprep.mubr.f32.mxu0 0.0
        %786 = vmatmul.mubr.f32.gmra.mrb[0].mxu0 %v692
        %v787 = vpop.f32.mrb[0].mxu0
        %v788 = vadd.f32 %v680, %v787
        %v789 = vpop.f32.mrb[0].mxu0
        %790 = vmatprep.mubr.f32.mxu0 0.0
        %791 = vmatmul.mubr.f32.gmra.mrb[0].mxu0 %v695
        %v792 = vpop.f32.mrb[0].mxu0
        %v793 = vadd.f32 %v680, %v792
        %v794 = vpop.f32.mrb[0].mxu0
        %795 = vmatprep.mubr.f32.mxu0 0.0
        %796 = vmatmul.mubr.f32.gmra.mrb[0].mxu0 %v698
        %v797 = vpop.f32.mrb[0].mxu0
        %v798 = vadd.f32 %v680, %v797
        %v799 = vpop.f32.mrb[0].mxu0
        %800 = vmatprep.mubr.f32.mxu0 0.0
        %801 = vmatmul.mubr.f32.gmra.mrb[0].mxu0 %v701
        %v802 = vpop.f32.mrb[0].mxu0
        %v803 = vadd.f32 %v680, %v802
        %v804 = vpop.f32.mrb[0].mxu0
        %805 = vmatprep.mubr.f32.mxu0 0.0
        %806 = vmatmul.mubr.f32.gmra.mrb[0].mxu0 %v704
        %v807 = vpop.f32.mrb[0].mxu0
        %v808 = vadd.f32 %v680, %v807
        %v809 = vpop.f32.mrb[0].mxu0
        %810 = vdwg.mxu0
        %v811 = vld [vmem:[#allocation2] sm:$0xff]
        %v812 = vld [vmem:[#allocation2 + $0x8] sm:$0xff]
        %v813 = vld [vmem:[#allocation2 + $0x10] sm:$0xff]
        %v814 = vld [vmem:[#allocation2 + $0x18] sm:$0xff]
        %v815 = vld [vmem:[#allocation2 + $0x20] sm:$0xff]
        %v816 = vld [vmem:[#allocation2 + $0x28] sm:$0xff]
        %v817 = vld [vmem:[#allocation2 + $0x30] sm:$0xff]
        %v818 = vld [vmem:[#allocation2 + $0x38] sm:$0xff]
        %827 = vrot.lane.b32.xlu0 %v773, 96
        %v828 = vpop.permute.xlu0 %827
        %829 = vrot.lane.b32.xlu0 %v778, 96
        %v830 = vpop.permute.xlu0 %829
        %831 = vrot.lane.b32.xlu0 %v783, 96
        %v832 = vpop.permute.xlu0 %831
        %833 = vrot.lane.b32.xlu0 %v788, 96
        %v834 = vpop.permute.xlu0 %833
        %835 = vrot.lane.b32.xlu0 %v793, 96
        %v836 = vpop.permute.xlu0 %835
        %837 = vrot.lane.b32.xlu0 %v798, 96
        %v838 = vpop.permute.xlu0 %837
        %839 = vrot.lane.b32.xlu0 %v803, 96
        %v840 = vpop.permute.xlu0 %839
        %841 = vrot.lane.b32.xlu0 %v808, 96
        %v842 = vpop.permute.xlu0 %841
        %vm843 = vcmask 130048
        %v844 = vsel %vm843, %v773, 0
        %v846 = vsel %vm843, %v778, 0
        %v848 = vsel %vm843, %v783, 0
        %v850 = vsel %vm843, %v788, 0
        %v852 = vsel %vm843, %v793, 0
        %v854 = vsel %vm843, %v798, 0
        %v856 = vsel %vm843, %v803, 0
        %v858 = vsel %vm843, %v808, 0
        %v860 = vsel %vm843, %v828, 0
        %v862 = vsel %vm843, %v830, 0
        %v864 = vsel %vm843, %v832, 0
        %v866 = vsel %vm843, %v834, 0
        %v868 = vsel %vm843, %v836, 0
        %v870 = vsel %vm843, %v838, 0
        %v872 = vsel %vm843, %v840, 0
        %v874 = vsel %vm843, %v842, 0
        %876 = vmatprep.subr.mxu0 0.0
        %877 = vmatpush1.xpose.msra.mxu0 %v860
        %878 = vmatprep.subr.mxu0 0.0
        %879 = vmatpush1.xpose.msra.mxu0 %v862
        %880 = vmatprep.subr.mxu0 0.0
        %881 = vmatpush1.xpose.msra.mxu0 %v864
        %882 = vmatprep.subr.mxu0 0.0
        %883 = vmatpush1.xpose.msra.mxu0 %v866
        %884 = vmatprep.subr.mxu0 0.0
        %885 = vmatpush1.xpose.msra.mxu0 %v868
        %886 = vmatprep.subr.mxu0 0.0
        %887 = vmatpush1.xpose.msra.mxu0 %v870
        %888 = vmatprep.subr.mxu0 0.0
        %889 = vmatpush1.xpose.msra.mxu0 %v872
        %890 = vmatprep.subr.mxu0 0.0
        %891 = vmatpush1.xpose.msra.mxu0 %v874
        %892 = vmatprep.subr.mxu0 0.0
        %893 = vmatpush1.xpose.msra.mxu0 0.0
        %894 = vmatprep.subr.mxu0 0.0
        %895 = vmatpush1.xpose.msra.mxu0 0.0
        %896 = vmatprep.subr.mxu0 0.0
        %897 = vmatpush1.xpose.msra.mxu0 0.0
        %898 = vmatprep.subr.mxu0 0.0
        %899 = vmatpush1.xpose.msra.mxu0 0.0
        %900 = vmatprep.subr.mxu0 0.0
        %901 = vmatpush1.xpose.msra.mxu0 0.0
        %902 = vmatprep.subr.mxu0 0.0
        %903 = vmatpush1.xpose.msra.mxu0 0.0
        %904 = vmatprep.subr.mxu0 0.0
        %905 = vmatpush1.xpose.msra.mxu0 0.0
        %906 = vmatprep.subr.mxu0 0.0
        %907 = vmatpush1.xpose.msra.mxu0 0.0
        %908 = vmatprep.subr.mxu0 0.0
        %909 = vmatpush1.xpose.msra.mxu0 0.0
        %910 = vmatprep.subr.mxu0 0.0
        %911 = vmatpush1.xpose.msra.mxu0 0.0
        %912 = vmatprep.subr.mxu0 0.0
        %913 = vmatpush1.xpose.msra.mxu0 0.0
        %914 = vmatprep.subr.mxu0 0.0
        %915 = vmatpush1.xpose.msra.mxu0 0.0
        %916 = vmatprep.subr.mxu0 0.0
        %917 = vmatpush1.xpose.msra.mxu0 0.0
        %918 = vmatprep.subr.mxu0 0.0
        %919 = vmatpush1.xpose.msra.mxu0 0.0
        %920 = vmatprep.subr.mxu0 0.0
        %921 = vmatpush1.xpose.msra.mxu0 0.0
        %922 = vmatprep.subr.mxu0 0.0
        %923 = vmatpush1.xpose.msra.mxu0 0.0
        %924 = vmatprep.subr.mxu0 0.0
        %925 = vmatpush1.xpose.msra.mxu0 0.0
        %926 = vmatprep.subr.mxu0 0.0
        %927 = vmatpush1.xpose.msra.mxu0 0.0
        %928 = vmatprep.subr.mxu0 0.0
        %929 = vmatpush1.xpose.msra.mxu0 0.0
        %930 = vmatprep.subr.mxu0 0.0
        %931 = vmatpush1.xpose.msra.mxu0 0.0
        %932 = vmatprep.subr.mxu0 0.0
        %933 = vmatpush1.xpose.msra.mxu0 0.0
        %934 = vmatprep.subr.mxu0 0.0
        %935 = vmatpush1.xpose.msra.mxu0 0.0
        %936 = vmatprep.subr.mxu0 0.0
        %937 = vmatpush1.xpose.msra.mxu0 0.0
        %938 = vmatprep.subr.mxu0 0.0
        %939 = vmatpush1.xpose.msra.mxu0 0.0
        %940 = vmatprep.mubr.f32.mxu0 0.0
        %941 = vmatmul.mubr.f32.gmra.mrb[0].mxu0 %v844
        %v942 = vpop.f32.mrb[0].mxu0
        %v943 = vadd.f32 %v811, %v942
        %v944 = vpop.f32.mrb[0].mxu0
        %945 = vmatprep.mubr.f32.mxu0 0.0
        %946 = vmatmul.mubr.f32.gmra.mrb[0].mxu0 %v846
        %v947 = vpop.f32.mrb[0].mxu0
        %v948 = vadd.f32 %v812, %v947
        %v949 = vpop.f32.mrb[0].mxu0
        %950 = vmatprep.mubr.f32.mxu0 0.0
        %951 = vmatmul.mubr.f32.gmra.mrb[0].mxu0 %v848
        %v952 = vpop.f32.mrb[0].mxu0
        %v953 = vadd.f32 %v813, %v952
        %v954 = vpop.f32.mrb[0].mxu0
        %955 = vmatprep.mubr.f32.mxu0 0.0
        %956 = vmatmul.mubr.f32.gmra.mrb[0].mxu0 %v850
        %v957 = vpop.f32.mrb[0].mxu0
        %v958 = vadd.f32 %v814, %v957
        %v959 = vpop.f32.mrb[0].mxu0
        %960 = vmatprep.mubr.f32.mxu0 0.0
        %961 = vmatmul.mubr.f32.gmra.mrb[0].mxu0 %v852
        %v962 = vpop.f32.mrb[0].mxu0
        %v963 = vadd.f32 %v815, %v962
        %v964 = vpop.f32.mrb[0].mxu0
        %965 = vmatprep.mubr.f32.mxu0 0.0
        %966 = vmatmul.mubr.f32.gmra.mrb[0].mxu0 %v854
        %v967 = vpop.f32.mrb[0].mxu0
        %v968 = vadd.f32 %v816, %v967
        %v969 = vpop.f32.mrb[0].mxu0
        %970 = vmatprep.mubr.f32.mxu0 0.0
        %971 = vmatmul.mubr.f32.gmra.mrb[0].mxu0 %v856
        %v972 = vpop.f32.mrb[0].mxu0
        %v973 = vadd.f32 %v817, %v972
        %v974 = vpop.f32.mrb[0].mxu0
        %975 = vmatprep.mubr.f32.mxu0 0.0
        %976 = vmatmul.mubr.f32.gmra.mrb[0].mxu0 %v858
        %v977 = vpop.f32.mrb[0].mxu0
        %v978 = vadd.f32 %v818, %v977
        %v979 = vpop.f32.mrb[0].mxu0
        %980 = vdwg.mxu0
        %vm981 = vcmask 523264
        %v982 = vsel %vm981, %v943, -inf
        %983 = vmax.xlane.f32.xlu0 %v982
        %v984 = vpop.xlane.xlu0 %983
        %v985 = vsel %vm981, %v948, -inf
        %986 = vmax.xlane.f32.xlu0 %v985
        %v987 = vpop.xlane.xlu0 %986
        %v988 = vsel %vm981, %v953, -inf
        %989 = vmax.xlane.f32.xlu0 %v988
        %v990 = vpop.xlane.xlu0 %989
        %v991 = vsel %vm981, %v958, -inf
        %992 = vmax.xlane.f32.xlu0 %v991
        %v993 = vpop.xlane.xlu0 %992
        %v994 = vsel %vm981, %v963, -inf
        %995 = vmax.xlane.f32.xlu0 %v994
        %v996 = vpop.xlane.xlu0 %995
        %v997 = vsel %vm981, %v968, -inf
        %998 = vmax.xlane.f32.xlu0 %v997
        %v999 = vpop.xlane.xlu0 %998
        %v1000 = vsel %vm981, %v973, -inf
        %1001 = vmax.xlane.f32.xlu0 %v1000
        %v1002 = vpop.xlane.xlu0 %1001
        %v1003 = vsel %vm981, %v978, -inf
        %1004 = vmax.xlane.f32.xlu0 %v1003
        %v1005 = vpop.xlane.xlu0 %1004
        %v1006 = vsub.f32 %v943, %v984
        %v1007 = vsub.f32 %v948, %v987
        %v1008 = vsub.f32 %v953, %v990
        %v1009 = vsub.f32 %v958, %v993
        %v1010 = vsub.f32 %v963, %v996
        %v1011 = vsub.f32 %v968, %v999
        %v1012 = vsub.f32 %v973, %v1002
        %v1013 = vsub.f32 %v978, %v1005
        %v1014 = vmul.f32 %v1006, 1.442695
        %v1015 = vpow.pop %v1014
        %v1016 = vmul.f32 %v1007, 1.442695
        %v1017 = vpow.pop %v1016
        %v1018 = vmul.f32 %v1008, 1.442695
        %v1019 = vpow.pop %v1018
        %v1020 = vmul.f32 %v1009, 1.442695
        %v1021 = vpow.pop %v1020
        %v1022 = vmul.f32 %v1010, 1.442695
        %v1023 = vpow.pop %v1022
        %v1024 = vmul.f32 %v1011, 1.442695
        %v1025 = vpow.pop %v1024
        %v1026 = vmul.f32 %v1012, 1.442695
        %v1027 = vpow.pop %v1026
        %v1028 = vmul.f32 %v1013, 1.442695
        %v1029 = vpow.pop %v1028
        %v1030 = vsel %vm981, %v1015, 0.0
        %1031 = vadd.xlane.f32.xlu0 %v1030
        %v1032 = vpop.xlane.xlu0 %1031
        %v1033 = vsel %vm981, %v1017, 0.0
        %1034 = vadd.xlane.f32.xlu0 %v1033
        %v1035 = vpop.xlane.xlu0 %1034
        %v1036 = vsel %vm981, %v1019, 0.0
        %1037 = vadd.xlane.f32.xlu0 %v1036
        %v1038 = vpop.xlane.xlu0 %1037
        %v1039 = vsel %vm981, %v1021, 0.0
        %1040 = vadd.xlane.f32.xlu0 %v1039
        %v1041 = vpop.xlane.xlu0 %1040
        %v1042 = vsel %vm981, %v1023, 0.0
        %1043 = vadd.xlane.f32.xlu0 %v1042
        %v1044 = vpop.xlane.xlu0 %1043
        %v1045 = vsel %vm981, %v1025, 0.0
        %1046 = vadd.xlane.f32.xlu0 %v1045
        %v1047 = vpop.xlane.xlu0 %1046
        %v1048 = vsel %vm981, %v1027, 0.0
        %1049 = vadd.xlane.f32.xlu0 %v1048
        %v1050 = vpop.xlane.xlu0 %1049
        %v1051 = vsel %vm981, %v1029, 0.0
        %1052 = vadd.xlane.f32.xlu0 %v1051
        %v1053 = vpop.xlane.xlu0 %1052
        %v1054 = vrcp.pop %v1032
        %v1055 = vmul.f32 %v1015, %v1054
        %v1056 = vrcp.pop %v1035
        %v1057 = vmul.f32 %v1017, %v1056
        %v1058 = vrcp.pop %v1038
        %v1059 = vmul.f32 %v1019, %v1058
        %v1060 = vrcp.pop %v1041
        %v1061 = vmul.f32 %v1021, %v1060
        %v1062 = vrcp.pop %v1044
        %v1063 = vmul.f32 %v1023, %v1062
        %v1064 = vrcp.pop %v1047
        %v1065 = vmul.f32 %v1025, %v1064
        %v1066 = vrcp.pop %v1050
        %v1067 = vmul.f32 %v1027, %v1066
        %v1068 = vrcp.pop %v1053
        %v1069 = vmul.f32 %v1029, %v1068
        %v1070 = vld [vmem:[#allocation6] sm:$0xff]
        %v1071 = vld [vmem:[#allocation6 + $0x8] sm:$0xff]
        %v1072 = vld [vmem:[#allocation6 + $0x10] sm:$0xff]
        %v1073 = vld [vmem:[#allocation6 + $0x18] sm:$0xff]
        %1074 = vmatprep.subr.mxu0 0.0
        %1075 = vmatpush1.msra.mxu0 %v1070
        %1076 = vmatprep.subr.mxu0 0.0
        %1077 = vmatpush1.msra.mxu0 %v1071
        %1078 = vmatprep.subr.mxu0 0.0
        %1079 = vmatpush1.msra.mxu0 %v1072
        %1080 = vmatprep.subr.mxu0 0.0
        %1081 = vmatpush1.msra.mxu0 %v1073
        %1082 = vmatprep.subr.mxu0 0.0
        %1083 = vmatpush1.msra.mxu0 0.0
        %1084 = vmatprep.subr.mxu0 0.0
        %1085 = vmatpush1.msra.mxu0 0.0
        %1086 = vmatprep.subr.mxu0 0.0
        %1087 = vmatpush1.msra.mxu0 0.0
        %1088 = vmatprep.subr.mxu0 0.0
        %1089 = vmatpush1.msra.mxu0 0.0
        %1090 = vmatprep.subr.mxu0 0.0
        %1091 = vmatpush1.msra.mxu0 0.0
        %1092 = vmatprep.subr.mxu0 0.0
        %1093 = vmatpush1.msra.mxu0 0.0
        %1094 = vmatprep.subr.mxu0 0.0
        %1095 = vmatpush1.msra.mxu0 0.0
        %1096 = vmatprep.subr.mxu0 0.0
        %1097 = vmatpush1.msra.mxu0 0.0
        %1098 = vmatprep.subr.mxu0 0.0
        %1099 = vmatpush1.msra.mxu0 0.0
        %1100 = vmatprep.subr.mxu0 0.0
        %1101 = vmatpush1.msra.mxu0 0.0
        %1102 = vmatprep.subr.mxu0 0.0
        %1103 = vmatpush1.msra.mxu0 0.0
        %1104 = vmatprep.subr.mxu0 0.0
        %1105 = vmatpush1.msra.mxu0 0.0
        %1106 = vmatprep.subr.mxu0 0.0
        %1107 = vmatpush1.msra.mxu0 0.0
        %1108 = vmatprep.subr.mxu0 0.0
        %1109 = vmatpush1.msra.mxu0 0.0
        %1110 = vmatprep.subr.mxu0 0.0
        %1111 = vmatpush1.msra.mxu0 0.0
        %1112 = vmatprep.subr.mxu0 0.0
        %1113 = vmatpush1.msra.mxu0 0.0
        %1114 = vmatprep.subr.mxu0 0.0
        %1115 = vmatpush1.msra.mxu0 0.0
        %1116 = vmatprep.subr.mxu0 0.0
        %1117 = vmatpush1.msra.mxu0 0.0
        %1118 = vmatprep.subr.mxu0 0.0
        %1119 = vmatpush1.msra.mxu0 0.0
        %1120 = vmatprep.subr.mxu0 0.0
        %1121 = vmatpush1.msra.mxu0 0.0
        %1122 = vmatprep.subr.mxu0 0.0
        %1123 = vmatpush1.msra.mxu0 0.0
        %1124 = vmatprep.subr.mxu0 0.0
        %1125 = vmatpush1.msra.mxu0 0.0
        %1126 = vmatprep.subr.mxu0 0.0
        %1127 = vmatpush1.msra.mxu0 0.0
        %1128 = vmatprep.subr.mxu0 0.0
        %1129 = vmatpush1.msra.mxu0 0.0
        %1130 = vmatprep.subr.mxu0 0.0
        %1131 = vmatpush1.msra.mxu0 0.0
        %1132 = vmatprep.subr.mxu0 0.0
        %1133 = vmatpush1.msra.mxu0 0.0
        %1134 = vmatprep.subr.mxu0 0.0
        %1135 = vmatpush1.msra.mxu0 0.0
        %1136 = vmatprep.subr.mxu0 0.0
        %1137 = vmatpush1.msra.mxu0 0.0
        %1138 = vmatprep.mubr.f32.mxu0 0.0
        %1139 = vmatmul.mubr.f32.gmra.mrb[0].mxu0 %v683
        %v1140 = vpop.f32.mrb[0].mxu0
        %v1141 = vadd.f32 0.0, %v1140
        %v1142 = vpop.f32.mrb[0].mxu0
        %1143 = vmatprep.mubr.f32.mxu0 0.0
        %1144 = vmatmul.mubr.f32.gmra.mrb[0].mxu0 %v686
        %v1145 = vpop.f32.mrb[0].mxu0
        %v1146 = vadd.f32 0.0, %v1145
        %v1147 = vpop.f32.mrb[0].mxu0
        %1148 = vmatprep.mubr.f32.mxu0 0.0
        %1149 = vmatmul.mubr.f32.gmra.mrb[0].mxu0 %v689
        %v1150 = vpop.f32.mrb[0].mxu0
        %v1151 = vadd.f32 0.0, %v1150
        %v1152 = vpop.f32.mrb[0].mxu0
        %1153 = vmatprep.mubr.f32.mxu0 0.0
        %1154 = vmatmul.mubr.f32.gmra.mrb[0].mxu0 %v692
        %v1155 = vpop.f32.mrb[0].mxu0
        %v1156 = vadd.f32 0.0, %v1155
        %v1157 = vpop.f32.mrb[0].mxu0
        %1158 = vmatprep.mubr.f32.mxu0 0.0
        %1159 = vmatmul.mubr.f32.gmra.mrb[0].mxu0 %v695
        %v1160 = vpop.f32.mrb[0].mxu0
        %v1161 = vadd.f32 0.0, %v1160
        %v1162 = vpop.f32.mrb[0].mxu0
        %1163 = vmatprep.mubr.f32.mxu0 0.0
        %1164 = vmatmul.mubr.f32.gmra.mrb[0].mxu0 %v698
        %v1165 = vpop.f32.mrb[0].mxu0
        %v1166 = vadd.f32 0.0, %v1165
        %v1167 = vpop.f32.mrb[0].mxu0
        %1168 = vmatprep.mubr.f32.mxu0 0.0
        %1169 = vmatmul.mubr.f32.gmra.mrb[0].mxu0 %v701
        %v1170 = vpop.f32.mrb[0].mxu0
        %v1171 = vadd.f32 0.0, %v1170
        %v1172 = vpop.f32.mrb[0].mxu0
        %1173 = vmatprep.mubr.f32.mxu0 0.0
        %1174 = vmatmul.mubr.f32.gmra.mrb[0].mxu0 %v704
        %v1175 = vpop.f32.mrb[0].mxu0
        %v1176 = vadd.f32 0.0, %v1175
        %v1177 = vpop.f32.mrb[0].mxu0
        %1178 = vdwg.mxu0
        %s1179 = scalar_lea.vmem [#allocation2], 64
        %v1180 = vld [vmem:[%s1179] sm:$0xff]
        %v1181 = vld [vmem:[%s1179 + $0x8] sm:$0xff]
        %v1182 = vld [vmem:[%s1179 + $0x10] sm:$0xff]
        %v1183 = vld [vmem:[%s1179 + $0x18] sm:$0xff]
        %v1184 = vld [vmem:[%s1179 + $0x20] sm:$0xff]
        %v1185 = vld [vmem:[%s1179 + $0x28] sm:$0xff]
        %v1186 = vld [vmem:[%s1179 + $0x30] sm:$0xff]
        %v1187 = vld [vmem:[%s1179 + $0x38] sm:$0xff]
        %1188 = vrot.lane.b32.xlu0 %v773, 112
        %v1189 = vpop.permute.xlu0 %1188
        %1190 = vrot.lane.b32.xlu0 %v778, 112
        %v1191 = vpop.permute.xlu0 %1190
        %1192 = vrot.lane.b32.xlu0 %v783, 112
        %v1193 = vpop.permute.xlu0 %1192
        %1194 = vrot.lane.b32.xlu0 %v788, 112
        %v1195 = vpop.permute.xlu0 %1194
        %1196 = vrot.lane.b32.xlu0 %v793, 112
        %v1197 = vpop.permute.xlu0 %1196
        %1198 = vrot.lane.b32.xlu0 %v798, 112
        %v1199 = vpop.permute.xlu0 %1198
        %1200 = vrot.lane.b32.xlu0 %v803, 112
        %v1201 = vpop.permute.xlu0 %1200
        %1202 = vrot.lane.b32.xlu0 %v808, 112
        %v1203 = vpop.permute.xlu0 %1202
        %1204 = vrot.lane.b32.xlu0 %v773, 80
        %v1205 = vpop.permute.xlu0 %1204
        %1206 = vrot.lane.b32.xlu0 %v778, 80
        %v1207 = vpop.permute.xlu0 %1206
        %1208 = vrot.lane.b32.xlu0 %v783, 80
        %v1209 = vpop.permute.xlu0 %1208
        %1210 = vrot.lane.b32.xlu0 %v788, 80
        %v1211 = vpop.permute.xlu0 %1210
        %1212 = vrot.lane.b32.xlu0 %v793, 80
        %v1213 = vpop.permute.xlu0 %1212
        %1214 = vrot.lane.b32.xlu0 %v798, 80
        %v1215 = vpop.permute.xlu0 %1214
        %1216 = vrot.lane.b32.xlu0 %v803, 80
        %v1217 = vpop.permute.xlu0 %1216
        %1218 = vrot.lane.b32.xlu0 %v808, 80
        %v1219 = vpop.permute.xlu0 %1218
        %v1220 = vsel %vm843, %v1189, 0
        %v1222 = vsel %vm843, %v1191, 0
        %v1224 = vsel %vm843, %v1193, 0
        %v1226 = vsel %vm843, %v1195, 0
        %v1228 = vsel %vm843, %v1197, 0
        %v1230 = vsel %vm843, %v1199, 0
        %v1232 = vsel %vm843, %v1201, 0
        %v1234 = vsel %vm843, %v1203, 0
        %v1236 = vsel %vm843, %v1205, 0
        %v1238 = vsel %vm843, %v1207, 0
        %v1240 = vsel %vm843, %v1209, 0
        %v1242 = vsel %vm843, %v1211, 0
        %v1244 = vsel %vm843, %v1213, 0
        %v1246 = vsel %vm843, %v1215, 0
        %v1248 = vsel %vm843, %v1217, 0
        %v1250 = vsel %vm843, %v1219, 0
        %1252 = vmatprep.subr.mxu0 0.0
        %1253 = vmatpush1.xpose.msra.mxu0 %v1236
        %1254 = vmatprep.subr.mxu0 0.0
        %1255 = vmatpush1.xpose.msra.mxu0 %v1238
        %1256 = vmatprep.subr.mxu0 0.0
        %1257 = vmatpush1.xpose.msra.mxu0 %v1240
        %1258 = vmatprep.subr.mxu0 0.0
        %1259 = vmatpush1.xpose.msra.mxu0 %v1242
        %1260 = vmatprep.subr.mxu0 0.0
        %1261 = vmatpush1.xpose.msra.mxu0 %v1244
        %1262 = vmatprep.subr.mxu0 0.0
        %1263 = vmatpush1.xpose.msra.mxu0 %v1246
        %1264 = vmatprep.subr.mxu0 0.0
        %1265 = vmatpush1.xpose.msra.mxu0 %v1248
        %1266 = vmatprep.subr.mxu0 0.0
        %1267 = vmatpush1.xpose.msra.mxu0 %v1250
        %1268 = vmatprep.subr.mxu0 0.0
        %1269 = vmatpush1.xpose.msra.mxu0 0.0
        %1270 = vmatprep.subr.mxu0 0.0
        %1271 = vmatpush1.xpose.msra.mxu0 0.0
        %1272 = vmatprep.subr.mxu0 0.0
        %1273 = vmatpush1.xpose.msra.mxu0 0.0
        %1274 = vmatprep.subr.mxu0 0.0
        %1275 = vmatpush1.xpose.msra.mxu0 0.0
        %1276 = vmatprep.subr.mxu0 0.0
        %1277 = vmatpush1.xpose.msra.mxu0 0.0
        %1278 = vmatprep.subr.mxu0 0.0
        %1279 = vmatpush1.xpose.msra.mxu0 0.0
        %1280 = vmatprep.subr.mxu0 0.0
        %1281 = vmatpush1.xpose.msra.mxu0 0.0
        %1282 = vmatprep.subr.mxu0 0.0
        %1283 = vmatpush1.xpose.msra.mxu0 0.0
        %1284 = vmatprep.subr.mxu0 0.0
        %1285 = vmatpush1.xpose.msra.mxu0 0.0
        %1286 = vmatprep.subr.mxu0 0.0
        %1287 = vmatpush1.xpose.msra.mxu0 0.0
        %1288 = vmatprep.subr.mxu0 0.0
        %1289 = vmatpush1.xpose.msra.mxu0 0.0
        %1290 = vmatprep.subr.mxu0 0.0
        %1291 = vmatpush1.xpose.msra.mxu0 0.0
        %1292 = vmatprep.subr.mxu0 0.0
        %1293 = vmatpush1.xpose.msra.mxu0 0.0
        %1294 = vmatprep.subr.mxu0 0.0
        %1295 = vmatpush1.xpose.msra.mxu0 0.0
        %1296 = vmatprep.subr.mxu0 0.0
        %1297 = vmatpush1.xpose.msra.mxu0 0.0
        %1298 = vmatprep.subr.mxu0 0.0
        %1299 = vmatpush1.xpose.msra.mxu0 0.0
        %1300 = vmatprep.subr.mxu0 0.0
        %1301 = vmatpush1.xpose.msra.mxu0 0.0
        %1302 = vmatprep.subr.mxu0 0.0
        %1303 = vmatpush1.xpose.msra.mxu0 0.0
        %1304 = vmatprep.subr.mxu0 0.0
        %1305 = vmatpush1.xpose.msra.mxu0 0.0
        %1306 = vmatprep.subr.mxu0 0.0
        %1307 = vmatpush1.xpose.msra.mxu0 0.0
        %1308 = vmatprep.subr.mxu0 0.0
        %1309 = vmatpush1.xpose.msra.mxu0 0.0
        %1310 = vmatprep.subr.mxu0 0.0
        %1311 = vmatpush1.xpose.msra.mxu0 0.0
        %1312 = vmatprep.subr.mxu0 0.0
        %1313 = vmatpush1.xpose.msra.mxu0 0.0
        %1314 = vmatprep.subr.mxu0 0.0
        %1315 = vmatpush1.xpose.msra.mxu0 0.0
        %1316 = vmatprep.mubr.f32.mxu0 0.0
        %1317 = vmatmul.mubr.f32.gmra.mrb[0].mxu0 %v1220
        %v1318 = vpop.f32.mrb[0].mxu0
        %v1319 = vadd.f32 %v1180, %v1318
        %v1320 = vpop.f32.mrb[0].mxu0
        %1321 = vmatprep.mubr.f32.mxu0 0.0
        %1322 = vmatmul.mubr.f32.gmra.mrb[0].mxu0 %v1222
        %v1323 = vpop.f32.mrb[0].mxu0
        %v1324 = vadd.f32 %v1181, %v1323
        %v1325 = vpop.f32.mrb[0].mxu0
        %1326 = vmatprep.mubr.f32.mxu0 0.0
        %1327 = vmatmul.mubr.f32.gmra.mrb[0].mxu0 %v1224
        %v1328 = vpop.f32.mrb[0].mxu0
        %v1329 = vadd.f32 %v1182, %v1328
        %v1330 = vpop.f32.mrb[0].mxu0
        %1331 = vmatprep.mubr.f32.mxu0 0.0
        %1332 = vmatmul.mubr.f32.gmra.mrb[0].mxu0 %v1226
        %v1333 = vpop.f32.mrb[0].mxu0
        %v1334 = vadd.f32 %v1183, %v1333
        %v1335 = vpop.f32.mrb[0].mxu0
        %1336 = vmatprep.mubr.f32.mxu0 0.0
        %1337 = vmatmul.mubr.f32.gmra.mrb[0].mxu0 %v1228
        %v1338 = vpop.f32.mrb[0].mxu0
        %v1339 = vadd.f32 %v1184, %v1338
        %v1340 = vpop.f32.mrb[0].mxu0
        %1341 = vmatprep.mubr.f32.mxu0 0.0
        %1342 = vmatmul.mubr.f32.gmra.mrb[0].mxu0 %v1230
        %v1343 = vpop.f32.mrb[0].mxu0
        %v1344 = vadd.f32 %v1185, %v1343
        %v1345 = vpop.f32.mrb[0].mxu0
        %1346 = vmatprep.mubr.f32.mxu0 0.0
        %1347 = vmatmul.mubr.f32.gmra.mrb[0].mxu0 %v1232
        %v1348 = vpop.f32.mrb[0].mxu0
        %v1349 = vadd.f32 %v1186, %v1348
        %v1350 = vpop.f32.mrb[0].mxu0
        %1351 = vmatprep.mubr.f32.mxu0 0.0
        %1352 = vmatmul.mubr.f32.gmra.mrb[0].mxu0 %v1234
        %v1353 = vpop.f32.mrb[0].mxu0
        %v1354 = vadd.f32 %v1187, %v1353
        %v1355 = vpop.f32.mrb[0].mxu0
        %1356 = vdwg.mxu0
        %v1357 = vsel %vm981, %v1319, -inf
        %1358 = vmax.xlane.f32.xlu0 %v1357
        %v1359 = vpop.xlane.xlu0 %1358
        %v1360 = vsel %vm981, %v1324, -inf
        %1361 = vmax.xlane.f32.xlu0 %v1360
        %v1362 = vpop.xlane.xlu0 %1361
        %v1363 = vsel %vm981, %v1329, -inf
        %1364 = vmax.xlane.f32.xlu0 %v1363
        %v1365 = vpop.xlane.xlu0 %1364
        %v1366 = vsel %vm981, %v1334, -inf
        %1367 = vmax.xlane.f32.xlu0 %v1366
        %v1368 = vpop.xlane.xlu0 %1367
        %v1369 = vsel %vm981, %v1339, -inf
        %1370 = vmax.xlane.f32.xlu0 %v1369
        %v1371 = vpop.xlane.xlu0 %1370
        %v1372 = vsel %vm981, %v1344, -inf
        %1373 = vmax.xlane.f32.xlu0 %v1372
        %v1374 = vpop.xlane.xlu0 %1373
        %v1375 = vsel %vm981, %v1349, -inf
        %1376 = vmax.xlane.f32.xlu0 %v1375
        %v1377 = vpop.xlane.xlu0 %1376
        %v1378 = vsel %vm981, %v1354, -inf
        %1379 = vmax.xlane.f32.xlu0 %v1378
        %v1380 = vpop.xlane.xlu0 %1379
        %v1381 = vsub.f32 %v1319, %v1359
        %v1382 = vsub.f32 %v1324, %v1362
        %v1383 = vsub.f32 %v1329, %v1365
        %v1384 = vsub.f32 %v1334, %v1368
        %v1385 = vsub.f32 %v1339, %v1371
        %v1386 = vsub.f32 %v1344, %v1374
        %v1387 = vsub.f32 %v1349, %v1377
        %v1388 = vsub.f32 %v1354, %v1380
        %v1389 = vmul.f32 %v1381, 1.442695
        %v1390 = vpow.pop %v1389
        %v1391 = vmul.f32 %v1382, 1.442695
        %v1392 = vpow.pop %v1391
        %v1393 = vmul.f32 %v1383, 1.442695
        %v1394 = vpow.pop %v1393
        %v1395 = vmul.f32 %v1384, 1.442695
        %v1396 = vpow.pop %v1395
        %v1397 = vmul.f32 %v1385, 1.442695
        %v1398 = vpow.pop %v1397
        %v1399 = vmul.f32 %v1386, 1.442695
        %v1400 = vpow.pop %v1399
        %v1401 = vmul.f32 %v1387, 1.442695
        %v1402 = vpow.pop %v1401
        %v1403 = vmul.f32 %v1388, 1.442695
        %v1404 = vpow.pop %v1403
        %v1405 = vsel %vm981, %v1390, 0.0
        %1406 = vadd.xlane.f32.xlu0 %v1405
        %v1407 = vpop.xlane.xlu0 %1406
        %v1408 = vsel %vm981, %v1392, 0.0
        %1409 = vadd.xlane.f32.xlu0 %v1408
        %v1410 = vpop.xlane.xlu0 %1409
        %v1411 = vsel %vm981, %v1394, 0.0
        %1412 = vadd.xlane.f32.xlu0 %v1411
        %v1413 = vpop.xlane.xlu0 %1412
        %v1414 = vsel %vm981, %v1396, 0.0
        %1415 = vadd.xlane.f32.xlu0 %v1414
        %v1416 = vpop.xlane.xlu0 %1415
        %v1417 = vsel %vm981, %v1398, 0.0
        %1418 = vadd.xlane.f32.xlu0 %v1417
        %v1419 = vpop.xlane.xlu0 %1418
        %v1420 = vsel %vm981, %v1400, 0.0
        %1421 = vadd.xlane.f32.xlu0 %v1420
        %v1422 = vpop.xlane.xlu0 %1421
        %v1423 = vsel %vm981, %v1402, 0.0
        %1424 = vadd.xlane.f32.xlu0 %v1423
        %v1425 = vpop.xlane.xlu0 %1424
        %v1426 = vsel %vm981, %v1404, 0.0
        %1427 = vadd.xlane.f32.xlu0 %v1426
        %v1428 = vpop.xlane.xlu0 %1427
        %v1429 = vrcp.pop %v1407
        %v1430 = vmul.f32 %v1390, %v1429
        %v1431 = vrcp.pop %v1410
        %v1432 = vmul.f32 %v1392, %v1431
        %v1433 = vrcp.pop %v1413
        %v1434 = vmul.f32 %v1394, %v1433
        %v1435 = vrcp.pop %v1416
        %v1436 = vmul.f32 %v1396, %v1435
        %v1437 = vrcp.pop %v1419
        %v1438 = vmul.f32 %v1398, %v1437
        %v1439 = vrcp.pop %v1422
        %v1440 = vmul.f32 %v1400, %v1439
        %v1441 = vrcp.pop %v1425
        %v1442 = vmul.f32 %v1402, %v1441
        %v1443 = vrcp.pop %v1428
        %v1444 = vmul.f32 %v1404, %v1443
        %s1445 = scalar_lea.vmem [#allocation6], 32
        %v1446 = vld [vmem:[%s1445] sm:$0xff]
        %v1447 = vld [vmem:[%s1445 + $0x8] sm:$0xff]
        %v1448 = vld [vmem:[%s1445 + $0x10] sm:$0xff]
        %v1449 = vld [vmem:[%s1445 + $0x18] sm:$0xff]
        %1450 = vmatprep.subr.mxu0 0.0
        %1451 = vmatpush1.msra.mxu0 %v1446
        %1452 = vmatprep.subr.mxu0 0.0
        %1453 = vmatpush1.msra.mxu0 %v1447
        %1454 = vmatprep.subr.mxu0 0.0
        %1455 = vmatpush1.msra.mxu0 %v1448
        %1456 = vmatprep.subr.mxu0 0.0
        %1457 = vmatpush1.msra.mxu0 %v1449
        %1458 = vmatprep.subr.mxu0 0.0
        %1459 = vmatpush1.msra.mxu0 0.0
        %1460 = vmatprep.subr.mxu0 0.0
        %1461 = vmatpush1.msra.mxu0 0.0
        %1462 = vmatprep.subr.mxu0 0.0
        %1463 = vmatpush1.msra.mxu0 0.0
        %1464 = vmatprep.subr.mxu0 0.0
        %1465 = vmatpush1.msra.mxu0 0.0
        %1466 = vmatprep.subr.mxu0 0.0
        %1467 = vmatpush1.msra.mxu0 0.0
        %1468 = vmatprep.subr.mxu0 0.0
        %1469 = vmatpush1.msra.mxu0 0.0
        %1470 = vmatprep.subr.mxu0 0.0
        %1471 = vmatpush1.msra.mxu0 0.0
        %1472 = vmatprep.subr.mxu0 0.0
        %1473 = vmatpush1.msra.mxu0 0.0
        %1474 = vmatprep.subr.mxu0 0.0
        %1475 = vmatpush1.msra.mxu0 0.0
        %1476 = vmatprep.subr.mxu0 0.0
        %1477 = vmatpush1.msra.mxu0 0.0
        %1478 = vmatprep.subr.mxu0 0.0
        %1479 = vmatpush1.msra.mxu0 0.0
        %1480 = vmatprep.subr.mxu0 0.0
        %1481 = vmatpush1.msra.mxu0 0.0
        %1482 = vmatprep.subr.mxu0 0.0
        %1483 = vmatpush1.msra.mxu0 0.0
        %1484 = vmatprep.subr.mxu0 0.0
        %1485 = vmatpush1.msra.mxu0 0.0
        %1486 = vmatprep.subr.mxu0 0.0
        %1487 = vmatpush1.msra.mxu0 0.0
        %1488 = vmatprep.subr.mxu0 0.0
        %1489 = vmatpush1.msra.mxu0 0.0
        %1490 = vmatprep.subr.mxu0 0.0
        %1491 = vmatpush1.msra.mxu0 0.0
        %1492 = vmatprep.subr.mxu0 0.0
        %1493 = vmatpush1.msra.mxu0 0.0
        %1494 = vmatprep.subr.mxu0 0.0
        %1495 = vmatpush1.msra.mxu0 0.0
        %1496 = vmatprep.subr.mxu0 0.0
        %1497 = vmatpush1.msra.mxu0 0.0
        %1498 = vmatprep.subr.mxu0 0.0
        %1499 = vmatpush1.msra.mxu0 0.0
        %1500 = vmatprep.subr.mxu0 0.0
        %1501 = vmatpush1.msra.mxu0 0.0
        %1502 = vmatprep.subr.mxu0 0.0
        %1503 = vmatpush1.msra.mxu0 0.0
        %1504 = vmatprep.subr.mxu0 0.0
        %1505 = vmatpush1.msra.mxu0 0.0
        %1506 = vmatprep.subr.mxu0 0.0
        %1507 = vmatpush1.msra.mxu0 0.0
        %1508 = vmatprep.subr.mxu0 0.0
        %1509 = vmatpush1.msra.mxu0 0.0
        %1510 = vmatprep.subr.mxu0 0.0
        %1511 = vmatpush1.msra.mxu0 0.0
        %1512 = vmatprep.subr.mxu0 0.0
        %1513 = vmatpush1.msra.mxu0 0.0
        %1514 = vmatprep.mubr.f32.mxu0 0.0
        %1515 = vmatmul.mubr.f32.gmra.mrb[0].mxu0 %v683
        %v1516 = vpop.f32.mrb[0].mxu0
        %v1517 = vadd.f32 0.0, %v1516
        %v1518 = vpop.f32.mrb[0].mxu0
        %1519 = vmatprep.mubr.f32.mxu0 0.0
        %1520 = vmatmul.mubr.f32.gmra.mrb[0].mxu0 %v686
        %v1521 = vpop.f32.mrb[0].mxu0
        %v1522 = vadd.f32 0.0, %v1521
        %v1523 = vpop.f32.mrb[0].mxu0
        %1524 = vmatprep.mubr.f32.mxu0 0.0
        %1525 = vmatmul.mubr.f32.gmra.mrb[0].mxu0 %v689
        %v1526 = vpop.f32.mrb[0].mxu0
        %v1527 = vadd.f32 0.0, %v1526
        %v1528 = vpop.f32.mrb[0].mxu0
        %1529 = vmatprep.mubr.f32.mxu0 0.0
        %1530 = vmatmul.mubr.f32.gmra.mrb[0].mxu0 %v692
        %v1531 = vpop.f32.mrb[0].mxu0
        %v1532 = vadd.f32 0.0, %v1531
        %v1533 = vpop.f32.mrb[0].mxu0
        %1534 = vmatprep.mubr.f32.mxu0 0.0
        %1535 = vmatmul.mubr.f32.gmra.mrb[0].mxu0 %v695
        %v1536 = vpop.f32.mrb[0].mxu0
        %v1537 = vadd.f32 0.0, %v1536
        %v1538 = vpop.f32.mrb[0].mxu0
        %1539 = vmatprep.mubr.f32.mxu0 0.0
        %1540 = vmatmul.mubr.f32.gmra.mrb[0].mxu0 %v698
        %v1541 = vpop.f32.mrb[0].mxu0
        %v1542 = vadd.f32 0.0, %v1541
        %v1543 = vpop.f32.mrb[0].mxu0
        %1544 = vmatprep.mubr.f32.mxu0 0.0
        %1545 = vmatmul.mubr.f32.gmra.mrb[0].mxu0 %v701
        %v1546 = vpop.f32.mrb[0].mxu0
        %v1547 = vadd.f32 0.0, %v1546
        %v1548 = vpop.f32.mrb[0].mxu0
        %1549 = vmatprep.mubr.f32.mxu0 0.0
        %1550 = vmatmul.mubr.f32.gmra.mrb[0].mxu0 %v704
        %v1551 = vpop.f32.mrb[0].mxu0
        %v1552 = vadd.f32 0.0, %v1551
        %v1553 = vpop.f32.mrb[0].mxu0
        %1554 = vdwg.mxu0
        %v1556 = vsel %vm981, %v1430, 0
        %v1559 = vsel %vm981, %v1432, 0
        %v1562 = vsel %vm981, %v1434, 0
        %v1565 = vsel %vm981, %v1436, 0
        %v1568 = vsel %vm981, %v1438, 0
        %v1571 = vsel %vm981, %v1440, 0
        %v1574 = vsel %vm981, %v1442, 0
        %v1577 = vsel %vm981, %v1444, 0
        %1579 = vmatprep.subr.mxu0 0.0
        %1580 = vmatpush1.msra.mxu0 %v1517
        %1581 = vmatprep.subr.mxu0 0.0
        %1582 = vmatpush1.msra.mxu0 %v1522
        %1583 = vmatprep.subr.mxu0 0.0
        %1584 = vmatpush1.msra.mxu0 %v1527
        %1585 = vmatprep.subr.mxu0 0.0
        %1586 = vmatpush1.msra.mxu0 %v1532
        %1587 = vmatprep.subr.mxu0 0.0
        %1588 = vmatpush1.msra.mxu0 %v1537
        %1589 = vmatprep.subr.mxu0 0.0
        %1590 = vmatpush1.msra.mxu0 %v1542
        %1591 = vmatprep.subr.mxu0 0.0
        %1592 = vmatpush1.msra.mxu0 %v1547
        %1593 = vmatprep.subr.mxu0 0.0
        %1594 = vmatpush1.msra.mxu0 %v1552
        %1595 = vmatprep.subr.mxu0 0.0
        %1596 = vmatpush1.msra.mxu0 0.0
        %1597 = vmatprep.subr.mxu0 0.0
        %1598 = vmatpush1.msra.mxu0 0.0
        %1599 = vmatprep.subr.mxu0 0.0
        %1600 = vmatpush1.msra.mxu0 0.0
        %1601 = vmatprep.subr.mxu0 0.0
        %1602 = vmatpush1.msra.mxu0 0.0
        %1603 = vmatprep.subr.mxu0 0.0
        %1604 = vmatpush1.msra.mxu0 0.0
        %1605 = vmatprep.subr.mxu0 0.0
        %1606 = vmatpush1.msra.mxu0 0.0
        %1607 = vmatprep.subr.mxu0 0.0
        %1608 = vmatpush1.msra.mxu0 0.0
        %1609 = vmatprep.subr.mxu0 0.0
        %1610 = vmatpush1.msra.mxu0 0.0
        %1611 = vmatprep.subr.mxu0 0.0
        %1612 = vmatpush1.msra.mxu0 0.0
        %1613 = vmatprep.subr.mxu0 0.0
        %1614 = vmatpush1.msra.mxu0 0.0
        %1615 = vmatprep.subr.mxu0 0.0
        %1616 = vmatpush1.msra.mxu0 0.0
        %1617 = vmatprep.subr.mxu0 0.0
        %1618 = vmatpush1.msra.mxu0 0.0
        %1619 = vmatprep.subr.mxu0 0.0
        %1620 = vmatpush1.msra.mxu0 0.0
        %1621 = vmatprep.subr.mxu0 0.0
        %1622 = vmatpush1.msra.mxu0 0.0
        %1623 = vmatprep.subr.mxu0 0.0
        %1624 = vmatpush1.msra.mxu0 0.0
        %1625 = vmatprep.subr.mxu0 0.0
        %1626 = vmatpush1.msra.mxu0 0.0
        %1627 = vmatprep.subr.mxu0 0.0
        %1628 = vmatpush1.msra.mxu0 0.0
        %1629 = vmatprep.subr.mxu0 0.0
        %1630 = vmatpush1.msra.mxu0 0.0
        %1631 = vmatprep.subr.mxu0 0.0
        %1632 = vmatpush1.msra.mxu0 0.0
        %1633 = vmatprep.subr.mxu0 0.0
        %1634 = vmatpush1.msra.mxu0 0.0
        %1635 = vmatprep.subr.mxu0 0.0
        %1636 = vmatpush1.msra.mxu0 0.0
        %1637 = vmatprep.subr.mxu0 0.0
        %1638 = vmatpush1.msra.mxu0 0.0
        %1639 = vmatprep.subr.mxu0 0.0
        %1640 = vmatpush1.msra.mxu0 0.0
        %1641 = vmatprep.subr.mxu0 0.0
        %1642 = vmatpush1.msra.mxu0 0.0
        %1643 = vmatprep.mubr.f32.mxu0 0.0
        %1644 = vmatmul.mubr.f32.gmra.mrb[0].mxu0 %v1556
        %v1645 = vpop.f32.mrb[0].mxu0
        %v1646 = vadd.f32 0.0, %v1645
        %v1647 = vpop.f32.mrb[0].mxu0
        %1648 = vmatprep.mubr.f32.mxu0 0.0
        %1649 = vmatmul.mubr.f32.gmra.mrb[0].mxu0 %v1559
        %v1650 = vpop.f32.mrb[0].mxu0
        %v1651 = vadd.f32 0.0, %v1650
        %v1652 = vpop.f32.mrb[0].mxu0
        %1653 = vmatprep.mubr.f32.mxu0 0.0
        %1654 = vmatmul.mubr.f32.gmra.mrb[0].mxu0 %v1562
        %v1655 = vpop.f32.mrb[0].mxu0
        %v1656 = vadd.f32 0.0, %v1655
        %v1657 = vpop.f32.mrb[0].mxu0
        %1658 = vmatprep.mubr.f32.mxu0 0.0
        %1659 = vmatmul.mubr.f32.gmra.mrb[0].mxu0 %v1565
        %v1660 = vpop.f32.mrb[0].mxu0
        %v1661 = vadd.f32 0.0, %v1660
        %v1662 = vpop.f32.mrb[0].mxu0
        %1663 = vmatprep.mubr.f32.mxu0 0.0
        %1664 = vmatmul.mubr.f32.gmra.mrb[0].mxu0 %v1568
        %v1665 = vpop.f32.mrb[0].mxu0
        %v1666 = vadd.f32 0.0, %v1665
        %v1667 = vpop.f32.mrb[0].mxu0
        %1668 = vmatprep.mubr.f32.mxu0 0.0
        %1669 = vmatmul.mubr.f32.gmra.mrb[0].mxu0 %v1571
        %v1670 = vpop.f32.mrb[0].mxu0
        %v1671 = vadd.f32 0.0, %v1670
        %v1672 = vpop.f32.mrb[0].mxu0
        %1673 = vmatprep.mubr.f32.mxu0 0.0
        %1674 = vmatmul.mubr.f32.gmra.mrb[0].mxu0 %v1574
        %v1675 = vpop.f32.mrb[0].mxu0
        %v1676 = vadd.f32 0.0, %v1675
        %v1677 = vpop.f32.mrb[0].mxu0
        %1678 = vmatprep.mubr.f32.mxu0 0.0
        %1679 = vmatmul.mubr.f32.gmra.mrb[0].mxu0 %v1577
        %v1680 = vpop.f32.mrb[0].mxu0
        %v1681 = vadd.f32 0.0, %v1680
        %v1682 = vpop.f32.mrb[0].mxu0
        %1683 = vdwg.mxu0
        %v1685 = vsel %vm981, %v1055, 0
        %v1688 = vsel %vm981, %v1057, 0
        %v1691 = vsel %vm981, %v1059, 0
        %v1694 = vsel %vm981, %v1061, 0
        %v1697 = vsel %vm981, %v1063, 0
        %v1700 = vsel %vm981, %v1065, 0
        %v1703 = vsel %vm981, %v1067, 0
        %v1706 = vsel %vm981, %v1069, 0
        %1708 = vmatprep.subr.mxu0 0.0
        %1709 = vmatpush1.msra.mxu0 %v1141
        %1710 = vmatprep.subr.mxu0 0.0
        %1711 = vmatpush1.msra.mxu0 %v1146
        %1712 = vmatprep.subr.mxu0 0.0
        %1713 = vmatpush1.msra.mxu0 %v1151
        %1714 = vmatprep.subr.mxu0 0.0
        %1715 = vmatpush1.msra.mxu0 %v1156
        %1716 = vmatprep.subr.mxu0 0.0
        %1717 = vmatpush1.msra.mxu0 %v1161
        %1718 = vmatprep.subr.mxu0 0.0
        %1719 = vmatpush1.msra.mxu0 %v1166
        %1720 = vmatprep.subr.mxu0 0.0
        %1721 = vmatpush1.msra.mxu0 %v1171
        %1722 = vmatprep.subr.mxu0 0.0
        %1723 = vmatpush1.msra.mxu0 %v1176
        %1724 = vmatprep.subr.mxu0 0.0
        %1725 = vmatpush1.msra.mxu0 0.0
        %1726 = vmatprep.subr.mxu0 0.0
        %1727 = vmatpush1.msra.mxu0 0.0
        %1728 = vmatprep.subr.mxu0 0.0
        %1729 = vmatpush1.msra.mxu0 0.0
        %1730 = vmatprep.subr.mxu0 0.0
        %1731 = vmatpush1.msra.mxu0 0.0
        %1732 = vmatprep.subr.mxu0 0.0
        %1733 = vmatpush1.msra.mxu0 0.0
        %1734 = vmatprep.subr.mxu0 0.0
        %1735 = vmatpush1.msra.mxu0 0.0
        %1736 = vmatprep.subr.mxu0 0.0
        %1737 = vmatpush1.msra.mxu0 0.0
        %1738 = vmatprep.subr.mxu0 0.0
        %1739 = vmatpush1.msra.mxu0 0.0
        %1740 = vmatprep.subr.mxu0 0.0
        %1741 = vmatpush1.msra.mxu0 0.0
        %1742 = vmatprep.subr.mxu0 0.0
        %1743 = vmatpush1.msra.mxu0 0.0
        %1744 = vmatprep.subr.mxu0 0.0
        %1745 = vmatpush1.msra.mxu0 0.0
        %1746 = vmatprep.subr.mxu0 0.0
        %1747 = vmatpush1.msra.mxu0 0.0
        %1748 = vmatprep.subr.mxu0 0.0
        %1749 = vmatpush1.msra.mxu0 0.0
        %1750 = vmatprep.subr.mxu0 0.0
        %1751 = vmatpush1.msra.mxu0 0.0
        %1752 = vmatprep.subr.mxu0 0.0
        %1753 = vmatpush1.msra.mxu0 0.0
        %1754 = vmatprep.subr.mxu0 0.0
        %1755 = vmatpush1.msra.mxu0 0.0
        %1756 = vmatprep.subr.mxu0 0.0
        %1757 = vmatpush1.msra.mxu0 0.0
        %1758 = vmatprep.subr.mxu0 0.0
        %1759 = vmatpush1.msra.mxu0 0.0
        %1760 = vmatprep.subr.mxu0 0.0
        %1761 = vmatpush1.msra.mxu0 0.0
        %1762 = vmatprep.subr.mxu0 0.0
        %1763 = vmatpush1.msra.mxu0 0.0
        %1764 = vmatprep.subr.mxu0 0.0
        %1765 = vmatpush1.msra.mxu0 0.0
        %1766 = vmatprep.subr.mxu0 0.0
        %1767 = vmatpush1.msra.mxu0 0.0
        %1768 = vmatprep.subr.mxu0 0.0
        %1769 = vmatpush1.msra.mxu0 0.0
        %1770 = vmatprep.subr.mxu0 0.0
        %1771 = vmatpush1.msra.mxu0 0.0
        %1772 = vmatprep.mubr.f32.mxu0 0.0
        %1773 = vmatmul.mubr.f32.gmra.mrb[0].mxu0 %v1685
        %v1774 = vpop.f32.mrb[0].mxu0
        %v1775 = vadd.f32 %v1646, %v1774
        %v1776 = vpop.f32.mrb[0].mxu0
        %1777 = vmatprep.mubr.f32.mxu0 0.0
        %1778 = vmatmul.mubr.f32.gmra.mrb[0].mxu0 %v1688
        %v1779 = vpop.f32.mrb[0].mxu0
        %v1780 = vadd.f32 %v1651, %v1779
        %v1781 = vpop.f32.mrb[0].mxu0
        %1782 = vmatprep.mubr.f32.mxu0 0.0
        %1783 = vmatmul.mubr.f32.gmra.mrb[0].mxu0 %v1691
        %v1784 = vpop.f32.mrb[0].mxu0
        %v1785 = vadd.f32 %v1656, %v1784
        %v1786 = vpop.f32.mrb[0].mxu0
        %1787 = vmatprep.mubr.f32.mxu0 0.0
        %1788 = vmatmul.mubr.f32.gmra.mrb[0].mxu0 %v1694
        %v1789 = vpop.f32.mrb[0].mxu0
        %v1790 = vadd.f32 %v1661, %v1789
        %v1791 = vpop.f32.mrb[0].mxu0
        %1792 = vmatprep.mubr.f32.mxu0 0.0
        %1793 = vmatmul.mubr.f32.gmra.mrb[0].mxu0 %v1697
        %v1794 = vpop.f32.mrb[0].mxu0
        %v1795 = vadd.f32 %v1666, %v1794
        %v1796 = vpop.f32.mrb[0].mxu0
        %1797 = vmatprep.mubr.f32.mxu0 0.0
        %1798 = vmatmul.mubr.f32.gmra.mrb[0].mxu0 %v1700
        %v1799 = vpop.f32.mrb[0].mxu0
        %v1800 = vadd.f32 %v1671, %v1799
        %v1801 = vpop.f32.mrb[0].mxu0
        %1802 = vmatprep.mubr.f32.mxu0 0.0
        %1803 = vmatmul.mubr.f32.gmra.mrb[0].mxu0 %v1703
        %v1804 = vpop.f32.mrb[0].mxu0
        %v1805 = vadd.f32 %v1676, %v1804
        %v1806 = vpop.f32.mrb[0].mxu0
        %1807 = vmatprep.mubr.f32.mxu0 0.0
        %1808 = vmatmul.mubr.f32.gmra.mrb[0].mxu0 %v1706
        %v1809 = vpop.f32.mrb[0].mxu0
        %v1810 = vadd.f32 %v1681, %v1809
        %v1811 = vpop.f32.mrb[0].mxu0
        %1812 = vdwg.mxu0
        %v1813 = vadd.f32 %v527, %v1775
        %v1814 = vadd.f32 %v528, %v1780
        %v1815 = vadd.f32 %v529, %v1785
        %v1816 = vadd.f32 %v530, %v1790
        %v1817 = vadd.f32 %v531, %v1795
        %v1818 = vadd.f32 %v532, %v1800
        %v1819 = vadd.f32 %v533, %v1805
        %v1820 = vadd.f32 %v534, %v1810
        %v1821 = vld [vmem:[%s7] sm:$0x1]
        %v1823 = vlaneseq
        %v1824 = vshrl.u32 %v1823, 7
        %v1825 = vsub.s32 0, %v1824
        %v1826 = vrot.slane %v1821, %v1825
        %v1828 = vadd.f32 %v1813, %v1826
        %v1829 = vadd.f32 %v1814, %v1826
        %v1830 = vadd.f32 %v1815, %v1826
        %v1831 = vadd.f32 %v1816, %v1826
        %v1832 = vadd.f32 %v1817, %v1826
        %v1833 = vadd.f32 %v1818, %v1826
        %v1834 = vadd.f32 %v1819, %v1826
        %v1835 = vadd.f32 %v1820, %v1826
        %v1836 = vld [vmem:[%s8] sm:$0x1]
        %v1837 = vld [vmem:[%s9] sm:$0x1]
        %v1838 = vsel %vm537, %v1828, 0.0
        %1839 = vadd.xlane.f32.xlu0 %v1838
        %v1840 = vpop.xlane.xlu0 %1839
        %v1841 = vsel %vm537, %v1829, 0.0
        %1842 = vadd.xlane.f32.xlu0 %v1841
        %v1843 = vpop.xlane.xlu0 %1842
        %v1844 = vsel %vm537, %v1830, 0.0
        %1845 = vadd.xlane.f32.xlu0 %v1844
        %v1846 = vpop.xlane.xlu0 %1845
        %v1847 = vsel %vm537, %v1831, 0.0
        %1848 = vadd.xlane.f32.xlu0 %v1847
        %v1849 = vpop.xlane.xlu0 %1848
        %v1850 = vsel %vm537, %v1832, 0.0
        %1851 = vadd.xlane.f32.xlu0 %v1850
        %v1852 = vpop.xlane.xlu0 %1851
        %v1853 = vsel %vm537, %v1833, 0.0
        %1854 = vadd.xlane.f32.xlu0 %v1853
        %v1855 = vpop.xlane.xlu0 %1854
        %v1856 = vsel %vm537, %v1834, 0.0
        %1857 = vadd.xlane.f32.xlu0 %v1856
        %v1858 = vpop.xlane.xlu0 %1857
        %v1859 = vsel %vm537, %v1835, 0.0
        %1860 = vadd.xlane.f32.xlu0 %v1859
        %v1861 = vpop.xlane.xlu0 %1860
        %v1862 = vmul.f32 %v1840, %v562
        %v1863 = vmul.f32 %v1843, %v562
        %v1864 = vmul.f32 %v1846, %v562
        %v1865 = vmul.f32 %v1849, %v562
        %v1866 = vmul.f32 %v1852, %v562
        %v1867 = vmul.f32 %v1855, %v562
        %v1868 = vmul.f32 %v1858, %v562
        %v1869 = vmul.f32 %v1861, %v562
        %v1870 = vsub.f32 %v1828, %v1862
        %v1871 = vsub.f32 %v1829, %v1863
        %v1872 = vsub.f32 %v1830, %v1864
        %v1873 = vsub.f32 %v1831, %v1865
        %v1874 = vsub.f32 %v1832, %v1866
        %v1875 = vsub.f32 %v1833, %v1867
        %v1876 = vsub.f32 %v1834, %v1868
        %v1877 = vsub.f32 %v1835, %v1869
        %v1878 = vmul.f32 %v1870, %v1870
        %v1879 = vmul.f32 %v1871, %v1871
        %v1880 = vmul.f32 %v1872, %v1872
        %v1881 = vmul.f32 %v1873, %v1873
        %v1882 = vmul.f32 %v1874, %v1874
        %v1883 = vmul.f32 %v1875, %v1875
        %v1884 = vmul.f32 %v1876, %v1876
        %v1885 = vmul.f32 %v1877, %v1877
        %v1886 = vsel %vm537, %v1878, 0.0
        %1887 = vadd.xlane.f32.xlu0 %v1886
        %v1888 = vpop.xlane.xlu0 %1887
        %v1889 = vsel %vm537, %v1879, 0.0
        %1890 = vadd.xlane.f32.xlu0 %v1889
        %v1891 = vpop.xlane.xlu0 %1890
        %v1892 = vsel %vm537, %v1880, 0.0
        %1893 = vadd.xlane.f32.xlu0 %v1892
        %v1894 = vpop.xlane.xlu0 %1893
        %v1895 = vsel %vm537, %v1881, 0.0
        %1896 = vadd.xlane.f32.xlu0 %v1895
        %v1897 = vpop.xlane.xlu0 %1896
        %v1898 = vsel %vm537, %v1882, 0.0
        %1899 = vadd.xlane.f32.xlu0 %v1898
        %v1900 = vpop.xlane.xlu0 %1899
        %v1901 = vsel %vm537, %v1883, 0.0
        %1902 = vadd.xlane.f32.xlu0 %v1901
        %v1903 = vpop.xlane.xlu0 %1902
        %v1904 = vsel %vm537, %v1884, 0.0
        %1905 = vadd.xlane.f32.xlu0 %v1904
        %v1906 = vpop.xlane.xlu0 %1905
        %v1907 = vsel %vm537, %v1885, 0.0
        %1908 = vadd.xlane.f32.xlu0 %v1907
        %v1909 = vpop.xlane.xlu0 %1908
        %v1910 = vmul.f32 %v1888, %v562
        %v1911 = vmul.f32 %v1891, %v562
        %v1912 = vmul.f32 %v1894, %v562
        %v1913 = vmul.f32 %v1897, %v562
        %v1914 = vmul.f32 %v1900, %v562
        %v1915 = vmul.f32 %v1903, %v562
        %v1916 = vmul.f32 %v1906, %v562
        %v1917 = vmul.f32 %v1909, %v562
        %v1918 = vadd.f32 %v1910, 1e-05
        %v1919 = vadd.f32 %v1911, 1e-05
        %v1920 = vadd.f32 %v1912, 1e-05
        %v1921 = vadd.f32 %v1913, 1e-05
        %v1922 = vadd.f32 %v1914, 1e-05
        %v1923 = vadd.f32 %v1915, 1e-05
        %v1924 = vadd.f32 %v1916, 1e-05
        %v1925 = vadd.f32 %v1917, 1e-05
        %v1926 = vrsqrt.pop %v1918
        %v1927 = vrsqrt.pop %v1919
        %v1928 = vrsqrt.pop %v1920
        %v1929 = vrsqrt.pop %v1921
        %v1930 = vrsqrt.pop %v1922
        %v1931 = vrsqrt.pop %v1923
        %v1932 = vrsqrt.pop %v1924
        %v1933 = vrsqrt.pop %v1925
        %v1934 = vmul.f32 %v1870, %v1926
        %v1935 = vmul.f32 %v1871, %v1927
        %v1936 = vmul.f32 %v1872, %v1928
        %v1937 = vmul.f32 %v1873, %v1929
        %v1938 = vmul.f32 %v1874, %v1930
        %v1939 = vmul.f32 %v1875, %v1931
        %v1940 = vmul.f32 %v1876, %v1932
        %v1941 = vmul.f32 %v1877, %v1933
        %v1943 = vlaneseq
        %v1944 = vshrl.u32 %v1943, 7
        %v1945 = vsub.s32 0, %v1944
        %v1946 = vrot.slane %v1836, %v1945
        %v1948 = vmul.f32 %v1934, %v1946
        %v1949 = vmul.f32 %v1935, %v1946
        %v1950 = vmul.f32 %v1936, %v1946
        %v1951 = vmul.f32 %v1937, %v1946
        %v1952 = vmul.f32 %v1938, %v1946
        %v1953 = vmul.f32 %v1939, %v1946
        %v1954 = vmul.f32 %v1940, %v1946
        %v1955 = vmul.f32 %v1941, %v1946
        %v1957 = vlaneseq
        %v1958 = vshrl.u32 %v1957, 7
        %v1959 = vsub.s32 0, %v1958
        %v1960 = vrot.slane %v1837, %v1959
        %v1962 = vadd.f32 %v1948, %v1960
        %v1963 = vadd.f32 %v1949, %v1960
        %v1964 = vadd.f32 %v1950, %v1960
        %v1965 = vadd.f32 %v1951, %v1960
        %v1966 = vadd.f32 %v1952, %v1960
        %v1967 = vadd.f32 %v1953, %v1960
        %v1968 = vadd.f32 %v1954, %v1960
        %v1969 = vadd.f32 %v1955, %v1960
        %v1970 = vld [vmem:[%s10] sm:$0xff]
        %v1971 = vld [vmem:[%s10 + $0x8] sm:$0xff]
        %v1972 = vld [vmem:[%s10 + $0x10] sm:$0xff]
        %v1973 = vld [vmem:[%s10 + $0x18] sm:$0xff]
        %v1974 = vld [vmem:[%s11] sm:$0x1]
        %v1976 = vlaneseq
        %v1977 = vshrl.u32 %v1976, 7
        %v1978 = vsub.s32 0, %v1977
        %v1979 = vrot.slane %v1974, %v1978
        %v1982 = vsel %vm537, %v1962, 0
        %v1985 = vsel %vm537, %v1963, 0
        %v1988 = vsel %vm537, %v1964, 0
        %v1991 = vsel %vm537, %v1965, 0
        %v1994 = vsel %vm537, %v1966, 0
        %v1997 = vsel %vm537, %v1967, 0
        %v2000 = vsel %vm537, %v1968, 0
        %v2003 = vsel %vm537, %v1969, 0
        %2005 = vmatprep.subr.mxu0 0.0
        %2006 = vmatpush1.msra.mxu0 %v1970
        %2007 = vmatprep.subr.mxu0 0.0
        %2008 = vmatpush1.msra.mxu0 %v1971
        %2009 = vmatprep.subr.mxu0 0.0
        %2010 = vmatpush1.msra.mxu0 %v1972
        %2011 = vmatprep.subr.mxu0 0.0
        %2012 = vmatpush1.msra.mxu0 %v1973
        %2013 = vmatprep.subr.mxu0 0.0
        %2014 = vmatpush1.msra.mxu0 0.0
        %2015 = vmatprep.subr.mxu0 0.0
        %2016 = vmatpush1.msra.mxu0 0.0
        %2017 = vmatprep.subr.mxu0 0.0
        %2018 = vmatpush1.msra.mxu0 0.0
        %2019 = vmatprep.subr.mxu0 0.0
        %2020 = vmatpush1.msra.mxu0 0.0
        %2021 = vmatprep.subr.mxu0 0.0
        %2022 = vmatpush1.msra.mxu0 0.0
        %2023 = vmatprep.subr.mxu0 0.0
        %2024 = vmatpush1.msra.mxu0 0.0
        %2025 = vmatprep.subr.mxu0 0.0
        %2026 = vmatpush1.msra.mxu0 0.0
        %2027 = vmatprep.subr.mxu0 0.0
        %2028 = vmatpush1.msra.mxu0 0.0
        %2029 = vmatprep.subr.mxu0 0.0
        %2030 = vmatpush1.msra.mxu0 0.0
        %2031 = vmatprep.subr.mxu0 0.0
        %2032 = vmatpush1.msra.mxu0 0.0
        %2033 = vmatprep.subr.mxu0 0.0
        %2034 = vmatpush1.msra.mxu0 0.0
        %2035 = vmatprep.subr.mxu0 0.0
        %2036 = vmatpush1.msra.mxu0 0.0
        %2037 = vmatprep.subr.mxu0 0.0
        %2038 = vmatpush1.msra.mxu0 0.0
        %2039 = vmatprep.subr.mxu0 0.0
        %2040 = vmatpush1.msra.mxu0 0.0
        %2041 = vmatprep.subr.mxu0 0.0
        %2042 = vmatpush1.msra.mxu0 0.0
        %2043 = vmatprep.subr.mxu0 0.0
        %2044 = vmatpush1.msra.mxu0 0.0
        %2045 = vmatprep.subr.mxu0 0.0
        %2046 = vmatpush1.msra.mxu0 0.0
        %2047 = vmatprep.subr.mxu0 0.0
        %2048 = vmatpush1.msra.mxu0 0.0
        %2049 = vmatprep.subr.mxu0 0.0
        %2050 = vmatpush1.msra.mxu0 0.0
        %2051 = vmatprep.subr.mxu0 0.0
        %2052 = vmatpush1.msra.mxu0 0.0
        %2053 = vmatprep.subr.mxu0 0.0
        %2054 = vmatpush1.msra.mxu0 0.0
        %2055 = vmatprep.subr.mxu0 0.0
        %2056 = vmatpush1.msra.mxu0 0.0
        %2057 = vmatprep.subr.mxu0 0.0
        %2058 = vmatpush1.msra.mxu0 0.0
        %2059 = vmatprep.subr.mxu0 0.0
        %2060 = vmatpush1.msra.mxu0 0.0
        %2061 = vmatprep.subr.mxu0 0.0
        %2062 = vmatpush1.msra.mxu0 0.0
        %2063 = vmatprep.subr.mxu0 0.0
        %2064 = vmatpush1.msra.mxu0 0.0
        %2065 = vmatprep.subr.mxu0 0.0
        %2066 = vmatpush1.msra.mxu0 0.0
        %2067 = vmatprep.subr.mxu0 0.0
        %2068 = vmatpush1.msra.mxu0 0.0
        %2069 = vmatprep.mubr.f32.mxu0 0.0
        %2070 = vmatmul.mubr.f32.gmra.mrb[0].mxu0 %v1982
        %v2071 = vpop.f32.mrb[0].mxu0
        %v2072 = vadd.f32 %v1979, %v2071
        %v2073 = vpop.f32.mrb[0].mxu0
        %2074 = vmatprep.mubr.f32.mxu0 0.0
        %2075 = vmatmul.mubr.f32.gmra.mrb[0].mxu0 %v1985
        %v2076 = vpop.f32.mrb[0].mxu0
        %v2077 = vadd.f32 %v1979, %v2076
        %v2078 = vpop.f32.mrb[0].mxu0
        %2079 = vmatprep.mubr.f32.mxu0 0.0
        %2080 = vmatmul.mubr.f32.gmra.mrb[0].mxu0 %v1988
        %v2081 = vpop.f32.mrb[0].mxu0
        %v2082 = vadd.f32 %v1979, %v2081
        %v2083 = vpop.f32.mrb[0].mxu0
        %2084 = vmatprep.mubr.f32.mxu0 0.0
        %2085 = vmatmul.mubr.f32.gmra.mrb[0].mxu0 %v1991
        %v2086 = vpop.f32.mrb[0].mxu0
        %v2087 = vadd.f32 %v1979, %v2086
        %v2088 = vpop.f32.mrb[0].mxu0
        %2089 = vmatprep.mubr.f32.mxu0 0.0
        %2090 = vmatmul.mubr.f32.gmra.mrb[0].mxu0 %v1994
        %v2091 = vpop.f32.mrb[0].mxu0
        %v2092 = vadd.f32 %v1979, %v2091
        %v2093 = vpop.f32.mrb[0].mxu0
        %2094 = vmatprep.mubr.f32.mxu0 0.0
        %2095 = vmatmul.mubr.f32.gmra.mrb[0].mxu0 %v1997
        %v2096 = vpop.f32.mrb[0].mxu0
        %v2097 = vadd.f32 %v1979, %v2096
        %v2098 = vpop.f32.mrb[0].mxu0
        %2099 = vmatprep.mubr.f32.mxu0 0.0
        %2100 = vmatmul.mubr.f32.gmra.mrb[0].mxu0 %v2000
        %v2101 = vpop.f32.mrb[0].mxu0
        %v2102 = vadd.f32 %v1979, %v2101
        %v2103 = vpop.f32.mrb[0].mxu0
        %2104 = vmatprep.mubr.f32.mxu0 0.0
        %2105 = vmatmul.mubr.f32.gmra.mrb[0].mxu0 %v2003
        %v2106 = vpop.f32.mrb[0].mxu0
        %v2107 = vadd.f32 %v1979, %v2106
        %v2108 = vpop.f32.mrb[0].mxu0
        %2109 = vdwg.mxu0
        %v2110 = vmul.f32 %v2072, 0.5
        %v2111 = vmul.f32 %v2077, 0.5
        %v2112 = vmul.f32 %v2082, 0.5
        %v2113 = vmul.f32 %v2087, 0.5
        %v2114 = vmul.f32 %v2092, 0.5
        %v2115 = vmul.f32 %v2097, 0.5
        %v2116 = vmul.f32 %v2102, 0.5
        %v2117 = vmul.f32 %v2107, 0.5
        %v2118 = vmul.f32 %v2072, 0.70710677
        %v2119 = vmul.f32 %v2077, 0.70710677
        %v2120 = vmul.f32 %v2082, 0.70710677
        %v2121 = vmul.f32 %v2087, 0.70710677
        %v2122 = vmul.f32 %v2092, 0.70710677
        %v2123 = vmul.f32 %v2097, 0.70710677
        %v2124 = vmul.f32 %v2102, 0.70710677
        %v2125 = vmul.f32 %v2107, 0.70710677
        %v2126 = vmax.f32 %v2118, -4.0
        %v2127 = vmax.f32 %v2119, -4.0
        %v2128 = vmax.f32 %v2120, -4.0
        %v2129 = vmax.f32 %v2121, -4.0
        %v2130 = vmax.f32 %v2122, -4.0
        %v2131 = vmax.f32 %v2123, -4.0
        %v2132 = vmax.f32 %v2124, -4.0
        %v2133 = vmax.f32 %v2125, -4.0
        %v2134 = vmin.f32 %v2126, 4.0
        %v2135 = vmin.f32 %v2127, 4.0
        %v2136 = vmin.f32 %v2128, 4.0
        %v2137 = vmin.f32 %v2129, 4.0
        %v2138 = vmin.f32 %v2130, 4.0
        %v2139 = vmin.f32 %v2131, 4.0
        %v2140 = vmin.f32 %v2132, 4.0
        %v2141 = vmin.f32 %v2133, 4.0
        %v2142 = vmul.f32 %v2134, %v2134
        %v2143 = vmul.f32 %v2135, %v2135
        %v2144 = vmul.f32 %v2136, %v2136
        %v2145 = vmul.f32 %v2137, %v2137
        %v2146 = vmul.f32 %v2138, %v2138
        %v2147 = vmul.f32 %v2139, %v2139
        %v2148 = vmul.f32 %v2140, %v2140
        %v2149 = vmul.f32 %v2141, %v2141
        %v2150 = vmul.f32 %v2142, -2.7261424e-10
        %v2151 = vmul.f32 %v2143, -2.7261424e-10
        %v2152 = vmul.f32 %v2144, -2.7261424e-10
        %v2153 = vmul.f32 %v2145, -2.7261424e-10
        %v2154 = vmul.f32 %v2146, -2.7261424e-10
        %v2155 = vmul.f32 %v2147, -2.7261424e-10
        %v2156 = vmul.f32 %v2148, -2.7261424e-10
        %v2157 = vmul.f32 %v2149, -2.7261424e-10
        %v2158 = vadd.f32 %v2150, 2.7706815e-08
        %v2159 = vadd.f32 %v2151, 2.7706815e-08
        %v2160 = vadd.f32 %v2152, 2.7706815e-08
        %v2161 = vadd.f32 %v2153, 2.7706815e-08
        %v2162 = vadd.f32 %v2154, 2.7706815e-08
        %v2163 = vadd.f32 %v2155, 2.7706815e-08
        %v2164 = vadd.f32 %v2156, 2.7706815e-08
        %v2165 = vadd.f32 %v2157, 2.7706815e-08
        %v2166 = vmul.f32 %v2158, %v2142
        %v2167 = vmul.f32 %v2159, %v2143
        %v2168 = vmul.f32 %v2160, %v2144
        %v2169 = vmul.f32 %v2161, %v2145
        %v2170 = vmul.f32 %v2162, %v2146
        %v2171 = vmul.f32 %v2163, %v2147
        %v2172 = vmul.f32 %v2164, %v2148
        %v2173 = vmul.f32 %v2165, %v2149
        %v2174 = vadd.f32 %v2166, -2.101024e-06
        %v2175 = vadd.f32 %v2167, -2.101024e-06
        %v2176 = vadd.f32 %v2168, -2.101024e-06
        %v2177 = vadd.f32 %v2169, -2.101024e-06
        %v2178 = vadd.f32 %v2170, -2.101024e-06
        %v2179 = vadd.f32 %v2171, -2.101024e-06
        %v2180 = vadd.f32 %v2172, -2.101024e-06
        %v2181 = vadd.f32 %v2173, -2.101024e-06
        %v2182 = vmul.f32 %v2174, %v2142
        %v2183 = vmul.f32 %v2175, %v2143
        %v2184 = vmul.f32 %v2176, %v2144
        %v2185 = vmul.f32 %v2177, %v2145
        %v2186 = vmul.f32 %v2178, %v2146
        %v2187 = vmul.f32 %v2179, %v2147
        %v2188 = vmul.f32 %v2180, %v2148
        %v2189 = vmul.f32 %v2181, %v2149
        %v2190 = vadd.f32 %v2182, -5.6925062e-05
        %v2191 = vadd.f32 %v2183, -5.6925062e-05
        %v2192 = vadd.f32 %v2184, -5.6925062e-05
        %v2193 = vadd.f32 %v2185, -5.6925062e-05
        %v2194 = vadd.f32 %v2186, -5.6925062e-05
        %v2195 = vadd.f32 %v2187, -5.6925062e-05
        %v2196 = vadd.f32 %v2188, -5.6925062e-05
        %v2197 = vadd.f32 %v2189, -5.6925062e-05
        %v2198 = vmul.f32 %v2190, %v2142
        %v2199 = vmul.f32 %v2191, %v2143
        %v2200 = vmul.f32 %v2192, %v2144
        %v2201 = vmul.f32 %v2193, %v2145
        %v2202 = vmul.f32 %v2194, %v2146
        %v2203 = vmul.f32 %v2195, %v2147
        %v2204 = vmul.f32 %v2196, %v2148
        %v2205 = vmul.f32 %v2197, %v2149
        %v2206 = vadd.f32 %v2198, -0.00073499064
        %v2207 = vadd.f32 %v2199, -0.00073499064
        %v2208 = vadd.f32 %v2200, -0.00073499064
        %v2209 = vadd.f32 %v2201, -0.00073499064
        %v2210 = vadd.f32 %v2202, -0.00073499064
        %v2211 = vadd.f32 %v2203, -0.00073499064
        %v2212 = vadd.f32 %v2204, -0.00073499064
        %v2213 = vadd.f32 %v2205, -0.00073499064
        %v2214 = vmul.f32 %v2206, %v2142
        %v2215 = vmul.f32 %v2207, %v2143
        %v2216 = vmul.f32 %v2208, %v2144
        %v2217 = vmul.f32 %v2209, %v2145
        %v2218 = vmul.f32 %v2210, %v2146
        %v2219 = vmul.f32 %v2211, %v2147
        %v2220 = vmul.f32 %v2212, %v2148
        %v2221 = vmul.f32 %v2213, %v2149
        %v2222 = vadd.f32 %v2214, -0.0029546
        %v2223 = vadd.f32 %v2215, -0.0029546
        %v2224 = vadd.f32 %v2216, -0.0029546
        %v2225 = vadd.f32 %v2217, -0.0029546
        %v2226 = vadd.f32 %v2218, -0.0029546
        %v2227 = vadd.f32 %v2219, -0.0029546
        %v2228 = vadd.f32 %v2220, -0.0029546
        %v2229 = vadd.f32 %v2221, -0.0029546
        %v2230 = vmul.f32 %v2222, %v2142
        %v2231 = vmul.f32 %v2223, %v2143
        %v2232 = vmul.f32 %v2224, %v2144
        %v2233 = vmul.f32 %v2225, %v2145
        %v2234 = vmul.f32 %v2226, %v2146
        %v2235 = vmul.f32 %v2227, %v2147
        %v2236 = vmul.f32 %v2228, %v2148
        %v2237 = vmul.f32 %v2229, %v2149
        %v2238 = vadd.f32 %v2230, -0.016096033
        %v2239 = vadd.f32 %v2231, -0.016096033
        %v2240 = vadd.f32 %v2232, -0.016096033
        %v2241 = vadd.f32 %v2233, -0.016096033
        %v2242 = vadd.f32 %v2234, -0.016096033
        %v2243 = vadd.f32 %v2235, -0.016096033
        %v2244 = vadd.f32 %v2236, -0.016096033
        %v2245 = vadd.f32 %v2237, -0.016096033
        %v2246 = vmul.f32 %v2238, %v2134
        %v2247 = vmul.f32 %v2239, %v2135
        %v2248 = vmul.f32 %v2240, %v2136
        %v2249 = vmul.f32 %v2241, %v2137
        %v2250 = vmul.f32 %v2242, %v2138
        %v2251 = vmul.f32 %v2243, %v2139
        %v2252 = vmul.f32 %v2244, %v2140
        %v2253 = vmul.f32 %v2245, %v2141
        %v2254 = vmul.f32 %v2142, -1.45660715e-05
        %v2255 = vmul.f32 %v2143, -1.45660715e-05
        %v2256 = vmul.f32 %v2144, -1.45660715e-05
        %v2257 = vmul.f32 %v2145, -1.45660715e-05
        %v2258 = vmul.f32 %v2146, -1.45660715e-05
        %v2259 = vmul.f32 %v2147, -1.45660715e-05
        %v2260 = vmul.f32 %v2148, -1.45660715e-05
        %v2261 = vmul.f32 %v2149, -1.45660715e-05
        %v2262 = vadd.f32 %v2254, -0.00021337405
        %v2263 = vadd.f32 %v2255, -0.00021337405
        %v2264 = vadd.f32 %v2256, -0.00021337405
        %v2265 = vadd.f32 %v2257, -0.00021337405
        %v2266 = vadd.f32 %v2258, -0.00021337405
        %v2267 = vadd.f32 %v2259, -0.00021337405
        %v2268 = vadd.f32 %v2260, -0.00021337405
        %v2269 = vadd.f32 %v2261, -0.00021337405
        %v2270 = vmul.f32 %v2262, %v2142
        %v2271 = vmul.f32 %v2263, %v2143
        %v2272 = vmul.f32 %v2264, %v2144
        %v2273 = vmul.f32 %v2265, %v2145
        %v2274 = vmul.f32 %v2266, %v2146
        %v2275 = vmul.f32 %v2267, %v2147
        %v2276 = vmul.f32 %v2268, %v2148
        %v2277 = vmul.f32 %v2269, %v2149
        %v2278 = vadd.f32 %v2270, -0.001682827
        %v2279 = vadd.f32 %v2271, -0.001682827
        %v2280 = vadd.f32 %v2272, -0.001682827
        %v2281 = vadd.f32 %v2273, -0.001682827
        %v2282 = vadd.f32 %v2274, -0.001682827
        %v2283 = vadd.f32 %v2275, -0.001682827
        %v2284 = vadd.f32 %v2276, -0.001682827
        %v2285 = vadd.f32 %v2277, -0.001682827
        %v2286 = vmul.f32 %v2278, %v2142
        %v2287 = vmul.f32 %v2279, %v2143
        %v2288 = vmul.f32 %v2280, %v2144
        %v2289 = vmul.f32 %v2281, %v2145
        %v2290 = vmul.f32 %v2282, %v2146
        %v2291 = vmul.f32 %v2283, %v2147
        %v2292 = vmul.f32 %v2284, %v2148
        %v2293 = vmul.f32 %v2285, %v2149
        %v2294 = vadd.f32 %v2286, -0.0073733293
        %v2295 = vadd.f32 %v2287, -0.0073733293
        %v2296 = vadd.f32 %v2288, -0.0073733293
        %v2297 = vadd.f32 %v2289, -0.0073733293
        %v2298 = vadd.f32 %v2290, -0.0073733293
        %v2299 = vadd.f32 %v2291, -0.0073733293
        %v2300 = vadd.f32 %v2292, -0.0073733293
        %v2301 = vadd.f32 %v2293, -0.0073733293
        %v2302 = vmul.f32 %v2294, %v2142
        %v2303 = vmul.f32 %v2295, %v2143
        %v2304 = vmul.f32 %v2296, %v2144
        %v2305 = vmul.f32 %v2297, %v2145
        %v2306 = vmul.f32 %v2298, %v2146
        %v2307 = vmul.f32 %v2299, %v2147
        %v2308 = vmul.f32 %v2300, %v2148
        %v2309 = vmul.f32 %v2301, %v2149
        %v2310 = vadd.f32 %v2302, -0.014264739
        %v2311 = vadd.f32 %v2303, -0.014264739
        %v2312 = vadd.f32 %v2304, -0.014264739
        %v2313 = vadd.f32 %v2305, -0.014264739
        %v2314 = vadd.f32 %v2306, -0.014264739
        %v2315 = vadd.f32 %v2307, -0.014264739
        %v2316 = vadd.f32 %v2308, -0.014264739
        %v2317 = vadd.f32 %v2309, -0.014264739
        %v2318 = vrcp.pop %v2310
        %v2319 = vmul.f32 %v2246, %v2318
        %v2320 = vrcp.pop %v2311
        %v2321 = vmul.f32 %v2247, %v2320
        %v2322 = vrcp.pop %v2312
        %v2323 = vmul.f32 %v2248, %v2322
        %v2324 = vrcp.pop %v2313
        %v2325 = vmul.f32 %v2249, %v2324
        %v2326 = vrcp.pop %v2314
        %v2327 = vmul.f32 %v2250, %v2326
        %v2328 = vrcp.pop %v2315
        %v2329 = vmul.f32 %v2251, %v2328
        %v2330 = vrcp.pop %v2316
        %v2331 = vmul.f32 %v2252, %v2330
        %v2332 = vrcp.pop %v2317
        %v2333 = vmul.f32 %v2253, %v2332
        %v2334 = vadd.f32 %v2319, 1.0
        %v2335 = vadd.f32 %v2321, 1.0
        %v2336 = vadd.f32 %v2323, 1.0
        %v2337 = vadd.f32 %v2325, 1.0
        %v2338 = vadd.f32 %v2327, 1.0
        %v2339 = vadd.f32 %v2329, 1.0
        %v2340 = vadd.f32 %v2331, 1.0
        %v2341 = vadd.f32 %v2333, 1.0
        %v2342 = vmul.f32 %v2110, %v2334
        %v2343 = vmul.f32 %v2111, %v2335
        %v2344 = vmul.f32 %v2112, %v2336
        %v2345 = vmul.f32 %v2113, %v2337
        %v2346 = vmul.f32 %v2114, %v2338
        %v2347 = vmul.f32 %v2115, %v2339
        %v2348 = vmul.f32 %v2116, %v2340
        %v2349 = vmul.f32 %v2117, %v2341
        %v2350 = vld [vmem:[#allocation7] sm:$0xff]
        %v2351 = vld [vmem:[#allocation7 + $0x8] sm:$0xff]
        %v2352 = vld [vmem:[#allocation7 + $0x10] sm:$0xff]
        %v2353 = vld [vmem:[#allocation7 + $0x18] sm:$0xff]
        %v2354 = vld [vmem:[#allocation7 + $0x20] sm:$0xff]
        %v2355 = vld [vmem:[#allocation7 + $0x28] sm:$0xff]
        %v2356 = vld [vmem:[#allocation7 + $0x30] sm:$0xff]
        %v2357 = vld [vmem:[#allocation7 + $0x38] sm:$0xff]
        %v2358 = vld [vmem:[#allocation7 + $0x40] sm:$0xff]
        %v2359 = vld [vmem:[#allocation7 + $0x48] sm:$0xff]
        %v2360 = vld [vmem:[#allocation7 + $0x50] sm:$0xff]
        %v2361 = vld [vmem:[#allocation7 + $0x58] sm:$0xff]
        %v2362 = vld [vmem:[#allocation7 + $0x60] sm:$0xff]
        %v2363 = vld [vmem:[#allocation7 + $0x68] sm:$0xff]
        %v2364 = vld [vmem:[#allocation7 + $0x70] sm:$0xff]
        %v2365 = vld [vmem:[#allocation7 + $0x78] sm:$0xff]
        %2366 = vmatprep.subr.mxu0 0.0
        %2367 = vmatpush1.msra.mxu0 %v2350
        %2368 = vmatprep.subr.mxu0 0.0
        %2369 = vmatpush1.msra.mxu0 %v2351
        %2370 = vmatprep.subr.mxu0 0.0
        %2371 = vmatpush1.msra.mxu0 %v2352
        %2372 = vmatprep.subr.mxu0 0.0
        %2373 = vmatpush1.msra.mxu0 %v2353
        %2374 = vmatprep.subr.mxu0 0.0
        %2375 = vmatpush1.msra.mxu0 %v2354
        %2376 = vmatprep.subr.mxu0 0.0
        %2377 = vmatpush1.msra.mxu0 %v2355
        %2378 = vmatprep.subr.mxu0 0.0
        %2379 = vmatpush1.msra.mxu0 %v2356
        %2380 = vmatprep.subr.mxu0 0.0
        %2381 = vmatpush1.msra.mxu0 %v2357
        %2382 = vmatprep.subr.mxu0 0.0
        %2383 = vmatpush1.msra.mxu0 %v2358
        %2384 = vmatprep.subr.mxu0 0.0
        %2385 = vmatpush1.msra.mxu0 %v2359
        %2386 = vmatprep.subr.mxu0 0.0
        %2387 = vmatpush1.msra.mxu0 %v2360
        %2388 = vmatprep.subr.mxu0 0.0
        %2389 = vmatpush1.msra.mxu0 %v2361
        %2390 = vmatprep.subr.mxu0 0.0
        %2391 = vmatpush1.msra.mxu0 %v2362
        %2392 = vmatprep.subr.mxu0 0.0
        %2393 = vmatpush1.msra.mxu0 %v2363
        %2394 = vmatprep.subr.mxu0 0.0
        %2395 = vmatpush1.msra.mxu0 %v2364
        %2396 = vmatprep.subr.mxu0 0.0
        %2397 = vmatpush1.msra.mxu0 %v2365
        %2398 = vmatprep.subr.mxu0 0.0
        %2399 = vmatpush1.msra.mxu0 0.0
        %2400 = vmatprep.subr.mxu0 0.0
        %2401 = vmatpush1.msra.mxu0 0.0
        %2402 = vmatprep.subr.mxu0 0.0
        %2403 = vmatpush1.msra.mxu0 0.0
        %2404 = vmatprep.subr.mxu0 0.0
        %2405 = vmatpush1.msra.mxu0 0.0
        %2406 = vmatprep.subr.mxu0 0.0
        %2407 = vmatpush1.msra.mxu0 0.0
        %2408 = vmatprep.subr.mxu0 0.0
        %2409 = vmatpush1.msra.mxu0 0.0
        %2410 = vmatprep.subr.mxu0 0.0
        %2411 = vmatpush1.msra.mxu0 0.0
        %2412 = vmatprep.subr.mxu0 0.0
        %2413 = vmatpush1.msra.mxu0 0.0
        %2414 = vmatprep.subr.mxu0 0.0
        %2415 = vmatpush1.msra.mxu0 0.0
        %2416 = vmatprep.subr.mxu0 0.0
        %2417 = vmatpush1.msra.mxu0 0.0
        %2418 = vmatprep.subr.mxu0 0.0
        %2419 = vmatpush1.msra.mxu0 0.0
        %2420 = vmatprep.subr.mxu0 0.0
        %2421 = vmatpush1.msra.mxu0 0.0
        %2422 = vmatprep.subr.mxu0 0.0
        %2423 = vmatpush1.msra.mxu0 0.0
        %2424 = vmatprep.subr.mxu0 0.0
        %2425 = vmatpush1.msra.mxu0 0.0
        %2426 = vmatprep.subr.mxu0 0.0
        %2427 = vmatpush1.msra.mxu0 0.0
        %2428 = vmatprep.subr.mxu0 0.0
        %2429 = vmatpush1.msra.mxu0 0.0
        %2430 = vmatprep.mubr.f32.mxu0 0.0
        %2431 = vmatmul.mubr.f32.gmra.mrb[0].mxu0 %v2342
        %v2432 = vpop.f32.mrb[0].mxu0
        %v2433 = vadd.f32 0.0, %v2432
        %v2434 = vpop.f32.mrb[0].mxu0
        %2435 = vmatprep.mubr.f32.mxu0 0.0
        %2436 = vmatmul.mubr.f32.gmra.mrb[0].mxu0 %v2343
        %v2437 = vpop.f32.mrb[0].mxu0
        %v2438 = vadd.f32 0.0, %v2437
        %v2439 = vpop.f32.mrb[0].mxu0
        %2440 = vmatprep.mubr.f32.mxu0 0.0
        %2441 = vmatmul.mubr.f32.gmra.mrb[0].mxu0 %v2344
        %v2442 = vpop.f32.mrb[0].mxu0
        %v2443 = vadd.f32 0.0, %v2442
        %v2444 = vpop.f32.mrb[0].mxu0
        %2445 = vmatprep.mubr.f32.mxu0 0.0
        %2446 = vmatmul.mubr.f32.gmra.mrb[0].mxu0 %v2345
        %v2447 = vpop.f32.mrb[0].mxu0
        %v2448 = vadd.f32 0.0, %v2447
        %v2449 = vpop.f32.mrb[0].mxu0
        %2450 = vmatprep.mubr.f32.mxu0 0.0
        %2451 = vmatmul.mubr.f32.gmra.mrb[0].mxu0 %v2346
        %v2452 = vpop.f32.mrb[0].mxu0
        %v2453 = vadd.f32 0.0, %v2452
        %v2454 = vpop.f32.mrb[0].mxu0
        %2455 = vmatprep.mubr.f32.mxu0 0.0
        %2456 = vmatmul.mubr.f32.gmra.mrb[0].mxu0 %v2347
        %v2457 = vpop.f32.mrb[0].mxu0
        %v2458 = vadd.f32 0.0, %v2457
        %v2459 = vpop.f32.mrb[0].mxu0
        %2460 = vmatprep.mubr.f32.mxu0 0.0
        %2461 = vmatmul.mubr.f32.gmra.mrb[0].mxu0 %v2348
        %v2462 = vpop.f32.mrb[0].mxu0
        %v2463 = vadd.f32 0.0, %v2462
        %v2464 = vpop.f32.mrb[0].mxu0
        %2465 = vmatprep.mubr.f32.mxu0 0.0
        %2466 = vmatmul.mubr.f32.gmra.mrb[0].mxu0 %v2349
        %v2467 = vpop.f32.mrb[0].mxu0
        %v2468 = vadd.f32 0.0, %v2467
        %v2469 = vpop.f32.mrb[0].mxu0
        %2470 = vdwg.mxu0
        %v2471 = vadd.f32 %v1828, %v2433
        %v2472 = vadd.f32 %v1829, %v2438
        %v2473 = vadd.f32 %v1830, %v2443
        %v2474 = vadd.f32 %v1831, %v2448
        %v2475 = vadd.f32 %v1832, %v2453
        %v2476 = vadd.f32 %v1833, %v2458
        %v2477 = vadd.f32 %v1834, %v2463
        %v2478 = vadd.f32 %v1835, %v2468
        %v2479 = vld [vmem:[%s13] sm:$0x1]
        %v2481 = vlaneseq
        %v2482 = vshrl.u32 %v2481, 7
        %v2483 = vsub.s32 0, %v2482
        %v2484 = vrot.slane %v2479, %v2483
        %v2486 = vadd.f32 %v2471, %v2484
        %v2487 = vadd.f32 %v2472, %v2484
        %v2488 = vadd.f32 %v2473, %v2484
        %v2489 = vadd.f32 %v2474, %v2484
        %v2490 = vadd.f32 %v2475, %v2484
        %v2491 = vadd.f32 %v2476, %v2484
        %v2492 = vadd.f32 %v2477, %v2484
        %v2493 = vadd.f32 %v2478, %v2484
        %s2494 = scalar_lea.vmem %s2, 1
        %v2495 = vld [vmem:[%s2494] sm:$0x1]
        %s2496 = scalar_lea.vmem %s3, 1
        %v2497 = vld [vmem:[%s2496] sm:$0x1]
        %v2498 = vsel %vm537, %v2486, 0.0
        %2499 = vadd.xlane.f32.xlu0 %v2498
        %v2500 = vpop.xlane.xlu0 %2499
        %v2501 = vsel %vm537, %v2487, 0.0
        %2502 = vadd.xlane.f32.xlu0 %v2501
        %v2503 = vpop.xlane.xlu0 %2502
        %v2504 = vsel %vm537, %v2488, 0.0
        %2505 = vadd.xlane.f32.xlu0 %v2504
        %v2506 = vpop.xlane.xlu0 %2505
        %v2507 = vsel %vm537, %v2489, 0.0
        %2508 = vadd.xlane.f32.xlu0 %v2507
        %v2509 = vpop.xlane.xlu0 %2508
        %v2510 = vsel %vm537, %v2490, 0.0
        %2511 = vadd.xlane.f32.xlu0 %v2510
        %v2512 = vpop.xlane.xlu0 %2511
        %v2513 = vsel %vm537, %v2491, 0.0
        %2514 = vadd.xlane.f32.xlu0 %v2513
        %v2515 = vpop.xlane.xlu0 %2514
        %v2516 = vsel %vm537, %v2492, 0.0
        %2517 = vadd.xlane.f32.xlu0 %v2516
        %v2518 = vpop.xlane.xlu0 %2517
        %v2519 = vsel %vm537, %v2493, 0.0
        %2520 = vadd.xlane.f32.xlu0 %v2519
        %v2521 = vpop.xlane.xlu0 %2520
        %v2522 = vmul.f32 %v2500, %v562
        %v2523 = vmul.f32 %v2503, %v562
        %v2524 = vmul.f32 %v2506, %v562
        %v2525 = vmul.f32 %v2509, %v562
        %v2526 = vmul.f32 %v2512, %v562
        %v2527 = vmul.f32 %v2515, %v562
        %v2528 = vmul.f32 %v2518, %v562
        %v2529 = vmul.f32 %v2521, %v562
        %v2530 = vsub.f32 %v2486, %v2522
        %v2531 = vsub.f32 %v2487, %v2523
        %v2532 = vsub.f32 %v2488, %v2524
        %v2533 = vsub.f32 %v2489, %v2525
        %v2534 = vsub.f32 %v2490, %v2526
        %v2535 = vsub.f32 %v2491, %v2527
        %v2536 = vsub.f32 %v2492, %v2528
        %v2537 = vsub.f32 %v2493, %v2529
        %v2538 = vmul.f32 %v2530, %v2530
        %v2539 = vmul.f32 %v2531, %v2531
        %v2540 = vmul.f32 %v2532, %v2532
        %v2541 = vmul.f32 %v2533, %v2533
        %v2542 = vmul.f32 %v2534, %v2534
        %v2543 = vmul.f32 %v2535, %v2535
        %v2544 = vmul.f32 %v2536, %v2536
        %v2545 = vmul.f32 %v2537, %v2537
        %v2546 = vsel %vm537, %v2538, 0.0
        %2547 = vadd.xlane.f32.xlu0 %v2546
        %v2548 = vpop.xlane.xlu0 %2547
        %v2549 = vsel %vm537, %v2539, 0.0
        %2550 = vadd.xlane.f32.xlu0 %v2549
        %v2551 = vpop.xlane.xlu0 %2550
        %v2552 = vsel %vm537, %v2540, 0.0
        %2553 = vadd.xlane.f32.xlu0 %v2552
        %v2554 = vpop.xlane.xlu0 %2553
        %v2555 = vsel %vm537, %v2541, 0.0
        %2556 = vadd.xlane.f32.xlu0 %v2555
        %v2557 = vpop.xlane.xlu0 %2556
        %v2558 = vsel %vm537, %v2542, 0.0
        %2559 = vadd.xlane.f32.xlu0 %v2558
        %v2560 = vpop.xlane.xlu0 %2559
        %v2561 = vsel %vm537, %v2543, 0.0
        %2562 = vadd.xlane.f32.xlu0 %v2561
        %v2563 = vpop.xlane.xlu0 %2562
        %v2564 = vsel %vm537, %v2544, 0.0
        %2565 = vadd.xlane.f32.xlu0 %v2564
        %v2566 = vpop.xlane.xlu0 %2565
        %v2567 = vsel %vm537, %v2545, 0.0
        %2568 = vadd.xlane.f32.xlu0 %v2567
        %v2569 = vpop.xlane.xlu0 %2568
        %v2570 = vmul.f32 %v2548, %v562
        %v2571 = vmul.f32 %v2551, %v562
        %v2572 = vmul.f32 %v2554, %v562
        %v2573 = vmul.f32 %v2557, %v562
        %v2574 = vmul.f32 %v2560, %v562
        %v2575 = vmul.f32 %v2563, %v562
        %v2576 = vmul.f32 %v2566, %v562
        %v2577 = vmul.f32 %v2569, %v562
        %v2578 = vadd.f32 %v2570, 1e-05
        %v2579 = vadd.f32 %v2571, 1e-05
        %v2580 = vadd.f32 %v2572, 1e-05
        %v2581 = vadd.f32 %v2573, 1e-05
        %v2582 = vadd.f32 %v2574, 1e-05
        %v2583 = vadd.f32 %v2575, 1e-05
        %v2584 = vadd.f32 %v2576, 1e-05
        %v2585 = vadd.f32 %v2577, 1e-05
        %v2586 = vrsqrt.pop %v2578
        %v2587 = vrsqrt.pop %v2579
        %v2588 = vrsqrt.pop %v2580
        %v2589 = vrsqrt.pop %v2581
        %v2590 = vrsqrt.pop %v2582
        %v2591 = vrsqrt.pop %v2583
        %v2592 = vrsqrt.pop %v2584
        %v2593 = vrsqrt.pop %v2585
        %v2594 = vmul.f32 %v2530, %v2586
        %v2595 = vmul.f32 %v2531, %v2587
        %v2596 = vmul.f32 %v2532, %v2588
        %v2597 = vmul.f32 %v2533, %v2589
        %v2598 = vmul.f32 %v2534, %v2590
        %v2599 = vmul.f32 %v2535, %v2591
        %v2600 = vmul.f32 %v2536, %v2592
        %v2601 = vmul.f32 %v2537, %v2593
        %v2603 = vlaneseq
        %v2604 = vshrl.u32 %v2603, 7
        %v2605 = vsub.s32 0, %v2604
        %v2606 = vrot.slane %v2495, %v2605
        %v2608 = vmul.f32 %v2594, %v2606
        %v2609 = vmul.f32 %v2595, %v2606
        %v2610 = vmul.f32 %v2596, %v2606
        %v2611 = vmul.f32 %v2597, %v2606
        %v2612 = vmul.f32 %v2598, %v2606
        %v2613 = vmul.f32 %v2599, %v2606
        %v2614 = vmul.f32 %v2600, %v2606
        %v2615 = vmul.f32 %v2601, %v2606
        %v2617 = vlaneseq
        %v2618 = vshrl.u32 %v2617, 7
        %v2619 = vsub.s32 0, %v2618
        %v2620 = vrot.slane %v2497, %v2619
        %v2622 = vadd.f32 %v2608, %v2620
        %v2623 = vadd.f32 %v2609, %v2620
        %v2624 = vadd.f32 %v2610, %v2620
        %v2625 = vadd.f32 %v2611, %v2620
        %v2626 = vadd.f32 %v2612, %v2620
        %v2627 = vadd.f32 %v2613, %v2620
        %v2628 = vadd.f32 %v2614, %v2620
        %v2629 = vadd.f32 %v2615, %v2620
        %s2630 = scalar_lea.vmem [#allocation4], 32
        %v2631 = vld [vmem:[%s2630] sm:$0xff]
        %v2632 = vld [vmem:[%s2630 + $0x8] sm:$0xff]
        %v2633 = vld [vmem:[%s2630 + $0x10] sm:$0xff]
        %v2634 = vld [vmem:[%s2630 + $0x18] sm:$0xff]
        %s2635 = scalar_lea.vmem %s5, 1
        %v2636 = vld [vmem:[%s2635] sm:$0x1]
        %v2638 = vlaneseq
        %v2639 = vshrl.u32 %v2638, 7
        %v2640 = vsub.s32 0, %v2639
        %v2641 = vrot.slane %v2636, %v2640
        %v2644 = vsel %vm537, %v2622, 0
        %v2647 = vsel %vm537, %v2623, 0
        %v2650 = vsel %vm537, %v2624, 0
        %v2653 = vsel %vm537, %v2625, 0
        %v2656 = vsel %vm537, %v2626, 0
        %v2659 = vsel %vm537, %v2627, 0
        %v2662 = vsel %vm537, %v2628, 0
        %v2665 = vsel %vm537, %v2629, 0
        %2667 = vmatprep.subr.mxu0 0.0
        %2668 = vmatpush1.msra.mxu0 %v2631
        %2669 = vmatprep.subr.mxu0 0.0
        %2670 = vmatpush1.msra.mxu0 %v2632
        %2671 = vmatprep.subr.mxu0 0.0
        %2672 = vmatpush1.msra.mxu0 %v2633
        %2673 = vmatprep.subr.mxu0 0.0
        %2674 = vmatpush1.msra.mxu0 %v2634
        %2675 = vmatprep.subr.mxu0 0.0
        %2676 = vmatpush1.msra.mxu0 0.0
        %2677 = vmatprep.subr.mxu0 0.0
        %2678 = vmatpush1.msra.mxu0 0.0
        %2679 = vmatprep.subr.mxu0 0.0
        %2680 = vmatpush1.msra.mxu0 0.0
        %2681 = vmatprep.subr.mxu0 0.0
        %2682 = vmatpush1.msra.mxu0 0.0
        %2683 = vmatprep.subr.mxu0 0.0
        %2684 = vmatpush1.msra.mxu0 0.0
        %2685 = vmatprep.subr.mxu0 0.0
        %2686 = vmatpush1.msra.mxu0 0.0
        %2687 = vmatprep.subr.mxu0 0.0
        %2688 = vmatpush1.msra.mxu0 0.0
        %2689 = vmatprep.subr.mxu0 0.0
        %2690 = vmatpush1.msra.mxu0 0.0
        %2691 = vmatprep.subr.mxu0 0.0
        %2692 = vmatpush1.msra.mxu0 0.0
        %2693 = vmatprep.subr.mxu0 0.0
        %2694 = vmatpush1.msra.mxu0 0.0
        %2695 = vmatprep.subr.mxu0 0.0
        %2696 = vmatpush1.msra.mxu0 0.0
        %2697 = vmatprep.subr.mxu0 0.0
        %2698 = vmatpush1.msra.mxu0 0.0
        %2699 = vmatprep.subr.mxu0 0.0
        %2700 = vmatpush1.msra.mxu0 0.0
        %2701 = vmatprep.subr.mxu0 0.0
        %2702 = vmatpush1.msra.mxu0 0.0
        %2703 = vmatprep.subr.mxu0 0.0
        %2704 = vmatpush1.msra.mxu0 0.0
        %2705 = vmatprep.subr.mxu0 0.0
        %2706 = vmatpush1.msra.mxu0 0.0
        %2707 = vmatprep.subr.mxu0 0.0
        %2708 = vmatpush1.msra.mxu0 0.0
        %2709 = vmatprep.subr.mxu0 0.0
        %2710 = vmatpush1.msra.mxu0 0.0
        %2711 = vmatprep.subr.mxu0 0.0
        %2712 = vmatpush1.msra.mxu0 0.0
        %2713 = vmatprep.subr.mxu0 0.0
        %2714 = vmatpush1.msra.mxu0 0.0
        %2715 = vmatprep.subr.mxu0 0.0
        %2716 = vmatpush1.msra.mxu0 0.0
        %2717 = vmatprep.subr.mxu0 0.0
        %2718 = vmatpush1.msra.mxu0 0.0
        %2719 = vmatprep.subr.mxu0 0.0
        %2720 = vmatpush1.msra.mxu0 0.0
        %2721 = vmatprep.subr.mxu0 0.0
        %2722 = vmatpush1.msra.mxu0 0.0
        %2723 = vmatprep.subr.mxu0 0.0
        %2724 = vmatpush1.msra.mxu0 0.0
        %2725 = vmatprep.subr.mxu0 0.0
        %2726 = vmatpush1.msra.mxu0 0.0
        %2727 = vmatprep.subr.mxu0 0.0
        %2728 = vmatpush1.msra.mxu0 0.0
        %2729 = vmatprep.subr.mxu0 0.0
        %2730 = vmatpush1.msra.mxu0 0.0
        %2731 = vmatprep.mubr.f32.mxu0 0.0
        %2732 = vmatmul.mubr.f32.gmra.mrb[0].mxu0 %v2644
        %v2733 = vpop.f32.mrb[0].mxu0
        %v2734 = vadd.f32 %v2641, %v2733
        %v2735 = vpop.f32.mrb[0].mxu0
        %2736 = vmatprep.mubr.f32.mxu0 0.0
        %2737 = vmatmul.mubr.f32.gmra.mrb[0].mxu0 %v2647
        %v2738 = vpop.f32.mrb[0].mxu0
        %v2739 = vadd.f32 %v2641, %v2738
        %v2740 = vpop.f32.mrb[0].mxu0
        %2741 = vmatprep.mubr.f32.mxu0 0.0
        %2742 = vmatmul.mubr.f32.gmra.mrb[0].mxu0 %v2650
        %v2743 = vpop.f32.mrb[0].mxu0
        %v2744 = vadd.f32 %v2641, %v2743
        %v2745 = vpop.f32.mrb[0].mxu0
        %2746 = vmatprep.mubr.f32.mxu0 0.0
        %2747 = vmatmul.mubr.f32.gmra.mrb[0].mxu0 %v2653
        %v2748 = vpop.f32.mrb[0].mxu0
        %v2749 = vadd.f32 %v2641, %v2748
        %v2750 = vpop.f32.mrb[0].mxu0
        %2751 = vmatprep.mubr.f32.mxu0 0.0
        %2752 = vmatmul.mubr.f32.gmra.mrb[0].mxu0 %v2656
        %v2753 = vpop.f32.mrb[0].mxu0
        %v2754 = vadd.f32 %v2641, %v2753
        %v2755 = vpop.f32.mrb[0].mxu0
        %2756 = vmatprep.mubr.f32.mxu0 0.0
        %2757 = vmatmul.mubr.f32.gmra.mrb[0].mxu0 %v2659
        %v2758 = vpop.f32.mrb[0].mxu0
        %v2759 = vadd.f32 %v2641, %v2758
        %v2760 = vpop.f32.mrb[0].mxu0
        %2761 = vmatprep.mubr.f32.mxu0 0.0
        %2762 = vmatmul.mubr.f32.gmra.mrb[0].mxu0 %v2662
        %v2763 = vpop.f32.mrb[0].mxu0
        %v2764 = vadd.f32 %v2641, %v2763
        %v2765 = vpop.f32.mrb[0].mxu0
        %2766 = vmatprep.mubr.f32.mxu0 0.0
        %2767 = vmatmul.mubr.f32.gmra.mrb[0].mxu0 %v2665
        %v2768 = vpop.f32.mrb[0].mxu0
        %v2769 = vadd.f32 %v2641, %v2768
        %v2770 = vpop.f32.mrb[0].mxu0
        %2771 = vdwg.mxu0
        %s2772 = scalar_lea.vmem [#allocation2], 128
        %v2773 = vld [vmem:[%s2772] sm:$0xff]
        %v2774 = vld [vmem:[%s2772 + $0x8] sm:$0xff]
        %v2775 = vld [vmem:[%s2772 + $0x10] sm:$0xff]
        %v2776 = vld [vmem:[%s2772 + $0x18] sm:$0xff]
        %v2777 = vld [vmem:[%s2772 + $0x20] sm:$0xff]
        %v2778 = vld [vmem:[%s2772 + $0x28] sm:$0xff]
        %v2779 = vld [vmem:[%s2772 + $0x30] sm:$0xff]
        %v2780 = vld [vmem:[%s2772 + $0x38] sm:$0xff]
        %2789 = vrot.lane.b32.xlu0 %v2734, 96
        %v2790 = vpop.permute.xlu0 %2789
        %2791 = vrot.lane.b32.xlu0 %v2739, 96
        %v2792 = vpop.permute.xlu0 %2791
        %2793 = vrot.lane.b32.xlu0 %v2744, 96
        %v2794 = vpop.permute.xlu0 %2793
        %2795 = vrot.lane.b32.xlu0 %v2749, 96
        %v2796 = vpop.permute.xlu0 %2795
        %2797 = vrot.lane.b32.xlu0 %v2754, 96
        %v2798 = vpop.permute.xlu0 %2797
        %2799 = vrot.lane.b32.xlu0 %v2759, 96
        %v2800 = vpop.permute.xlu0 %2799
        %2801 = vrot.lane.b32.xlu0 %v2764, 96
        %v2802 = vpop.permute.xlu0 %2801
        %2803 = vrot.lane.b32.xlu0 %v2769, 96
        %v2804 = vpop.permute.xlu0 %2803
        %v2805 = vsel %vm843, %v2734, 0
        %v2807 = vsel %vm843, %v2739, 0
        %v2809 = vsel %vm843, %v2744, 0
        %v2811 = vsel %vm843, %v2749, 0
        %v2813 = vsel %vm843, %v2754, 0
        %v2815 = vsel %vm843, %v2759, 0
        %v2817 = vsel %vm843, %v2764, 0
        %v2819 = vsel %vm843, %v2769, 0
        %v2821 = vsel %vm843, %v2790, 0
        %v2823 = vsel %vm843, %v2792, 0
        %v2825 = vsel %vm843, %v2794, 0
        %v2827 = vsel %vm843, %v2796, 0
        %v2829 = vsel %vm843, %v2798, 0
        %v2831 = vsel %vm843, %v2800, 0
        %v2833 = vsel %vm843, %v2802, 0
        %v2835 = vsel %vm843, %v2804, 0
        %2837 = vmatprep.subr.mxu0 0.0
        %2838 = vmatpush1.xpose.msra.mxu0 %v2821
        %2839 = vmatprep.subr.mxu0 0.0
        %2840 = vmatpush1.xpose.msra.mxu0 %v2823
        %2841 = vmatprep.subr.mxu0 0.0
        %2842 = vmatpush1.xpose.msra.mxu0 %v2825
        %2843 = vmatprep.subr.mxu0 0.0
        %2844 = vmatpush1.xpose.msra.mxu0 %v2827
        %2845 = vmatprep.subr.mxu0 0.0
        %2846 = vmatpush1.xpose.msra.mxu0 %v2829
        %2847 = vmatprep.subr.mxu0 0.0
        %2848 = vmatpush1.xpose.msra.mxu0 %v2831
        %2849 = vmatprep.subr.mxu0 0.0
        %2850 = vmatpush1.xpose.msra.mxu0 %v2833
        %2851 = vmatprep.subr.mxu0 0.0
        %2852 = vmatpush1.xpose.msra.mxu0 %v2835
        %2853 = vmatprep.subr.mxu0 0.0
        %2854 = vmatpush1.xpose.msra.mxu0 0.0
        %2855 = vmatprep.subr.mxu0 0.0
        %2856 = vmatpush1.xpose.msra.mxu0 0.0
        %2857 = vmatprep.subr.mxu0 0.0
        %2858 = vmatpush1.xpose.msra.mxu0 0.0
        %2859 = vmatprep.subr.mxu0 0.0
        %2860 = vmatpush1.xpose.msra.mxu0 0.0
        %2861 = vmatprep.subr.mxu0 0.0
        %2862 = vmatpush1.xpose.msra.mxu0 0.0
        %2863 = vmatprep.subr.mxu0 0.0
        %2864 = vmatpush1.xpose.msra.mxu0 0.0
        %2865 = vmatprep.subr.mxu0 0.0
        %2866 = vmatpush1.xpose.msra.mxu0 0.0
        %2867 = vmatprep.subr.mxu0 0.0
        %2868 = vmatpush1.xpose.msra.mxu0 0.0
        %2869 = vmatprep.subr.mxu0 0.0
        %2870 = vmatpush1.xpose.msra.mxu0 0.0
        %2871 = vmatprep.subr.mxu0 0.0
        %2872 = vmatpush1.xpose.msra.mxu0 0.0
        %2873 = vmatprep.subr.mxu0 0.0
        %2874 = vmatpush1.xpose.msra.mxu0 0.0
        %2875 = vmatprep.subr.mxu0 0.0
        %2876 = vmatpush1.xpose.msra.mxu0 0.0
        %2877 = vmatprep.subr.mxu0 0.0
        %2878 = vmatpush1.xpose.msra.mxu0 0.0
        %2879 = vmatprep.subr.mxu0 0.0
        %2880 = vmatpush1.xpose.msra.mxu0 0.0
        %2881 = vmatprep.subr.mxu0 0.0
        %2882 = vmatpush1.xpose.msra.mxu0 0.0
        %2883 = vmatprep.subr.mxu0 0.0
        %2884 = vmatpush1.xpose.msra.mxu0 0.0
        %2885 = vmatprep.subr.mxu0 0.0
        %2886 = vmatpush1.xpose.msra.mxu0 0.0
        %2887 = vmatprep.subr.mxu0 0.0
        %2888 = vmatpush1.xpose.msra.mxu0 0.0
        %2889 = vmatprep.subr.mxu0 0.0
        %2890 = vmatpush1.xpose.msra.mxu0 0.0
        %2891 = vmatprep.subr.mxu0 0.0
        %2892 = vmatpush1.xpose.msra.mxu0 0.0
        %2893 = vmatprep.subr.mxu0 0.0
        %2894 = vmatpush1.xpose.msra.mxu0 0.0
        %2895 = vmatprep.subr.mxu0 0.0
        %2896 = vmatpush1.xpose.msra.mxu0 0.0
        %2897 = vmatprep.subr.mxu0 0.0
        %2898 = vmatpush1.xpose.msra.mxu0 0.0
        %2899 = vmatprep.subr.mxu0 0.0
        %2900 = vmatpush1.xpose.msra.mxu0 0.0
        %2901 = vmatprep.mubr.f32.mxu0 0.0
        %2902 = vmatmul.mubr.f32.gmra.mrb[0].mxu0 %v2805
        %v2903 = vpop.f32.mrb[0].mxu0
        %v2904 = vadd.f32 %v2773, %v2903
        %v2905 = vpop.f32.mrb[0].mxu0
        %2906 = vmatprep.mubr.f32.mxu0 0.0
        %2907 = vmatmul.mubr.f32.gmra.mrb[0].mxu0 %v2807
        %v2908 = vpop.f32.mrb[0].mxu0
        %v2909 = vadd.f32 %v2774, %v2908
        %v2910 = vpop.f32.mrb[0].mxu0
        %2911 = vmatprep.mubr.f32.mxu0 0.0
        %2912 = vmatmul.mubr.f32.gmra.mrb[0].mxu0 %v2809
        %v2913 = vpop.f32.mrb[0].mxu0
        %v2914 = vadd.f32 %v2775, %v2913
        %v2915 = vpop.f32.mrb[0].mxu0
        %2916 = vmatprep.mubr.f32.mxu0 0.0
        %2917 = vmatmul.mubr.f32.gmra.mrb[0].mxu0 %v2811
        %v2918 = vpop.f32.mrb[0].mxu0
        %v2919 = vadd.f32 %v2776, %v2918
        %v2920 = vpop.f32.mrb[0].mxu0
        %2921 = vmatprep.mubr.f32.mxu0 0.0
        %2922 = vmatmul.mubr.f32.gmra.mrb[0].mxu0 %v2813
        %v2923 = vpop.f32.mrb[0].mxu0
        %v2924 = vadd.f32 %v2777, %v2923
        %v2925 = vpop.f32.mrb[0].mxu0
        %2926 = vmatprep.mubr.f32.mxu0 0.0
        %2927 = vmatmul.mubr.f32.gmra.mrb[0].mxu0 %v2815
        %v2928 = vpop.f32.mrb[0].mxu0
        %v2929 = vadd.f32 %v2778, %v2928
        %v2930 = vpop.f32.mrb[0].mxu0
        %2931 = vmatprep.mubr.f32.mxu0 0.0
        %2932 = vmatmul.mubr.f32.gmra.mrb[0].mxu0 %v2817
        %v2933 = vpop.f32.mrb[0].mxu0
        %v2934 = vadd.f32 %v2779, %v2933
        %v2935 = vpop.f32.mrb[0].mxu0
        %2936 = vmatprep.mubr.f32.mxu0 0.0
        %2937 = vmatmul.mubr.f32.gmra.mrb[0].mxu0 %v2819
        %v2938 = vpop.f32.mrb[0].mxu0
        %v2939 = vadd.f32 %v2780, %v2938
        %v2940 = vpop.f32.mrb[0].mxu0
        %2941 = vdwg.mxu0
        %v2942 = vsel %vm981, %v2904, -inf
        %2943 = vmax.xlane.f32.xlu0 %v2942
        %v2944 = vpop.xlane.xlu0 %2943
        %v2945 = vsel %vm981, %v2909, -inf
        %2946 = vmax.xlane.f32.xlu0 %v2945
        %v2947 = vpop.xlane.xlu0 %2946
        %v2948 = vsel %vm981, %v2914, -inf
        %2949 = vmax.xlane.f32.xlu0 %v2948
        %v2950 = vpop.xlane.xlu0 %2949
        %v2951 = vsel %vm981, %v2919, -inf
        %2952 = vmax.xlane.f32.xlu0 %v2951
        %v2953 = vpop.xlane.xlu0 %2952
        %v2954 = vsel %vm981, %v2924, -inf
        %2955 = vmax.xlane.f32.xlu0 %v2954
        %v2956 = vpop.xlane.xlu0 %2955
        %v2957 = vsel %vm981, %v2929, -inf
        %2958 = vmax.xlane.f32.xlu0 %v2957
        %v2959 = vpop.xlane.xlu0 %2958
        %v2960 = vsel %vm981, %v2934, -inf
        %2961 = vmax.xlane.f32.xlu0 %v2960
        %v2962 = vpop.xlane.xlu0 %2961
        %v2963 = vsel %vm981, %v2939, -inf
        %2964 = vmax.xlane.f32.xlu0 %v2963
        %v2965 = vpop.xlane.xlu0 %2964
        %v2966 = vsub.f32 %v2904, %v2944
        %v2967 = vsub.f32 %v2909, %v2947
        %v2968 = vsub.f32 %v2914, %v2950
        %v2969 = vsub.f32 %v2919, %v2953
        %v2970 = vsub.f32 %v2924, %v2956
        %v2971 = vsub.f32 %v2929, %v2959
        %v2972 = vsub.f32 %v2934, %v2962
        %v2973 = vsub.f32 %v2939, %v2965
        %v2974 = vmul.f32 %v2966, 1.442695
        %v2975 = vpow.pop %v2974
        %v2976 = vmul.f32 %v2967, 1.442695
        %v2977 = vpow.pop %v2976
        %v2978 = vmul.f32 %v2968, 1.442695
        %v2979 = vpow.pop %v2978
        %v2980 = vmul.f32 %v2969, 1.442695
        %v2981 = vpow.pop %v2980
        %v2982 = vmul.f32 %v2970, 1.442695
        %v2983 = vpow.pop %v2982
        %v2984 = vmul.f32 %v2971, 1.442695
        %v2985 = vpow.pop %v2984
        %v2986 = vmul.f32 %v2972, 1.442695
        %v2987 = vpow.pop %v2986
        %v2988 = vmul.f32 %v2973, 1.442695
        %v2989 = vpow.pop %v2988
        %v2990 = vsel %vm981, %v2975, 0.0
        %2991 = vadd.xlane.f32.xlu0 %v2990
        %v2992 = vpop.xlane.xlu0 %2991
        %v2993 = vsel %vm981, %v2977, 0.0
        %2994 = vadd.xlane.f32.xlu0 %v2993
        %v2995 = vpop.xlane.xlu0 %2994
        %v2996 = vsel %vm981, %v2979, 0.0
        %2997 = vadd.xlane.f32.xlu0 %v2996
        %v2998 = vpop.xlane.xlu0 %2997
        %v2999 = vsel %vm981, %v2981, 0.0
        %3000 = vadd.xlane.f32.xlu0 %v2999
        %v3001 = vpop.xlane.xlu0 %3000
        %v3002 = vsel %vm981, %v2983, 0.0
        %3003 = vadd.xlane.f32.xlu0 %v3002
        %v3004 = vpop.xlane.xlu0 %3003
        %v3005 = vsel %vm981, %v2985, 0.0
        %3006 = vadd.xlane.f32.xlu0 %v3005
        %v3007 = vpop.xlane.xlu0 %3006
        %v3008 = vsel %vm981, %v2987, 0.0
        %3009 = vadd.xlane.f32.xlu0 %v3008
        %v3010 = vpop.xlane.xlu0 %3009
        %v3011 = vsel %vm981, %v2989, 0.0
        %3012 = vadd.xlane.f32.xlu0 %v3011
        %v3013 = vpop.xlane.xlu0 %3012
        %v3014 = vrcp.pop %v2992
        %v3015 = vmul.f32 %v2975, %v3014
        %v3016 = vrcp.pop %v2995
        %v3017 = vmul.f32 %v2977, %v3016
        %v3018 = vrcp.pop %v2998
        %v3019 = vmul.f32 %v2979, %v3018
        %v3020 = vrcp.pop %v3001
        %v3021 = vmul.f32 %v2981, %v3020
        %v3022 = vrcp.pop %v3004
        %v3023 = vmul.f32 %v2983, %v3022
        %v3024 = vrcp.pop %v3007
        %v3025 = vmul.f32 %v2985, %v3024
        %v3026 = vrcp.pop %v3010
        %v3027 = vmul.f32 %v2987, %v3026
        %v3028 = vrcp.pop %v3013
        %v3029 = vmul.f32 %v2989, %v3028
        %s3030 = scalar_lea.vmem [#allocation6], 64
        %v3031 = vld [vmem:[%s3030] sm:$0xff]
        %v3032 = vld [vmem:[%s3030 + $0x8] sm:$0xff]
        %v3033 = vld [vmem:[%s3030 + $0x10] sm:$0xff]
        %v3034 = vld [vmem:[%s3030 + $0x18] sm:$0xff]
        %3035 = vmatprep.subr.mxu0 0.0
        %3036 = vmatpush1.msra.mxu0 %v3031
        %3037 = vmatprep.subr.mxu0 0.0
        %3038 = vmatpush1.msra.mxu0 %v3032
        %3039 = vmatprep.subr.mxu0 0.0
        %3040 = vmatpush1.msra.mxu0 %v3033
        %3041 = vmatprep.subr.mxu0 0.0
        %3042 = vmatpush1.msra.mxu0 %v3034
        %3043 = vmatprep.subr.mxu0 0.0
        %3044 = vmatpush1.msra.mxu0 0.0
        %3045 = vmatprep.subr.mxu0 0.0
        %3046 = vmatpush1.msra.mxu0 0.0
        %3047 = vmatprep.subr.mxu0 0.0
        %3048 = vmatpush1.msra.mxu0 0.0
        %3049 = vmatprep.subr.mxu0 0.0
        %3050 = vmatpush1.msra.mxu0 0.0
        %3051 = vmatprep.subr.mxu0 0.0
        %3052 = vmatpush1.msra.mxu0 0.0
        %3053 = vmatprep.subr.mxu0 0.0
        %3054 = vmatpush1.msra.mxu0 0.0
        %3055 = vmatprep.subr.mxu0 0.0
        %3056 = vmatpush1.msra.mxu0 0.0
        %3057 = vmatprep.subr.mxu0 0.0
        %3058 = vmatpush1.msra.mxu0 0.0
        %3059 = vmatprep.subr.mxu0 0.0
        %3060 = vmatpush1.msra.mxu0 0.0
        %3061 = vmatprep.subr.mxu0 0.0
        %3062 = vmatpush1.msra.mxu0 0.0
        %3063 = vmatprep.subr.mxu0 0.0
        %3064 = vmatpush1.msra.mxu0 0.0
        %3065 = vmatprep.subr.mxu0 0.0
        %3066 = vmatpush1.msra.mxu0 0.0
        %3067 = vmatprep.subr.mxu0 0.0
        %3068 = vmatpush1.msra.mxu0 0.0
        %3069 = vmatprep.subr.mxu0 0.0
        %3070 = vmatpush1.msra.mxu0 0.0
        %3071 = vmatprep.subr.mxu0 0.0
        %3072 = vmatpush1.msra.mxu0 0.0
        %3073 = vmatprep.subr.mxu0 0.0
        %3074 = vmatpush1.msra.mxu0 0.0
        %3075 = vmatprep.subr.mxu0 0.0
        %3076 = vmatpush1.msra.mxu0 0.0
        %3077 = vmatprep.subr.mxu0 0.0
        %3078 = vmatpush1.msra.mxu0 0.0
        %3079 = vmatprep.subr.mxu0 0.0
        %3080 = vmatpush1.msra.mxu0 0.0
        %3081 = vmatprep.subr.mxu0 0.0
        %3082 = vmatpush1.msra.mxu0 0.0
        %3083 = vmatprep.subr.mxu0 0.0
        %3084 = vmatpush1.msra.mxu0 0.0
        %3085 = vmatprep.subr.mxu0 0.0
        %3086 = vmatpush1.msra.mxu0 0.0
        %3087 = vmatprep.subr.mxu0 0.0
        %3088 = vmatpush1.msra.mxu0 0.0
        %3089 = vmatprep.subr.mxu0 0.0
        %3090 = vmatpush1.msra.mxu0 0.0
        %3091 = vmatprep.subr.mxu0 0.0
        %3092 = vmatpush1.msra.mxu0 0.0
        %3093 = vmatprep.subr.mxu0 0.0
        %3094 = vmatpush1.msra.mxu0 0.0
        %3095 = vmatprep.subr.mxu0 0.0
        %3096 = vmatpush1.msra.mxu0 0.0
        %3097 = vmatprep.subr.mxu0 0.0
        %3098 = vmatpush1.msra.mxu0 0.0
        %3099 = vmatprep.mubr.f32.mxu0 0.0
        %3100 = vmatmul.mubr.f32.gmra.mrb[0].mxu0 %v2644
        %v3101 = vpop.f32.mrb[0].mxu0
        %v3102 = vadd.f32 0.0, %v3101
        %v3103 = vpop.f32.mrb[0].mxu0
        %3104 = vmatprep.mubr.f32.mxu0 0.0
        %3105 = vmatmul.mubr.f32.gmra.mrb[0].mxu0 %v2647
        %v3106 = vpop.f32.mrb[0].mxu0
        %v3107 = vadd.f32 0.0, %v3106
        %v3108 = vpop.f32.mrb[0].mxu0
        %3109 = vmatprep.mubr.f32.mxu0 0.0
        %3110 = vmatmul.mubr.f32.gmra.mrb[0].mxu0 %v2650
        %v3111 = vpop.f32.mrb[0].mxu0
        %v3112 = vadd.f32 0.0, %v3111
        %v3113 = vpop.f32.mrb[0].mxu0
        %3114 = vmatprep.mubr.f32.mxu0 0.0
        %3115 = vmatmul.mubr.f32.gmra.mrb[0].mxu0 %v2653
        %v3116 = vpop.f32.mrb[0].mxu0
        %v3117 = vadd.f32 0.0, %v3116
        %v3118 = vpop.f32.mrb[0].mxu0
        %3119 = vmatprep.mubr.f32.mxu0 0.0
        %3120 = vmatmul.mubr.f32.gmra.mrb[0].mxu0 %v2656
        %v3121 = vpop.f32.mrb[0].mxu0
        %v3122 = vadd.f32 0.0, %v3121
        %v3123 = vpop.f32.mrb[0].mxu0
        %3124 = vmatprep.mubr.f32.mxu0 0.0
        %3125 = vmatmul.mubr.f32.gmra.mrb[0].mxu0 %v2659
        %v3126 = vpop.f32.mrb[0].mxu0
        %v3127 = vadd.f32 0.0, %v3126
        %v3128 = vpop.f32.mrb[0].mxu0
        %3129 = vmatprep.mubr.f32.mxu0 0.0
        %3130 = vmatmul.mubr.f32.gmra.mrb[0].mxu0 %v2662
        %v3131 = vpop.f32.mrb[0].mxu0
        %v3132 = vadd.f32 0.0, %v3131
        %v3133 = vpop.f32.mrb[0].mxu0
        %3134 = vmatprep.mubr.f32.mxu0 0.0
        %3135 = vmatmul.mubr.f32.gmra.mrb[0].mxu0 %v2665
        %v3136 = vpop.f32.mrb[0].mxu0
        %v3137 = vadd.f32 0.0, %v3136
        %v3138 = vpop.f32.mrb[0].mxu0
        %3139 = vdwg.mxu0
        %s3140 = scalar_lea.vmem [#allocation2], 192
        %v3141 = vld [vmem:[%s3140] sm:$0xff]
        %v3142 = vld [vmem:[%s3140 + $0x8] sm:$0xff]
        %v3143 = vld [vmem:[%s3140 + $0x10] sm:$0xff]
        %v3144 = vld [vmem:[%s3140 + $0x18] sm:$0xff]
        %v3145 = vld [vmem:[%s3140 + $0x20] sm:$0xff]
        %v3146 = vld [vmem:[%s3140 + $0x28] sm:$0xff]
        %v3147 = vld [vmem:[%s3140 + $0x30] sm:$0xff]
        %v3148 = vld [vmem:[%s3140 + $0x38] sm:$0xff]
        %3149 = vrot.lane.b32.xlu0 %v2734, 112
        %v3150 = vpop.permute.xlu0 %3149
        %3151 = vrot.lane.b32.xlu0 %v2739, 112
        %v3152 = vpop.permute.xlu0 %3151
        %3153 = vrot.lane.b32.xlu0 %v2744, 112
        %v3154 = vpop.permute.xlu0 %3153
        %3155 = vrot.lane.b32.xlu0 %v2749, 112
        %v3156 = vpop.permute.xlu0 %3155
        %3157 = vrot.lane.b32.xlu0 %v2754, 112
        %v3158 = vpop.permute.xlu0 %3157
        %3159 = vrot.lane.b32.xlu0 %v2759, 112
        %v3160 = vpop.permute.xlu0 %3159
        %3161 = vrot.lane.b32.xlu0 %v2764, 112
        %v3162 = vpop.permute.xlu0 %3161
        %3163 = vrot.lane.b32.xlu0 %v2769, 112
        %v3164 = vpop.permute.xlu0 %3163
        %3165 = vrot.lane.b32.xlu0 %v2734, 80
        %v3166 = vpop.permute.xlu0 %3165
        %3167 = vrot.lane.b32.xlu0 %v2739, 80
        %v3168 = vpop.permute.xlu0 %3167
        %3169 = vrot.lane.b32.xlu0 %v2744, 80
        %v3170 = vpop.permute.xlu0 %3169
        %3171 = vrot.lane.b32.xlu0 %v2749, 80
        %v3172 = vpop.permute.xlu0 %3171
        %3173 = vrot.lane.b32.xlu0 %v2754, 80
        %v3174 = vpop.permute.xlu0 %3173
        %3175 = vrot.lane.b32.xlu0 %v2759, 80
        %v3176 = vpop.permute.xlu0 %3175
        %3177 = vrot.lane.b32.xlu0 %v2764, 80
        %v3178 = vpop.permute.xlu0 %3177
        %3179 = vrot.lane.b32.xlu0 %v2769, 80
        %v3180 = vpop.permute.xlu0 %3179
        %v3181 = vsel %vm843, %v3150, 0
        %v3183 = vsel %vm843, %v3152, 0
        %v3185 = vsel %vm843, %v3154, 0
        %v3187 = vsel %vm843, %v3156, 0
        %v3189 = vsel %vm843, %v3158, 0
        %v3191 = vsel %vm843, %v3160, 0
        %v3193 = vsel %vm843, %v3162, 0
        %v3195 = vsel %vm843, %v3164, 0
        %v3197 = vsel %vm843, %v3166, 0
        %v3199 = vsel %vm843, %v3168, 0
        %v3201 = vsel %vm843, %v3170, 0
        %v3203 = vsel %vm843, %v3172, 0
        %v3205 = vsel %vm843, %v3174, 0
        %v3207 = vsel %vm843, %v3176, 0
        %v3209 = vsel %vm843, %v3178, 0
        %v3211 = vsel %vm843, %v3180, 0
        %3213 = vmatprep.subr.mxu0 0.0
        %3214 = vmatpush1.xpose.msra.mxu0 %v3197
        %3215 = vmatprep.subr.mxu0 0.0
        %3216 = vmatpush1.xpose.msra.mxu0 %v3199
        %3217 = vmatprep.subr.mxu0 0.0
        %3218 = vmatpush1.xpose.msra.mxu0 %v3201
        %3219 = vmatprep.subr.mxu0 0.0
        %3220 = vmatpush1.xpose.msra.mxu0 %v3203
        %3221 = vmatprep.subr.mxu0 0.0
        %3222 = vmatpush1.xpose.msra.mxu0 %v3205
        %3223 = vmatprep.subr.mxu0 0.0
        %3224 = vmatpush1.xpose.msra.mxu0 %v3207
        %3225 = vmatprep.subr.mxu0 0.0
        %3226 = vmatpush1.xpose.msra.mxu0 %v3209
        %3227 = vmatprep.subr.mxu0 0.0
        %3228 = vmatpush1.xpose.msra.mxu0 %v3211
        %3229 = vmatprep.subr.mxu0 0.0
        %3230 = vmatpush1.xpose.msra.mxu0 0.0
        %3231 = vmatprep.subr.mxu0 0.0
        %3232 = vmatpush1.xpose.msra.mxu0 0.0
        %3233 = vmatprep.subr.mxu0 0.0
        %3234 = vmatpush1.xpose.msra.mxu0 0.0
        %3235 = vmatprep.subr.mxu0 0.0
        %3236 = vmatpush1.xpose.msra.mxu0 0.0
        %3237 = vmatprep.subr.mxu0 0.0
        %3238 = vmatpush1.xpose.msra.mxu0 0.0
        %3239 = vmatprep.subr.mxu0 0.0
        %3240 = vmatpush1.xpose.msra.mxu0 0.0
        %3241 = vmatprep.subr.mxu0 0.0
        %3242 = vmatpush1.xpose.msra.mxu0 0.0
        %3243 = vmatprep.subr.mxu0 0.0
        %3244 = vmatpush1.xpose.msra.mxu0 0.0
        %3245 = vmatprep.subr.mxu0 0.0
        %3246 = vmatpush1.xpose.msra.mxu0 0.0
        %3247 = vmatprep.subr.mxu0 0.0
        %3248 = vmatpush1.xpose.msra.mxu0 0.0
        %3249 = vmatprep.subr.mxu0 0.0
        %3250 = vmatpush1.xpose.msra.mxu0 0.0
        %3251 = vmatprep.subr.mxu0 0.0
        %3252 = vmatpush1.xpose.msra.mxu0 0.0
        %3253 = vmatprep.subr.mxu0 0.0
        %3254 = vmatpush1.xpose.msra.mxu0 0.0
        %3255 = vmatprep.subr.mxu0 0.0
        %3256 = vmatpush1.xpose.msra.mxu0 0.0
        %3257 = vmatprep.subr.mxu0 0.0
        %3258 = vmatpush1.xpose.msra.mxu0 0.0
        %3259 = vmatprep.subr.mxu0 0.0
        %3260 = vmatpush1.xpose.msra.mxu0 0.0
        %3261 = vmatprep.subr.mxu0 0.0
        %3262 = vmatpush1.xpose.msra.mxu0 0.0
        %3263 = vmatprep.subr.mxu0 0.0
        %3264 = vmatpush1.xpose.msra.mxu0 0.0
        %3265 = vmatprep.subr.mxu0 0.0
        %3266 = vmatpush1.xpose.msra.mxu0 0.0
        %3267 = vmatprep.subr.mxu0 0.0
        %3268 = vmatpush1.xpose.msra.mxu0 0.0
        %3269 = vmatprep.subr.mxu0 0.0
        %3270 = vmatpush1.xpose.msra.mxu0 0.0
        %3271 = vmatprep.subr.mxu0 0.0
        %3272 = vmatpush1.xpose.msra.mxu0 0.0
        %3273 = vmatprep.subr.mxu0 0.0
        %3274 = vmatpush1.xpose.msra.mxu0 0.0
        %3275 = vmatprep.subr.mxu0 0.0
        %3276 = vmatpush1.xpose.msra.mxu0 0.0
        %3277 = vmatprep.mubr.f32.mxu0 0.0
        %3278 = vmatmul.mubr.f32.gmra.mrb[0].mxu0 %v3181
        %v3279 = vpop.f32.mrb[0].mxu0
        %v3280 = vadd.f32 %v3141, %v3279
        %v3281 = vpop.f32.mrb[0].mxu0
        %3282 = vmatprep.mubr.f32.mxu0 0.0
        %3283 = vmatmul.mubr.f32.gmra.mrb[0].mxu0 %v3183
        %v3284 = vpop.f32.mrb[0].mxu0
        %v3285 = vadd.f32 %v3142, %v3284
        %v3286 = vpop.f32.mrb[0].mxu0
        %3287 = vmatprep.mubr.f32.mxu0 0.0
        %3288 = vmatmul.mubr.f32.gmra.mrb[0].mxu0 %v3185
        %v3289 = vpop.f32.mrb[0].mxu0
        %v3290 = vadd.f32 %v3143, %v3289
        %v3291 = vpop.f32.mrb[0].mxu0
        %3292 = vmatprep.mubr.f32.mxu0 0.0
        %3293 = vmatmul.mubr.f32.gmra.mrb[0].mxu0 %v3187
        %v3294 = vpop.f32.mrb[0].mxu0
        %v3295 = vadd.f32 %v3144, %v3294
        %v3296 = vpop.f32.mrb[0].mxu0
        %3297 = vmatprep.mubr.f32.mxu0 0.0
        %3298 = vmatmul.mubr.f32.gmra.mrb[0].mxu0 %v3189
        %v3299 = vpop.f32.mrb[0].mxu0
        %v3300 = vadd.f32 %v3145, %v3299
        %v3301 = vpop.f32.mrb[0].mxu0
        %3302 = vmatprep.mubr.f32.mxu0 0.0
        %3303 = vmatmul.mubr.f32.gmra.mrb[0].mxu0 %v3191
        %v3304 = vpop.f32.mrb[0].mxu0
        %v3305 = vadd.f32 %v3146, %v3304
        %v3306 = vpop.f32.mrb[0].mxu0
        %3307 = vmatprep.mubr.f32.mxu0 0.0
        %3308 = vmatmul.mubr.f32.gmra.mrb[0].mxu0 %v3193
        %v3309 = vpop.f32.mrb[0].mxu0
        %v3310 = vadd.f32 %v3147, %v3309
        %v3311 = vpop.f32.mrb[0].mxu0
        %3312 = vmatprep.mubr.f32.mxu0 0.0
        %3313 = vmatmul.mubr.f32.gmra.mrb[0].mxu0 %v3195
        %v3314 = vpop.f32.mrb[0].mxu0
        %v3315 = vadd.f32 %v3148, %v3314
        %v3316 = vpop.f32.mrb[0].mxu0
        %3317 = vdwg.mxu0
        %v3318 = vsel %vm981, %v3280, -inf
        %3319 = vmax.xlane.f32.xlu0 %v3318
        %v3320 = vpop.xlane.xlu0 %3319
        %v3321 = vsel %vm981, %v3285, -inf
        %3322 = vmax.xlane.f32.xlu0 %v3321
        %v3323 = vpop.xlane.xlu0 %3322
        %v3324 = vsel %vm981, %v3290, -inf
        %3325 = vmax.xlane.f32.xlu0 %v3324
        %v3326 = vpop.xlane.xlu0 %3325
        %v3327 = vsel %vm981, %v3295, -inf
        %3328 = vmax.xlane.f32.xlu0 %v3327
        %v3329 = vpop.xlane.xlu0 %3328
        %v3330 = vsel %vm981, %v3300, -inf
        %3331 = vmax.xlane.f32.xlu0 %v3330
        %v3332 = vpop.xlane.xlu0 %3331
        %v3333 = vsel %vm981, %v3305, -inf
        %3334 = vmax.xlane.f32.xlu0 %v3333
        %v3335 = vpop.xlane.xlu0 %3334
        %v3336 = vsel %vm981, %v3310, -inf
        %3337 = vmax.xlane.f32.xlu0 %v3336
        %v3338 = vpop.xlane.xlu0 %3337
        %v3339 = vsel %vm981, %v3315, -inf
        %3340 = vmax.xlane.f32.xlu0 %v3339
        %v3341 = vpop.xlane.xlu0 %3340
        %v3342 = vsub.f32 %v3280, %v3320
        %v3343 = vsub.f32 %v3285, %v3323
        %v3344 = vsub.f32 %v3290, %v3326
        %v3345 = vsub.f32 %v3295, %v3329
        %v3346 = vsub.f32 %v3300, %v3332
        %v3347 = vsub.f32 %v3305, %v3335
        %v3348 = vsub.f32 %v3310, %v3338
        %v3349 = vsub.f32 %v3315, %v3341
        %v3350 = vmul.f32 %v3342, 1.442695
        %v3351 = vpow.pop %v3350
        %v3352 = vmul.f32 %v3343, 1.442695
        %v3353 = vpow.pop %v3352
        %v3354 = vmul.f32 %v3344, 1.442695
        %v3355 = vpow.pop %v3354
        %v3356 = vmul.f32 %v3345, 1.442695
        %v3357 = vpow.pop %v3356
        %v3358 = vmul.f32 %v3346, 1.442695
        %v3359 = vpow.pop %v3358
        %v3360 = vmul.f32 %v3347, 1.442695
        %v3361 = vpow.pop %v3360
        %v3362 = vmul.f32 %v3348, 1.442695
        %v3363 = vpow.pop %v3362
        %v3364 = vmul.f32 %v3349, 1.442695
        %v3365 = vpow.pop %v3364
        %v3366 = vsel %vm981, %v3351, 0.0
        %3367 = vadd.xlane.f32.xlu0 %v3366
        %v3368 = vpop.xlane.xlu0 %3367
        %v3369 = vsel %vm981, %v3353, 0.0
        %3370 = vadd.xlane.f32.xlu0 %v3369
        %v3371 = vpop.xlane.xlu0 %3370
        %v3372 = vsel %vm981, %v3355, 0.0
        %3373 = vadd.xlane.f32.xlu0 %v3372
        %v3374 = vpop.xlane.xlu0 %3373
        %v3375 = vsel %vm981, %v3357, 0.0
        %3376 = vadd.xlane.f32.xlu0 %v3375
        %v3377 = vpop.xlane.xlu0 %3376
        %v3378 = vsel %vm981, %v3359, 0.0
        %3379 = vadd.xlane.f32.xlu0 %v3378
        %v3380 = vpop.xlane.xlu0 %3379
        %v3381 = vsel %vm981, %v3361, 0.0
        %3382 = vadd.xlane.f32.xlu0 %v3381
        %v3383 = vpop.xlane.xlu0 %3382
        %v3384 = vsel %vm981, %v3363, 0.0
        %3385 = vadd.xlane.f32.xlu0 %v3384
        %v3386 = vpop.xlane.xlu0 %3385
        %v3387 = vsel %vm981, %v3365, 0.0
        %3388 = vadd.xlane.f32.xlu0 %v3387
        %v3389 = vpop.xlane.xlu0 %3388
        %v3390 = vrcp.pop %v3368
        %v3391 = vmul.f32 %v3351, %v3390
        %v3392 = vrcp.pop %v3371
        %v3393 = vmul.f32 %v3353, %v3392
        %v3394 = vrcp.pop %v3374
        %v3395 = vmul.f32 %v3355, %v3394
        %v3396 = vrcp.pop %v3377
        %v3397 = vmul.f32 %v3357, %v3396
        %v3398 = vrcp.pop %v3380
        %v3399 = vmul.f32 %v3359, %v3398
        %v3400 = vrcp.pop %v3383
        %v3401 = vmul.f32 %v3361, %v3400
        %v3402 = vrcp.pop %v3386
        %v3403 = vmul.f32 %v3363, %v3402
        %v3404 = vrcp.pop %v3389
        %v3405 = vmul.f32 %v3365, %v3404
        %s3406 = scalar_lea.vmem [#allocation6], 96
        %v3407 = vld [vmem:[%s3406] sm:$0xff]
        %v3408 = vld [vmem:[%s3406 + $0x8] sm:$0xff]
        %v3409 = vld [vmem:[%s3406 + $0x10] sm:$0xff]
        %v3410 = vld [vmem:[%s3406 + $0x18] sm:$0xff]
        %3411 = vmatprep.subr.mxu0 0.0
        %3412 = vmatpush1.msra.mxu0 %v3407
        %3413 = vmatprep.subr.mxu0 0.0
        %3414 = vmatpush1.msra.mxu0 %v3408
        %3415 = vmatprep.subr.mxu0 0.0
        %3416 = vmatpush1.msra.mxu0 %v3409
        %3417 = vmatprep.subr.mxu0 0.0
        %3418 = vmatpush1.msra.mxu0 %v3410
        %3419 = vmatprep.subr.mxu0 0.0
        %3420 = vmatpush1.msra.mxu0 0.0
        %3421 = vmatprep.subr.mxu0 0.0
        %3422 = vmatpush1.msra.mxu0 0.0
        %3423 = vmatprep.subr.mxu0 0.0
        %3424 = vmatpush1.msra.mxu0 0.0
        %3425 = vmatprep.subr.mxu0 0.0
        %3426 = vmatpush1.msra.mxu0 0.0
        %3427 = vmatprep.subr.mxu0 0.0
        %3428 = vmatpush1.msra.mxu0 0.0
        %3429 = vmatprep.subr.mxu0 0.0
        %3430 = vmatpush1.msra.mxu0 0.0
        %3431 = vmatprep.subr.mxu0 0.0
        %3432 = vmatpush1.msra.mxu0 0.0
        %3433 = vmatprep.subr.mxu0 0.0
        %3434 = vmatpush1.msra.mxu0 0.0
        %3435 = vmatprep.subr.mxu0 0.0
        %3436 = vmatpush1.msra.mxu0 0.0
        %3437 = vmatprep.subr.mxu0 0.0
        %3438 = vmatpush1.msra.mxu0 0.0
        %3439 = vmatprep.subr.mxu0 0.0
        %3440 = vmatpush1.msra.mxu0 0.0
        %3441 = vmatprep.subr.mxu0 0.0
        %3442 = vmatpush1.msra.mxu0 0.0
        %3443 = vmatprep.subr.mxu0 0.0
        %3444 = vmatpush1.msra.mxu0 0.0
        %3445 = vmatprep.subr.mxu0 0.0
        %3446 = vmatpush1.msra.mxu0 0.0
        %3447 = vmatprep.subr.mxu0 0.0
        %3448 = vmatpush1.msra.mxu0 0.0
        %3449 = vmatprep.subr.mxu0 0.0
        %3450 = vmatpush1.msra.mxu0 0.0
        %3451 = vmatprep.subr.mxu0 0.0
        %3452 = vmatpush1.msra.mxu0 0.0
        %3453 = vmatprep.subr.mxu0 0.0
        %3454 = vmatpush1.msra.mxu0 0.0
        %3455 = vmatprep.subr.mxu0 0.0
        %3456 = vmatpush1.msra.mxu0 0.0
        %3457 = vmatprep.subr.mxu0 0.0
        %3458 = vmatpush1.msra.mxu0 0.0
        %3459 = vmatprep.subr.mxu0 0.0
        %3460 = vmatpush1.msra.mxu0 0.0
        %3461 = vmatprep.subr.mxu0 0.0
        %3462 = vmatpush1.msra.mxu0 0.0
        %3463 = vmatprep.subr.mxu0 0.0
        %3464 = vmatpush1.msra.mxu0 0.0
        %3465 = vmatprep.subr.mxu0 0.0
        %3466 = vmatpush1.msra.mxu0 0.0
        %3467 = vmatprep.subr.mxu0 0.0
        %3468 = vmatpush1.msra.mxu0 0.0
        %3469 = vmatprep.subr.mxu0 0.0
        %3470 = vmatpush1.msra.mxu0 0.0
        %3471 = vmatprep.subr.mxu0 0.0
        %3472 = vmatpush1.msra.mxu0 0.0
        %3473 = vmatprep.subr.mxu0 0.0
        %3474 = vmatpush1.msra.mxu0 0.0
        %3475 = vmatprep.mubr.f32.mxu0 0.0
        %3476 = vmatmul.mubr.f32.gmra.mrb[0].mxu0 %v2644
        %v3477 = vpop.f32.mrb[0].mxu0
        %v3478 = vadd.f32 0.0, %v3477
        %v3479 = vpop.f32.mrb[0].mxu0
        %3480 = vmatprep.mubr.f32.mxu0 0.0
        %3481 = vmatmul.mubr.f32.gmra.mrb[0].mxu0 %v2647
        %v3482 = vpop.f32.mrb[0].mxu0
        %v3483 = vadd.f32 0.0, %v3482
        %v3484 = vpop.f32.mrb[0].mxu0
        %3485 = vmatprep.mubr.f32.mxu0 0.0
        %3486 = vmatmul.mubr.f32.gmra.mrb[0].mxu0 %v2650
        %v3487 = vpop.f32.mrb[0].mxu0
        %v3488 = vadd.f32 0.0, %v3487
        %v3489 = vpop.f32.mrb[0].mxu0
        %3490 = vmatprep.mubr.f32.mxu0 0.0
        %3491 = vmatmul.mubr.f32.gmra.mrb[0].mxu0 %v2653
        %v3492 = vpop.f32.mrb[0].mxu0
        %v3493 = vadd.f32 0.0, %v3492
        %v3494 = vpop.f32.mrb[0].mxu0
        %3495 = vmatprep.mubr.f32.mxu0 0.0
        %3496 = vmatmul.mubr.f32.gmra.mrb[0].mxu0 %v2656
        %v3497 = vpop.f32.mrb[0].mxu0
        %v3498 = vadd.f32 0.0, %v3497
        %v3499 = vpop.f32.mrb[0].mxu0
        %3500 = vmatprep.mubr.f32.mxu0 0.0
        %3501 = vmatmul.mubr.f32.gmra.mrb[0].mxu0 %v2659
        %v3502 = vpop.f32.mrb[0].mxu0
        %v3503 = vadd.f32 0.0, %v3502
        %v3504 = vpop.f32.mrb[0].mxu0
        %3505 = vmatprep.mubr.f32.mxu0 0.0
        %3506 = vmatmul.mubr.f32.gmra.mrb[0].mxu0 %v2662
        %v3507 = vpop.f32.mrb[0].mxu0
        %v3508 = vadd.f32 0.0, %v3507
        %v3509 = vpop.f32.mrb[0].mxu0
        %3510 = vmatprep.mubr.f32.mxu0 0.0
        %3511 = vmatmul.mubr.f32.gmra.mrb[0].mxu0 %v2665
        %v3512 = vpop.f32.mrb[0].mxu0
        %v3513 = vadd.f32 0.0, %v3512
        %v3514 = vpop.f32.mrb[0].mxu0
        %3515 = vdwg.mxu0
        %v3517 = vsel %vm981, %v3391, 0
        %v3520 = vsel %vm981, %v3393, 0
        %v3523 = vsel %vm981, %v3395, 0
        %v3526 = vsel %vm981, %v3397, 0
        %v3529 = vsel %vm981, %v3399, 0
        %v3532 = vsel %vm981, %v3401, 0
        %v3535 = vsel %vm981, %v3403, 0
        %v3538 = vsel %vm981, %v3405, 0
        %3540 = vmatprep.subr.mxu0 0.0
        %3541 = vmatpush1.msra.mxu0 %v3478
        %3542 = vmatprep.subr.mxu0 0.0
        %3543 = vmatpush1.msra.mxu0 %v3483
        %3544 = vmatprep.subr.mxu0 0.0
        %3545 = vmatpush1.msra.mxu0 %v3488
        %3546 = vmatprep.subr.mxu0 0.0
        %3547 = vmatpush1.msra.mxu0 %v3493
        %3548 = vmatprep.subr.mxu0 0.0
        %3549 = vmatpush1.msra.mxu0 %v3498
        %3550 = vmatprep.subr.mxu0 0.0
        %3551 = vmatpush1.msra.mxu0 %v3503
        %3552 = vmatprep.subr.mxu0 0.0
        %3553 = vmatpush1.msra.mxu0 %v3508
        %3554 = vmatprep.subr.mxu0 0.0
        %3555 = vmatpush1.msra.mxu0 %v3513
        %3556 = vmatprep.subr.mxu0 0.0
        %3557 = vmatpush1.msra.mxu0 0.0
        %3558 = vmatprep.subr.mxu0 0.0
        %3559 = vmatpush1.msra.mxu0 0.0
        %3560 = vmatprep.subr.mxu0 0.0
        %3561 = vmatpush1.msra.mxu0 0.0
        %3562 = vmatprep.subr.mxu0 0.0
        %3563 = vmatpush1.msra.mxu0 0.0
        %3564 = vmatprep.subr.mxu0 0.0
        %3565 = vmatpush1.msra.mxu0 0.0
        %3566 = vmatprep.subr.mxu0 0.0
        %3567 = vmatpush1.msra.mxu0 0.0
        %3568 = vmatprep.subr.mxu0 0.0
        %3569 = vmatpush1.msra.mxu0 0.0
        %3570 = vmatprep.subr.mxu0 0.0
        %3571 = vmatpush1.msra.mxu0 0.0
        %3572 = vmatprep.subr.mxu0 0.0
        %3573 = vmatpush1.msra.mxu0 0.0
        %3574 = vmatprep.subr.mxu0 0.0
        %3575 = vmatpush1.msra.mxu0 0.0
        %3576 = vmatprep.subr.mxu0 0.0
        %3577 = vmatpush1.msra.mxu0 0.0
        %3578 = vmatprep.subr.mxu0 0.0
        %3579 = vmatpush1.msra.mxu0 0.0
        %3580 = vmatprep.subr.mxu0 0.0
        %3581 = vmatpush1.msra.mxu0 0.0
        %3582 = vmatprep.subr.mxu0 0.0
        %3583 = vmatpush1.msra.mxu0 0.0
        %3584 = vmatprep.subr.mxu0 0.0
        %3585 = vmatpush1.msra.mxu0 0.0
        %3586 = vmatprep.subr.mxu0 0.0
        %3587 = vmatpush1.msra.mxu0 0.0
        %3588 = vmatprep.subr.mxu0 0.0
        %3589 = vmatpush1.msra.mxu0 0.0
        %3590 = vmatprep.subr.mxu0 0.0
        %3591 = vmatpush1.msra.mxu0 0.0
        %3592 = vmatprep.subr.mxu0 0.0
        %3593 = vmatpush1.msra.mxu0 0.0
        %3594 = vmatprep.subr.mxu0 0.0
        %3595 = vmatpush1.msra.mxu0 0.0
        %3596 = vmatprep.subr.mxu0 0.0
        %3597 = vmatpush1.msra.mxu0 0.0
        %3598 = vmatprep.subr.mxu0 0.0
        %3599 = vmatpush1.msra.mxu0 0.0
        %3600 = vmatprep.subr.mxu0 0.0
        %3601 = vmatpush1.msra.mxu0 0.0
        %3602 = vmatprep.subr.mxu0 0.0
        %3603 = vmatpush1.msra.mxu0 0.0
        %3604 = vmatprep.mubr.f32.mxu0 0.0
        %3605 = vmatmul.mubr.f32.gmra.mrb[0].mxu0 %v3517
        %v3606 = vpop.f32.mrb[0].mxu0
        %v3607 = vadd.f32 0.0, %v3606
        %v3608 = vpop.f32.mrb[0].mxu0
        %3609 = vmatprep.mubr.f32.mxu0 0.0
        %3610 = vmatmul.mubr.f32.gmra.mrb[0].mxu0 %v3520
        %v3611 = vpop.f32.mrb[0].mxu0
        %v3612 = vadd.f32 0.0, %v3611
        %v3613 = vpop.f32.mrb[0].mxu0
        %3614 = vmatprep.mubr.f32.mxu0 0.0
        %3615 = vmatmul.mubr.f32.gmra.mrb[0].mxu0 %v3523
        %v3616 = vpop.f32.mrb[0].mxu0
        %v3617 = vadd.f32 0.0, %v3616
        %v3618 = vpop.f32.mrb[0].mxu0
        %3619 = vmatprep.mubr.f32.mxu0 0.0
        %3620 = vmatmul.mubr.f32.gmra.mrb[0].mxu0 %v3526
        %v3621 = vpop.f32.mrb[0].mxu0
        %v3622 = vadd.f32 0.0, %v3621
        %v3623 = vpop.f32.mrb[0].mxu0
        %3624 = vmatprep.mubr.f32.mxu0 0.0
        %3625 = vmatmul.mubr.f32.gmra.mrb[0].mxu0 %v3529
        %v3626 = vpop.f32.mrb[0].mxu0
        %v3627 = vadd.f32 0.0, %v3626
        %v3628 = vpop.f32.mrb[0].mxu0
        %3629 = vmatprep.mubr.f32.mxu0 0.0
        %3630 = vmatmul.mubr.f32.gmra.mrb[0].mxu0 %v3532
        %v3631 = vpop.f32.mrb[0].mxu0
        %v3632 = vadd.f32 0.0, %v3631
        %v3633 = vpop.f32.mrb[0].mxu0
        %3634 = vmatprep.mubr.f32.mxu0 0.0
        %3635 = vmatmul.mubr.f32.gmra.mrb[0].mxu0 %v3535
        %v3636 = vpop.f32.mrb[0].mxu0
        %v3637 = vadd.f32 0.0, %v3636
        %v3638 = vpop.f32.mrb[0].mxu0
        %3639 = vmatprep.mubr.f32.mxu0 0.0
        %3640 = vmatmul.mubr.f32.gmra.mrb[0].mxu0 %v3538
        %v3641 = vpop.f32.mrb[0].mxu0
        %v3642 = vadd.f32 0.0, %v3641
        %v3643 = vpop.f32.mrb[0].mxu0
        %3644 = vdwg.mxu0
        %v3646 = vsel %vm981, %v3015, 0
        %v3649 = vsel %vm981, %v3017, 0
        %v3652 = vsel %vm981, %v3019, 0
        %v3655 = vsel %vm981, %v3021, 0
        %v3658 = vsel %vm981, %v3023, 0
        %v3661 = vsel %vm981, %v3025, 0
        %v3664 = vsel %vm981, %v3027, 0
        %v3667 = vsel %vm981, %v3029, 0
        %3669 = vmatprep.subr.mxu0 0.0
        %3670 = vmatpush1.msra.mxu0 %v3102
        %3671 = vmatprep.subr.mxu0 0.0
        %3672 = vmatpush1.msra.mxu0 %v3107
        %3673 = vmatprep.subr.mxu0 0.0
        %3674 = vmatpush1.msra.mxu0 %v3112
        %3675 = vmatprep.subr.mxu0 0.0
        %3676 = vmatpush1.msra.mxu0 %v3117
        %3677 = vmatprep.subr.mxu0 0.0
        %3678 = vmatpush1.msra.mxu0 %v3122
        %3679 = vmatprep.subr.mxu0 0.0
        %3680 = vmatpush1.msra.mxu0 %v3127
        %3681 = vmatprep.subr.mxu0 0.0
        %3682 = vmatpush1.msra.mxu0 %v3132
        %3683 = vmatprep.subr.mxu0 0.0
        %3684 = vmatpush1.msra.mxu0 %v3137
        %3685 = vmatprep.subr.mxu0 0.0
        %3686 = vmatpush1.msra.mxu0 0.0
        %3687 = vmatprep.subr.mxu0 0.0
        %3688 = vmatpush1.msra.mxu0 0.0
        %3689 = vmatprep.subr.mxu0 0.0
        %3690 = vmatpush1.msra.mxu0 0.0
        %3691 = vmatprep.subr.mxu0 0.0
        %3692 = vmatpush1.msra.mxu0 0.0
        %3693 = vmatprep.subr.mxu0 0.0
        %3694 = vmatpush1.msra.mxu0 0.0
        %3695 = vmatprep.subr.mxu0 0.0
        %3696 = vmatpush1.msra.mxu0 0.0
        %3697 = vmatprep.subr.mxu0 0.0
        %3698 = vmatpush1.msra.mxu0 0.0
        %3699 = vmatprep.subr.mxu0 0.0
        %3700 = vmatpush1.msra.mxu0 0.0
        %3701 = vmatprep.subr.mxu0 0.0
        %3702 = vmatpush1.msra.mxu0 0.0
        %3703 = vmatprep.subr.mxu0 0.0
        %3704 = vmatpush1.msra.mxu0 0.0
        %3705 = vmatprep.subr.mxu0 0.0
        %3706 = vmatpush1.msra.mxu0 0.0
        %3707 = vmatprep.subr.mxu0 0.0
        %3708 = vmatpush1.msra.mxu0 0.0
        %3709 = vmatprep.subr.mxu0 0.0
        %3710 = vmatpush1.msra.mxu0 0.0
        %3711 = vmatprep.subr.mxu0 0.0
        %3712 = vmatpush1.msra.mxu0 0.0
        %3713 = vmatprep.subr.mxu0 0.0
        %3714 = vmatpush1.msra.mxu0 0.0
        %3715 = vmatprep.subr.mxu0 0.0
        %3716 = vmatpush1.msra.mxu0 0.0
        %3717 = vmatprep.subr.mxu0 0.0
        %3718 = vmatpush1.msra.mxu0 0.0
        %3719 = vmatprep.subr.mxu0 0.0
        %3720 = vmatpush1.msra.mxu0 0.0
        %3721 = vmatprep.subr.mxu0 0.0
        %3722 = vmatpush1.msra.mxu0 0.0
        %3723 = vmatprep.subr.mxu0 0.0
        %3724 = vmatpush1.msra.mxu0 0.0
        %3725 = vmatprep.subr.mxu0 0.0
        %3726 = vmatpush1.msra.mxu0 0.0
        %3727 = vmatprep.subr.mxu0 0.0
        %3728 = vmatpush1.msra.mxu0 0.0
        %3729 = vmatprep.subr.mxu0 0.0
        %3730 = vmatpush1.msra.mxu0 0.0
        %3731 = vmatprep.subr.mxu0 0.0
        %3732 = vmatpush1.msra.mxu0 0.0
        %3733 = vmatprep.mubr.f32.mxu0 0.0
        %3734 = vmatmul.mubr.f32.gmra.mrb[0].mxu0 %v3646
        %v3735 = vpop.f32.mrb[0].mxu0
        %v3736 = vadd.f32 %v3607, %v3735
        %v3737 = vpop.f32.mrb[0].mxu0
        %3738 = vmatprep.mubr.f32.mxu0 0.0
        %3739 = vmatmul.mubr.f32.gmra.mrb[0].mxu0 %v3649
        %v3740 = vpop.f32.mrb[0].mxu0
        %v3741 = vadd.f32 %v3612, %v3740
        %v3742 = vpop.f32.mrb[0].mxu0
        %3743 = vmatprep.mubr.f32.mxu0 0.0
        %3744 = vmatmul.mubr.f32.gmra.mrb[0].mxu0 %v3652
        %v3745 = vpop.f32.mrb[0].mxu0
        %v3746 = vadd.f32 %v3617, %v3745
        %v3747 = vpop.f32.mrb[0].mxu0
        %3748 = vmatprep.mubr.f32.mxu0 0.0
        %3749 = vmatmul.mubr.f32.gmra.mrb[0].mxu0 %v3655
        %v3750 = vpop.f32.mrb[0].mxu0
        %v3751 = vadd.f32 %v3622, %v3750
        %v3752 = vpop.f32.mrb[0].mxu0
        %3753 = vmatprep.mubr.f32.mxu0 0.0
        %3754 = vmatmul.mubr.f32.gmra.mrb[0].mxu0 %v3658
        %v3755 = vpop.f32.mrb[0].mxu0
        %v3756 = vadd.f32 %v3627, %v3755
        %v3757 = vpop.f32.mrb[0].mxu0
        %3758 = vmatprep.mubr.f32.mxu0 0.0
        %3759 = vmatmul.mubr.f32.gmra.mrb[0].mxu0 %v3661
        %v3760 = vpop.f32.mrb[0].mxu0
        %v3761 = vadd.f32 %v3632, %v3760
        %v3762 = vpop.f32.mrb[0].mxu0
        %3763 = vmatprep.mubr.f32.mxu0 0.0
        %3764 = vmatmul.mubr.f32.gmra.mrb[0].mxu0 %v3664
        %v3765 = vpop.f32.mrb[0].mxu0
        %v3766 = vadd.f32 %v3637, %v3765
        %v3767 = vpop.f32.mrb[0].mxu0
        %3768 = vmatprep.mubr.f32.mxu0 0.0
        %3769 = vmatmul.mubr.f32.gmra.mrb[0].mxu0 %v3667
        %v3770 = vpop.f32.mrb[0].mxu0
        %v3771 = vadd.f32 %v3642, %v3770
        %v3772 = vpop.f32.mrb[0].mxu0
        %3773 = vdwg.mxu0
        %v3774 = vadd.f32 %v2486, %v3736
        %v3775 = vadd.f32 %v2487, %v3741
        %v3776 = vadd.f32 %v2488, %v3746
        %v3777 = vadd.f32 %v2489, %v3751
        %v3778 = vadd.f32 %v2490, %v3756
        %v3779 = vadd.f32 %v2491, %v3761
        %v3780 = vadd.f32 %v2492, %v3766
        %v3781 = vadd.f32 %v2493, %v3771
        %s3782 = scalar_lea.vmem %s7, 1
        %v3783 = vld [vmem:[%s3782] sm:$0x1]
        %v3785 = vlaneseq
        %v3786 = vshrl.u32 %v3785, 7
        %v3787 = vsub.s32 0, %v3786
        %v3788 = vrot.slane %v3783, %v3787
        %v3790 = vadd.f32 %v3774, %v3788
        %v3791 = vadd.f32 %v3775, %v3788
        %v3792 = vadd.f32 %v3776, %v3788
        %v3793 = vadd.f32 %v3777, %v3788
        %v3794 = vadd.f32 %v3778, %v3788
        %v3795 = vadd.f32 %v3779, %v3788
        %v3796 = vadd.f32 %v3780, %v3788
        %v3797 = vadd.f32 %v3781, %v3788
        %s3798 = scalar_lea.vmem %s8, 1
        %v3799 = vld [vmem:[%s3798] sm:$0x1]
        %s3800 = scalar_lea.vmem %s9, 1
        %v3801 = vld [vmem:[%s3800] sm:$0x1]
        %v3802 = vsel %vm537, %v3790, 0.0
        %3803 = vadd.xlane.f32.xlu0 %v3802
        %v3804 = vpop.xlane.xlu0 %3803
        %v3805 = vsel %vm537, %v3791, 0.0
        %3806 = vadd.xlane.f32.xlu0 %v3805
        %v3807 = vpop.xlane.xlu0 %3806
        %v3808 = vsel %vm537, %v3792, 0.0
        %3809 = vadd.xlane.f32.xlu0 %v3808
        %v3810 = vpop.xlane.xlu0 %3809
        %v3811 = vsel %vm537, %v3793, 0.0
        %3812 = vadd.xlane.f32.xlu0 %v3811
        %v3813 = vpop.xlane.xlu0 %3812
        %v3814 = vsel %vm537, %v3794, 0.0
        %3815 = vadd.xlane.f32.xlu0 %v3814
        %v3816 = vpop.xlane.xlu0 %3815
        %v3817 = vsel %vm537, %v3795, 0.0
        %3818 = vadd.xlane.f32.xlu0 %v3817
        %v3819 = vpop.xlane.xlu0 %3818
        %v3820 = vsel %vm537, %v3796, 0.0
        %3821 = vadd.xlane.f32.xlu0 %v3820
        %v3822 = vpop.xlane.xlu0 %3821
        %v3823 = vsel %vm537, %v3797, 0.0
        %3824 = vadd.xlane.f32.xlu0 %v3823
        %v3825 = vpop.xlane.xlu0 %3824
        %v3826 = vmul.f32 %v3804, %v562
        %v3827 = vmul.f32 %v3807, %v562
        %v3828 = vmul.f32 %v3810, %v562
        %v3829 = vmul.f32 %v3813, %v562
        %v3830 = vmul.f32 %v3816, %v562
        %v3831 = vmul.f32 %v3819, %v562
        %v3832 = vmul.f32 %v3822, %v562
        %v3833 = vmul.f32 %v3825, %v562
        %v3834 = vsub.f32 %v3790, %v3826
        %v3835 = vsub.f32 %v3791, %v3827
        %v3836 = vsub.f32 %v3792, %v3828
        %v3837 = vsub.f32 %v3793, %v3829
        %v3838 = vsub.f32 %v3794, %v3830
        %v3839 = vsub.f32 %v3795, %v3831
        %v3840 = vsub.f32 %v3796, %v3832
        %v3841 = vsub.f32 %v3797, %v3833
        %v3842 = vmul.f32 %v3834, %v3834
        %v3843 = vmul.f32 %v3835, %v3835
        %v3844 = vmul.f32 %v3836, %v3836
        %v3845 = vmul.f32 %v3837, %v3837
        %v3846 = vmul.f32 %v3838, %v3838
        %v3847 = vmul.f32 %v3839, %v3839
        %v3848 = vmul.f32 %v3840, %v3840
        %v3849 = vmul.f32 %v3841, %v3841
        %v3850 = vsel %vm537, %v3842, 0.0
        %3851 = vadd.xlane.f32.xlu0 %v3850
        %v3852 = vpop.xlane.xlu0 %3851
        %v3853 = vsel %vm537, %v3843, 0.0
        %3854 = vadd.xlane.f32.xlu0 %v3853
        %v3855 = vpop.xlane.xlu0 %3854
        %v3856 = vsel %vm537, %v3844, 0.0
        %3857 = vadd.xlane.f32.xlu0 %v3856
        %v3858 = vpop.xlane.xlu0 %3857
        %v3859 = vsel %vm537, %v3845, 0.0
        %3860 = vadd.xlane.f32.xlu0 %v3859
        %v3861 = vpop.xlane.xlu0 %3860
        %v3862 = vsel %vm537, %v3846, 0.0
        %3863 = vadd.xlane.f32.xlu0 %v3862
        %v3864 = vpop.xlane.xlu0 %3863
        %v3865 = vsel %vm537, %v3847, 0.0
        %3866 = vadd.xlane.f32.xlu0 %v3865
        %v3867 = vpop.xlane.xlu0 %3866
        %v3868 = vsel %vm537, %v3848, 0.0
        %3869 = vadd.xlane.f32.xlu0 %v3868
        %v3870 = vpop.xlane.xlu0 %3869
        %v3871 = vsel %vm537, %v3849, 0.0
        %3872 = vadd.xlane.f32.xlu0 %v3871
        %v3873 = vpop.xlane.xlu0 %3872
        %v3874 = vmul.f32 %v3852, %v562
        %v3875 = vmul.f32 %v3855, %v562
        %v3876 = vmul.f32 %v3858, %v562
        %v3877 = vmul.f32 %v3861, %v562
        %v3878 = vmul.f32 %v3864, %v562
        %v3879 = vmul.f32 %v3867, %v562
        %v3880 = vmul.f32 %v3870, %v562
        %v3881 = vmul.f32 %v3873, %v562
        %v3882 = vadd.f32 %v3874, 1e-05
        %v3883 = vadd.f32 %v3875, 1e-05
        %v3884 = vadd.f32 %v3876, 1e-05
        %v3885 = vadd.f32 %v3877, 1e-05
        %v3886 = vadd.f32 %v3878, 1e-05
        %v3887 = vadd.f32 %v3879, 1e-05
        %v3888 = vadd.f32 %v3880, 1e-05
        %v3889 = vadd.f32 %v3881, 1e-05
        %v3890 = vrsqrt.pop %v3882
        %v3891 = vrsqrt.pop %v3883
        %v3892 = vrsqrt.pop %v3884
        %v3893 = vrsqrt.pop %v3885
        %v3894 = vrsqrt.pop %v3886
        %v3895 = vrsqrt.pop %v3887
        %v3896 = vrsqrt.pop %v3888
        %v3897 = vrsqrt.pop %v3889
        %v3898 = vmul.f32 %v3834, %v3890
        %v3899 = vmul.f32 %v3835, %v3891
        %v3900 = vmul.f32 %v3836, %v3892
        %v3901 = vmul.f32 %v3837, %v3893
        %v3902 = vmul.f32 %v3838, %v3894
        %v3903 = vmul.f32 %v3839, %v3895
        %v3904 = vmul.f32 %v3840, %v3896
        %v3905 = vmul.f32 %v3841, %v3897
        %v3907 = vlaneseq
        %v3908 = vshrl.u32 %v3907, 7
        %v3909 = vsub.s32 0, %v3908
        %v3910 = vrot.slane %v3799, %v3909
        %v3912 = vmul.f32 %v3898, %v3910
        %v3913 = vmul.f32 %v3899, %v3910
        %v3914 = vmul.f32 %v3900, %v3910
        %v3915 = vmul.f32 %v3901, %v3910
        %v3916 = vmul.f32 %v3902, %v3910
        %v3917 = vmul.f32 %v3903, %v3910
        %v3918 = vmul.f32 %v3904, %v3910
        %v3919 = vmul.f32 %v3905, %v3910
        %v3921 = vlaneseq
        %v3922 = vshrl.u32 %v3921, 7
        %v3923 = vsub.s32 0, %v3922
        %v3924 = vrot.slane %v3801, %v3923
        %v3926 = vadd.f32 %v3912, %v3924
        %v3927 = vadd.f32 %v3913, %v3924
        %v3928 = vadd.f32 %v3914, %v3924
        %v3929 = vadd.f32 %v3915, %v3924
        %v3930 = vadd.f32 %v3916, %v3924
        %v3931 = vadd.f32 %v3917, %v3924
        %v3932 = vadd.f32 %v3918, %v3924
        %v3933 = vadd.f32 %v3919, %v3924
        %s3934 = scalar_lea.vmem %s10, 32
        %v3935 = vld [vmem:[%s3934] sm:$0xff]
        %v3936 = vld [vmem:[%s3934 + $0x8] sm:$0xff]
        %v3937 = vld [vmem:[%s3934 + $0x10] sm:$0xff]
        %v3938 = vld [vmem:[%s3934 + $0x18] sm:$0xff]
        %s3939 = scalar_lea.vmem %s11, 1
        %v3940 = vld [vmem:[%s3939] sm:$0x1]
        %v3942 = vlaneseq
        %v3943 = vshrl.u32 %v3942, 7
        %v3944 = vsub.s32 0, %v3943
        %v3945 = vrot.slane %v3940, %v3944
        %v3948 = vsel %vm537, %v3926, 0
        %v3951 = vsel %vm537, %v3927, 0
        %v3954 = vsel %vm537, %v3928, 0
        %v3957 = vsel %vm537, %v3929, 0
        %v3960 = vsel %vm537, %v3930, 0
        %v3963 = vsel %vm537, %v3931, 0
        %v3966 = vsel %vm537, %v3932, 0
        %v3969 = vsel %vm537, %v3933, 0
        %3971 = vmatprep.subr.mxu0 0.0
        %3972 = vmatpush1.msra.mxu0 %v3935
        %3973 = vmatprep.subr.mxu0 0.0
        %3974 = vmatpush1.msra.mxu0 %v3936
        %3975 = vmatprep.subr.mxu0 0.0
        %3976 = vmatpush1.msra.mxu0 %v3937
        %3977 = vmatprep.subr.mxu0 0.0
        %3978 = vmatpush1.msra.mxu0 %v3938
        %3979 = vmatprep.subr.mxu0 0.0
        %3980 = vmatpush1.msra.mxu0 0.0
        %3981 = vmatprep.subr.mxu0 0.0
        %3982 = vmatpush1.msra.mxu0 0.0
        %3983 = vmatprep.subr.mxu0 0.0
        %3984 = vmatpush1.msra.mxu0 0.0
        %3985 = vmatprep.subr.mxu0 0.0
        %3986 = vmatpush1.msra.mxu0 0.0
        %3987 = vmatprep.subr.mxu0 0.0
        %3988 = vmatpush1.msra.mxu0 0.0
        %3989 = vmatprep.subr.mxu0 0.0
        %3990 = vmatpush1.msra.mxu0 0.0
        %3991 = vmatprep.subr.mxu0 0.0
        %3992 = vmatpush1.msra.mxu0 0.0
        %3993 = vmatprep.subr.mxu0 0.0
        %3994 = vmatpush1.msra.mxu0 0.0
        %3995 = vmatprep.subr.mxu0 0.0
        %3996 = vmatpush1.msra.mxu0 0.0
        %3997 = vmatprep.subr.mxu0 0.0
        %3998 = vmatpush1.msra.mxu0 0.0
        %3999 = vmatprep.subr.mxu0 0.0
        %4000 = vmatpush1.msra.mxu0 0.0
        %4001 = vmatprep.subr.mxu0 0.0
        %4002 = vmatpush1.msra.mxu0 0.0
        %4003 = vmatprep.subr.mxu0 0.0
        %4004 = vmatpush1.msra.mxu0 0.0
        %4005 = vmatprep.subr.mxu0 0.0
        %4006 = vmatpush1.msra.mxu0 0.0
        %4007 = vmatprep.subr.mxu0 0.0
        %4008 = vmatpush1.msra.mxu0 0.0
        %4009 = vmatprep.subr.mxu0 0.0
        %4010 = vmatpush1.msra.mxu0 0.0
        %4011 = vmatprep.subr.mxu0 0.0
        %4012 = vmatpush1.msra.mxu0 0.0
        %4013 = vmatprep.subr.mxu0 0.0
        %4014 = vmatpush1.msra.mxu0 0.0
        %4015 = vmatprep.subr.mxu0 0.0
        %4016 = vmatpush1.msra.mxu0 0.0
        %4017 = vmatprep.subr.mxu0 0.0
        %4018 = vmatpush1.msra.mxu0 0.0
        %4019 = vmatprep.subr.mxu0 0.0
        %4020 = vmatpush1.msra.mxu0 0.0
        %4021 = vmatprep.subr.mxu0 0.0
        %4022 = vmatpush1.msra.mxu0 0.0
        %4023 = vmatprep.subr.mxu0 0.0
        %4024 = vmatpush1.msra.mxu0 0.0
        %4025 = vmatprep.subr.mxu0 0.0
        %4026 = vmatpush1.msra.mxu0 0.0
        %4027 = vmatprep.subr.mxu0 0.0
        %4028 = vmatpush1.msra.mxu0 0.0
        %4029 = vmatprep.subr.mxu0 0.0
        %4030 = vmatpush1.msra.mxu0 0.0
        %4031 = vmatprep.subr.mxu0 0.0
        %4032 = vmatpush1.msra.mxu0 0.0
        %4033 = vmatprep.subr.mxu0 0.0
        %4034 = vmatpush1.msra.mxu0 0.0
        %4035 = vmatprep.mubr.f32.mxu0 0.0
        %4036 = vmatmul.mubr.f32.gmra.mrb[0].mxu0 %v3948
        %v4037 = vpop.f32.mrb[0].mxu0
        %v4038 = vadd.f32 %v3945, %v4037
        %v4039 = vpop.f32.mrb[0].mxu0
        %4040 = vmatprep.mubr.f32.mxu0 0.0
        %4041 = vmatmul.mubr.f32.gmra.mrb[0].mxu0 %v3951
        %v4042 = vpop.f32.mrb[0].mxu0
        %v4043 = vadd.f32 %v3945, %v4042
        %v4044 = vpop.f32.mrb[0].mxu0
        %4045 = vmatprep.mubr.f32.mxu0 0.0
        %4046 = vmatmul.mubr.f32.gmra.mrb[0].mxu0 %v3954
        %v4047 = vpop.f32.mrb[0].mxu0
        %v4048 = vadd.f32 %v3945, %v4047
        %v4049 = vpop.f32.mrb[0].mxu0
        %4050 = vmatprep.mubr.f32.mxu0 0.0
        %4051 = vmatmul.mubr.f32.gmra.mrb[0].mxu0 %v3957
        %v4052 = vpop.f32.mrb[0].mxu0
        %v4053 = vadd.f32 %v3945, %v4052
        %v4054 = vpop.f32.mrb[0].mxu0
        %4055 = vmatprep.mubr.f32.mxu0 0.0
        %4056 = vmatmul.mubr.f32.gmra.mrb[0].mxu0 %v3960
        %v4057 = vpop.f32.mrb[0].mxu0
        %v4058 = vadd.f32 %v3945, %v4057
        %v4059 = vpop.f32.mrb[0].mxu0
        %4060 = vmatprep.mubr.f32.mxu0 0.0
        %4061 = vmatmul.mubr.f32.gmra.mrb[0].mxu0 %v3963
        %v4062 = vpop.f32.mrb[0].mxu0
        %v4063 = vadd.f32 %v3945, %v4062
        %v4064 = vpop.f32.mrb[0].mxu0
        %4065 = vmatprep.mubr.f32.mxu0 0.0
        %4066 = vmatmul.mubr.f32.gmra.mrb[0].mxu0 %v3966
        %v4067 = vpop.f32.mrb[0].mxu0
        %v4068 = vadd.f32 %v3945, %v4067
        %v4069 = vpop.f32.mrb[0].mxu0
        %4070 = vmatprep.mubr.f32.mxu0 0.0
        %4071 = vmatmul.mubr.f32.gmra.mrb[0].mxu0 %v3969
        %v4072 = vpop.f32.mrb[0].mxu0
        %v4073 = vadd.f32 %v3945, %v4072
        %v4074 = vpop.f32.mrb[0].mxu0
        %4075 = vdwg.mxu0
        %v4076 = vmul.f32 %v4038, 0.5
        %v4077 = vmul.f32 %v4043, 0.5
        %v4078 = vmul.f32 %v4048, 0.5
        %v4079 = vmul.f32 %v4053, 0.5
        %v4080 = vmul.f32 %v4058, 0.5
        %v4081 = vmul.f32 %v4063, 0.5
        %v4082 = vmul.f32 %v4068, 0.5
        %v4083 = vmul.f32 %v4073, 0.5
        %v4084 = vmul.f32 %v4038, 0.70710677
        %v4085 = vmul.f32 %v4043, 0.70710677
        %v4086 = vmul.f32 %v4048, 0.70710677
        %v4087 = vmul.f32 %v4053, 0.70710677
        %v4088 = vmul.f32 %v4058, 0.70710677
        %v4089 = vmul.f32 %v4063, 0.70710677
        %v4090 = vmul.f32 %v4068, 0.70710677
        %v4091 = vmul.f32 %v4073, 0.70710677
        %v4092 = vmax.f32 %v4084, -4.0
        %v4093 = vmax.f32 %v4085, -4.0
        %v4094 = vmax.f32 %v4086, -4.0
        %v4095 = vmax.f32 %v4087, -4.0
        %v4096 = vmax.f32 %v4088, -4.0
        %v4097 = vmax.f32 %v4089, -4.0
        %v4098 = vmax.f32 %v4090, -4.0
        %v4099 = vmax.f32 %v4091, -4.0
        %v4100 = vmin.f32 %v4092, 4.0
        %v4101 = vmin.f32 %v4093, 4.0
        %v4102 = vmin.f32 %v4094, 4.0
        %v4103 = vmin.f32 %v4095, 4.0
        %v4104 = vmin.f32 %v4096, 4.0
        %v4105 = vmin.f32 %v4097, 4.0
        %v4106 = vmin.f32 %v4098, 4.0
        %v4107 = vmin.f32 %v4099, 4.0
        %v4108 = vmul.f32 %v4100, %v4100
        %v4109 = vmul.f32 %v4101, %v4101
        %v4110 = vmul.f32 %v4102, %v4102
        %v4111 = vmul.f32 %v4103, %v4103
        %v4112 = vmul.f32 %v4104, %v4104
        %v4113 = vmul.f32 %v4105, %v4105
        %v4114 = vmul.f32 %v4106, %v4106
        %v4115 = vmul.f32 %v4107, %v4107
        %v4116 = vmul.f32 %v4108, -2.7261424e-10
        %v4117 = vmul.f32 %v4109, -2.7261424e-10
        %v4118 = vmul.f32 %v4110, -2.7261424e-10
        %v4119 = vmul.f32 %v4111, -2.7261424e-10
        %v4120 = vmul.f32 %v4112, -2.7261424e-10
        %v4121 = vmul.f32 %v4113, -2.7261424e-10
        %v4122 = vmul.f32 %v4114, -2.7261424e-10
        %v4123 = vmul.f32 %v4115, -2.7261424e-10
        %v4124 = vadd.f32 %v4116, 2.7706815e-08
        %v4125 = vadd.f32 %v4117, 2.7706815e-08
        %v4126 = vadd.f32 %v4118, 2.7706815e-08
        %v4127 = vadd.f32 %v4119, 2.7706815e-08
        %v4128 = vadd.f32 %v4120, 2.7706815e-08
        %v4129 = vadd.f32 %v4121, 2.7706815e-08
        %v4130 = vadd.f32 %v4122, 2.7706815e-08
        %v4131 = vadd.f32 %v4123, 2.7706815e-08
        %v4132 = vmul.f32 %v4124, %v4108
        %v4133 = vmul.f32 %v4125, %v4109
        %v4134 = vmul.f32 %v4126, %v4110
        %v4135 = vmul.f32 %v4127, %v4111
        %v4136 = vmul.f32 %v4128, %v4112
        %v4137 = vmul.f32 %v4129, %v4113
        %v4138 = vmul.f32 %v4130, %v4114
        %v4139 = vmul.f32 %v4131, %v4115
        %v4140 = vadd.f32 %v4132, -2.101024e-06
        %v4141 = vadd.f32 %v4133, -2.101024e-06
        %v4142 = vadd.f32 %v4134, -2.101024e-06
        %v4143 = vadd.f32 %v4135, -2.101024e-06
        %v4144 = vadd.f32 %v4136, -2.101024e-06
        %v4145 = vadd.f32 %v4137, -2.101024e-06
        %v4146 = vadd.f32 %v4138, -2.101024e-06
        %v4147 = vadd.f32 %v4139, -2.101024e-06
        %v4148 = vmul.f32 %v4140, %v4108
        %v4149 = vmul.f32 %v4141, %v4109
        %v4150 = vmul.f32 %v4142, %v4110
        %v4151 = vmul.f32 %v4143, %v4111
        %v4152 = vmul.f32 %v4144, %v4112
        %v4153 = vmul.f32 %v4145, %v4113
        %v4154 = vmul.f32 %v4146, %v4114
        %v4155 = vmul.f32 %v4147, %v4115
        %v4156 = vadd.f32 %v4148, -5.6925062e-05
        %v4157 = vadd.f32 %v4149, -5.6925062e-05
        %v4158 = vadd.f32 %v4150, -5.6925062e-05
        %v4159 = vadd.f32 %v4151, -5.6925062e-05
        %v4160 = vadd.f32 %v4152, -5.6925062e-05
        %v4161 = vadd.f32 %v4153, -5.6925062e-05
        %v4162 = vadd.f32 %v4154, -5.6925062e-05
        %v4163 = vadd.f32 %v4155, -5.6925062e-05
        %v4164 = vmul.f32 %v4156, %v4108
        %v4165 = vmul.f32 %v4157, %v4109
        %v4166 = vmul.f32 %v4158, %v4110
        %v4167 = vmul.f32 %v4159, %v4111
        %v4168 = vmul.f32 %v4160, %v4112
        %v4169 = vmul.f32 %v4161, %v4113
        %v4170 = vmul.f32 %v4162, %v4114
        %v4171 = vmul.f32 %v4163, %v4115
        %v4172 = vadd.f32 %v4164, -0.00073499064
        %v4173 = vadd.f32 %v4165, -0.00073499064
        %v4174 = vadd.f32 %v4166, -0.00073499064
        %v4175 = vadd.f32 %v4167, -0.00073499064
        %v4176 = vadd.f32 %v4168, -0.00073499064
        %v4177 = vadd.f32 %v4169, -0.00073499064
        %v4178 = vadd.f32 %v4170, -0.00073499064
        %v4179 = vadd.f32 %v4171, -0.00073499064
        %v4180 = vmul.f32 %v4172, %v4108
        %v4181 = vmul.f32 %v4173, %v4109
        %v4182 = vmul.f32 %v4174, %v4110
        %v4183 = vmul.f32 %v4175, %v4111
        %v4184 = vmul.f32 %v4176, %v4112
        %v4185 = vmul.f32 %v4177, %v4113
        %v4186 = vmul.f32 %v4178, %v4114
        %v4187 = vmul.f32 %v4179, %v4115
        %v4188 = vadd.f32 %v4180, -0.0029546
        %v4189 = vadd.f32 %v4181, -0.0029546
        %v4190 = vadd.f32 %v4182, -0.0029546
        %v4191 = vadd.f32 %v4183, -0.0029546
        %v4192 = vadd.f32 %v4184, -0.0029546
        %v4193 = vadd.f32 %v4185, -0.0029546
        %v4194 = vadd.f32 %v4186, -0.0029546
        %v4195 = vadd.f32 %v4187, -0.0029546
        %v4196 = vmul.f32 %v4188, %v4108
        %v4197 = vmul.f32 %v4189, %v4109
        %v4198 = vmul.f32 %v4190, %v4110
        %v4199 = vmul.f32 %v4191, %v4111
        %v4200 = vmul.f32 %v4192, %v4112
        %v4201 = vmul.f32 %v4193, %v4113
        %v4202 = vmul.f32 %v4194, %v4114
        %v4203 = vmul.f32 %v4195, %v4115
        %v4204 = vadd.f32 %v4196, -0.016096033
        %v4205 = vadd.f32 %v4197, -0.016096033
        %v4206 = vadd.f32 %v4198, -0.016096033
        %v4207 = vadd.f32 %v4199, -0.016096033
        %v4208 = vadd.f32 %v4200, -0.016096033
        %v4209 = vadd.f32 %v4201, -0.016096033
        %v4210 = vadd.f32 %v4202, -0.016096033
        %v4211 = vadd.f32 %v4203, -0.016096033
        %v4212 = vmul.f32 %v4204, %v4100
        %v4213 = vmul.f32 %v4205, %v4101
        %v4214 = vmul.f32 %v4206, %v4102
        %v4215 = vmul.f32 %v4207, %v4103
        %v4216 = vmul.f32 %v4208, %v4104
        %v4217 = vmul.f32 %v4209, %v4105
        %v4218 = vmul.f32 %v4210, %v4106
        %v4219 = vmul.f32 %v4211, %v4107
        %v4220 = vmul.f32 %v4108, -1.45660715e-05
        %v4221 = vmul.f32 %v4109, -1.45660715e-05
        %v4222 = vmul.f32 %v4110, -1.45660715e-05
        %v4223 = vmul.f32 %v4111, -1.45660715e-05
        %v4224 = vmul.f32 %v4112, -1.45660715e-05
        %v4225 = vmul.f32 %v4113, -1.45660715e-05
        %v4226 = vmul.f32 %v4114, -1.45660715e-05
        %v4227 = vmul.f32 %v4115, -1.45660715e-05
        %v4228 = vadd.f32 %v4220, -0.00021337405
        %v4229 = vadd.f32 %v4221, -0.00021337405
        %v4230 = vadd.f32 %v4222, -0.00021337405
        %v4231 = vadd.f32 %v4223, -0.00021337405
        %v4232 = vadd.f32 %v4224, -0.00021337405
        %v4233 = vadd.f32 %v4225, -0.00021337405
        %v4234 = vadd.f32 %v4226, -0.00021337405
        %v4235 = vadd.f32 %v4227, -0.00021337405
        %v4236 = vmul.f32 %v4228, %v4108
        %v4237 = vmul.f32 %v4229, %v4109
        %v4238 = vmul.f32 %v4230, %v4110
        %v4239 = vmul.f32 %v4231, %v4111
        %v4240 = vmul.f32 %v4232, %v4112
        %v4241 = vmul.f32 %v4233, %v4113
        %v4242 = vmul.f32 %v4234, %v4114
        %v4243 = vmul.f32 %v4235, %v4115
        %v4244 = vadd.f32 %v4236, -0.001682827
        %v4245 = vadd.f32 %v4237, -0.001682827
        %v4246 = vadd.f32 %v4238, -0.001682827
        %v4247 = vadd.f32 %v4239, -0.001682827
        %v4248 = vadd.f32 %v4240, -0.001682827
        %v4249 = vadd.f32 %v4241, -0.001682827
        %v4250 = vadd.f32 %v4242, -0.001682827
        %v4251 = vadd.f32 %v4243, -0.001682827
        %v4252 = vmul.f32 %v4244, %v4108
        %v4253 = vmul.f32 %v4245, %v4109
        %v4254 = vmul.f32 %v4246, %v4110
        %v4255 = vmul.f32 %v4247, %v4111
        %v4256 = vmul.f32 %v4248, %v4112
        %v4257 = vmul.f32 %v4249, %v4113
        %v4258 = vmul.f32 %v4250, %v4114
        %v4259 = vmul.f32 %v4251, %v4115
        %v4260 = vadd.f32 %v4252, -0.0073733293
        %v4261 = vadd.f32 %v4253, -0.0073733293
        %v4262 = vadd.f32 %v4254, -0.0073733293
        %v4263 = vadd.f32 %v4255, -0.0073733293
        %v4264 = vadd.f32 %v4256, -0.0073733293
        %v4265 = vadd.f32 %v4257, -0.0073733293
        %v4266 = vadd.f32 %v4258, -0.0073733293
        %v4267 = vadd.f32 %v4259, -0.0073733293
        %v4268 = vmul.f32 %v4260, %v4108
        %v4269 = vmul.f32 %v4261, %v4109
        %v4270 = vmul.f32 %v4262, %v4110
        %v4271 = vmul.f32 %v4263, %v4111
        %v4272 = vmul.f32 %v4264, %v4112
        %v4273 = vmul.f32 %v4265, %v4113
        %v4274 = vmul.f32 %v4266, %v4114
        %v4275 = vmul.f32 %v4267, %v4115
        %v4276 = vadd.f32 %v4268, -0.014264739
        %v4277 = vadd.f32 %v4269, -0.014264739
        %v4278 = vadd.f32 %v4270, -0.014264739
        %v4279 = vadd.f32 %v4271, -0.014264739
        %v4280 = vadd.f32 %v4272, -0.014264739
        %v4281 = vadd.f32 %v4273, -0.014264739
        %v4282 = vadd.f32 %v4274, -0.014264739
        %v4283 = vadd.f32 %v4275, -0.014264739
        %v4284 = vrcp.pop %v4276
        %v4285 = vmul.f32 %v4212, %v4284
        %v4286 = vrcp.pop %v4277
        %v4287 = vmul.f32 %v4213, %v4286
        %v4288 = vrcp.pop %v4278
        %v4289 = vmul.f32 %v4214, %v4288
        %v4290 = vrcp.pop %v4279
        %v4291 = vmul.f32 %v4215, %v4290
        %v4292 = vrcp.pop %v4280
        %v4293 = vmul.f32 %v4216, %v4292
        %v4294 = vrcp.pop %v4281
        %v4295 = vmul.f32 %v4217, %v4294
        %v4296 = vrcp.pop %v4282
        %v4297 = vmul.f32 %v4218, %v4296
        %v4298 = vrcp.pop %v4283
        %v4299 = vmul.f32 %v4219, %v4298
        %v4300 = vadd.f32 %v4285, 1.0
        %v4301 = vadd.f32 %v4287, 1.0
        %v4302 = vadd.f32 %v4289, 1.0
        %v4303 = vadd.f32 %v4291, 1.0
        %v4304 = vadd.f32 %v4293, 1.0
        %v4305 = vadd.f32 %v4295, 1.0
        %v4306 = vadd.f32 %v4297, 1.0
        %v4307 = vadd.f32 %v4299, 1.0
        %v4308 = vmul.f32 %v4076, %v4300
        %v4309 = vmul.f32 %v4077, %v4301
        %v4310 = vmul.f32 %v4078, %v4302
        %v4311 = vmul.f32 %v4079, %v4303
        %v4312 = vmul.f32 %v4080, %v4304
        %v4313 = vmul.f32 %v4081, %v4305
        %v4314 = vmul.f32 %v4082, %v4306
        %v4315 = vmul.f32 %v4083, %v4307
        %s4316 = scalar_lea.vmem [#allocation7], 128
        %v4317 = vld [vmem:[%s4316] sm:$0xff]
        %v4318 = vld [vmem:[%s4316 + $0x8] sm:$0xff]
        %v4319 = vld [vmem:[%s4316 + $0x10] sm:$0xff]
        %v4320 = vld [vmem:[%s4316 + $0x18] sm:$0xff]
        %v4321 = vld [vmem:[%s4316 + $0x20] sm:$0xff]
        %v4322 = vld [vmem:[%s4316 + $0x28] sm:$0xff]
        %v4323 = vld [vmem:[%s4316 + $0x30] sm:$0xff]
        %v4324 = vld [vmem:[%s4316 + $0x38] sm:$0xff]
        %v4325 = vld [vmem:[%s4316 + $0x40] sm:$0xff]
        %v4326 = vld [vmem:[%s4316 + $0x48] sm:$0xff]
        %v4327 = vld [vmem:[%s4316 + $0x50] sm:$0xff]
        %v4328 = vld [vmem:[%s4316 + $0x58] sm:$0xff]
        %v4329 = vld [vmem:[%s4316 + $0x60] sm:$0xff]
        %v4330 = vld [vmem:[%s4316 + $0x68] sm:$0xff]
        %v4331 = vld [vmem:[%s4316 + $0x70] sm:$0xff]
        %v4332 = vld [vmem:[%s4316 + $0x78] sm:$0xff]
        %4333 = vmatprep.subr.mxu0 0.0
        %4334 = vmatpush1.msra.mxu0 %v4317
        %4335 = vmatprep.subr.mxu0 0.0
        %4336 = vmatpush1.msra.mxu0 %v4318
        %4337 = vmatprep.subr.mxu0 0.0
        %4338 = vmatpush1.msra.mxu0 %v4319
        %4339 = vmatprep.subr.mxu0 0.0
        %4340 = vmatpush1.msra.mxu0 %v4320
        %4341 = vmatprep.subr.mxu0 0.0
        %4342 = vmatpush1.msra.mxu0 %v4321
        %4343 = vmatprep.subr.mxu0 0.0
        %4344 = vmatpush1.msra.mxu0 %v4322
        %4345 = vmatprep.subr.mxu0 0.0
        %4346 = vmatpush1.msra.mxu0 %v4323
        %4347 = vmatprep.subr.mxu0 0.0
        %4348 = vmatpush1.msra.mxu0 %v4324
        %4349 = vmatprep.subr.mxu0 0.0
        %4350 = vmatpush1.msra.mxu0 %v4325
        %4351 = vmatprep.subr.mxu0 0.0
        %4352 = vmatpush1.msra.mxu0 %v4326
        %4353 = vmatprep.subr.mxu0 0.0
        %4354 = vmatpush1.msra.mxu0 %v4327
        %4355 = vmatprep.subr.mxu0 0.0
        %4356 = vmatpush1.msra.mxu0 %v4328
        %4357 = vmatprep.subr.mxu0 0.0
        %4358 = vmatpush1.msra.mxu0 %v4329
        %4359 = vmatprep.subr.mxu0 0.0
        %4360 = vmatpush1.msra.mxu0 %v4330
        %4361 = vmatprep.subr.mxu0 0.0
        %4362 = vmatpush1.msra.mxu0 %v4331
        %4363 = vmatprep.subr.mxu0 0.0
        %4364 = vmatpush1.msra.mxu0 %v4332
        %4365 = vmatprep.subr.mxu0 0.0
        %4366 = vmatpush1.msra.mxu0 0.0
        %4367 = vmatprep.subr.mxu0 0.0
        %4368 = vmatpush1.msra.mxu0 0.0
        %4369 = vmatprep.subr.mxu0 0.0
        %4370 = vmatpush1.msra.mxu0 0.0
        %4371 = vmatprep.subr.mxu0 0.0
        %4372 = vmatpush1.msra.mxu0 0.0
        %4373 = vmatprep.subr.mxu0 0.0
        %4374 = vmatpush1.msra.mxu0 0.0
        %4375 = vmatprep.subr.mxu0 0.0
        %4376 = vmatpush1.msra.mxu0 0.0
        %4377 = vmatprep.subr.mxu0 0.0
        %4378 = vmatpush1.msra.mxu0 0.0
        %4379 = vmatprep.subr.mxu0 0.0
        %4380 = vmatpush1.msra.mxu0 0.0
        %4381 = vmatprep.subr.mxu0 0.0
        %4382 = vmatpush1.msra.mxu0 0.0
        %4383 = vmatprep.subr.mxu0 0.0
        %4384 = vmatpush1.msra.mxu0 0.0
        %4385 = vmatprep.subr.mxu0 0.0
        %4386 = vmatpush1.msra.mxu0 0.0
        %4387 = vmatprep.subr.mxu0 0.0
        %4388 = vmatpush1.msra.mxu0 0.0
        %4389 = vmatprep.subr.mxu0 0.0
        %4390 = vmatpush1.msra.mxu0 0.0
        %4391 = vmatprep.subr.mxu0 0.0
        %4392 = vmatpush1.msra.mxu0 0.0
        %4393 = vmatprep.subr.mxu0 0.0
        %4394 = vmatpush1.msra.mxu0 0.0
        %4395 = vmatprep.subr.mxu0 0.0
        %4396 = vmatpush1.msra.mxu0 0.0
        %4397 = vmatprep.mubr.f32.mxu0 0.0
        %4398 = vmatmul.mubr.f32.gmra.mrb[0].mxu0 %v4308
        %v4399 = vpop.f32.mrb[0].mxu0
        %v4400 = vadd.f32 0.0, %v4399
        %v4401 = vpop.f32.mrb[0].mxu0
        %4402 = vmatprep.mubr.f32.mxu0 0.0
        %4403 = vmatmul.mubr.f32.gmra.mrb[0].mxu0 %v4309
        %v4404 = vpop.f32.mrb[0].mxu0
        %v4405 = vadd.f32 0.0, %v4404
        %v4406 = vpop.f32.mrb[0].mxu0
        %4407 = vmatprep.mubr.f32.mxu0 0.0
        %4408 = vmatmul.mubr.f32.gmra.mrb[0].mxu0 %v4310
        %v4409 = vpop.f32.mrb[0].mxu0
        %v4410 = vadd.f32 0.0, %v4409
        %v4411 = vpop.f32.mrb[0].mxu0
        %4412 = vmatprep.mubr.f32.mxu0 0.0
        %4413 = vmatmul.mubr.f32.gmra.mrb[0].mxu0 %v4311
        %v4414 = vpop.f32.mrb[0].mxu0
        %v4415 = vadd.f32 0.0, %v4414
        %v4416 = vpop.f32.mrb[0].mxu0
        %4417 = vmatprep.mubr.f32.mxu0 0.0
        %4418 = vmatmul.mubr.f32.gmra.mrb[0].mxu0 %v4312
        %v4419 = vpop.f32.mrb[0].mxu0
        %v4420 = vadd.f32 0.0, %v4419
        %v4421 = vpop.f32.mrb[0].mxu0
        %4422 = vmatprep.mubr.f32.mxu0 0.0
        %4423 = vmatmul.mubr.f32.gmra.mrb[0].mxu0 %v4313
        %v4424 = vpop.f32.mrb[0].mxu0
        %v4425 = vadd.f32 0.0, %v4424
        %v4426 = vpop.f32.mrb[0].mxu0
        %4427 = vmatprep.mubr.f32.mxu0 0.0
        %4428 = vmatmul.mubr.f32.gmra.mrb[0].mxu0 %v4314
        %v4429 = vpop.f32.mrb[0].mxu0
        %v4430 = vadd.f32 0.0, %v4429
        %v4431 = vpop.f32.mrb[0].mxu0
        %4432 = vmatprep.mubr.f32.mxu0 0.0
        %4433 = vmatmul.mubr.f32.gmra.mrb[0].mxu0 %v4315
        %v4434 = vpop.f32.mrb[0].mxu0
        %v4435 = vadd.f32 0.0, %v4434
        %v4436 = vpop.f32.mrb[0].mxu0
        %4437 = vdwg.mxu0
        %v4438 = vadd.f32 %v3790, %v4400
        %v4439 = vadd.f32 %v3791, %v4405
        %v4440 = vadd.f32 %v3792, %v4410
        %v4441 = vadd.f32 %v3793, %v4415
        %v4442 = vadd.f32 %v3794, %v4420
        %v4443 = vadd.f32 %v3795, %v4425
        %v4444 = vadd.f32 %v3796, %v4430
        %v4445 = vadd.f32 %v3797, %v4435
        %s4446 = scalar_lea.vmem %s13, 1
        %v4447 = vld [vmem:[%s4446] sm:$0x1]
        %v4449 = vlaneseq
        %v4450 = vshrl.u32 %v4449, 7
        %v4451 = vsub.s32 0, %v4450
        %v4452 = vrot.slane %v4447, %v4451
        %v4454 = vadd.f32 %v4438, %v4452
        %v4455 = vadd.f32 %v4439, %v4452
        %v4456 = vadd.f32 %v4440, %v4452
        %v4457 = vadd.f32 %v4441, %v4452
        %v4458 = vadd.f32 %v4442, %v4452
        %v4459 = vadd.f32 %v4443, %v4452
        %v4460 = vadd.f32 %v4444, %v4452
        %v4461 = vadd.f32 %v4445, %v4452
        %s4462 = scalar_lea.vmem %s2, 2
        %v4463 = vld [vmem:[%s4462] sm:$0x1]
        %s4464 = scalar_lea.vmem %s3, 2
        %v4465 = vld [vmem:[%s4464] sm:$0x1]
        %v4466 = vsel %vm537, %v4454, 0.0
        %4467 = vadd.xlane.f32.xlu0 %v4466
        %v4468 = vpop.xlane.xlu0 %4467
        %v4469 = vsel %vm537, %v4455, 0.0
        %4470 = vadd.xlane.f32.xlu0 %v4469
        %v4471 = vpop.xlane.xlu0 %4470
        %v4472 = vsel %vm537, %v4456, 0.0
        %4473 = vadd.xlane.f32.xlu0 %v4472
        %v4474 = vpop.xlane.xlu0 %4473
        %v4475 = vsel %vm537, %v4457, 0.0
        %4476 = vadd.xlane.f32.xlu0 %v4475
        %v4477 = vpop.xlane.xlu0 %4476
        %v4478 = vsel %vm537, %v4458, 0.0
        %4479 = vadd.xlane.f32.xlu0 %v4478
        %v4480 = vpop.xlane.xlu0 %4479
        %v4481 = vsel %vm537, %v4459, 0.0
        %4482 = vadd.xlane.f32.xlu0 %v4481
        %v4483 = vpop.xlane.xlu0 %4482
        %v4484 = vsel %vm537, %v4460, 0.0
        %4485 = vadd.xlane.f32.xlu0 %v4484
        %v4486 = vpop.xlane.xlu0 %4485
        %v4487 = vsel %vm537, %v4461, 0.0
        %4488 = vadd.xlane.f32.xlu0 %v4487
        %v4489 = vpop.xlane.xlu0 %4488
        %v4490 = vmul.f32 %v4468, %v562
        %v4491 = vmul.f32 %v4471, %v562
        %v4492 = vmul.f32 %v4474, %v562
        %v4493 = vmul.f32 %v4477, %v562
        %v4494 = vmul.f32 %v4480, %v562
        %v4495 = vmul.f32 %v4483, %v562
        %v4496 = vmul.f32 %v4486, %v562
        %v4497 = vmul.f32 %v4489, %v562
        %v4498 = vsub.f32 %v4454, %v4490
        %v4499 = vsub.f32 %v4455, %v4491
        %v4500 = vsub.f32 %v4456, %v4492
        %v4501 = vsub.f32 %v4457, %v4493
        %v4502 = vsub.f32 %v4458, %v4494
        %v4503 = vsub.f32 %v4459, %v4495
        %v4504 = vsub.f32 %v4460, %v4496
        %v4505 = vsub.f32 %v4461, %v4497
        %v4506 = vmul.f32 %v4498, %v4498
        %v4507 = vmul.f32 %v4499, %v4499
        %v4508 = vmul.f32 %v4500, %v4500
        %v4509 = vmul.f32 %v4501, %v4501
        %v4510 = vmul.f32 %v4502, %v4502
        %v4511 = vmul.f32 %v4503, %v4503
        %v4512 = vmul.f32 %v4504, %v4504
        %v4513 = vmul.f32 %v4505, %v4505
        %v4514 = vsel %vm537, %v4506, 0.0
        %4515 = vadd.xlane.f32.xlu0 %v4514
        %v4516 = vpop.xlane.xlu0 %4515
        %v4517 = vsel %vm537, %v4507, 0.0
        %4518 = vadd.xlane.f32.xlu0 %v4517
        %v4519 = vpop.xlane.xlu0 %4518
        %v4520 = vsel %vm537, %v4508, 0.0
        %4521 = vadd.xlane.f32.xlu0 %v4520
        %v4522 = vpop.xlane.xlu0 %4521
        %v4523 = vsel %vm537, %v4509, 0.0
        %4524 = vadd.xlane.f32.xlu0 %v4523
        %v4525 = vpop.xlane.xlu0 %4524
        %v4526 = vsel %vm537, %v4510, 0.0
        %4527 = vadd.xlane.f32.xlu0 %v4526
        %v4528 = vpop.xlane.xlu0 %4527
        %v4529 = vsel %vm537, %v4511, 0.0
        %4530 = vadd.xlane.f32.xlu0 %v4529
        %v4531 = vpop.xlane.xlu0 %4530
        %v4532 = vsel %vm537, %v4512, 0.0
        %4533 = vadd.xlane.f32.xlu0 %v4532
        %v4534 = vpop.xlane.xlu0 %4533
        %v4535 = vsel %vm537, %v4513, 0.0
        %4536 = vadd.xlane.f32.xlu0 %v4535
        %v4537 = vpop.xlane.xlu0 %4536
        %v4538 = vmul.f32 %v4516, %v562
        %v4539 = vmul.f32 %v4519, %v562
        %v4540 = vmul.f32 %v4522, %v562
        %v4541 = vmul.f32 %v4525, %v562
        %v4542 = vmul.f32 %v4528, %v562
        %v4543 = vmul.f32 %v4531, %v562
        %v4544 = vmul.f32 %v4534, %v562
        %v4545 = vmul.f32 %v4537, %v562
        %v4546 = vadd.f32 %v4538, 1e-05
        %v4547 = vadd.f32 %v4539, 1e-05
        %v4548 = vadd.f32 %v4540, 1e-05
        %v4549 = vadd.f32 %v4541, 1e-05
        %v4550 = vadd.f32 %v4542, 1e-05
        %v4551 = vadd.f32 %v4543, 1e-05
        %v4552 = vadd.f32 %v4544, 1e-05
        %v4553 = vadd.f32 %v4545, 1e-05
        %v4554 = vrsqrt.pop %v4546
        %v4555 = vrsqrt.pop %v4547
        %v4556 = vrsqrt.pop %v4548
        %v4557 = vrsqrt.pop %v4549
        %v4558 = vrsqrt.pop %v4550
        %v4559 = vrsqrt.pop %v4551
        %v4560 = vrsqrt.pop %v4552
        %v4561 = vrsqrt.pop %v4553
        %v4562 = vmul.f32 %v4498, %v4554
        %v4563 = vmul.f32 %v4499, %v4555
        %v4564 = vmul.f32 %v4500, %v4556
        %v4565 = vmul.f32 %v4501, %v4557
        %v4566 = vmul.f32 %v4502, %v4558
        %v4567 = vmul.f32 %v4503, %v4559
        %v4568 = vmul.f32 %v4504, %v4560
        %v4569 = vmul.f32 %v4505, %v4561
        %v4571 = vlaneseq
        %v4572 = vshrl.u32 %v4571, 7
        %v4573 = vsub.s32 0, %v4572
        %v4574 = vrot.slane %v4463, %v4573
        %v4576 = vmul.f32 %v4562, %v4574
        %v4577 = vmul.f32 %v4563, %v4574
        %v4578 = vmul.f32 %v4564, %v4574
        %v4579 = vmul.f32 %v4565, %v4574
        %v4580 = vmul.f32 %v4566, %v4574
        %v4581 = vmul.f32 %v4567, %v4574
        %v4582 = vmul.f32 %v4568, %v4574
        %v4583 = vmul.f32 %v4569, %v4574
        %v4585 = vlaneseq
        %v4586 = vshrl.u32 %v4585, 7
        %v4587 = vsub.s32 0, %v4586
        %v4588 = vrot.slane %v4465, %v4587
        %v4590 = vadd.f32 %v4576, %v4588
        %v4591 = vadd.f32 %v4577, %v4588
        %v4592 = vadd.f32 %v4578, %v4588
        %v4593 = vadd.f32 %v4579, %v4588
        %v4594 = vadd.f32 %v4580, %v4588
        %v4595 = vadd.f32 %v4581, %v4588
        %v4596 = vadd.f32 %v4582, %v4588
        %v4597 = vadd.f32 %v4583, %v4588
        %s4598 = scalar_lea.vmem [#allocation4], 64
        %v4599 = vld [vmem:[%s4598] sm:$0xff]
        %v4600 = vld [vmem:[%s4598 + $0x8] sm:$0xff]
        %v4601 = vld [vmem:[%s4598 + $0x10] sm:$0xff]
        %v4602 = vld [vmem:[%s4598 + $0x18] sm:$0xff]
        %s4603 = scalar_lea.vmem %s5, 2
        %v4604 = vld [vmem:[%s4603] sm:$0x1]
        %v4606 = vlaneseq
        %v4607 = vshrl.u32 %v4606, 7
        %v4608 = vsub.s32 0, %v4607
        %v4609 = vrot.slane %v4604, %v4608
        %v4612 = vsel %vm537, %v4590, 0
        %v4615 = vsel %vm537, %v4591, 0
        %v4618 = vsel %vm537, %v4592, 0
        %v4621 = vsel %vm537, %v4593, 0
        %v4624 = vsel %vm537, %v4594, 0
        %v4627 = vsel %vm537, %v4595, 0
        %v4630 = vsel %vm537, %v4596, 0
        %v4633 = vsel %vm537, %v4597, 0
        %4635 = vmatprep.subr.mxu0 0.0
        %4636 = vmatpush1.msra.mxu0 %v4599
        %4637 = vmatprep.subr.mxu0 0.0
        %4638 = vmatpush1.msra.mxu0 %v4600
        %4639 = vmatprep.subr.mxu0 0.0
        %4640 = vmatpush1.msra.mxu0 %v4601
        %4641 = vmatprep.subr.mxu0 0.0
        %4642 = vmatpush1.msra.mxu0 %v4602
        %4643 = vmatprep.subr.mxu0 0.0
        %4644 = vmatpush1.msra.mxu0 0.0
        %4645 = vmatprep.subr.mxu0 0.0
        %4646 = vmatpush1.msra.mxu0 0.0
        %4647 = vmatprep.subr.mxu0 0.0
        %4648 = vmatpush1.msra.mxu0 0.0
        %4649 = vmatprep.subr.mxu0 0.0
        %4650 = vmatpush1.msra.mxu0 0.0
        %4651 = vmatprep.subr.mxu0 0.0
        %4652 = vmatpush1.msra.mxu0 0.0
        %4653 = vmatprep.subr.mxu0 0.0
        %4654 = vmatpush1.msra.mxu0 0.0
        %4655 = vmatprep.subr.mxu0 0.0
        %4656 = vmatpush1.msra.mxu0 0.0
        %4657 = vmatprep.subr.mxu0 0.0
        %4658 = vmatpush1.msra.mxu0 0.0
        %4659 = vmatprep.subr.mxu0 0.0
        %4660 = vmatpush1.msra.mxu0 0.0
        %4661 = vmatprep.subr.mxu0 0.0
        %4662 = vmatpush1.msra.mxu0 0.0
        %4663 = vmatprep.subr.mxu0 0.0
        %4664 = vmatpush1.msra.mxu0 0.0
        %4665 = vmatprep.subr.mxu0 0.0
        %4666 = vmatpush1.msra.mxu0 0.0
        %4667 = vmatprep.subr.mxu0 0.0
        %4668 = vmatpush1.msra.mxu0 0.0
        %4669 = vmatprep.subr.mxu0 0.0
        %4670 = vmatpush1.msra.mxu0 0.0
        %4671 = vmatprep.subr.mxu0 0.0
        %4672 = vmatpush1.msra.mxu0 0.0
        %4673 = vmatprep.subr.mxu0 0.0
        %4674 = vmatpush1.msra.mxu0 0.0
        %4675 = vmatprep.subr.mxu0 0.0
        %4676 = vmatpush1.msra.mxu0 0.0
        %4677 = vmatprep.subr.mxu0 0.0
        %4678 = vmatpush1.msra.mxu0 0.0
        %4679 = vmatprep.subr.mxu0 0.0
        %4680 = vmatpush1.msra.mxu0 0.0
        %4681 = vmatprep.subr.mxu0 0.0
        %4682 = vmatpush1.msra.mxu0 0.0
        %4683 = vmatprep.subr.mxu0 0.0
        %4684 = vmatpush1.msra.mxu0 0.0
        %4685 = vmatprep.subr.mxu0 0.0
        %4686 = vmatpush1.msra.mxu0 0.0
        %4687 = vmatprep.subr.mxu0 0.0
        %4688 = vmatpush1.msra.mxu0 0.0
        %4689 = vmatprep.subr.mxu0 0.0
        %4690 = vmatpush1.msra.mxu0 0.0
        %4691 = vmatprep.subr.mxu0 0.0
        %4692 = vmatpush1.msra.mxu0 0.0
        %4693 = vmatprep.subr.mxu0 0.0
        %4694 = vmatpush1.msra.mxu0 0.0
        %4695 = vmatprep.subr.mxu0 0.0
        %4696 = vmatpush1.msra.mxu0 0.0
        %4697 = vmatprep.subr.mxu0 0.0
        %4698 = vmatpush1.msra.mxu0 0.0
        %4699 = vmatprep.mubr.f32.mxu0 0.0
        %4700 = vmatmul.mubr.f32.gmra.mrb[0].mxu0 %v4612
        %v4701 = vpop.f32.mrb[0].mxu0
        %v4702 = vadd.f32 %v4609, %v4701
        %v4703 = vpop.f32.mrb[0].mxu0
        %4704 = vmatprep.mubr.f32.mxu0 0.0
        %4705 = vmatmul.mubr.f32.gmra.mrb[0].mxu0 %v4615
        %v4706 = vpop.f32.mrb[0].mxu0
        %v4707 = vadd.f32 %v4609, %v4706
        %v4708 = vpop.f32.mrb[0].mxu0
        %4709 = vmatprep.mubr.f32.mxu0 0.0
        %4710 = vmatmul.mubr.f32.gmra.mrb[0].mxu0 %v4618
        %v4711 = vpop.f32.mrb[0].mxu0
        %v4712 = vadd.f32 %v4609, %v4711
        %v4713 = vpop.f32.mrb[0].mxu0
        %4714 = vmatprep.mubr.f32.mxu0 0.0
        %4715 = vmatmul.mubr.f32.gmra.mrb[0].mxu0 %v4621
        %v4716 = vpop.f32.mrb[0].mxu0
        %v4717 = vadd.f32 %v4609, %v4716
        %v4718 = vpop.f32.mrb[0].mxu0
        %4719 = vmatprep.mubr.f32.mxu0 0.0
        %4720 = vmatmul.mubr.f32.gmra.mrb[0].mxu0 %v4624
        %v4721 = vpop.f32.mrb[0].mxu0
        %v4722 = vadd.f32 %v4609, %v4721
        %v4723 = vpop.f32.mrb[0].mxu0
        %4724 = vmatprep.mubr.f32.mxu0 0.0
        %4725 = vmatmul.mubr.f32.gmra.mrb[0].mxu0 %v4627
        %v4726 = vpop.f32.mrb[0].mxu0
        %v4727 = vadd.f32 %v4609, %v4726
        %v4728 = vpop.f32.mrb[0].mxu0
        %4729 = vmatprep.mubr.f32.mxu0 0.0
        %4730 = vmatmul.mubr.f32.gmra.mrb[0].mxu0 %v4630
        %v4731 = vpop.f32.mrb[0].mxu0
        %v4732 = vadd.f32 %v4609, %v4731
        %v4733 = vpop.f32.mrb[0].mxu0
        %4734 = vmatprep.mubr.f32.mxu0 0.0
        %4735 = vmatmul.mubr.f32.gmra.mrb[0].mxu0 %v4633
        %v4736 = vpop.f32.mrb[0].mxu0
        %v4737 = vadd.f32 %v4609, %v4736
        %v4738 = vpop.f32.mrb[0].mxu0
        %4739 = vdwg.mxu0
        %s4740 = scalar_lea.vmem [#allocation2], 256
        %v4741 = vld [vmem:[%s4740] sm:$0xff]
        %v4742 = vld [vmem:[%s4740 + $0x8] sm:$0xff]
        %v4743 = vld [vmem:[%s4740 + $0x10] sm:$0xff]
        %v4744 = vld [vmem:[%s4740 + $0x18] sm:$0xff]
        %v4745 = vld [vmem:[%s4740 + $0x20] sm:$0xff]
        %v4746 = vld [vmem:[%s4740 + $0x28] sm:$0xff]
        %v4747 = vld [vmem:[%s4740 + $0x30] sm:$0xff]
        %v4748 = vld [vmem:[%s4740 + $0x38] sm:$0xff]
        %4757 = vrot.lane.b32.xlu0 %v4702, 96
        %v4758 = vpop.permute.xlu0 %4757
        %4759 = vrot.lane.b32.xlu0 %v4707, 96
        %v4760 = vpop.permute.xlu0 %4759
        %4761 = vrot.lane.b32.xlu0 %v4712, 96
        %v4762 = vpop.permute.xlu0 %4761
        %4763 = vrot.lane.b32.xlu0 %v4717, 96
        %v4764 = vpop.permute.xlu0 %4763
        %4765 = vrot.lane.b32.xlu0 %v4722, 96
        %v4766 = vpop.permute.xlu0 %4765
        %4767 = vrot.lane.b32.xlu0 %v4727, 96
        %v4768 = vpop.permute.xlu0 %4767
        %4769 = vrot.lane.b32.xlu0 %v4732, 96
        %v4770 = vpop.permute.xlu0 %4769
        %4771 = vrot.lane.b32.xlu0 %v4737, 96
        %v4772 = vpop.permute.xlu0 %4771
        %v4773 = vsel %vm843, %v4702, 0
        %v4775 = vsel %vm843, %v4707, 0
        %v4777 = vsel %vm843, %v4712, 0
        %v4779 = vsel %vm843, %v4717, 0
        %v4781 = vsel %vm843, %v4722, 0
        %v4783 = vsel %vm843, %v4727, 0
        %v4785 = vsel %vm843, %v4732, 0
        %v4787 = vsel %vm843, %v4737, 0
        %v4789 = vsel %vm843, %v4758, 0
        %v4791 = vsel %vm843, %v4760, 0
        %v4793 = vsel %vm843, %v4762, 0
        %v4795 = vsel %vm843, %v4764, 0
        %v4797 = vsel %vm843, %v4766, 0
        %v4799 = vsel %vm843, %v4768, 0
        %v4801 = vsel %vm843, %v4770, 0
        %v4803 = vsel %vm843, %v4772, 0
        %4805 = vmatprep.subr.mxu0 0.0
        %4806 = vmatpush1.xpose.msra.mxu0 %v4789
        %4807 = vmatprep.subr.mxu0 0.0
        %4808 = vmatpush1.xpose.msra.mxu0 %v4791
        %4809 = vmatprep.subr.mxu0 0.0
        %4810 = vmatpush1.xpose.msra.mxu0 %v4793
        %4811 = vmatprep.subr.mxu0 0.0
        %4812 = vmatpush1.xpose.msra.mxu0 %v4795
        %4813 = vmatprep.subr.mxu0 0.0
        %4814 = vmatpush1.xpose.msra.mxu0 %v4797
        %4815 = vmatprep.subr.mxu0 0.0
        %4816 = vmatpush1.xpose.msra.mxu0 %v4799
        %4817 = vmatprep.subr.mxu0 0.0
        %4818 = vmatpush1.xpose.msra.mxu0 %v4801
        %4819 = vmatprep.subr.mxu0 0.0
        %4820 = vmatpush1.xpose.msra.mxu0 %v4803
        %4821 = vmatprep.subr.mxu0 0.0
        %4822 = vmatpush1.xpose.msra.mxu0 0.0
        %4823 = vmatprep.subr.mxu0 0.0
        %4824 = vmatpush1.xpose.msra.mxu0 0.0
        %4825 = vmatprep.subr.mxu0 0.0
        %4826 = vmatpush1.xpose.msra.mxu0 0.0
        %4827 = vmatprep.subr.mxu0 0.0
        %4828 = vmatpush1.xpose.msra.mxu0 0.0
        %4829 = vmatprep.subr.mxu0 0.0
        %4830 = vmatpush1.xpose.msra.mxu0 0.0
        %4831 = vmatprep.subr.mxu0 0.0
        %4832 = vmatpush1.xpose.msra.mxu0 0.0
        %4833 = vmatprep.subr.mxu0 0.0
        %4834 = vmatpush1.xpose.msra.mxu0 0.0
        %4835 = vmatprep.subr.mxu0 0.0
        %4836 = vmatpush1.xpose.msra.mxu0 0.0
        %4837 = vmatprep.subr.mxu0 0.0
        %4838 = vmatpush1.xpose.msra.mxu0 0.0
        %4839 = vmatprep.subr.mxu0 0.0
        %4840 = vmatpush1.xpose.msra.mxu0 0.0
        %4841 = vmatprep.subr.mxu0 0.0
        %4842 = vmatpush1.xpose.msra.mxu0 0.0
        %4843 = vmatprep.subr.mxu0 0.0
        %4844 = vmatpush1.xpose.msra.mxu0 0.0
        %4845 = vmatprep.subr.mxu0 0.0
        %4846 = vmatpush1.xpose.msra.mxu0 0.0
        %4847 = vmatprep.subr.mxu0 0.0
        %4848 = vmatpush1.xpose.msra.mxu0 0.0
        %4849 = vmatprep.subr.mxu0 0.0
        %4850 = vmatpush1.xpose.msra.mxu0 0.0
        %4851 = vmatprep.subr.mxu0 0.0
        %4852 = vmatpush1.xpose.msra.mxu0 0.0
        %4853 = vmatprep.subr.mxu0 0.0
        %4854 = vmatpush1.xpose.msra.mxu0 0.0
        %4855 = vmatprep.subr.mxu0 0.0
        %4856 = vmatpush1.xpose.msra.mxu0 0.0
        %4857 = vmatprep.subr.mxu0 0.0
        %4858 = vmatpush1.xpose.msra.mxu0 0.0
        %4859 = vmatprep.subr.mxu0 0.0
        %4860 = vmatpush1.xpose.msra.mxu0 0.0
        %4861 = vmatprep.subr.mxu0 0.0
        %4862 = vmatpush1.xpose.msra.mxu0 0.0
        %4863 = vmatprep.subr.mxu0 0.0
        %4864 = vmatpush1.xpose.msra.mxu0 0.0
        %4865 = vmatprep.subr.mxu0 0.0
        %4866 = vmatpush1.xpose.msra.mxu0 0.0
        %4867 = vmatprep.subr.mxu0 0.0
        %4868 = vmatpush1.xpose.msra.mxu0 0.0
        %4869 = vmatprep.mubr.f32.mxu0 0.0
        %4870 = vmatmul.mubr.f32.gmra.mrb[0].mxu0 %v4773
        %v4871 = vpop.f32.mrb[0].mxu0
        %v4872 = vadd.f32 %v4741, %v4871
        %v4873 = vpop.f32.mrb[0].mxu0
        %4874 = vmatprep.mubr.f32.mxu0 0.0
        %4875 = vmatmul.mubr.f32.gmra.mrb[0].mxu0 %v4775
        %v4876 = vpop.f32.mrb[0].mxu0
        %v4877 = vadd.f32 %v4742, %v4876
        %v4878 = vpop.f32.mrb[0].mxu0
        %4879 = vmatprep.mubr.f32.mxu0 0.0
        %4880 = vmatmul.mubr.f32.gmra.mrb[0].mxu0 %v4777
        %v4881 = vpop.f32.mrb[0].mxu0
        %v4882 = vadd.f32 %v4743, %v4881
        %v4883 = vpop.f32.mrb[0].mxu0
        %4884 = vmatprep.mubr.f32.mxu0 0.0
        %4885 = vmatmul.mubr.f32.gmra.mrb[0].mxu0 %v4779
        %v4886 = vpop.f32.mrb[0].mxu0
        %v4887 = vadd.f32 %v4744, %v4886
        %v4888 = vpop.f32.mrb[0].mxu0
        %4889 = vmatprep.mubr.f32.mxu0 0.0
        %4890 = vmatmul.mubr.f32.gmra.mrb[0].mxu0 %v4781
        %v4891 = vpop.f32.mrb[0].mxu0
        %v4892 = vadd.f32 %v4745, %v4891
        %v4893 = vpop.f32.mrb[0].mxu0
        %4894 = vmatprep.mubr.f32.mxu0 0.0
        %4895 = vmatmul.mubr.f32.gmra.mrb[0].mxu0 %v4783
        %v4896 = vpop.f32.mrb[0].mxu0
        %v4897 = vadd.f32 %v4746, %v4896
        %v4898 = vpop.f32.mrb[0].mxu0
        %4899 = vmatprep.mubr.f32.mxu0 0.0
        %4900 = vmatmul.mubr.f32.gmra.mrb[0].mxu0 %v4785
        %v4901 = vpop.f32.mrb[0].mxu0
        %v4902 = vadd.f32 %v4747, %v4901
        %v4903 = vpop.f32.mrb[0].mxu0
        %4904 = vmatprep.mubr.f32.mxu0 0.0
        %4905 = vmatmul.mubr.f32.gmra.mrb[0].mxu0 %v4787
        %v4906 = vpop.f32.mrb[0].mxu0
        %v4907 = vadd.f32 %v4748, %v4906
        %v4908 = vpop.f32.mrb[0].mxu0
        %4909 = vdwg.mxu0
        %v4910 = vsel %vm981, %v4872, -inf
        %4911 = vmax.xlane.f32.xlu0 %v4910
        %v4912 = vpop.xlane.xlu0 %4911
        %v4913 = vsel %vm981, %v4877, -inf
        %4914 = vmax.xlane.f32.xlu0 %v4913
        %v4915 = vpop.xlane.xlu0 %4914
        %v4916 = vsel %vm981, %v4882, -inf
        %4917 = vmax.xlane.f32.xlu0 %v4916
        %v4918 = vpop.xlane.xlu0 %4917
        %v4919 = vsel %vm981, %v4887, -inf
        %4920 = vmax.xlane.f32.xlu0 %v4919
        %v4921 = vpop.xlane.xlu0 %4920
        %v4922 = vsel %vm981, %v4892, -inf
        %4923 = vmax.xlane.f32.xlu0 %v4922
        %v4924 = vpop.xlane.xlu0 %4923
        %v4925 = vsel %vm981, %v4897, -inf
        %4926 = vmax.xlane.f32.xlu0 %v4925
        %v4927 = vpop.xlane.xlu0 %4926
        %v4928 = vsel %vm981, %v4902, -inf
        %4929 = vmax.xlane.f32.xlu0 %v4928
        %v4930 = vpop.xlane.xlu0 %4929
        %v4931 = vsel %vm981, %v4907, -inf
        %4932 = vmax.xlane.f32.xlu0 %v4931
        %v4933 = vpop.xlane.xlu0 %4932
        %v4934 = vsub.f32 %v4872, %v4912
        %v4935 = vsub.f32 %v4877, %v4915
        %v4936 = vsub.f32 %v4882, %v4918
        %v4937 = vsub.f32 %v4887, %v4921
        %v4938 = vsub.f32 %v4892, %v4924
        %v4939 = vsub.f32 %v4897, %v4927
        %v4940 = vsub.f32 %v4902, %v4930
        %v4941 = vsub.f32 %v4907, %v4933
        %v4942 = vmul.f32 %v4934, 1.442695
        %v4943 = vpow.pop %v4942
        %v4944 = vmul.f32 %v4935, 1.442695
        %v4945 = vpow.pop %v4944
        %v4946 = vmul.f32 %v4936, 1.442695
        %v4947 = vpow.pop %v4946
        %v4948 = vmul.f32 %v4937, 1.442695
        %v4949 = vpow.pop %v4948
        %v4950 = vmul.f32 %v4938, 1.442695
        %v4951 = vpow.pop %v4950
        %v4952 = vmul.f32 %v4939, 1.442695
        %v4953 = vpow.pop %v4952
        %v4954 = vmul.f32 %v4940, 1.442695
        %v4955 = vpow.pop %v4954
        %v4956 = vmul.f32 %v4941, 1.442695
        %v4957 = vpow.pop %v4956
        %v4958 = vsel %vm981, %v4943, 0.0
        %4959 = vadd.xlane.f32.xlu0 %v4958
        %v4960 = vpop.xlane.xlu0 %4959
        %v4961 = vsel %vm981, %v4945, 0.0
        %4962 = vadd.xlane.f32.xlu0 %v4961
        %v4963 = vpop.xlane.xlu0 %4962
        %v4964 = vsel %vm981, %v4947, 0.0
        %4965 = vadd.xlane.f32.xlu0 %v4964
        %v4966 = vpop.xlane.xlu0 %4965
        %v4967 = vsel %vm981, %v4949, 0.0
        %4968 = vadd.xlane.f32.xlu0 %v4967
        %v4969 = vpop.xlane.xlu0 %4968
        %v4970 = vsel %vm981, %v4951, 0.0
        %4971 = vadd.xlane.f32.xlu0 %v4970
        %v4972 = vpop.xlane.xlu0 %4971
        %v4973 = vsel %vm981, %v4953, 0.0
        %4974 = vadd.xlane.f32.xlu0 %v4973
        %v4975 = vpop.xlane.xlu0 %4974
        %v4976 = vsel %vm981, %v4955, 0.0
        %4977 = vadd.xlane.f32.xlu0 %v4976
        %v4978 = vpop.xlane.xlu0 %4977
        %v4979 = vsel %vm981, %v4957, 0.0
        %4980 = vadd.xlane.f32.xlu0 %v4979
        %v4981 = vpop.xlane.xlu0 %4980
        %v4982 = vrcp.pop %v4960
        %v4983 = vmul.f32 %v4943, %v4982
        %v4984 = vrcp.pop %v4963
        %v4985 = vmul.f32 %v4945, %v4984
        %v4986 = vrcp.pop %v4966
        %v4987 = vmul.f32 %v4947, %v4986
        %v4988 = vrcp.pop %v4969
        %v4989 = vmul.f32 %v4949, %v4988
        %v4990 = vrcp.pop %v4972
        %v4991 = vmul.f32 %v4951, %v4990
        %v4992 = vrcp.pop %v4975
        %v4993 = vmul.f32 %v4953, %v4992
        %v4994 = vrcp.pop %v4978
        %v4995 = vmul.f32 %v4955, %v4994
        %v4996 = vrcp.pop %v4981
        %v4997 = vmul.f32 %v4957, %v4996
        %s4998 = scalar_lea.vmem [#allocation6], 128
        %v4999 = vld [vmem:[%s4998] sm:$0xff]
        %v5000 = vld [vmem:[%s4998 + $0x8] sm:$0xff]
        %v5001 = vld [vmem:[%s4998 + $0x10] sm:$0xff]
        %v5002 = vld [vmem:[%s4998 + $0x18] sm:$0xff]
        %5003 = vmatprep.subr.mxu0 0.0
        %5004 = vmatpush1.msra.mxu0 %v4999
        %5005 = vmatprep.subr.mxu0 0.0
        %5006 = vmatpush1.msra.mxu0 %v5000
        %5007 = vmatprep.subr.mxu0 0.0
        %5008 = vmatpush1.msra.mxu0 %v5001
        %5009 = vmatprep.subr.mxu0 0.0
        %5010 = vmatpush1.msra.mxu0 %v5002
        %5011 = vmatprep.subr.mxu0 0.0
        %5012 = vmatpush1.msra.mxu0 0.0
        %5013 = vmatprep.subr.mxu0 0.0
        %5014 = vmatpush1.msra.mxu0 0.0
        %5015 = vmatprep.subr.mxu0 0.0
        %5016 = vmatpush1.msra.mxu0 0.0
        %5017 = vmatprep.subr.mxu0 0.0
        %5018 = vmatpush1.msra.mxu0 0.0
        %5019 = vmatprep.subr.mxu0 0.0
        %5020 = vmatpush1.msra.mxu0 0.0
        %5021 = vmatprep.subr.mxu0 0.0
        %5022 = vmatpush1.msra.mxu0 0.0
        %5023 = vmatprep.subr.mxu0 0.0
        %5024 = vmatpush1.msra.mxu0 0.0
        %5025 = vmatprep.subr.mxu0 0.0
        %5026 = vmatpush1.msra.mxu0 0.0
        %5027 = vmatprep.subr.mxu0 0.0
        %5028 = vmatpush1.msra.mxu0 0.0
        %5029 = vmatprep.subr.mxu0 0.0
        %5030 = vmatpush1.msra.mxu0 0.0
        %5031 = vmatprep.subr.mxu0 0.0
        %5032 = vmatpush1.msra.mxu0 0.0
        %5033 = vmatprep.subr.mxu0 0.0
        %5034 = vmatpush1.msra.mxu0 0.0
        %5035 = vmatprep.subr.mxu0 0.0
        %5036 = vmatpush1.msra.mxu0 0.0
        %5037 = vmatprep.subr.mxu0 0.0
        %5038 = vmatpush1.msra.mxu0 0.0
        %5039 = vmatprep.subr.mxu0 0.0
        %5040 = vmatpush1.msra.mxu0 0.0
        %5041 = vmatprep.subr.mxu0 0.0
        %5042 = vmatpush1.msra.mxu0 0.0
        %5043 = vmatprep.subr.mxu0 0.0
        %5044 = vmatpush1.msra.mxu0 0.0
        %5045 = vmatprep.subr.mxu0 0.0
        %5046 = vmatpush1.msra.mxu0 0.0
        %5047 = vmatprep.subr.mxu0 0.0
        %5048 = vmatpush1.msra.mxu0 0.0
        %5049 = vmatprep.subr.mxu0 0.0
        %5050 = vmatpush1.msra.mxu0 0.0
        %5051 = vmatprep.subr.mxu0 0.0
        %5052 = vmatpush1.msra.mxu0 0.0
        %5053 = vmatprep.subr.mxu0 0.0
        %5054 = vmatpush1.msra.mxu0 0.0
        %5055 = vmatprep.subr.mxu0 0.0
        %5056 = vmatpush1.msra.mxu0 0.0
        %5057 = vmatprep.subr.mxu0 0.0
        %5058 = vmatpush1.msra.mxu0 0.0
        %5059 = vmatprep.subr.mxu0 0.0
        %5060 = vmatpush1.msra.mxu0 0.0
        %5061 = vmatprep.subr.mxu0 0.0
        %5062 = vmatpush1.msra.mxu0 0.0
        %5063 = vmatprep.subr.mxu0 0.0
        %5064 = vmatpush1.msra.mxu0 0.0
        %5065 = vmatprep.subr.mxu0 0.0
        %5066 = vmatpush1.msra.mxu0 0.0
        %5067 = vmatprep.mubr.f32.mxu0 0.0
        %5068 = vmatmul.mubr.f32.gmra.mrb[0].mxu0 %v4612
        %v5069 = vpop.f32.mrb[0].mxu0
        %v5070 = vadd.f32 0.0, %v5069
        %v5071 = vpop.f32.mrb[0].mxu0
        %5072 = vmatprep.mubr.f32.mxu0 0.0
        %5073 = vmatmul.mubr.f32.gmra.mrb[0].mxu0 %v4615
        %v5074 = vpop.f32.mrb[0].mxu0
        %v5075 = vadd.f32 0.0, %v5074
        %v5076 = vpop.f32.mrb[0].mxu0
        %5077 = vmatprep.mubr.f32.mxu0 0.0
        %5078 = vmatmul.mubr.f32.gmra.mrb[0].mxu0 %v4618
        %v5079 = vpop.f32.mrb[0].mxu0
        %v5080 = vadd.f32 0.0, %v5079
        %v5081 = vpop.f32.mrb[0].mxu0
        %5082 = vmatprep.mubr.f32.mxu0 0.0
        %5083 = vmatmul.mubr.f32.gmra.mrb[0].mxu0 %v4621
        %v5084 = vpop.f32.mrb[0].mxu0
        %v5085 = vadd.f32 0.0, %v5084
        %v5086 = vpop.f32.mrb[0].mxu0
        %5087 = vmatprep.mubr.f32.mxu0 0.0
        %5088 = vmatmul.mubr.f32.gmra.mrb[0].mxu0 %v4624
        %v5089 = vpop.f32.mrb[0].mxu0
        %v5090 = vadd.f32 0.0, %v5089
        %v5091 = vpop.f32.mrb[0].mxu0
        %5092 = vmatprep.mubr.f32.mxu0 0.0
        %5093 = vmatmul.mubr.f32.gmra.mrb[0].mxu0 %v4627
        %v5094 = vpop.f32.mrb[0].mxu0
        %v5095 = vadd.f32 0.0, %v5094
        %v5096 = vpop.f32.mrb[0].mxu0
        %5097 = vmatprep.mubr.f32.mxu0 0.0
        %5098 = vmatmul.mubr.f32.gmra.mrb[0].mxu0 %v4630
        %v5099 = vpop.f32.mrb[0].mxu0
        %v5100 = vadd.f32 0.0, %v5099
        %v5101 = vpop.f32.mrb[0].mxu0
        %5102 = vmatprep.mubr.f32.mxu0 0.0
        %5103 = vmatmul.mubr.f32.gmra.mrb[0].mxu0 %v4633
        %v5104 = vpop.f32.mrb[0].mxu0
        %v5105 = vadd.f32 0.0, %v5104
        %v5106 = vpop.f32.mrb[0].mxu0
        %5107 = vdwg.mxu0
        %s5108 = scalar_lea.vmem [#allocation2], 320
        %v5109 = vld [vmem:[%s5108] sm:$0xff]
        %v5110 = vld [vmem:[%s5108 + $0x8] sm:$0xff]
        %v5111 = vld [vmem:[%s5108 + $0x10] sm:$0xff]
        %v5112 = vld [vmem:[%s5108 + $0x18] sm:$0xff]
        %v5113 = vld [vmem:[%s5108 + $0x20] sm:$0xff]
        %v5114 = vld [vmem:[%s5108 + $0x28] sm:$0xff]
        %v5115 = vld [vmem:[%s5108 + $0x30] sm:$0xff]
        %v5116 = vld [vmem:[%s5108 + $0x38] sm:$0xff]
        %5117 = vrot.lane.b32.xlu0 %v4702, 112
        %v5118 = vpop.permute.xlu0 %5117
        %5119 = vrot.lane.b32.xlu0 %v4707, 112
        %v5120 = vpop.permute.xlu0 %5119
        %5121 = vrot.lane.b32.xlu0 %v4712, 112
        %v5122 = vpop.permute.xlu0 %5121
        %5123 = vrot.lane.b32.xlu0 %v4717, 112
        %v5124 = vpop.permute.xlu0 %5123
        %5125 = vrot.lane.b32.xlu0 %v4722, 112
        %v5126 = vpop.permute.xlu0 %5125
        %5127 = vrot.lane.b32.xlu0 %v4727, 112
        %v5128 = vpop.permute.xlu0 %5127
        %5129 = vrot.lane.b32.xlu0 %v4732, 112
        %v5130 = vpop.permute.xlu0 %5129
        %5131 = vrot.lane.b32.xlu0 %v4737, 112
        %v5132 = vpop.permute.xlu0 %5131
        %5133 = vrot.lane.b32.xlu0 %v4702, 80
        %v5134 = vpop.permute.xlu0 %5133
        %5135 = vrot.lane.b32.xlu0 %v4707, 80
        %v5136 = vpop.permute.xlu0 %5135
        %5137 = vrot.lane.b32.xlu0 %v4712, 80
        %v5138 = vpop.permute.xlu0 %5137
        %5139 = vrot.lane.b32.xlu0 %v4717, 80
        %v5140 = vpop.permute.xlu0 %5139
        %5141 = vrot.lane.b32.xlu0 %v4722, 80
        %v5142 = vpop.permute.xlu0 %5141
        %5143 = vrot.lane.b32.xlu0 %v4727, 80
        %v5144 = vpop.permute.xlu0 %5143
        %5145 = vrot.lane.b32.xlu0 %v4732, 80
        %v5146 = vpop.permute.xlu0 %5145
        %5147 = vrot.lane.b32.xlu0 %v4737, 80
        %v5148 = vpop.permute.xlu0 %5147
        %v5149 = vsel %vm843, %v5118, 0
        %v5151 = vsel %vm843, %v5120, 0
        %v5153 = vsel %vm843, %v5122, 0
        %v5155 = vsel %vm843, %v5124, 0
        %v5157 = vsel %vm843, %v5126, 0
        %v5159 = vsel %vm843, %v5128, 0
        %v5161 = vsel %vm843, %v5130, 0
        %v5163 = vsel %vm843, %v5132, 0
        %v5165 = vsel %vm843, %v5134, 0
        %v5167 = vsel %vm843, %v5136, 0
        %v5169 = vsel %vm843, %v5138, 0
        %v5171 = vsel %vm843, %v5140, 0
        %v5173 = vsel %vm843, %v5142, 0
        %v5175 = vsel %vm843, %v5144, 0
        %v5177 = vsel %vm843, %v5146, 0
        %v5179 = vsel %vm843, %v5148, 0
        %5181 = vmatprep.subr.mxu0 0.0
        %5182 = vmatpush1.xpose.msra.mxu0 %v5165
        %5183 = vmatprep.subr.mxu0 0.0
        %5184 = vmatpush1.xpose.msra.mxu0 %v5167
        %5185 = vmatprep.subr.mxu0 0.0
        %5186 = vmatpush1.xpose.msra.mxu0 %v5169
        %5187 = vmatprep.subr.mxu0 0.0
        %5188 = vmatpush1.xpose.msra.mxu0 %v5171
        %5189 = vmatprep.subr.mxu0 0.0
        %5190 = vmatpush1.xpose.msra.mxu0 %v5173
        %5191 = vmatprep.subr.mxu0 0.0
        %5192 = vmatpush1.xpose.msra.mxu0 %v5175
        %5193 = vmatprep.subr.mxu0 0.0
        %5194 = vmatpush1.xpose.msra.mxu0 %v5177
        %5195 = vmatprep.subr.mxu0 0.0
        %5196 = vmatpush1.xpose.msra.mxu0 %v5179
        %5197 = vmatprep.subr.mxu0 0.0
        %5198 = vmatpush1.xpose.msra.mxu0 0.0
        %5199 = vmatprep.subr.mxu0 0.0
        %5200 = vmatpush1.xpose.msra.mxu0 0.0
        %5201 = vmatprep.subr.mxu0 0.0
        %5202 = vmatpush1.xpose.msra.mxu0 0.0
        %5203 = vmatprep.subr.mxu0 0.0
        %5204 = vmatpush1.xpose.msra.mxu0 0.0
        %5205 = vmatprep.subr.mxu0 0.0
        %5206 = vmatpush1.xpose.msra.mxu0 0.0
        %5207 = vmatprep.subr.mxu0 0.0
        %5208 = vmatpush1.xpose.msra.mxu0 0.0
        %5209 = vmatprep.subr.mxu0 0.0
        %5210 = vmatpush1.xpose.msra.mxu0 0.0
        %5211 = vmatprep.subr.mxu0 0.0
        %5212 = vmatpush1.xpose.msra.mxu0 0.0
        %5213 = vmatprep.subr.mxu0 0.0
        %5214 = vmatpush1.xpose.msra.mxu0 0.0
        %5215 = vmatprep.subr.mxu0 0.0
        %5216 = vmatpush1.xpose.msra.mxu0 0.0
        %5217 = vmatprep.subr.mxu0 0.0
        %5218 = vmatpush1.xpose.msra.mxu0 0.0
        %5219 = vmatprep.subr.mxu0 0.0
        %5220 = vmatpush1.xpose.msra.mxu0 0.0
        %5221 = vmatprep.subr.mxu0 0.0
        %5222 = vmatpush1.xpose.msra.mxu0 0.0
        %5223 = vmatprep.subr.mxu0 0.0
        %5224 = vmatpush1.xpose.msra.mxu0 0.0
        %5225 = vmatprep.subr.mxu0 0.0
        %5226 = vmatpush1.xpose.msra.mxu0 0.0
        %5227 = vmatprep.subr.mxu0 0.0
        %5228 = vmatpush1.xpose.msra.mxu0 0.0
        %5229 = vmatprep.subr.mxu0 0.0
        %5230 = vmatpush1.xpose.msra.mxu0 0.0
        %5231 = vmatprep.subr.mxu0 0.0
        %5232 = vmatpush1.xpose.msra.mxu0 0.0
        %5233 = vmatprep.subr.mxu0 0.0
        %5234 = vmatpush1.xpose.msra.mxu0 0.0
        %5235 = vmatprep.subr.mxu0 0.0
        %5236 = vmatpush1.xpose.msra.mxu0 0.0
        %5237 = vmatprep.subr.mxu0 0.0
        %5238 = vmatpush1.xpose.msra.mxu0 0.0
        %5239 = vmatprep.subr.mxu0 0.0
        %5240 = vmatpush1.xpose.msra.mxu0 0.0
        %5241 = vmatprep.subr.mxu0 0.0
        %5242 = vmatpush1.xpose.msra.mxu0 0.0
        %5243 = vmatprep.subr.mxu0 0.0
        %5244 = vmatpush1.xpose.msra.mxu0 0.0
        %5245 = vmatprep.mubr.f32.mxu0 0.0
        %5246 = vmatmul.mubr.f32.gmra.mrb[0].mxu0 %v5149
        %v5247 = vpop.f32.mrb[0].mxu0
        %v5248 = vadd.f32 %v5109, %v5247
        %v5249 = vpop.f32.mrb[0].mxu0
        %5250 = vmatprep.mubr.f32.mxu0 0.0
        %5251 = vmatmul.mubr.f32.gmra.mrb[0].mxu0 %v5151
        %v5252 = vpop.f32.mrb[0].mxu0
        %v5253 = vadd.f32 %v5110, %v5252
        %v5254 = vpop.f32.mrb[0].mxu0
        %5255 = vmatprep.mubr.f32.mxu0 0.0
        %5256 = vmatmul.mubr.f32.gmra.mrb[0].mxu0 %v5153
        %v5257 = vpop.f32.mrb[0].mxu0
        %v5258 = vadd.f32 %v5111, %v5257
        %v5259 = vpop.f32.mrb[0].mxu0
        %5260 = vmatprep.mubr.f32.mxu0 0.0
        %5261 = vmatmul.mubr.f32.gmra.mrb[0].mxu0 %v5155
        %v5262 = vpop.f32.mrb[0].mxu0
        %v5263 = vadd.f32 %v5112, %v5262
        %v5264 = vpop.f32.mrb[0].mxu0
        %5265 = vmatprep.mubr.f32.mxu0 0.0
        %5266 = vmatmul.mubr.f32.gmra.mrb[0].mxu0 %v5157
        %v5267 = vpop.f32.mrb[0].mxu0
        %v5268 = vadd.f32 %v5113, %v5267
        %v5269 = vpop.f32.mrb[0].mxu0
        %5270 = vmatprep.mubr.f32.mxu0 0.0
        %5271 = vmatmul.mubr.f32.gmra.mrb[0].mxu0 %v5159
        %v5272 = vpop.f32.mrb[0].mxu0
        %v5273 = vadd.f32 %v5114, %v5272
        %v5274 = vpop.f32.mrb[0].mxu0
        %5275 = vmatprep.mubr.f32.mxu0 0.0
        %5276 = vmatmul.mubr.f32.gmra.mrb[0].mxu0 %v5161
        %v5277 = vpop.f32.mrb[0].mxu0
        %v5278 = vadd.f32 %v5115, %v5277
        %v5279 = vpop.f32.mrb[0].mxu0
        %5280 = vmatprep.mubr.f32.mxu0 0.0
        %5281 = vmatmul.mubr.f32.gmra.mrb[0].mxu0 %v5163
        %v5282 = vpop.f32.mrb[0].mxu0
        %v5283 = vadd.f32 %v5116, %v5282
        %v5284 = vpop.f32.mrb[0].mxu0
        %5285 = vdwg.mxu0
        %v5286 = vsel %vm981, %v5248, -inf
        %5287 = vmax.xlane.f32.xlu0 %v5286
        %v5288 = vpop.xlane.xlu0 %5287
        %v5289 = vsel %vm981, %v5253, -inf
        %5290 = vmax.xlane.f32.xlu0 %v5289
        %v5291 = vpop.xlane.xlu0 %5290
        %v5292 = vsel %vm981, %v5258, -inf
        %5293 = vmax.xlane.f32.xlu0 %v5292
        %v5294 = vpop.xlane.xlu0 %5293
        %v5295 = vsel %vm981, %v5263, -inf
        %5296 = vmax.xlane.f32.xlu0 %v5295
        %v5297 = vpop.xlane.xlu0 %5296
        %v5298 = vsel %vm981, %v5268, -inf
        %5299 = vmax.xlane.f32.xlu0 %v5298
        %v5300 = vpop.xlane.xlu0 %5299
        %v5301 = vsel %vm981, %v5273, -inf
        %5302 = vmax.xlane.f32.xlu0 %v5301
        %v5303 = vpop.xlane.xlu0 %5302
        %v5304 = vsel %vm981, %v5278, -inf
        %5305 = vmax.xlane.f32.xlu0 %v5304
        %v5306 = vpop.xlane.xlu0 %5305
        %v5307 = vsel %vm981, %v5283, -inf
        %5308 = vmax.xlane.f32.xlu0 %v5307
        %v5309 = vpop.xlane.xlu0 %5308
        %v5310 = vsub.f32 %v5248, %v5288
        %v5311 = vsub.f32 %v5253, %v5291
        %v5312 = vsub.f32 %v5258, %v5294
        %v5313 = vsub.f32 %v5263, %v5297
        %v5314 = vsub.f32 %v5268, %v5300
        %v5315 = vsub.f32 %v5273, %v5303
        %v5316 = vsub.f32 %v5278, %v5306
        %v5317 = vsub.f32 %v5283, %v5309
        %v5318 = vmul.f32 %v5310, 1.442695
        %v5319 = vpow.pop %v5318
        %v5320 = vmul.f32 %v5311, 1.442695
        %v5321 = vpow.pop %v5320
        %v5322 = vmul.f32 %v5312, 1.442695
        %v5323 = vpow.pop %v5322
        %v5324 = vmul.f32 %v5313, 1.442695
        %v5325 = vpow.pop %v5324
        %v5326 = vmul.f32 %v5314, 1.442695
        %v5327 = vpow.pop %v5326
        %v5328 = vmul.f32 %v5315, 1.442695
        %v5329 = vpow.pop %v5328
        %v5330 = vmul.f32 %v5316, 1.442695
        %v5331 = vpow.pop %v5330
        %v5332 = vmul.f32 %v5317, 1.442695
        %v5333 = vpow.pop %v5332
        %v5334 = vsel %vm981, %v5319, 0.0
        %5335 = vadd.xlane.f32.xlu0 %v5334
        %v5336 = vpop.xlane.xlu0 %5335
        %v5337 = vsel %vm981, %v5321, 0.0
        %5338 = vadd.xlane.f32.xlu0 %v5337
        %v5339 = vpop.xlane.xlu0 %5338
        %v5340 = vsel %vm981, %v5323, 0.0
        %5341 = vadd.xlane.f32.xlu0 %v5340
        %v5342 = vpop.xlane.xlu0 %5341
        %v5343 = vsel %vm981, %v5325, 0.0
        %5344 = vadd.xlane.f32.xlu0 %v5343
        %v5345 = vpop.xlane.xlu0 %5344
        %v5346 = vsel %vm981, %v5327, 0.0
        %5347 = vadd.xlane.f32.xlu0 %v5346
        %v5348 = vpop.xlane.xlu0 %5347
        %v5349 = vsel %vm981, %v5329, 0.0
        %5350 = vadd.xlane.f32.xlu0 %v5349
        %v5351 = vpop.xlane.xlu0 %5350
        %v5352 = vsel %vm981, %v5331, 0.0
        %5353 = vadd.xlane.f32.xlu0 %v5352
        %v5354 = vpop.xlane.xlu0 %5353
        %v5355 = vsel %vm981, %v5333, 0.0
        %5356 = vadd.xlane.f32.xlu0 %v5355
        %v5357 = vpop.xlane.xlu0 %5356
        %v5358 = vrcp.pop %v5336
        %v5359 = vmul.f32 %v5319, %v5358
        %v5360 = vrcp.pop %v5339
        %v5361 = vmul.f32 %v5321, %v5360
        %v5362 = vrcp.pop %v5342
        %v5363 = vmul.f32 %v5323, %v5362
        %v5364 = vrcp.pop %v5345
        %v5365 = vmul.f32 %v5325, %v5364
        %v5366 = vrcp.pop %v5348
        %v5367 = vmul.f32 %v5327, %v5366
        %v5368 = vrcp.pop %v5351
        %v5369 = vmul.f32 %v5329, %v5368
        %v5370 = vrcp.pop %v5354
        %v5371 = vmul.f32 %v5331, %v5370
        %v5372 = vrcp.pop %v5357
        %v5373 = vmul.f32 %v5333, %v5372
        %s5374 = scalar_lea.vmem [#allocation6], 160
        %v5375 = vld [vmem:[%s5374] sm:$0xff]
        %v5376 = vld [vmem:[%s5374 + $0x8] sm:$0xff]
        %v5377 = vld [vmem:[%s5374 + $0x10] sm:$0xff]
        %v5378 = vld [vmem:[%s5374 + $0x18] sm:$0xff]
        %5379 = vmatprep.subr.mxu0 0.0
        %5380 = vmatpush1.msra.mxu0 %v5375
        %5381 = vmatprep.subr.mxu0 0.0
        %5382 = vmatpush1.msra.mxu0 %v5376
        %5383 = vmatprep.subr.mxu0 0.0
        %5384 = vmatpush1.msra.mxu0 %v5377
        %5385 = vmatprep.subr.mxu0 0.0
        %5386 = vmatpush1.msra.mxu0 %v5378
        %5387 = vmatprep.subr.mxu0 0.0
        %5388 = vmatpush1.msra.mxu0 0.0
        %5389 = vmatprep.subr.mxu0 0.0
        %5390 = vmatpush1.msra.mxu0 0.0
        %5391 = vmatprep.subr.mxu0 0.0
        %5392 = vmatpush1.msra.mxu0 0.0
        %5393 = vmatprep.subr.mxu0 0.0
        %5394 = vmatpush1.msra.mxu0 0.0
        %5395 = vmatprep.subr.mxu0 0.0
        %5396 = vmatpush1.msra.mxu0 0.0
        %5397 = vmatprep.subr.mxu0 0.0
        %5398 = vmatpush1.msra.mxu0 0.0
        %5399 = vmatprep.subr.mxu0 0.0
        %5400 = vmatpush1.msra.mxu0 0.0
        %5401 = vmatprep.subr.mxu0 0.0
        %5402 = vmatpush1.msra.mxu0 0.0
        %5403 = vmatprep.subr.mxu0 0.0
        %5404 = vmatpush1.msra.mxu0 0.0
        %5405 = vmatprep.subr.mxu0 0.0
        %5406 = vmatpush1.msra.mxu0 0.0
        %5407 = vmatprep.subr.mxu0 0.0
        %5408 = vmatpush1.msra.mxu0 0.0
        %5409 = vmatprep.subr.mxu0 0.0
        %5410 = vmatpush1.msra.mxu0 0.0
        %5411 = vmatprep.subr.mxu0 0.0
        %5412 = vmatpush1.msra.mxu0 0.0
        %5413 = vmatprep.subr.mxu0 0.0
        %5414 = vmatpush1.msra.mxu0 0.0
        %5415 = vmatprep.subr.mxu0 0.0
        %5416 = vmatpush1.msra.mxu0 0.0
        %5417 = vmatprep.subr.mxu0 0.0
        %5418 = vmatpush1.msra.mxu0 0.0
        %5419 = vmatprep.subr.mxu0 0.0
        %5420 = vmatpush1.msra.mxu0 0.0
        %5421 = vmatprep.subr.mxu0 0.0
        %5422 = vmatpush1.msra.mxu0 0.0
        %5423 = vmatprep.subr.mxu0 0.0
        %5424 = vmatpush1.msra.mxu0 0.0
        %5425 = vmatprep.subr.mxu0 0.0
        %5426 = vmatpush1.msra.mxu0 0.0
        %5427 = vmatprep.subr.mxu0 0.0
        %5428 = vmatpush1.msra.mxu0 0.0
        %5429 = vmatprep.subr.mxu0 0.0
        %5430 = vmatpush1.msra.mxu0 0.0
        %5431 = vmatprep.subr.mxu0 0.0
        %5432 = vmatpush1.msra.mxu0 0.0
        %5433 = vmatprep.subr.mxu0 0.0
        %5434 = vmatpush1.msra.mxu0 0.0
        %5435 = vmatprep.subr.mxu0 0.0
        %5436 = vmatpush1.msra.mxu0 0.0
        %5437 = vmatprep.subr.mxu0 0.0
        %5438 = vmatpush1.msra.mxu0 0.0
        %5439 = vmatprep.subr.mxu0 0.0
        %5440 = vmatpush1.msra.mxu0 0.0
        %5441 = vmatprep.subr.mxu0 0.0
        %5442 = vmatpush1.msra.mxu0 0.0
        %5443 = vmatprep.mubr.f32.mxu0 0.0
        %5444 = vmatmul.mubr.f32.gmra.mrb[0].mxu0 %v4612
        %v5445 = vpop.f32.mrb[0].mxu0
        %v5446 = vadd.f32 0.0, %v5445
        %v5447 = vpop.f32.mrb[0].mxu0
        %5448 = vmatprep.mubr.f32.mxu0 0.0
        %5449 = vmatmul.mubr.f32.gmra.mrb[0].mxu0 %v4615
        %v5450 = vpop.f32.mrb[0].mxu0
        %v5451 = vadd.f32 0.0, %v5450
        %v5452 = vpop.f32.mrb[0].mxu0
        %5453 = vmatprep.mubr.f32.mxu0 0.0
        %5454 = vmatmul.mubr.f32.gmra.mrb[0].mxu0 %v4618
        %v5455 = vpop.f32.mrb[0].mxu0
        %v5456 = vadd.f32 0.0, %v5455
        %v5457 = vpop.f32.mrb[0].mxu0
        %5458 = vmatprep.mubr.f32.mxu0 0.0
        %5459 = vmatmul.mubr.f32.gmra.mrb[0].mxu0 %v4621
        %v5460 = vpop.f32.mrb[0].mxu0
        %v5461 = vadd.f32 0.0, %v5460
        %v5462 = vpop.f32.mrb[0].mxu0
        %5463 = vmatprep.mubr.f32.mxu0 0.0
        %5464 = vmatmul.mubr.f32.gmra.mrb[0].mxu0 %v4624
        %v5465 = vpop.f32.mrb[0].mxu0
        %v5466 = vadd.f32 0.0, %v5465
        %v5467 = vpop.f32.mrb[0].mxu0
        %5468 = vmatprep.mubr.f32.mxu0 0.0
        %5469 = vmatmul.mubr.f32.gmra.mrb[0].mxu0 %v4627
        %v5470 = vpop.f32.mrb[0].mxu0
        %v5471 = vadd.f32 0.0, %v5470
        %v5472 = vpop.f32.mrb[0].mxu0
        %5473 = vmatprep.mubr.f32.mxu0 0.0
        %5474 = vmatmul.mubr.f32.gmra.mrb[0].mxu0 %v4630
        %v5475 = vpop.f32.mrb[0].mxu0
        %v5476 = vadd.f32 0.0, %v5475
        %v5477 = vpop.f32.mrb[0].mxu0
        %5478 = vmatprep.mubr.f32.mxu0 0.0
        %5479 = vmatmul.mubr.f32.gmra.mrb[0].mxu0 %v4633
        %v5480 = vpop.f32.mrb[0].mxu0
        %v5481 = vadd.f32 0.0, %v5480
        %v5482 = vpop.f32.mrb[0].mxu0
        %5483 = vdwg.mxu0
        %v5485 = vsel %vm981, %v5359, 0
        %v5488 = vsel %vm981, %v5361, 0
        %v5491 = vsel %vm981, %v5363, 0
        %v5494 = vsel %vm981, %v5365, 0
        %v5497 = vsel %vm981, %v5367, 0
        %v5500 = vsel %vm981, %v5369, 0
        %v5503 = vsel %vm981, %v5371, 0
        %v5506 = vsel %vm981, %v5373, 0
        %5508 = vmatprep.subr.mxu0 0.0
        %5509 = vmatpush1.msra.mxu0 %v5446
        %5510 = vmatprep.subr.mxu0 0.0
        %5511 = vmatpush1.msra.mxu0 %v5451
        %5512 = vmatprep.subr.mxu0 0.0
        %5513 = vmatpush1.msra.mxu0 %v5456
        %5514 = vmatprep.subr.mxu0 0.0
        %5515 = vmatpush1.msra.mxu0 %v5461
        %5516 = vmatprep.subr.mxu0 0.0
        %5517 = vmatpush1.msra.mxu0 %v5466
        %5518 = vmatprep.subr.mxu0 0.0
        %5519 = vmatpush1.msra.mxu0 %v5471
        %5520 = vmatprep.subr.mxu0 0.0
        %5521 = vmatpush1.msra.mxu0 %v5476
        %5522 = vmatprep.subr.mxu0 0.0
        %5523 = vmatpush1.msra.mxu0 %v5481
        %5524 = vmatprep.subr.mxu0 0.0
        %5525 = vmatpush1.msra.mxu0 0.0
        %5526 = vmatprep.subr.mxu0 0.0
        %5527 = vmatpush1.msra.mxu0 0.0
        %5528 = vmatprep.subr.mxu0 0.0
        %5529 = vmatpush1.msra.mxu0 0.0
        %5530 = vmatprep.subr.mxu0 0.0
        %5531 = vmatpush1.msra.mxu0 0.0
        %5532 = vmatprep.subr.mxu0 0.0
        %5533 = vmatpush1.msra.mxu0 0.0
        %5534 = vmatprep.subr.mxu0 0.0
        %5535 = vmatpush1.msra.mxu0 0.0
        %5536 = vmatprep.subr.mxu0 0.0
        %5537 = vmatpush1.msra.mxu0 0.0
        %5538 = vmatprep.subr.mxu0 0.0
        %5539 = vmatpush1.msra.mxu0 0.0
        %5540 = vmatprep.subr.mxu0 0.0
        %5541 = vmatpush1.msra.mxu0 0.0
        %5542 = vmatprep.subr.mxu0 0.0
        %5543 = vmatpush1.msra.mxu0 0.0
        %5544 = vmatprep.subr.mxu0 0.0
        %5545 = vmatpush1.msra.mxu0 0.0
        %5546 = vmatprep.subr.mxu0 0.0
        %5547 = vmatpush1.msra.mxu0 0.0
        %5548 = vmatprep.subr.mxu0 0.0
        %5549 = vmatpush1.msra.mxu0 0.0
        %5550 = vmatprep.subr.mxu0 0.0
        %5551 = vmatpush1.msra.mxu0 0.0
        %5552 = vmatprep.subr.mxu0 0.0
        %5553 = vmatpush1.msra.mxu0 0.0
        %5554 = vmatprep.subr.mxu0 0.0
        %5555 = vmatpush1.msra.mxu0 0.0
        %5556 = vmatprep.subr.mxu0 0.0
        %5557 = vmatpush1.msra.mxu0 0.0
        %5558 = vmatprep.subr.mxu0 0.0
        %5559 = vmatpush1.msra.mxu0 0.0
        %5560 = vmatprep.subr.mxu0 0.0
        %5561 = vmatpush1.msra.mxu0 0.0
        %5562 = vmatprep.subr.mxu0 0.0
        %5563 = vmatpush1.msra.mxu0 0.0
        %5564 = vmatprep.subr.mxu0 0.0
        %5565 = vmatpush1.msra.mxu0 0.0
        %5566 = vmatprep.subr.mxu0 0.0
        %5567 = vmatpush1.msra.mxu0 0.0
        %5568 = vmatprep.subr.mxu0 0.0
        %5569 = vmatpush1.msra.mxu0 0.0
        %5570 = vmatprep.subr.mxu0 0.0
        %5571 = vmatpush1.msra.mxu0 0.0
        %5572 = vmatprep.mubr.f32.mxu0 0.0
        %5573 = vmatmul.mubr.f32.gmra.mrb[0].mxu0 %v5485
        %v5574 = vpop.f32.mrb[0].mxu0
        %v5575 = vadd.f32 0.0, %v5574
        %v5576 = vpop.f32.mrb[0].mxu0
        %5577 = vmatprep.mubr.f32.mxu0 0.0
        %5578 = vmatmul.mubr.f32.gmra.mrb[0].mxu0 %v5488
        %v5579 = vpop.f32.mrb[0].mxu0
        %v5580 = vadd.f32 0.0, %v5579
        %v5581 = vpop.f32.mrb[0].mxu0
        %5582 = vmatprep.mubr.f32.mxu0 0.0
        %5583 = vmatmul.mubr.f32.gmra.mrb[0].mxu0 %v5491
        %v5584 = vpop.f32.mrb[0].mxu0
        %v5585 = vadd.f32 0.0, %v5584
        %v5586 = vpop.f32.mrb[0].mxu0
        %5587 = vmatprep.mubr.f32.mxu0 0.0
        %5588 = vmatmul.mubr.f32.gmra.mrb[0].mxu0 %v5494
        %v5589 = vpop.f32.mrb[0].mxu0
        %v5590 = vadd.f32 0.0, %v5589
        %v5591 = vpop.f32.mrb[0].mxu0
        %5592 = vmatprep.mubr.f32.mxu0 0.0
        %5593 = vmatmul.mubr.f32.gmra.mrb[0].mxu0 %v5497
        %v5594 = vpop.f32.mrb[0].mxu0
        %v5595 = vadd.f32 0.0, %v5594
        %v5596 = vpop.f32.mrb[0].mxu0
        %5597 = vmatprep.mubr.f32.mxu0 0.0
        %5598 = vmatmul.mubr.f32.gmra.mrb[0].mxu0 %v5500
        %v5599 = vpop.f32.mrb[0].mxu0
        %v5600 = vadd.f32 0.0, %v5599
        %v5601 = vpop.f32.mrb[0].mxu0
        %5602 = vmatprep.mubr.f32.mxu0 0.0
        %5603 = vmatmul.mubr.f32.gmra.mrb[0].mxu0 %v5503
        %v5604 = vpop.f32.mrb[0].mxu0
        %v5605 = vadd.f32 0.0, %v5604
        %v5606 = vpop.f32.mrb[0].mxu0
        %5607 = vmatprep.mubr.f32.mxu0 0.0
        %5608 = vmatmul.mubr.f32.gmra.mrb[0].mxu0 %v5506
        %v5609 = vpop.f32.mrb[0].mxu0
        %v5610 = vadd.f32 0.0, %v5609
        %v5611 = vpop.f32.mrb[0].mxu0
        %5612 = vdwg.mxu0
        %v5614 = vsel %vm981, %v4983, 0
        %v5617 = vsel %vm981, %v4985, 0
        %v5620 = vsel %vm981, %v4987, 0
        %v5623 = vsel %vm981, %v4989, 0
        %v5626 = vsel %vm981, %v4991, 0
        %v5629 = vsel %vm981, %v4993, 0
        %v5632 = vsel %vm981, %v4995, 0
        %v5635 = vsel %vm981, %v4997, 0
        %5637 = vmatprep.subr.mxu0 0.0
        %5638 = vmatpush1.msra.mxu0 %v5070
        %5639 = vmatprep.subr.mxu0 0.0
        %5640 = vmatpush1.msra.mxu0 %v5075
        %5641 = vmatprep.subr.mxu0 0.0
        %5642 = vmatpush1.msra.mxu0 %v5080
        %5643 = vmatprep.subr.mxu0 0.0
        %5644 = vmatpush1.msra.mxu0 %v5085
        %5645 = vmatprep.subr.mxu0 0.0
        %5646 = vmatpush1.msra.mxu0 %v5090
        %5647 = vmatprep.subr.mxu0 0.0
        %5648 = vmatpush1.msra.mxu0 %v5095
        %5649 = vmatprep.subr.mxu0 0.0
        %5650 = vmatpush1.msra.mxu0 %v5100
        %5651 = vmatprep.subr.mxu0 0.0
        %5652 = vmatpush1.msra.mxu0 %v5105
        %5653 = vmatprep.subr.mxu0 0.0
        %5654 = vmatpush1.msra.mxu0 0.0
        %5655 = vmatprep.subr.mxu0 0.0
        %5656 = vmatpush1.msra.mxu0 0.0
        %5657 = vmatprep.subr.mxu0 0.0
        %5658 = vmatpush1.msra.mxu0 0.0
        %5659 = vmatprep.subr.mxu0 0.0
        %5660 = vmatpush1.msra.mxu0 0.0
        %5661 = vmatprep.subr.mxu0 0.0
        %5662 = vmatpush1.msra.mxu0 0.0
        %5663 = vmatprep.subr.mxu0 0.0
        %5664 = vmatpush1.msra.mxu0 0.0
        %5665 = vmatprep.subr.mxu0 0.0
        %5666 = vmatpush1.msra.mxu0 0.0
        %5667 = vmatprep.subr.mxu0 0.0
        %5668 = vmatpush1.msra.mxu0 0.0
        %5669 = vmatprep.subr.mxu0 0.0
        %5670 = vmatpush1.msra.mxu0 0.0
        %5671 = vmatprep.subr.mxu0 0.0
        %5672 = vmatpush1.msra.mxu0 0.0
        %5673 = vmatprep.subr.mxu0 0.0
        %5674 = vmatpush1.msra.mxu0 0.0
        %5675 = vmatprep.subr.mxu0 0.0
        %5676 = vmatpush1.msra.mxu0 0.0
        %5677 = vmatprep.subr.mxu0 0.0
        %5678 = vmatpush1.msra.mxu0 0.0
        %5679 = vmatprep.subr.mxu0 0.0
        %5680 = vmatpush1.msra.mxu0 0.0
        %5681 = vmatprep.subr.mxu0 0.0
        %5682 = vmatpush1.msra.mxu0 0.0
        %5683 = vmatprep.subr.mxu0 0.0
        %5684 = vmatpush1.msra.mxu0 0.0
        %5685 = vmatprep.subr.mxu0 0.0
        %5686 = vmatpush1.msra.mxu0 0.0
        %5687 = vmatprep.subr.mxu0 0.0
        %5688 = vmatpush1.msra.mxu0 0.0
        %5689 = vmatprep.subr.mxu0 0.0
        %5690 = vmatpush1.msra.mxu0 0.0
        %5691 = vmatprep.subr.mxu0 0.0
        %5692 = vmatpush1.msra.mxu0 0.0
        %5693 = vmatprep.subr.mxu0 0.0
        %5694 = vmatpush1.msra.mxu0 0.0
        %5695 = vmatprep.subr.mxu0 0.0
        %5696 = vmatpush1.msra.mxu0 0.0
        %5697 = vmatprep.subr.mxu0 0.0
        %5698 = vmatpush1.msra.mxu0 0.0
        %5699 = vmatprep.subr.mxu0 0.0
        %5700 = vmatpush1.msra.mxu0 0.0
        %5701 = vmatprep.mubr.f32.mxu0 0.0
        %5702 = vmatmul.mubr.f32.gmra.mrb[0].mxu0 %v5614
        %v5703 = vpop.f32.mrb[0].mxu0
        %v5704 = vadd.f32 %v5575, %v5703
        %v5705 = vpop.f32.mrb[0].mxu0
        %5706 = vmatprep.mubr.f32.mxu0 0.0
        %5707 = vmatmul.mubr.f32.gmra.mrb[0].mxu0 %v5617
        %v5708 = vpop.f32.mrb[0].mxu0
        %v5709 = vadd.f32 %v5580, %v5708
        %v5710 = vpop.f32.mrb[0].mxu0
        %5711 = vmatprep.mubr.f32.mxu0 0.0
        %5712 = vmatmul.mubr.f32.gmra.mrb[0].mxu0 %v5620
        %v5713 = vpop.f32.mrb[0].mxu0
        %v5714 = vadd.f32 %v5585, %v5713
        %v5715 = vpop.f32.mrb[0].mxu0
        %5716 = vmatprep.mubr.f32.mxu0 0.0
        %5717 = vmatmul.mubr.f32.gmra.mrb[0].mxu0 %v5623
        %v5718 = vpop.f32.mrb[0].mxu0
        %v5719 = vadd.f32 %v5590, %v5718
        %v5720 = vpop.f32.mrb[0].mxu0
        %5721 = vmatprep.mubr.f32.mxu0 0.0
        %5722 = vmatmul.mubr.f32.gmra.mrb[0].mxu0 %v5626
        %v5723 = vpop.f32.mrb[0].mxu0
        %v5724 = vadd.f32 %v5595, %v5723
        %v5725 = vpop.f32.mrb[0].mxu0
        %5726 = vmatprep.mubr.f32.mxu0 0.0
        %5727 = vmatmul.mubr.f32.gmra.mrb[0].mxu0 %v5629
        %v5728 = vpop.f32.mrb[0].mxu0
        %v5729 = vadd.f32 %v5600, %v5728
        %v5730 = vpop.f32.mrb[0].mxu0
        %5731 = vmatprep.mubr.f32.mxu0 0.0
        %5732 = vmatmul.mubr.f32.gmra.mrb[0].mxu0 %v5632
        %v5733 = vpop.f32.mrb[0].mxu0
        %v5734 = vadd.f32 %v5605, %v5733
        %v5735 = vpop.f32.mrb[0].mxu0
        %5736 = vmatprep.mubr.f32.mxu0 0.0
        %5737 = vmatmul.mubr.f32.gmra.mrb[0].mxu0 %v5635
        %v5738 = vpop.f32.mrb[0].mxu0
        %v5739 = vadd.f32 %v5610, %v5738
        %v5740 = vpop.f32.mrb[0].mxu0
        %5741 = vdwg.mxu0
        %v5742 = vadd.f32 %v4454, %v5704
        %v5743 = vadd.f32 %v4455, %v5709
        %v5744 = vadd.f32 %v4456, %v5714
        %v5745 = vadd.f32 %v4457, %v5719
        %v5746 = vadd.f32 %v4458, %v5724
        %v5747 = vadd.f32 %v4459, %v5729
        %v5748 = vadd.f32 %v4460, %v5734
        %v5749 = vadd.f32 %v4461, %v5739
        %s5750 = scalar_lea.vmem %s7, 2
        %v5751 = vld [vmem:[%s5750] sm:$0x1]
        %v5753 = vlaneseq
        %v5754 = vshrl.u32 %v5753, 7
        %v5755 = vsub.s32 0, %v5754
        %v5756 = vrot.slane %v5751, %v5755
        %v5758 = vadd.f32 %v5742, %v5756
        %v5759 = vadd.f32 %v5743, %v5756
        %v5760 = vadd.f32 %v5744, %v5756
        %v5761 = vadd.f32 %v5745, %v5756
        %v5762 = vadd.f32 %v5746, %v5756
        %v5763 = vadd.f32 %v5747, %v5756
        %v5764 = vadd.f32 %v5748, %v5756
        %v5765 = vadd.f32 %v5749, %v5756
        %s5766 = scalar_lea.vmem %s8, 2
        %v5767 = vld [vmem:[%s5766] sm:$0x1]
        %s5768 = scalar_lea.vmem %s9, 2
        %v5769 = vld [vmem:[%s5768] sm:$0x1]
        %v5770 = vsel %vm537, %v5758, 0.0
        %5771 = vadd.xlane.f32.xlu0 %v5770
        %v5772 = vpop.xlane.xlu0 %5771
        %v5773 = vsel %vm537, %v5759, 0.0
        %5774 = vadd.xlane.f32.xlu0 %v5773
        %v5775 = vpop.xlane.xlu0 %5774
        %v5776 = vsel %vm537, %v5760, 0.0
        %5777 = vadd.xlane.f32.xlu0 %v5776
        %v5778 = vpop.xlane.xlu0 %5777
        %v5779 = vsel %vm537, %v5761, 0.0
        %5780 = vadd.xlane.f32.xlu0 %v5779
        %v5781 = vpop.xlane.xlu0 %5780
        %v5782 = vsel %vm537, %v5762, 0.0
        %5783 = vadd.xlane.f32.xlu0 %v5782
        %v5784 = vpop.xlane.xlu0 %5783
        %v5785 = vsel %vm537, %v5763, 0.0
        %5786 = vadd.xlane.f32.xlu0 %v5785
        %v5787 = vpop.xlane.xlu0 %5786
        %v5788 = vsel %vm537, %v5764, 0.0
        %5789 = vadd.xlane.f32.xlu0 %v5788
        %v5790 = vpop.xlane.xlu0 %5789
        %v5791 = vsel %vm537, %v5765, 0.0
        %5792 = vadd.xlane.f32.xlu0 %v5791
        %v5793 = vpop.xlane.xlu0 %5792
        %v5794 = vmul.f32 %v5772, %v562
        %v5795 = vmul.f32 %v5775, %v562
        %v5796 = vmul.f32 %v5778, %v562
        %v5797 = vmul.f32 %v5781, %v562
        %v5798 = vmul.f32 %v5784, %v562
        %v5799 = vmul.f32 %v5787, %v562
        %v5800 = vmul.f32 %v5790, %v562
        %v5801 = vmul.f32 %v5793, %v562
        %v5802 = vsub.f32 %v5758, %v5794
        %v5803 = vsub.f32 %v5759, %v5795
        %v5804 = vsub.f32 %v5760, %v5796
        %v5805 = vsub.f32 %v5761, %v5797
        %v5806 = vsub.f32 %v5762, %v5798
        %v5807 = vsub.f32 %v5763, %v5799
        %v5808 = vsub.f32 %v5764, %v5800
        %v5809 = vsub.f32 %v5765, %v5801
        %v5810 = vmul.f32 %v5802, %v5802
        %v5811 = vmul.f32 %v5803, %v5803
        %v5812 = vmul.f32 %v5804, %v5804
        %v5813 = vmul.f32 %v5805, %v5805
        %v5814 = vmul.f32 %v5806, %v5806
        %v5815 = vmul.f32 %v5807, %v5807
        %v5816 = vmul.f32 %v5808, %v5808
        %v5817 = vmul.f32 %v5809, %v5809
        %v5818 = vsel %vm537, %v5810, 0.0
        %5819 = vadd.xlane.f32.xlu0 %v5818
        %v5820 = vpop.xlane.xlu0 %5819
        %v5821 = vsel %vm537, %v5811, 0.0
        %5822 = vadd.xlane.f32.xlu0 %v5821
        %v5823 = vpop.xlane.xlu0 %5822
        %v5824 = vsel %vm537, %v5812, 0.0
        %5825 = vadd.xlane.f32.xlu0 %v5824
        %v5826 = vpop.xlane.xlu0 %5825
        %v5827 = vsel %vm537, %v5813, 0.0
        %5828 = vadd.xlane.f32.xlu0 %v5827
        %v5829 = vpop.xlane.xlu0 %5828
        %v5830 = vsel %vm537, %v5814, 0.0
        %5831 = vadd.xlane.f32.xlu0 %v5830
        %v5832 = vpop.xlane.xlu0 %5831
        %v5833 = vsel %vm537, %v5815, 0.0
        %5834 = vadd.xlane.f32.xlu0 %v5833
        %v5835 = vpop.xlane.xlu0 %5834
        %v5836 = vsel %vm537, %v5816, 0.0
        %5837 = vadd.xlane.f32.xlu0 %v5836
        %v5838 = vpop.xlane.xlu0 %5837
        %v5839 = vsel %vm537, %v5817, 0.0
        %5840 = vadd.xlane.f32.xlu0 %v5839
        %v5841 = vpop.xlane.xlu0 %5840
        %v5842 = vmul.f32 %v5820, %v562
        %v5843 = vmul.f32 %v5823, %v562
        %v5844 = vmul.f32 %v5826, %v562
        %v5845 = vmul.f32 %v5829, %v562
        %v5846 = vmul.f32 %v5832, %v562
        %v5847 = vmul.f32 %v5835, %v562
        %v5848 = vmul.f32 %v5838, %v562
        %v5849 = vmul.f32 %v5841, %v562
        %v5850 = vadd.f32 %v5842, 1e-05
        %v5851 = vadd.f32 %v5843, 1e-05
        %v5852 = vadd.f32 %v5844, 1e-05
        %v5853 = vadd.f32 %v5845, 1e-05
        %v5854 = vadd.f32 %v5846, 1e-05
        %v5855 = vadd.f32 %v5847, 1e-05
        %v5856 = vadd.f32 %v5848, 1e-05
        %v5857 = vadd.f32 %v5849, 1e-05
        %v5858 = vrsqrt.pop %v5850
        %v5859 = vrsqrt.pop %v5851
        %v5860 = vrsqrt.pop %v5852
        %v5861 = vrsqrt.pop %v5853
        %v5862 = vrsqrt.pop %v5854
        %v5863 = vrsqrt.pop %v5855
        %v5864 = vrsqrt.pop %v5856
        %v5865 = vrsqrt.pop %v5857
        %v5866 = vmul.f32 %v5802, %v5858
        %v5867 = vmul.f32 %v5803, %v5859
        %v5868 = vmul.f32 %v5804, %v5860
        %v5869 = vmul.f32 %v5805, %v5861
        %v5870 = vmul.f32 %v5806, %v5862
        %v5871 = vmul.f32 %v5807, %v5863
        %v5872 = vmul.f32 %v5808, %v5864
        %v5873 = vmul.f32 %v5809, %v5865
        %v5875 = vlaneseq
        %v5876 = vshrl.u32 %v5875, 7
        %v5877 = vsub.s32 0, %v5876
        %v5878 = vrot.slane %v5767, %v5877
        %v5880 = vmul.f32 %v5866, %v5878
        %v5881 = vmul.f32 %v5867, %v5878
        %v5882 = vmul.f32 %v5868, %v5878
        %v5883 = vmul.f32 %v5869, %v5878
        %v5884 = vmul.f32 %v5870, %v5878
        %v5885 = vmul.f32 %v5871, %v5878
        %v5886 = vmul.f32 %v5872, %v5878
        %v5887 = vmul.f32 %v5873, %v5878
        %v5889 = vlaneseq
        %v5890 = vshrl.u32 %v5889, 7
        %v5891 = vsub.s32 0, %v5890
        %v5892 = vrot.slane %v5769, %v5891
        %v5894 = vadd.f32 %v5880, %v5892
        %v5895 = vadd.f32 %v5881, %v5892
        %v5896 = vadd.f32 %v5882, %v5892
        %v5897 = vadd.f32 %v5883, %v5892
        %v5898 = vadd.f32 %v5884, %v5892
        %v5899 = vadd.f32 %v5885, %v5892
        %v5900 = vadd.f32 %v5886, %v5892
        %v5901 = vadd.f32 %v5887, %v5892
        %s5902 = scalar_lea.vmem %s10, 64
        %v5903 = vld [vmem:[%s5902] sm:$0xff]
        %v5904 = vld [vmem:[%s5902 + $0x8] sm:$0xff]
        %v5905 = vld [vmem:[%s5902 + $0x10] sm:$0xff]
        %v5906 = vld [vmem:[%s5902 + $0x18] sm:$0xff]
        %s5907 = scalar_lea.vmem %s11, 2
        %v5908 = vld [vmem:[%s5907] sm:$0x1]
        %v5910 = vlaneseq
        %v5911 = vshrl.u32 %v5910, 7
        %v5912 = vsub.s32 0, %v5911
        %v5913 = vrot.slane %v5908, %v5912
        %v5916 = vsel %vm537, %v5894, 0
        %v5919 = vsel %vm537, %v5895, 0
        %v5922 = vsel %vm537, %v5896, 0
        %v5925 = vsel %vm537, %v5897, 0
        %v5928 = vsel %vm537, %v5898, 0
        %v5931 = vsel %vm537, %v5899, 0
        %v5934 = vsel %vm537, %v5900, 0
        %v5937 = vsel %vm537, %v5901, 0
        %5939 = vmatprep.subr.mxu0 0.0
        %5940 = vmatpush1.msra.mxu0 %v5903
        %5941 = vmatprep.subr.mxu0 0.0
        %5942 = vmatpush1.msra.mxu0 %v5904
        %5943 = vmatprep.subr.mxu0 0.0
        %5944 = vmatpush1.msra.mxu0 %v5905
        %5945 = vmatprep.subr.mxu0 0.0
        %5946 = vmatpush1.msra.mxu0 %v5906
        %5947 = vmatprep.subr.mxu0 0.0
        %5948 = vmatpush1.msra.mxu0 0.0
        %5949 = vmatprep.subr.mxu0 0.0
        %5950 = vmatpush1.msra.mxu0 0.0
        %5951 = vmatprep.subr.mxu0 0.0
        %5952 = vmatpush1.msra.mxu0 0.0
        %5953 = vmatprep.subr.mxu0 0.0
        %5954 = vmatpush1.msra.mxu0 0.0
        %5955 = vmatprep.subr.mxu0 0.0
        %5956 = vmatpush1.msra.mxu0 0.0
        %5957 = vmatprep.subr.mxu0 0.0
        %5958 = vmatpush1.msra.mxu0 0.0
        %5959 = vmatprep.subr.mxu0 0.0
        %5960 = vmatpush1.msra.mxu0 0.0
        %5961 = vmatprep.subr.mxu0 0.0
        %5962 = vmatpush1.msra.mxu0 0.0
        %5963 = vmatprep.subr.mxu0 0.0
        %5964 = vmatpush1.msra.mxu0 0.0
        %5965 = vmatprep.subr.mxu0 0.0
        %5966 = vmatpush1.msra.mxu0 0.0
        %5967 = vmatprep.subr.mxu0 0.0
        %5968 = vmatpush1.msra.mxu0 0.0
        %5969 = vmatprep.subr.mxu0 0.0
        %5970 = vmatpush1.msra.mxu0 0.0
        %5971 = vmatprep.subr.mxu0 0.0
        %5972 = vmatpush1.msra.mxu0 0.0
        %5973 = vmatprep.subr.mxu0 0.0
        %5974 = vmatpush1.msra.mxu0 0.0
        %5975 = vmatprep.subr.mxu0 0.0
        %5976 = vmatpush1.msra.mxu0 0.0
        %5977 = vmatprep.subr.mxu0 0.0
        %5978 = vmatpush1.msra.mxu0 0.0
        %5979 = vmatprep.subr.mxu0 0.0
        %5980 = vmatpush1.msra.mxu0 0.0
        %5981 = vmatprep.subr.mxu0 0.0
        %5982 = vmatpush1.msra.mxu0 0.0
        %5983 = vmatprep.subr.mxu0 0.0
        %5984 = vmatpush1.msra.mxu0 0.0
        %5985 = vmatprep.subr.mxu0 0.0
        %5986 = vmatpush1.msra.mxu0 0.0
        %5987 = vmatprep.subr.mxu0 0.0
        %5988 = vmatpush1.msra.mxu0 0.0
        %5989 = vmatprep.subr.mxu0 0.0
        %5990 = vmatpush1.msra.mxu0 0.0
        %5991 = vmatprep.subr.mxu0 0.0
        %5992 = vmatpush1.msra.mxu0 0.0
        %5993 = vmatprep.subr.mxu0 0.0
        %5994 = vmatpush1.msra.mxu0 0.0
        %5995 = vmatprep.subr.mxu0 0.0
        %5996 = vmatpush1.msra.mxu0 0.0
        %5997 = vmatprep.subr.mxu0 0.0
        %5998 = vmatpush1.msra.mxu0 0.0
        %5999 = vmatprep.subr.mxu0 0.0
        %6000 = vmatpush1.msra.mxu0 0.0
        %6001 = vmatprep.subr.mxu0 0.0
        %6002 = vmatpush1.msra.mxu0 0.0
        %6003 = vmatprep.mubr.f32.mxu0 0.0
        %6004 = vmatmul.mubr.f32.gmra.mrb[0].mxu0 %v5916
        %v6005 = vpop.f32.mrb[0].mxu0
        %v6006 = vadd.f32 %v5913, %v6005
        %v6007 = vpop.f32.mrb[0].mxu0
        %6008 = vmatprep.mubr.f32.mxu0 0.0
        %6009 = vmatmul.mubr.f32.gmra.mrb[0].mxu0 %v5919
        %v6010 = vpop.f32.mrb[0].mxu0
        %v6011 = vadd.f32 %v5913, %v6010
        %v6012 = vpop.f32.mrb[0].mxu0
        %6013 = vmatprep.mubr.f32.mxu0 0.0
        %6014 = vmatmul.mubr.f32.gmra.mrb[0].mxu0 %v5922
        %v6015 = vpop.f32.mrb[0].mxu0
        %v6016 = vadd.f32 %v5913, %v6015
        %v6017 = vpop.f32.mrb[0].mxu0
        %6018 = vmatprep.mubr.f32.mxu0 0.0
        %6019 = vmatmul.mubr.f32.gmra.mrb[0].mxu0 %v5925
        %v6020 = vpop.f32.mrb[0].mxu0
        %v6021 = vadd.f32 %v5913, %v6020
        %v6022 = vpop.f32.mrb[0].mxu0
        %6023 = vmatprep.mubr.f32.mxu0 0.0
        %6024 = vmatmul.mubr.f32.gmra.mrb[0].mxu0 %v5928
        %v6025 = vpop.f32.mrb[0].mxu0
        %v6026 = vadd.f32 %v5913, %v6025
        %v6027 = vpop.f32.mrb[0].mxu0
        %6028 = vmatprep.mubr.f32.mxu0 0.0
        %6029 = vmatmul.mubr.f32.gmra.mrb[0].mxu0 %v5931
        %v6030 = vpop.f32.mrb[0].mxu0
        %v6031 = vadd.f32 %v5913, %v6030
        %v6032 = vpop.f32.mrb[0].mxu0
        %6033 = vmatprep.mubr.f32.mxu0 0.0
        %6034 = vmatmul.mubr.f32.gmra.mrb[0].mxu0 %v5934
        %v6035 = vpop.f32.mrb[0].mxu0
        %v6036 = vadd.f32 %v5913, %v6035
        %v6037 = vpop.f32.mrb[0].mxu0
        %6038 = vmatprep.mubr.f32.mxu0 0.0
        %6039 = vmatmul.mubr.f32.gmra.mrb[0].mxu0 %v5937
        %v6040 = vpop.f32.mrb[0].mxu0
        %v6041 = vadd.f32 %v5913, %v6040
        %v6042 = vpop.f32.mrb[0].mxu0
        %6043 = vdwg.mxu0
        %v6044 = vmul.f32 %v6006, 0.5
        %v6045 = vmul.f32 %v6011, 0.5
        %v6046 = vmul.f32 %v6016, 0.5
        %v6047 = vmul.f32 %v6021, 0.5
        %v6048 = vmul.f32 %v6026, 0.5
        %v6049 = vmul.f32 %v6031, 0.5
        %v6050 = vmul.f32 %v6036, 0.5
        %v6051 = vmul.f32 %v6041, 0.5
        %v6052 = vmul.f32 %v6006, 0.70710677
        %v6053 = vmul.f32 %v6011, 0.70710677
        %v6054 = vmul.f32 %v6016, 0.70710677
        %v6055 = vmul.f32 %v6021, 0.70710677
        %v6056 = vmul.f32 %v6026, 0.70710677
        %v6057 = vmul.f32 %v6031, 0.70710677
        %v6058 = vmul.f32 %v6036, 0.70710677
        %v6059 = vmul.f32 %v6041, 0.70710677
        %v6060 = vmax.f32 %v6052, -4.0
        %v6061 = vmax.f32 %v6053, -4.0
        %v6062 = vmax.f32 %v6054, -4.0
        %v6063 = vmax.f32 %v6055, -4.0
        %v6064 = vmax.f32 %v6056, -4.0
        %v6065 = vmax.f32 %v6057, -4.0
        %v6066 = vmax.f32 %v6058, -4.0
        %v6067 = vmax.f32 %v6059, -4.0
        %v6068 = vmin.f32 %v6060, 4.0
        %v6069 = vmin.f32 %v6061, 4.0
        %v6070 = vmin.f32 %v6062, 4.0
        %v6071 = vmin.f32 %v6063, 4.0
        %v6072 = vmin.f32 %v6064, 4.0
        %v6073 = vmin.f32 %v6065, 4.0
        %v6074 = vmin.f32 %v6066, 4.0
        %v6075 = vmin.f32 %v6067, 4.0
        %v6076 = vmul.f32 %v6068, %v6068
        %v6077 = vmul.f32 %v6069, %v6069
        %v6078 = vmul.f32 %v6070, %v6070
        %v6079 = vmul.f32 %v6071, %v6071
        %v6080 = vmul.f32 %v6072, %v6072
        %v6081 = vmul.f32 %v6073, %v6073
        %v6082 = vmul.f32 %v6074, %v6074
        %v6083 = vmul.f32 %v6075, %v6075
        %v6084 = vmul.f32 %v6076, -2.7261424e-10
        %v6085 = vmul.f32 %v6077, -2.7261424e-10
        %v6086 = vmul.f32 %v6078, -2.7261424e-10
        %v6087 = vmul.f32 %v6079, -2.7261424e-10
        %v6088 = vmul.f32 %v6080, -2.7261424e-10
        %v6089 = vmul.f32 %v6081, -2.7261424e-10
        %v6090 = vmul.f32 %v6082, -2.7261424e-10
        %v6091 = vmul.f32 %v6083, -2.7261424e-10
        %v6092 = vadd.f32 %v6084, 2.7706815e-08
        %v6093 = vadd.f32 %v6085, 2.7706815e-08
        %v6094 = vadd.f32 %v6086, 2.7706815e-08
        %v6095 = vadd.f32 %v6087, 2.7706815e-08
        %v6096 = vadd.f32 %v6088, 2.7706815e-08
        %v6097 = vadd.f32 %v6089, 2.7706815e-08
        %v6098 = vadd.f32 %v6090, 2.7706815e-08
        %v6099 = vadd.f32 %v6091, 2.7706815e-08
        %v6100 = vmul.f32 %v6092, %v6076
        %v6101 = vmul.f32 %v6093, %v6077
        %v6102 = vmul.f32 %v6094, %v6078
        %v6103 = vmul.f32 %v6095, %v6079
        %v6104 = vmul.f32 %v6096, %v6080
        %v6105 = vmul.f32 %v6097, %v6081
        %v6106 = vmul.f32 %v6098, %v6082
        %v6107 = vmul.f32 %v6099, %v6083
        %v6108 = vadd.f32 %v6100, -2.101024e-06
        %v6109 = vadd.f32 %v6101, -2.101024e-06
        %v6110 = vadd.f32 %v6102, -2.101024e-06
        %v6111 = vadd.f32 %v6103, -2.101024e-06
        %v6112 = vadd.f32 %v6104, -2.101024e-06
        %v6113 = vadd.f32 %v6105, -2.101024e-06
        %v6114 = vadd.f32 %v6106, -2.101024e-06
        %v6115 = vadd.f32 %v6107, -2.101024e-06
        %v6116 = vmul.f32 %v6108, %v6076
        %v6117 = vmul.f32 %v6109, %v6077
        %v6118 = vmul.f32 %v6110, %v6078
        %v6119 = vmul.f32 %v6111, %v6079
        %v6120 = vmul.f32 %v6112, %v6080
        %v6121 = vmul.f32 %v6113, %v6081
        %v6122 = vmul.f32 %v6114, %v6082
        %v6123 = vmul.f32 %v6115, %v6083
        %v6124 = vadd.f32 %v6116, -5.6925062e-05
        %v6125 = vadd.f32 %v6117, -5.6925062e-05
        %v6126 = vadd.f32 %v6118, -5.6925062e-05
        %v6127 = vadd.f32 %v6119, -5.6925062e-05
        %v6128 = vadd.f32 %v6120, -5.6925062e-05
        %v6129 = vadd.f32 %v6121, -5.6925062e-05
        %v6130 = vadd.f32 %v6122, -5.6925062e-05
        %v6131 = vadd.f32 %v6123, -5.6925062e-05
        %v6132 = vmul.f32 %v6124, %v6076
        %v6133 = vmul.f32 %v6125, %v6077
        %v6134 = vmul.f32 %v6126, %v6078
        %v6135 = vmul.f32 %v6127, %v6079
        %v6136 = vmul.f32 %v6128, %v6080
        %v6137 = vmul.f32 %v6129, %v6081
        %v6138 = vmul.f32 %v6130, %v6082
        %v6139 = vmul.f32 %v6131, %v6083
        %v6140 = vadd.f32 %v6132, -0.00073499064
        %v6141 = vadd.f32 %v6133, -0.00073499064
        %v6142 = vadd.f32 %v6134, -0.00073499064
        %v6143 = vadd.f32 %v6135, -0.00073499064
        %v6144 = vadd.f32 %v6136, -0.00073499064
        %v6145 = vadd.f32 %v6137, -0.00073499064
        %v6146 = vadd.f32 %v6138, -0.00073499064
        %v6147 = vadd.f32 %v6139, -0.00073499064
        %v6148 = vmul.f32 %v6140, %v6076
        %v6149 = vmul.f32 %v6141, %v6077
        %v6150 = vmul.f32 %v6142, %v6078
        %v6151 = vmul.f32 %v6143, %v6079
        %v6152 = vmul.f32 %v6144, %v6080
        %v6153 = vmul.f32 %v6145, %v6081
        %v6154 = vmul.f32 %v6146, %v6082
        %v6155 = vmul.f32 %v6147, %v6083
        %v6156 = vadd.f32 %v6148, -0.0029546
        %v6157 = vadd.f32 %v6149, -0.0029546
        %v6158 = vadd.f32 %v6150, -0.0029546
        %v6159 = vadd.f32 %v6151, -0.0029546
        %v6160 = vadd.f32 %v6152, -0.0029546
        %v6161 = vadd.f32 %v6153, -0.0029546
        %v6162 = vadd.f32 %v6154, -0.0029546
        %v6163 = vadd.f32 %v6155, -0.0029546
        %v6164 = vmul.f32 %v6156, %v6076
        %v6165 = vmul.f32 %v6157, %v6077
        %v6166 = vmul.f32 %v6158, %v6078
        %v6167 = vmul.f32 %v6159, %v6079
        %v6168 = vmul.f32 %v6160, %v6080
        %v6169 = vmul.f32 %v6161, %v6081
        %v6170 = vmul.f32 %v6162, %v6082
        %v6171 = vmul.f32 %v6163, %v6083
        %v6172 = vadd.f32 %v6164, -0.016096033
        %v6173 = vadd.f32 %v6165, -0.016096033
        %v6174 = vadd.f32 %v6166, -0.016096033
        %v6175 = vadd.f32 %v6167, -0.016096033
        %v6176 = vadd.f32 %v6168, -0.016096033
        %v6177 = vadd.f32 %v6169, -0.016096033
        %v6178 = vadd.f32 %v6170, -0.016096033
        %v6179 = vadd.f32 %v6171, -0.016096033
        %v6180 = vmul.f32 %v6172, %v6068
        %v6181 = vmul.f32 %v6173, %v6069
        %v6182 = vmul.f32 %v6174, %v6070
        %v6183 = vmul.f32 %v6175, %v6071
        %v6184 = vmul.f32 %v6176, %v6072
        %v6185 = vmul.f32 %v6177, %v6073
        %v6186 = vmul.f32 %v6178, %v6074
        %v6187 = vmul.f32 %v6179, %v6075
        %v6188 = vmul.f32 %v6076, -1.45660715e-05
        %v6189 = vmul.f32 %v6077, -1.45660715e-05
        %v6190 = vmul.f32 %v6078, -1.45660715e-05
        %v6191 = vmul.f32 %v6079, -1.45660715e-05
        %v6192 = vmul.f32 %v6080, -1.45660715e-05
        %v6193 = vmul.f32 %v6081, -1.45660715e-05
        %v6194 = vmul.f32 %v6082, -1.45660715e-05
        %v6195 = vmul.f32 %v6083, -1.45660715e-05
        %v6196 = vadd.f32 %v6188, -0.00021337405
        %v6197 = vadd.f32 %v6189, -0.00021337405
        %v6198 = vadd.f32 %v6190, -0.00021337405
        %v6199 = vadd.f32 %v6191, -0.00021337405
        %v6200 = vadd.f32 %v6192, -0.00021337405
        %v6201 = vadd.f32 %v6193, -0.00021337405
        %v6202 = vadd.f32 %v6194, -0.00021337405
        %v6203 = vadd.f32 %v6195, -0.00021337405
        %v6204 = vmul.f32 %v6196, %v6076
        %v6205 = vmul.f32 %v6197, %v6077
        %v6206 = vmul.f32 %v6198, %v6078
        %v6207 = vmul.f32 %v6199, %v6079
        %v6208 = vmul.f32 %v6200, %v6080
        %v6209 = vmul.f32 %v6201, %v6081
        %v6210 = vmul.f32 %v6202, %v6082
        %v6211 = vmul.f32 %v6203, %v6083
        %v6212 = vadd.f32 %v6204, -0.001682827
        %v6213 = vadd.f32 %v6205, -0.001682827
        %v6214 = vadd.f32 %v6206, -0.001682827
        %v6215 = vadd.f32 %v6207, -0.001682827
        %v6216 = vadd.f32 %v6208, -0.001682827
        %v6217 = vadd.f32 %v6209, -0.001682827
        %v6218 = vadd.f32 %v6210, -0.001682827
        %v6219 = vadd.f32 %v6211, -0.001682827
        %v6220 = vmul.f32 %v6212, %v6076
        %v6221 = vmul.f32 %v6213, %v6077
        %v6222 = vmul.f32 %v6214, %v6078
        %v6223 = vmul.f32 %v6215, %v6079
        %v6224 = vmul.f32 %v6216, %v6080
        %v6225 = vmul.f32 %v6217, %v6081
        %v6226 = vmul.f32 %v6218, %v6082
        %v6227 = vmul.f32 %v6219, %v6083
        %v6228 = vadd.f32 %v6220, -0.0073733293
        %v6229 = vadd.f32 %v6221, -0.0073733293
        %v6230 = vadd.f32 %v6222, -0.0073733293
        %v6231 = vadd.f32 %v6223, -0.0073733293
        %v6232 = vadd.f32 %v6224, -0.0073733293
        %v6233 = vadd.f32 %v6225, -0.0073733293
        %v6234 = vadd.f32 %v6226, -0.0073733293
        %v6235 = vadd.f32 %v6227, -0.0073733293
        %v6236 = vmul.f32 %v6228, %v6076
        %v6237 = vmul.f32 %v6229, %v6077
        %v6238 = vmul.f32 %v6230, %v6078
        %v6239 = vmul.f32 %v6231, %v6079
        %v6240 = vmul.f32 %v6232, %v6080
        %v6241 = vmul.f32 %v6233, %v6081
        %v6242 = vmul.f32 %v6234, %v6082
        %v6243 = vmul.f32 %v6235, %v6083
        %v6244 = vadd.f32 %v6236, -0.014264739
        %v6245 = vadd.f32 %v6237, -0.014264739
        %v6246 = vadd.f32 %v6238, -0.014264739
        %v6247 = vadd.f32 %v6239, -0.014264739
        %v6248 = vadd.f32 %v6240, -0.014264739
        %v6249 = vadd.f32 %v6241, -0.014264739
        %v6250 = vadd.f32 %v6242, -0.014264739
        %v6251 = vadd.f32 %v6243, -0.014264739
        %v6252 = vrcp.pop %v6244
        %v6253 = vmul.f32 %v6180, %v6252
        %v6254 = vrcp.pop %v6245
        %v6255 = vmul.f32 %v6181, %v6254
        %v6256 = vrcp.pop %v6246
        %v6257 = vmul.f32 %v6182, %v6256
        %v6258 = vrcp.pop %v6247
        %v6259 = vmul.f32 %v6183, %v6258
        %v6260 = vrcp.pop %v6248
        %v6261 = vmul.f32 %v6184, %v6260
        %v6262 = vrcp.pop %v6249
        %v6263 = vmul.f32 %v6185, %v6262
        %v6264 = vrcp.pop %v6250
        %v6265 = vmul.f32 %v6186, %v6264
        %v6266 = vrcp.pop %v6251
        %v6267 = vmul.f32 %v6187, %v6266
        %v6268 = vadd.f32 %v6253, 1.0
        %v6269 = vadd.f32 %v6255, 1.0
        %v6270 = vadd.f32 %v6257, 1.0
        %v6271 = vadd.f32 %v6259, 1.0
        %v6272 = vadd.f32 %v6261, 1.0
        %v6273 = vadd.f32 %v6263, 1.0
        %v6274 = vadd.f32 %v6265, 1.0
        %v6275 = vadd.f32 %v6267, 1.0
        %v6276 = vmul.f32 %v6044, %v6268
        %v6277 = vmul.f32 %v6045, %v6269
        %v6278 = vmul.f32 %v6046, %v6270
        %v6279 = vmul.f32 %v6047, %v6271
        %v6280 = vmul.f32 %v6048, %v6272
        %v6281 = vmul.f32 %v6049, %v6273
        %v6282 = vmul.f32 %v6050, %v6274
        %v6283 = vmul.f32 %v6051, %v6275
        %s6284 = scalar_lea.vmem [#allocation7], 256
        %v6285 = vld [vmem:[%s6284] sm:$0xff]
        %v6286 = vld [vmem:[%s6284 + $0x8] sm:$0xff]
        %v6287 = vld [vmem:[%s6284 + $0x10] sm:$0xff]
        %v6288 = vld [vmem:[%s6284 + $0x18] sm:$0xff]
        %v6289 = vld [vmem:[%s6284 + $0x20] sm:$0xff]
        %v6290 = vld [vmem:[%s6284 + $0x28] sm:$0xff]
        %v6291 = vld [vmem:[%s6284 + $0x30] sm:$0xff]
        %v6292 = vld [vmem:[%s6284 + $0x38] sm:$0xff]
        %v6293 = vld [vmem:[%s6284 + $0x40] sm:$0xff]
        %v6294 = vld [vmem:[%s6284 + $0x48] sm:$0xff]
        %v6295 = vld [vmem:[%s6284 + $0x50] sm:$0xff]
        %v6296 = vld [vmem:[%s6284 + $0x58] sm:$0xff]
        %v6297 = vld [vmem:[%s6284 + $0x60] sm:$0xff]
        %v6298 = vld [vmem:[%s6284 + $0x68] sm:$0xff]
        %v6299 = vld [vmem:[%s6284 + $0x70] sm:$0xff]
        %v6300 = vld [vmem:[%s6284 + $0x78] sm:$0xff]
        %6301 = vmatprep.subr.mxu0 0.0
        %6302 = vmatpush1.msra.mxu0 %v6285
        %6303 = vmatprep.subr.mxu0 0.0
        %6304 = vmatpush1.msra.mxu0 %v6286
        %6305 = vmatprep.subr.mxu0 0.0
        %6306 = vmatpush1.msra.mxu0 %v6287
        %6307 = vmatprep.subr.mxu0 0.0
        %6308 = vmatpush1.msra.mxu0 %v6288
        %6309 = vmatprep.subr.mxu0 0.0
        %6310 = vmatpush1.msra.mxu0 %v6289
        %6311 = vmatprep.subr.mxu0 0.0
        %6312 = vmatpush1.msra.mxu0 %v6290
        %6313 = vmatprep.subr.mxu0 0.0
        %6314 = vmatpush1.msra.mxu0 %v6291
        %6315 = vmatprep.subr.mxu0 0.0
        %6316 = vmatpush1.msra.mxu0 %v6292
        %6317 = vmatprep.subr.mxu0 0.0
        %6318 = vmatpush1.msra.mxu0 %v6293
        %6319 = vmatprep.subr.mxu0 0.0
        %6320 = vmatpush1.msra.mxu0 %v6294
        %6321 = vmatprep.subr.mxu0 0.0
        %6322 = vmatpush1.msra.mxu0 %v6295
        %6323 = vmatprep.subr.mxu0 0.0
        %6324 = vmatpush1.msra.mxu0 %v6296
        %6325 = vmatprep.subr.mxu0 0.0
        %6326 = vmatpush1.msra.mxu0 %v6297
        %6327 = vmatprep.subr.mxu0 0.0
        %6328 = vmatpush1.msra.mxu0 %v6298
        %6329 = vmatprep.subr.mxu0 0.0
        %6330 = vmatpush1.msra.mxu0 %v6299
        %6331 = vmatprep.subr.mxu0 0.0
        %6332 = vmatpush1.msra.mxu0 %v6300
        %6333 = vmatprep.subr.mxu0 0.0
        %6334 = vmatpush1.msra.mxu0 0.0
        %6335 = vmatprep.subr.mxu0 0.0
        %6336 = vmatpush1.msra.mxu0 0.0
        %6337 = vmatprep.subr.mxu0 0.0
        %6338 = vmatpush1.msra.mxu0 0.0
        %6339 = vmatprep.subr.mxu0 0.0
        %6340 = vmatpush1.msra.mxu0 0.0
        %6341 = vmatprep.subr.mxu0 0.0
        %6342 = vmatpush1.msra.mxu0 0.0
        %6343 = vmatprep.subr.mxu0 0.0
        %6344 = vmatpush1.msra.mxu0 0.0
        %6345 = vmatprep.subr.mxu0 0.0
        %6346 = vmatpush1.msra.mxu0 0.0
        %6347 = vmatprep.subr.mxu0 0.0
        %6348 = vmatpush1.msra.mxu0 0.0
        %6349 = vmatprep.subr.mxu0 0.0
        %6350 = vmatpush1.msra.mxu0 0.0
        %6351 = vmatprep.subr.mxu0 0.0
        %6352 = vmatpush1.msra.mxu0 0.0
        %6353 = vmatprep.subr.mxu0 0.0
        %6354 = vmatpush1.msra.mxu0 0.0
        %6355 = vmatprep.subr.mxu0 0.0
        %6356 = vmatpush1.msra.mxu0 0.0
        %6357 = vmatprep.subr.mxu0 0.0
        %6358 = vmatpush1.msra.mxu0 0.0
        %6359 = vmatprep.subr.mxu0 0.0
        %6360 = vmatpush1.msra.mxu0 0.0
        %6361 = vmatprep.subr.mxu0 0.0
        %6362 = vmatpush1.msra.mxu0 0.0
        %6363 = vmatprep.subr.mxu0 0.0
        %6364 = vmatpush1.msra.mxu0 0.0
        %6365 = vmatprep.mubr.f32.mxu0 0.0
        %6366 = vmatmul.mubr.f32.gmra.mrb[0].mxu0 %v6276
        %v6367 = vpop.f32.mrb[0].mxu0
        %v6368 = vadd.f32 0.0, %v6367
        %v6369 = vpop.f32.mrb[0].mxu0
        %6370 = vmatprep.mubr.f32.mxu0 0.0
        %6371 = vmatmul.mubr.f32.gmra.mrb[0].mxu0 %v6277
        %v6372 = vpop.f32.mrb[0].mxu0
        %v6373 = vadd.f32 0.0, %v6372
        %v6374 = vpop.f32.mrb[0].mxu0
        %6375 = vmatprep.mubr.f32.mxu0 0.0
        %6376 = vmatmul.mubr.f32.gmra.mrb[0].mxu0 %v6278
        %v6377 = vpop.f32.mrb[0].mxu0
        %v6378 = vadd.f32 0.0, %v6377
        %v6379 = vpop.f32.mrb[0].mxu0
        %6380 = vmatprep.mubr.f32.mxu0 0.0
        %6381 = vmatmul.mubr.f32.gmra.mrb[0].mxu0 %v6279
        %v6382 = vpop.f32.mrb[0].mxu0
        %v6383 = vadd.f32 0.0, %v6382
        %v6384 = vpop.f32.mrb[0].mxu0
        %6385 = vmatprep.mubr.f32.mxu0 0.0
        %6386 = vmatmul.mubr.f32.gmra.mrb[0].mxu0 %v6280
        %v6387 = vpop.f32.mrb[0].mxu0
        %v6388 = vadd.f32 0.0, %v6387
        %v6389 = vpop.f32.mrb[0].mxu0
        %6390 = vmatprep.mubr.f32.mxu0 0.0
        %6391 = vmatmul.mubr.f32.gmra.mrb[0].mxu0 %v6281
        %v6392 = vpop.f32.mrb[0].mxu0
        %v6393 = vadd.f32 0.0, %v6392
        %v6394 = vpop.f32.mrb[0].mxu0
        %6395 = vmatprep.mubr.f32.mxu0 0.0
        %6396 = vmatmul.mubr.f32.gmra.mrb[0].mxu0 %v6282
        %v6397 = vpop.f32.mrb[0].mxu0
        %v6398 = vadd.f32 0.0, %v6397
        %v6399 = vpop.f32.mrb[0].mxu0
        %6400 = vmatprep.mubr.f32.mxu0 0.0
        %6401 = vmatmul.mubr.f32.gmra.mrb[0].mxu0 %v6283
        %v6402 = vpop.f32.mrb[0].mxu0
        %v6403 = vadd.f32 0.0, %v6402
        %v6404 = vpop.f32.mrb[0].mxu0
        %6405 = vdwg.mxu0
        %v6406 = vadd.f32 %v5758, %v6368
        %v6407 = vadd.f32 %v5759, %v6373
        %v6408 = vadd.f32 %v5760, %v6378
        %v6409 = vadd.f32 %v5761, %v6383
        %v6410 = vadd.f32 %v5762, %v6388
        %v6411 = vadd.f32 %v5763, %v6393
        %v6412 = vadd.f32 %v5764, %v6398
        %v6413 = vadd.f32 %v5765, %v6403
        %s6414 = scalar_lea.vmem %s13, 2
        %v6415 = vld [vmem:[%s6414] sm:$0x1]
        %v6417 = vlaneseq
        %v6418 = vshrl.u32 %v6417, 7
        %v6419 = vsub.s32 0, %v6418
        %v6420 = vrot.slane %v6415, %v6419
        %v6422 = vadd.f32 %v6406, %v6420
        %v6423 = vadd.f32 %v6407, %v6420
        %v6424 = vadd.f32 %v6408, %v6420
        %v6425 = vadd.f32 %v6409, %v6420
        %v6426 = vadd.f32 %v6410, %v6420
        %v6427 = vadd.f32 %v6411, %v6420
        %v6428 = vadd.f32 %v6412, %v6420
        %v6429 = vadd.f32 %v6413, %v6420
        %s6430 = scalar_lea.vmem %s2, 3
        %v6431 = vld [vmem:[%s6430] sm:$0x1]
        %s6432 = scalar_lea.vmem %s3, 3
        %v6433 = vld [vmem:[%s6432] sm:$0x1]
        %v6434 = vsel %vm537, %v6422, 0.0
        %6435 = vadd.xlane.f32.xlu0 %v6434
        %v6436 = vpop.xlane.xlu0 %6435
        %v6437 = vsel %vm537, %v6423, 0.0
        %6438 = vadd.xlane.f32.xlu0 %v6437
        %v6439 = vpop.xlane.xlu0 %6438
        %v6440 = vsel %vm537, %v6424, 0.0
        %6441 = vadd.xlane.f32.xlu0 %v6440
        %v6442 = vpop.xlane.xlu0 %6441
        %v6443 = vsel %vm537, %v6425, 0.0
        %6444 = vadd.xlane.f32.xlu0 %v6443
        %v6445 = vpop.xlane.xlu0 %6444
        %v6446 = vsel %vm537, %v6426, 0.0
        %6447 = vadd.xlane.f32.xlu0 %v6446
        %v6448 = vpop.xlane.xlu0 %6447
        %v6449 = vsel %vm537, %v6427, 0.0
        %6450 = vadd.xlane.f32.xlu0 %v6449
        %v6451 = vpop.xlane.xlu0 %6450
        %v6452 = vsel %vm537, %v6428, 0.0
        %6453 = vadd.xlane.f32.xlu0 %v6452
        %v6454 = vpop.xlane.xlu0 %6453
        %v6455 = vsel %vm537, %v6429, 0.0
        %6456 = vadd.xlane.f32.xlu0 %v6455
        %v6457 = vpop.xlane.xlu0 %6456
        %v6458 = vmul.f32 %v6436, %v562
        %v6459 = vmul.f32 %v6439, %v562
        %v6460 = vmul.f32 %v6442, %v562
        %v6461 = vmul.f32 %v6445, %v562
        %v6462 = vmul.f32 %v6448, %v562
        %v6463 = vmul.f32 %v6451, %v562
        %v6464 = vmul.f32 %v6454, %v562
        %v6465 = vmul.f32 %v6457, %v562
        %v6466 = vsub.f32 %v6422, %v6458
        %v6467 = vsub.f32 %v6423, %v6459
        %v6468 = vsub.f32 %v6424, %v6460
        %v6469 = vsub.f32 %v6425, %v6461
        %v6470 = vsub.f32 %v6426, %v6462
        %v6471 = vsub.f32 %v6427, %v6463
        %v6472 = vsub.f32 %v6428, %v6464
        %v6473 = vsub.f32 %v6429, %v6465
        %v6474 = vmul.f32 %v6466, %v6466
        %v6475 = vmul.f32 %v6467, %v6467
        %v6476 = vmul.f32 %v6468, %v6468
        %v6477 = vmul.f32 %v6469, %v6469
        %v6478 = vmul.f32 %v6470, %v6470
        %v6479 = vmul.f32 %v6471, %v6471
        %v6480 = vmul.f32 %v6472, %v6472
        %v6481 = vmul.f32 %v6473, %v6473
        %v6482 = vsel %vm537, %v6474, 0.0
        %6483 = vadd.xlane.f32.xlu0 %v6482
        %v6484 = vpop.xlane.xlu0 %6483
        %v6485 = vsel %vm537, %v6475, 0.0
        %6486 = vadd.xlane.f32.xlu0 %v6485
        %v6487 = vpop.xlane.xlu0 %6486
        %v6488 = vsel %vm537, %v6476, 0.0
        %6489 = vadd.xlane.f32.xlu0 %v6488
        %v6490 = vpop.xlane.xlu0 %6489
        %v6491 = vsel %vm537, %v6477, 0.0
        %6492 = vadd.xlane.f32.xlu0 %v6491
        %v6493 = vpop.xlane.xlu0 %6492
        %v6494 = vsel %vm537, %v6478, 0.0
        %6495 = vadd.xlane.f32.xlu0 %v6494
        %v6496 = vpop.xlane.xlu0 %6495
        %v6497 = vsel %vm537, %v6479, 0.0
        %6498 = vadd.xlane.f32.xlu0 %v6497
        %v6499 = vpop.xlane.xlu0 %6498
        %v6500 = vsel %vm537, %v6480, 0.0
        %6501 = vadd.xlane.f32.xlu0 %v6500
        %v6502 = vpop.xlane.xlu0 %6501
        %v6503 = vsel %vm537, %v6481, 0.0
        %6504 = vadd.xlane.f32.xlu0 %v6503
        %v6505 = vpop.xlane.xlu0 %6504
        %v6506 = vmul.f32 %v6484, %v562
        %v6507 = vmul.f32 %v6487, %v562
        %v6508 = vmul.f32 %v6490, %v562
        %v6509 = vmul.f32 %v6493, %v562
        %v6510 = vmul.f32 %v6496, %v562
        %v6511 = vmul.f32 %v6499, %v562
        %v6512 = vmul.f32 %v6502, %v562
        %v6513 = vmul.f32 %v6505, %v562
        %v6514 = vadd.f32 %v6506, 1e-05
        %v6515 = vadd.f32 %v6507, 1e-05
        %v6516 = vadd.f32 %v6508, 1e-05
        %v6517 = vadd.f32 %v6509, 1e-05
        %v6518 = vadd.f32 %v6510, 1e-05
        %v6519 = vadd.f32 %v6511, 1e-05
        %v6520 = vadd.f32 %v6512, 1e-05
        %v6521 = vadd.f32 %v6513, 1e-05
        %v6522 = vrsqrt.pop %v6514
        %v6523 = vrsqrt.pop %v6515
        %v6524 = vrsqrt.pop %v6516
        %v6525 = vrsqrt.pop %v6517
        %v6526 = vrsqrt.pop %v6518
        %v6527 = vrsqrt.pop %v6519
        %v6528 = vrsqrt.pop %v6520
        %v6529 = vrsqrt.pop %v6521
        %v6530 = vmul.f32 %v6466, %v6522
        %v6531 = vmul.f32 %v6467, %v6523
        %v6532 = vmul.f32 %v6468, %v6524
        %v6533 = vmul.f32 %v6469, %v6525
        %v6534 = vmul.f32 %v6470, %v6526
        %v6535 = vmul.f32 %v6471, %v6527
        %v6536 = vmul.f32 %v6472, %v6528
        %v6537 = vmul.f32 %v6473, %v6529
        %v6539 = vlaneseq
        %v6540 = vshrl.u32 %v6539, 7
        %v6541 = vsub.s32 0, %v6540
        %v6542 = vrot.slane %v6431, %v6541
        %v6544 = vmul.f32 %v6530, %v6542
        %v6545 = vmul.f32 %v6531, %v6542
        %v6546 = vmul.f32 %v6532, %v6542
        %v6547 = vmul.f32 %v6533, %v6542
        %v6548 = vmul.f32 %v6534, %v6542
        %v6549 = vmul.f32 %v6535, %v6542
        %v6550 = vmul.f32 %v6536, %v6542
        %v6551 = vmul.f32 %v6537, %v6542
        %v6553 = vlaneseq
        %v6554 = vshrl.u32 %v6553, 7
        %v6555 = vsub.s32 0, %v6554
        %v6556 = vrot.slane %v6433, %v6555
        %v6558 = vadd.f32 %v6544, %v6556
        %v6559 = vadd.f32 %v6545, %v6556
        %v6560 = vadd.f32 %v6546, %v6556
        %v6561 = vadd.f32 %v6547, %v6556
        %v6562 = vadd.f32 %v6548, %v6556
        %v6563 = vadd.f32 %v6549, %v6556
        %v6564 = vadd.f32 %v6550, %v6556
        %v6565 = vadd.f32 %v6551, %v6556
        %s6566 = scalar_lea.vmem [#allocation4], 96
        %v6567 = vld [vmem:[%s6566] sm:$0xff]
        %v6568 = vld [vmem:[%s6566 + $0x8] sm:$0xff]
        %v6569 = vld [vmem:[%s6566 + $0x10] sm:$0xff]
        %v6570 = vld [vmem:[%s6566 + $0x18] sm:$0xff]
        %s6571 = scalar_lea.vmem %s5, 3
        %v6572 = vld [vmem:[%s6571] sm:$0x1]
        %v6574 = vlaneseq
        %v6575 = vshrl.u32 %v6574, 7
        %v6576 = vsub.s32 0, %v6575
        %v6577 = vrot.slane %v6572, %v6576
        %v6580 = vsel %vm537, %v6558, 0
        %v6583 = vsel %vm537, %v6559, 0
        %v6586 = vsel %vm537, %v6560, 0
        %v6589 = vsel %vm537, %v6561, 0
        %v6592 = vsel %vm537, %v6562, 0
        %v6595 = vsel %vm537, %v6563, 0
        %v6598 = vsel %vm537, %v6564, 0
        %v6601 = vsel %vm537, %v6565, 0
        %6603 = vmatprep.subr.mxu0 0.0
        %6604 = vmatpush1.msra.mxu0 %v6567
        %6605 = vmatprep.subr.mxu0 0.0
        %6606 = vmatpush1.msra.mxu0 %v6568
        %6607 = vmatprep.subr.mxu0 0.0
        %6608 = vmatpush1.msra.mxu0 %v6569
        %6609 = vmatprep.subr.mxu0 0.0
        %6610 = vmatpush1.msra.mxu0 %v6570
        %6611 = vmatprep.subr.mxu0 0.0
        %6612 = vmatpush1.msra.mxu0 0.0
        %6613 = vmatprep.subr.mxu0 0.0
        %6614 = vmatpush1.msra.mxu0 0.0
        %6615 = vmatprep.subr.mxu0 0.0
        %6616 = vmatpush1.msra.mxu0 0.0
        %6617 = vmatprep.subr.mxu0 0.0
        %6618 = vmatpush1.msra.mxu0 0.0
        %6619 = vmatprep.subr.mxu0 0.0
        %6620 = vmatpush1.msra.mxu0 0.0
        %6621 = vmatprep.subr.mxu0 0.0
        %6622 = vmatpush1.msra.mxu0 0.0
        %6623 = vmatprep.subr.mxu0 0.0
        %6624 = vmatpush1.msra.mxu0 0.0
        %6625 = vmatprep.subr.mxu0 0.0
        %6626 = vmatpush1.msra.mxu0 0.0
        %6627 = vmatprep.subr.mxu0 0.0
        %6628 = vmatpush1.msra.mxu0 0.0
        %6629 = vmatprep.subr.mxu0 0.0
        %6630 = vmatpush1.msra.mxu0 0.0
        %6631 = vmatprep.subr.mxu0 0.0
        %6632 = vmatpush1.msra.mxu0 0.0
        %6633 = vmatprep.subr.mxu0 0.0
        %6634 = vmatpush1.msra.mxu0 0.0
        %6635 = vmatprep.subr.mxu0 0.0
        %6636 = vmatpush1.msra.mxu0 0.0
        %6637 = vmatprep.subr.mxu0 0.0
        %6638 = vmatpush1.msra.mxu0 0.0
        %6639 = vmatprep.subr.mxu0 0.0
        %6640 = vmatpush1.msra.mxu0 0.0
        %6641 = vmatprep.subr.mxu0 0.0
        %6642 = vmatpush1.msra.mxu0 0.0
        %6643 = vmatprep.subr.mxu0 0.0
        %6644 = vmatpush1.msra.mxu0 0.0
        %6645 = vmatprep.subr.mxu0 0.0
        %6646 = vmatpush1.msra.mxu0 0.0
        %6647 = vmatprep.subr.mxu0 0.0
        %6648 = vmatpush1.msra.mxu0 0.0
        %6649 = vmatprep.subr.mxu0 0.0
        %6650 = vmatpush1.msra.mxu0 0.0
        %6651 = vmatprep.subr.mxu0 0.0
        %6652 = vmatpush1.msra.mxu0 0.0
        %6653 = vmatprep.subr.mxu0 0.0
        %6654 = vmatpush1.msra.mxu0 0.0
        %6655 = vmatprep.subr.mxu0 0.0
        %6656 = vmatpush1.msra.mxu0 0.0
        %6657 = vmatprep.subr.mxu0 0.0
        %6658 = vmatpush1.msra.mxu0 0.0
        %6659 = vmatprep.subr.mxu0 0.0
        %6660 = vmatpush1.msra.mxu0 0.0
        %6661 = vmatprep.subr.mxu0 0.0
        %6662 = vmatpush1.msra.mxu0 0.0
        %6663 = vmatprep.subr.mxu0 0.0
        %6664 = vmatpush1.msra.mxu0 0.0
        %6665 = vmatprep.subr.mxu0 0.0
        %6666 = vmatpush1.msra.mxu0 0.0
        %6667 = vmatprep.mubr.f32.mxu0 0.0
        %6668 = vmatmul.mubr.f32.gmra.mrb[0].mxu0 %v6580
        %v6669 = vpop.f32.mrb[0].mxu0
        %v6670 = vadd.f32 %v6577, %v6669
        %v6671 = vpop.f32.mrb[0].mxu0
        %6672 = vmatprep.mubr.f32.mxu0 0.0
        %6673 = vmatmul.mubr.f32.gmra.mrb[0].mxu0 %v6583
        %v6674 = vpop.f32.mrb[0].mxu0
        %v6675 = vadd.f32 %v6577, %v6674
        %v6676 = vpop.f32.mrb[0].mxu0
        %6677 = vmatprep.mubr.f32.mxu0 0.0
        %6678 = vmatmul.mubr.f32.gmra.mrb[0].mxu0 %v6586
        %v6679 = vpop.f32.mrb[0].mxu0
        %v6680 = vadd.f32 %v6577, %v6679
        %v6681 = vpop.f32.mrb[0].mxu0
        %6682 = vmatprep.mubr.f32.mxu0 0.0
        %6683 = vmatmul.mubr.f32.gmra.mrb[0].mxu0 %v6589
        %v6684 = vpop.f32.mrb[0].mxu0
        %v6685 = vadd.f32 %v6577, %v6684
        %v6686 = vpop.f32.mrb[0].mxu0
        %6687 = vmatprep.mubr.f32.mxu0 0.0
        %6688 = vmatmul.mubr.f32.gmra.mrb[0].mxu0 %v6592
        %v6689 = vpop.f32.mrb[0].mxu0
        %v6690 = vadd.f32 %v6577, %v6689
        %v6691 = vpop.f32.mrb[0].mxu0
        %6692 = vmatprep.mubr.f32.mxu0 0.0
        %6693 = vmatmul.mubr.f32.gmra.mrb[0].mxu0 %v6595
        %v6694 = vpop.f32.mrb[0].mxu0
        %v6695 = vadd.f32 %v6577, %v6694
        %v6696 = vpop.f32.mrb[0].mxu0
        %6697 = vmatprep.mubr.f32.mxu0 0.0
        %6698 = vmatmul.mubr.f32.gmra.mrb[0].mxu0 %v6598
        %v6699 = vpop.f32.mrb[0].mxu0
        %v6700 = vadd.f32 %v6577, %v6699
        %v6701 = vpop.f32.mrb[0].mxu0
        %6702 = vmatprep.mubr.f32.mxu0 0.0
        %6703 = vmatmul.mubr.f32.gmra.mrb[0].mxu0 %v6601
        %v6704 = vpop.f32.mrb[0].mxu0
        %v6705 = vadd.f32 %v6577, %v6704
        %v6706 = vpop.f32.mrb[0].mxu0
        %6707 = vdwg.mxu0
        %s6708 = scalar_lea.vmem [#allocation2], 384
        %v6709 = vld [vmem:[%s6708] sm:$0xff]
        %v6710 = vld [vmem:[%s6708 + $0x8] sm:$0xff]
        %v6711 = vld [vmem:[%s6708 + $0x10] sm:$0xff]
        %v6712 = vld [vmem:[%s6708 + $0x18] sm:$0xff]
        %v6713 = vld [vmem:[%s6708 + $0x20] sm:$0xff]
        %v6714 = vld [vmem:[%s6708 + $0x28] sm:$0xff]
        %v6715 = vld [vmem:[%s6708 + $0x30] sm:$0xff]
        %v6716 = vld [vmem:[%s6708 + $0x38] sm:$0xff]
        %6725 = vrot.lane.b32.xlu0 %v6670, 96
        %v6726 = vpop.permute.xlu0 %6725
        %6727 = vrot.lane.b32.xlu0 %v6675, 96
        %v6728 = vpop.permute.xlu0 %6727
        %6729 = vrot.lane.b32.xlu0 %v6680, 96
        %v6730 = vpop.permute.xlu0 %6729
        %6731 = vrot.lane.b32.xlu0 %v6685, 96
        %v6732 = vpop.permute.xlu0 %6731
        %6733 = vrot.lane.b32.xlu0 %v6690, 96
        %v6734 = vpop.permute.xlu0 %6733
        %6735 = vrot.lane.b32.xlu0 %v6695, 96
        %v6736 = vpop.permute.xlu0 %6735
        %6737 = vrot.lane.b32.xlu0 %v6700, 96
        %v6738 = vpop.permute.xlu0 %6737
        %6739 = vrot.lane.b32.xlu0 %v6705, 96
        %v6740 = vpop.permute.xlu0 %6739
        %v6741 = vsel %vm843, %v6670, 0
        %v6743 = vsel %vm843, %v6675, 0
        %v6745 = vsel %vm843, %v6680, 0
        %v6747 = vsel %vm843, %v6685, 0
        %v6749 = vsel %vm843, %v6690, 0
        %v6751 = vsel %vm843, %v6695, 0
        %v6753 = vsel %vm843, %v6700, 0
        %v6755 = vsel %vm843, %v6705, 0
        %v6757 = vsel %vm843, %v6726, 0
        %v6759 = vsel %vm843, %v6728, 0
        %v6761 = vsel %vm843, %v6730, 0
        %v6763 = vsel %vm843, %v6732, 0
        %v6765 = vsel %vm843, %v6734, 0
        %v6767 = vsel %vm843, %v6736, 0
        %v6769 = vsel %vm843, %v6738, 0
        %v6771 = vsel %vm843, %v6740, 0
        %6773 = vmatprep.subr.mxu0 0.0
        %6774 = vmatpush1.xpose.msra.mxu0 %v6757
        %6775 = vmatprep.subr.mxu0 0.0
        %6776 = vmatpush1.xpose.msra.mxu0 %v6759
        %6777 = vmatprep.subr.mxu0 0.0
        %6778 = vmatpush1.xpose.msra.mxu0 %v6761
        %6779 = vmatprep.subr.mxu0 0.0
        %6780 = vmatpush1.xpose.msra.mxu0 %v6763
        %6781 = vmatprep.subr.mxu0 0.0
        %6782 = vmatpush1.xpose.msra.mxu0 %v6765
        %6783 = vmatprep.subr.mxu0 0.0
        %6784 = vmatpush1.xpose.msra.mxu0 %v6767
        %6785 = vmatprep.subr.mxu0 0.0
        %6786 = vmatpush1.xpose.msra.mxu0 %v6769
        %6787 = vmatprep.subr.mxu0 0.0
        %6788 = vmatpush1.xpose.msra.mxu0 %v6771
        %6789 = vmatprep.subr.mxu0 0.0
        %6790 = vmatpush1.xpose.msra.mxu0 0.0
        %6791 = vmatprep.subr.mxu0 0.0
        %6792 = vmatpush1.xpose.msra.mxu0 0.0
        %6793 = vmatprep.subr.mxu0 0.0
        %6794 = vmatpush1.xpose.msra.mxu0 0.0
        %6795 = vmatprep.subr.mxu0 0.0
        %6796 = vmatpush1.xpose.msra.mxu0 0.0
        %6797 = vmatprep.subr.mxu0 0.0
        %6798 = vmatpush1.xpose.msra.mxu0 0.0
        %6799 = vmatprep.subr.mxu0 0.0
        %6800 = vmatpush1.xpose.msra.mxu0 0.0
        %6801 = vmatprep.subr.mxu0 0.0
        %6802 = vmatpush1.xpose.msra.mxu0 0.0
        %6803 = vmatprep.subr.mxu0 0.0
        %6804 = vmatpush1.xpose.msra.mxu0 0.0
        %6805 = vmatprep.subr.mxu0 0.0
        %6806 = vmatpush1.xpose.msra.mxu0 0.0
        %6807 = vmatprep.subr.mxu0 0.0
        %6808 = vmatpush1.xpose.msra.mxu0 0.0
        %6809 = vmatprep.subr.mxu0 0.0
        %6810 = vmatpush1.xpose.msra.mxu0 0.0
        %6811 = vmatprep.subr.mxu0 0.0
        %6812 = vmatpush1.xpose.msra.mxu0 0.0
        %6813 = vmatprep.subr.mxu0 0.0
        %6814 = vmatpush1.xpose.msra.mxu0 0.0
        %6815 = vmatprep.subr.mxu0 0.0
        %6816 = vmatpush1.xpose.msra.mxu0 0.0
        %6817 = vmatprep.subr.mxu0 0.0
        %6818 = vmatpush1.xpose.msra.mxu0 0.0
        %6819 = vmatprep.subr.mxu0 0.0
        %6820 = vmatpush1.xpose.msra.mxu0 0.0
        %6821 = vmatprep.subr.mxu0 0.0
        %6822 = vmatpush1.xpose.msra.mxu0 0.0
        %6823 = vmatprep.subr.mxu0 0.0
        %6824 = vmatpush1.xpose.msra.mxu0 0.0
        %6825 = vmatprep.subr.mxu0 0.0
        %6826 = vmatpush1.xpose.msra.mxu0 0.0
        %6827 = vmatprep.subr.mxu0 0.0
        %6828 = vmatpush1.xpose.msra.mxu0 0.0
        %6829 = vmatprep.subr.mxu0 0.0
        %6830 = vmatpush1.xpose.msra.mxu0 0.0
        %6831 = vmatprep.subr.mxu0 0.0
        %6832 = vmatpush1.xpose.msra.mxu0 0.0
        %6833 = vmatprep.subr.mxu0 0.0
        %6834 = vmatpush1.xpose.msra.mxu0 0.0
        %6835 = vmatprep.subr.mxu0 0.0
        %6836 = vmatpush1.xpose.msra.mxu0 0.0
        %6837 = vmatprep.mubr.f32.mxu0 0.0
        %6838 = vmatmul.mubr.f32.gmra.mrb[0].mxu0 %v6741
        %v6839 = vpop.f32.mrb[0].mxu0
        %v6840 = vadd.f32 %v6709, %v6839
        %v6841 = vpop.f32.mrb[0].mxu0
        %6842 = vmatprep.mubr.f32.mxu0 0.0
        %6843 = vmatmul.mubr.f32.gmra.mrb[0].mxu0 %v6743
        %v6844 = vpop.f32.mrb[0].mxu0
        %v6845 = vadd.f32 %v6710, %v6844
        %v6846 = vpop.f32.mrb[0].mxu0
        %6847 = vmatprep.mubr.f32.mxu0 0.0
        %6848 = vmatmul.mubr.f32.gmra.mrb[0].mxu0 %v6745
        %v6849 = vpop.f32.mrb[0].mxu0
        %v6850 = vadd.f32 %v6711, %v6849
        %v6851 = vpop.f32.mrb[0].mxu0
        %6852 = vmatprep.mubr.f32.mxu0 0.0
        %6853 = vmatmul.mubr.f32.gmra.mrb[0].mxu0 %v6747
        %v6854 = vpop.f32.mrb[0].mxu0
        %v6855 = vadd.f32 %v6712, %v6854
        %v6856 = vpop.f32.mrb[0].mxu0
        %6857 = vmatprep.mubr.f32.mxu0 0.0
        %6858 = vmatmul.mubr.f32.gmra.mrb[0].mxu0 %v6749
        %v6859 = vpop.f32.mrb[0].mxu0
        %v6860 = vadd.f32 %v6713, %v6859
        %v6861 = vpop.f32.mrb[0].mxu0
        %6862 = vmatprep.mubr.f32.mxu0 0.0
        %6863 = vmatmul.mubr.f32.gmra.mrb[0].mxu0 %v6751
        %v6864 = vpop.f32.mrb[0].mxu0
        %v6865 = vadd.f32 %v6714, %v6864
        %v6866 = vpop.f32.mrb[0].mxu0
        %6867 = vmatprep.mubr.f32.mxu0 0.0
        %6868 = vmatmul.mubr.f32.gmra.mrb[0].mxu0 %v6753
        %v6869 = vpop.f32.mrb[0].mxu0
        %v6870 = vadd.f32 %v6715, %v6869
        %v6871 = vpop.f32.mrb[0].mxu0
        %6872 = vmatprep.mubr.f32.mxu0 0.0
        %6873 = vmatmul.mubr.f32.gmra.mrb[0].mxu0 %v6755
        %v6874 = vpop.f32.mrb[0].mxu0
        %v6875 = vadd.f32 %v6716, %v6874
        %v6876 = vpop.f32.mrb[0].mxu0
        %6877 = vdwg.mxu0
        %v6878 = vsel %vm981, %v6840, -inf
        %6879 = vmax.xlane.f32.xlu0 %v6878
        %v6880 = vpop.xlane.xlu0 %6879
        %v6881 = vsel %vm981, %v6845, -inf
        %6882 = vmax.xlane.f32.xlu0 %v6881
        %v6883 = vpop.xlane.xlu0 %6882
        %v6884 = vsel %vm981, %v6850, -inf
        %6885 = vmax.xlane.f32.xlu0 %v6884
        %v6886 = vpop.xlane.xlu0 %6885
        %v6887 = vsel %vm981, %v6855, -inf
        %6888 = vmax.xlane.f32.xlu0 %v6887
        %v6889 = vpop.xlane.xlu0 %6888
        %v6890 = vsel %vm981, %v6860, -inf
        %6891 = vmax.xlane.f32.xlu0 %v6890
        %v6892 = vpop.xlane.xlu0 %6891
        %v6893 = vsel %vm981, %v6865, -inf
        %6894 = vmax.xlane.f32.xlu0 %v6893
        %v6895 = vpop.xlane.xlu0 %6894
        %v6896 = vsel %vm981, %v6870, -inf
        %6897 = vmax.xlane.f32.xlu0 %v6896
        %v6898 = vpop.xlane.xlu0 %6897
        %v6899 = vsel %vm981, %v6875, -inf
        %6900 = vmax.xlane.f32.xlu0 %v6899
        %v6901 = vpop.xlane.xlu0 %6900
        %v6902 = vsub.f32 %v6840, %v6880
        %v6903 = vsub.f32 %v6845, %v6883
        %v6904 = vsub.f32 %v6850, %v6886
        %v6905 = vsub.f32 %v6855, %v6889
        %v6906 = vsub.f32 %v6860, %v6892
        %v6907 = vsub.f32 %v6865, %v6895
        %v6908 = vsub.f32 %v6870, %v6898
        %v6909 = vsub.f32 %v6875, %v6901
        %v6910 = vmul.f32 %v6902, 1.442695
        %v6911 = vpow.pop %v6910
        %v6912 = vmul.f32 %v6903, 1.442695
        %v6913 = vpow.pop %v6912
        %v6914 = vmul.f32 %v6904, 1.442695
        %v6915 = vpow.pop %v6914
        %v6916 = vmul.f32 %v6905, 1.442695
        %v6917 = vpow.pop %v6916
        %v6918 = vmul.f32 %v6906, 1.442695
        %v6919 = vpow.pop %v6918
        %v6920 = vmul.f32 %v6907, 1.442695
        %v6921 = vpow.pop %v6920
        %v6922 = vmul.f32 %v6908, 1.442695
        %v6923 = vpow.pop %v6922
        %v6924 = vmul.f32 %v6909, 1.442695
        %v6925 = vpow.pop %v6924
        %v6926 = vsel %vm981, %v6911, 0.0
        %6927 = vadd.xlane.f32.xlu0 %v6926
        %v6928 = vpop.xlane.xlu0 %6927
        %v6929 = vsel %vm981, %v6913, 0.0
        %6930 = vadd.xlane.f32.xlu0 %v6929
        %v6931 = vpop.xlane.xlu0 %6930
        %v6932 = vsel %vm981, %v6915, 0.0
        %6933 = vadd.xlane.f32.xlu0 %v6932
        %v6934 = vpop.xlane.xlu0 %6933
        %v6935 = vsel %vm981, %v6917, 0.0
        %6936 = vadd.xlane.f32.xlu0 %v6935
        %v6937 = vpop.xlane.xlu0 %6936
        %v6938 = vsel %vm981, %v6919, 0.0
        %6939 = vadd.xlane.f32.xlu0 %v6938
        %v6940 = vpop.xlane.xlu0 %6939
        %v6941 = vsel %vm981, %v6921, 0.0
        %6942 = vadd.xlane.f32.xlu0 %v6941
        %v6943 = vpop.xlane.xlu0 %6942
        %v6944 = vsel %vm981, %v6923, 0.0
        %6945 = vadd.xlane.f32.xlu0 %v6944
        %v6946 = vpop.xlane.xlu0 %6945
        %v6947 = vsel %vm981, %v6925, 0.0
        %6948 = vadd.xlane.f32.xlu0 %v6947
        %v6949 = vpop.xlane.xlu0 %6948
        %v6950 = vrcp.pop %v6928
        %v6951 = vmul.f32 %v6911, %v6950
        %v6952 = vrcp.pop %v6931
        %v6953 = vmul.f32 %v6913, %v6952
        %v6954 = vrcp.pop %v6934
        %v6955 = vmul.f32 %v6915, %v6954
        %v6956 = vrcp.pop %v6937
        %v6957 = vmul.f32 %v6917, %v6956
        %v6958 = vrcp.pop %v6940
        %v6959 = vmul.f32 %v6919, %v6958
        %v6960 = vrcp.pop %v6943
        %v6961 = vmul.f32 %v6921, %v6960
        %v6962 = vrcp.pop %v6946
        %v6963 = vmul.f32 %v6923, %v6962
        %v6964 = vrcp.pop %v6949
        %v6965 = vmul.f32 %v6925, %v6964
        %s6966 = scalar_lea.vmem [#allocation6], 192
        %v6967 = vld [vmem:[%s6966] sm:$0xff]
        %v6968 = vld [vmem:[%s6966 + $0x8] sm:$0xff]
        %v6969 = vld [vmem:[%s6966 + $0x10] sm:$0xff]
        %v6970 = vld [vmem:[%s6966 + $0x18] sm:$0xff]
        %6971 = vmatprep.subr.mxu0 0.0
        %6972 = vmatpush1.msra.mxu0 %v6967
        %6973 = vmatprep.subr.mxu0 0.0
        %6974 = vmatpush1.msra.mxu0 %v6968
        %6975 = vmatprep.subr.mxu0 0.0
        %6976 = vmatpush1.msra.mxu0 %v6969
        %6977 = vmatprep.subr.mxu0 0.0
        %6978 = vmatpush1.msra.mxu0 %v6970
        %6979 = vmatprep.subr.mxu0 0.0
        %6980 = vmatpush1.msra.mxu0 0.0
        %6981 = vmatprep.subr.mxu0 0.0
        %6982 = vmatpush1.msra.mxu0 0.0
        %6983 = vmatprep.subr.mxu0 0.0
        %6984 = vmatpush1.msra.mxu0 0.0
        %6985 = vmatprep.subr.mxu0 0.0
        %6986 = vmatpush1.msra.mxu0 0.0
        %6987 = vmatprep.subr.mxu0 0.0
        %6988 = vmatpush1.msra.mxu0 0.0
        %6989 = vmatprep.subr.mxu0 0.0
        %6990 = vmatpush1.msra.mxu0 0.0
        %6991 = vmatprep.subr.mxu0 0.0
        %6992 = vmatpush1.msra.mxu0 0.0
        %6993 = vmatprep.subr.mxu0 0.0
        %6994 = vmatpush1.msra.mxu0 0.0
        %6995 = vmatprep.subr.mxu0 0.0
        %6996 = vmatpush1.msra.mxu0 0.0
        %6997 = vmatprep.subr.mxu0 0.0
        %6998 = vmatpush1.msra.mxu0 0.0
        %6999 = vmatprep.subr.mxu0 0.0
        %7000 = vmatpush1.msra.mxu0 0.0
        %7001 = vmatprep.subr.mxu0 0.0
        %7002 = vmatpush1.msra.mxu0 0.0
        %7003 = vmatprep.subr.mxu0 0.0
        %7004 = vmatpush1.msra.mxu0 0.0
        %7005 = vmatprep.subr.mxu0 0.0
        %7006 = vmatpush1.msra.mxu0 0.0
        %7007 = vmatprep.subr.mxu0 0.0
        %7008 = vmatpush1.msra.mxu0 0.0
        %7009 = vmatprep.subr.mxu0 0.0
        %7010 = vmatpush1.msra.mxu0 0.0
        %7011 = vmatprep.subr.mxu0 0.0
        %7012 = vmatpush1.msra.mxu0 0.0
        %7013 = vmatprep.subr.mxu0 0.0
        %7014 = vmatpush1.msra.mxu0 0.0
        %7015 = vmatprep.subr.mxu0 0.0
        %7016 = vmatpush1.msra.mxu0 0.0
        %7017 = vmatprep.subr.mxu0 0.0
        %7018 = vmatpush1.msra.mxu0 0.0
        %7019 = vmatprep.subr.mxu0 0.0
        %7020 = vmatpush1.msra.mxu0 0.0
        %7021 = vmatprep.subr.mxu0 0.0
        %7022 = vmatpush1.msra.mxu0 0.0
        %7023 = vmatprep.subr.mxu0 0.0
        %7024 = vmatpush1.msra.mxu0 0.0
        %7025 = vmatprep.subr.mxu0 0.0
        %7026 = vmatpush1.msra.mxu0 0.0
        %7027 = vmatprep.subr.mxu0 0.0
        %7028 = vmatpush1.msra.mxu0 0.0
        %7029 = vmatprep.subr.mxu0 0.0
        %7030 = vmatpush1.msra.mxu0 0.0
        %7031 = vmatprep.subr.mxu0 0.0
        %7032 = vmatpush1.msra.mxu0 0.0
        %7033 = vmatprep.subr.mxu0 0.0
        %7034 = vmatpush1.msra.mxu0 0.0
        %7035 = vmatprep.mubr.f32.mxu0 0.0
        %7036 = vmatmul.mubr.f32.gmra.mrb[0].mxu0 %v6580
        %v7037 = vpop.f32.mrb[0].mxu0
        %v7038 = vadd.f32 0.0, %v7037
        %v7039 = vpop.f32.mrb[0].mxu0
        %7040 = vmatprep.mubr.f32.mxu0 0.0
        %7041 = vmatmul.mubr.f32.gmra.mrb[0].mxu0 %v6583
        %v7042 = vpop.f32.mrb[0].mxu0
        %v7043 = vadd.f32 0.0, %v7042
        %v7044 = vpop.f32.mrb[0].mxu0
        %7045 = vmatprep.mubr.f32.mxu0 0.0
        %7046 = vmatmul.mubr.f32.gmra.mrb[0].mxu0 %v6586
        %v7047 = vpop.f32.mrb[0].mxu0
        %v7048 = vadd.f32 0.0, %v7047
        %v7049 = vpop.f32.mrb[0].mxu0
        %7050 = vmatprep.mubr.f32.mxu0 0.0
        %7051 = vmatmul.mubr.f32.gmra.mrb[0].mxu0 %v6589
        %v7052 = vpop.f32.mrb[0].mxu0
        %v7053 = vadd.f32 0.0, %v7052
        %v7054 = vpop.f32.mrb[0].mxu0
        %7055 = vmatprep.mubr.f32.mxu0 0.0
        %7056 = vmatmul.mubr.f32.gmra.mrb[0].mxu0 %v6592
        %v7057 = vpop.f32.mrb[0].mxu0
        %v7058 = vadd.f32 0.0, %v7057
        %v7059 = vpop.f32.mrb[0].mxu0
        %7060 = vmatprep.mubr.f32.mxu0 0.0
        %7061 = vmatmul.mubr.f32.gmra.mrb[0].mxu0 %v6595
        %v7062 = vpop.f32.mrb[0].mxu0
        %v7063 = vadd.f32 0.0, %v7062
        %v7064 = vpop.f32.mrb[0].mxu0
        %7065 = vmatprep.mubr.f32.mxu0 0.0
        %7066 = vmatmul.mubr.f32.gmra.mrb[0].mxu0 %v6598
        %v7067 = vpop.f32.mrb[0].mxu0
        %v7068 = vadd.f32 0.0, %v7067
        %v7069 = vpop.f32.mrb[0].mxu0
        %7070 = vmatprep.mubr.f32.mxu0 0.0
        %7071 = vmatmul.mubr.f32.gmra.mrb[0].mxu0 %v6601
        %v7072 = vpop.f32.mrb[0].mxu0
        %v7073 = vadd.f32 0.0, %v7072
        %v7074 = vpop.f32.mrb[0].mxu0
        %7075 = vdwg.mxu0
        %s7076 = scalar_lea.vmem [#allocation2], 448
        %v7077 = vld [vmem:[%s7076] sm:$0xff]
        %v7078 = vld [vmem:[%s7076 + $0x8] sm:$0xff]
        %v7079 = vld [vmem:[%s7076 + $0x10] sm:$0xff]
        %v7080 = vld [vmem:[%s7076 + $0x18] sm:$0xff]
        %v7081 = vld [vmem:[%s7076 + $0x20] sm:$0xff]
        %v7082 = vld [vmem:[%s7076 + $0x28] sm:$0xff]
        %v7083 = vld [vmem:[%s7076 + $0x30] sm:$0xff]
        %v7084 = vld [vmem:[%s7076 + $0x38] sm:$0xff]
        %7085 = vrot.lane.b32.xlu0 %v6670, 112
        %v7086 = vpop.permute.xlu0 %7085
        %7087 = vrot.lane.b32.xlu0 %v6675, 112
        %v7088 = vpop.permute.xlu0 %7087
        %7089 = vrot.lane.b32.xlu0 %v6680, 112
        %v7090 = vpop.permute.xlu0 %7089
        %7091 = vrot.lane.b32.xlu0 %v6685, 112
        %v7092 = vpop.permute.xlu0 %7091
        %7093 = vrot.lane.b32.xlu0 %v6690, 112
        %v7094 = vpop.permute.xlu0 %7093
        %7095 = vrot.lane.b32.xlu0 %v6695, 112
        %v7096 = vpop.permute.xlu0 %7095
        %7097 = vrot.lane.b32.xlu0 %v6700, 112
        %v7098 = vpop.permute.xlu0 %7097
        %7099 = vrot.lane.b32.xlu0 %v6705, 112
        %v7100 = vpop.permute.xlu0 %7099
        %7101 = vrot.lane.b32.xlu0 %v6670, 80
        %v7102 = vpop.permute.xlu0 %7101
        %7103 = vrot.lane.b32.xlu0 %v6675, 80
        %v7104 = vpop.permute.xlu0 %7103
        %7105 = vrot.lane.b32.xlu0 %v6680, 80
        %v7106 = vpop.permute.xlu0 %7105
        %7107 = vrot.lane.b32.xlu0 %v6685, 80
        %v7108 = vpop.permute.xlu0 %7107
        %7109 = vrot.lane.b32.xlu0 %v6690, 80
        %v7110 = vpop.permute.xlu0 %7109
        %7111 = vrot.lane.b32.xlu0 %v6695, 80
        %v7112 = vpop.permute.xlu0 %7111
        %7113 = vrot.lane.b32.xlu0 %v6700, 80
        %v7114 = vpop.permute.xlu0 %7113
        %7115 = vrot.lane.b32.xlu0 %v6705, 80
        %v7116 = vpop.permute.xlu0 %7115
        %v7117 = vsel %vm843, %v7086, 0
        %v7119 = vsel %vm843, %v7088, 0
        %v7121 = vsel %vm843, %v7090, 0
        %v7123 = vsel %vm843, %v7092, 0
        %v7125 = vsel %vm843, %v7094, 0
        %v7127 = vsel %vm843, %v7096, 0
        %v7129 = vsel %vm843, %v7098, 0
        %v7131 = vsel %vm843, %v7100, 0
        %v7133 = vsel %vm843, %v7102, 0
        %v7135 = vsel %vm843, %v7104, 0
        %v7137 = vsel %vm843, %v7106, 0
        %v7139 = vsel %vm843, %v7108, 0
        %v7141 = vsel %vm843, %v7110, 0
        %v7143 = vsel %vm843, %v7112, 0
        %v7145 = vsel %vm843, %v7114, 0
        %v7147 = vsel %vm843, %v7116, 0
        %7149 = vmatprep.subr.mxu0 0.0
        %7150 = vmatpush1.xpose.msra.mxu0 %v7133
        %7151 = vmatprep.subr.mxu0 0.0
        %7152 = vmatpush1.xpose.msra.mxu0 %v7135
        %7153 = vmatprep.subr.mxu0 0.0
        %7154 = vmatpush1.xpose.msra.mxu0 %v7137
        %7155 = vmatprep.subr.mxu0 0.0
        %7156 = vmatpush1.xpose.msra.mxu0 %v7139
        %7157 = vmatprep.subr.mxu0 0.0
        %7158 = vmatpush1.xpose.msra.mxu0 %v7141
        %7159 = vmatprep.subr.mxu0 0.0
        %7160 = vmatpush1.xpose.msra.mxu0 %v7143
        %7161 = vmatprep.subr.mxu0 0.0
        %7162 = vmatpush1.xpose.msra.mxu0 %v7145
        %7163 = vmatprep.subr.mxu0 0.0
        %7164 = vmatpush1.xpose.msra.mxu0 %v7147
        %7165 = vmatprep.subr.mxu0 0.0
        %7166 = vmatpush1.xpose.msra.mxu0 0.0
        %7167 = vmatprep.subr.mxu0 0.0
        %7168 = vmatpush1.xpose.msra.mxu0 0.0
        %7169 = vmatprep.subr.mxu0 0.0
        %7170 = vmatpush1.xpose.msra.mxu0 0.0
        %7171 = vmatprep.subr.mxu0 0.0
        %7172 = vmatpush1.xpose.msra.mxu0 0.0
        %7173 = vmatprep.subr.mxu0 0.0
        %7174 = vmatpush1.xpose.msra.mxu0 0.0
        %7175 = vmatprep.subr.mxu0 0.0
        %7176 = vmatpush1.xpose.msra.mxu0 0.0
        %7177 = vmatprep.subr.mxu0 0.0
        %7178 = vmatpush1.xpose.msra.mxu0 0.0
        %7179 = vmatprep.subr.mxu0 0.0
        %7180 = vmatpush1.xpose.msra.mxu0 0.0
        %7181 = vmatprep.subr.mxu0 0.0
        %7182 = vmatpush1.xpose.msra.mxu0 0.0
        %7183 = vmatprep.subr.mxu0 0.0
        %7184 = vmatpush1.xpose.msra.mxu0 0.0
        %7185 = vmatprep.subr.mxu0 0.0
        %7186 = vmatpush1.xpose.msra.mxu0 0.0
        %7187 = vmatprep.subr.mxu0 0.0
        %7188 = vmatpush1.xpose.msra.mxu0 0.0
        %7189 = vmatprep.subr.mxu0 0.0
        %7190 = vmatpush1.xpose.msra.mxu0 0.0
        %7191 = vmatprep.subr.mxu0 0.0
        %7192 = vmatpush1.xpose.msra.mxu0 0.0
        %7193 = vmatprep.subr.mxu0 0.0
        %7194 = vmatpush1.xpose.msra.mxu0 0.0
        %7195 = vmatprep.subr.mxu0 0.0
        %7196 = vmatpush1.xpose.msra.mxu0 0.0
        %7197 = vmatprep.subr.mxu0 0.0
        %7198 = vmatpush1.xpose.msra.mxu0 0.0
        %7199 = vmatprep.subr.mxu0 0.0
        %7200 = vmatpush1.xpose.msra.mxu0 0.0
        %7201 = vmatprep.subr.mxu0 0.0
        %7202 = vmatpush1.xpose.msra.mxu0 0.0
        %7203 = vmatprep.subr.mxu0 0.0
        %7204 = vmatpush1.xpose.msra.mxu0 0.0
        %7205 = vmatprep.subr.mxu0 0.0
        %7206 = vmatpush1.xpose.msra.mxu0 0.0
        %7207 = vmatprep.subr.mxu0 0.0
        %7208 = vmatpush1.xpose.msra.mxu0 0.0
        %7209 = vmatprep.subr.mxu0 0.0
        %7210 = vmatpush1.xpose.msra.mxu0 0.0
        %7211 = vmatprep.subr.mxu0 0.0
        %7212 = vmatpush1.xpose.msra.mxu0 0.0
        %7213 = vmatprep.mubr.f32.mxu0 0.0
        %7214 = vmatmul.mubr.f32.gmra.mrb[0].mxu0 %v7117
        %v7215 = vpop.f32.mrb[0].mxu0
        %v7216 = vadd.f32 %v7077, %v7215
        %v7217 = vpop.f32.mrb[0].mxu0
        %7218 = vmatprep.mubr.f32.mxu0 0.0
        %7219 = vmatmul.mubr.f32.gmra.mrb[0].mxu0 %v7119
        %v7220 = vpop.f32.mrb[0].mxu0
        %v7221 = vadd.f32 %v7078, %v7220
        %v7222 = vpop.f32.mrb[0].mxu0
        %7223 = vmatprep.mubr.f32.mxu0 0.0
        %7224 = vmatmul.mubr.f32.gmra.mrb[0].mxu0 %v7121
        %v7225 = vpop.f32.mrb[0].mxu0
        %v7226 = vadd.f32 %v7079, %v7225
        %v7227 = vpop.f32.mrb[0].mxu0
        %7228 = vmatprep.mubr.f32.mxu0 0.0
        %7229 = vmatmul.mubr.f32.gmra.mrb[0].mxu0 %v7123
        %v7230 = vpop.f32.mrb[0].mxu0
        %v7231 = vadd.f32 %v7080, %v7230
        %v7232 = vpop.f32.mrb[0].mxu0
        %7233 = vmatprep.mubr.f32.mxu0 0.0
        %7234 = vmatmul.mubr.f32.gmra.mrb[0].mxu0 %v7125
        %v7235 = vpop.f32.mrb[0].mxu0
        %v7236 = vadd.f32 %v7081, %v7235
        %v7237 = vpop.f32.mrb[0].mxu0
        %7238 = vmatprep.mubr.f32.mxu0 0.0
        %7239 = vmatmul.mubr.f32.gmra.mrb[0].mxu0 %v7127
        %v7240 = vpop.f32.mrb[0].mxu0
        %v7241 = vadd.f32 %v7082, %v7240
        %v7242 = vpop.f32.mrb[0].mxu0
        %7243 = vmatprep.mubr.f32.mxu0 0.0
        %7244 = vmatmul.mubr.f32.gmra.mrb[0].mxu0 %v7129
        %v7245 = vpop.f32.mrb[0].mxu0
        %v7246 = vadd.f32 %v7083, %v7245
        %v7247 = vpop.f32.mrb[0].mxu0
        %7248 = vmatprep.mubr.f32.mxu0 0.0
        %7249 = vmatmul.mubr.f32.gmra.mrb[0].mxu0 %v7131
        %v7250 = vpop.f32.mrb[0].mxu0
        %v7251 = vadd.f32 %v7084, %v7250
        %v7252 = vpop.f32.mrb[0].mxu0
        %7253 = vdwg.mxu0
        %v7254 = vsel %vm981, %v7216, -inf
        %7255 = vmax.xlane.f32.xlu0 %v7254
        %v7256 = vpop.xlane.xlu0 %7255
        %v7257 = vsel %vm981, %v7221, -inf
        %7258 = vmax.xlane.f32.xlu0 %v7257
        %v7259 = vpop.xlane.xlu0 %7258
        %v7260 = vsel %vm981, %v7226, -inf
        %7261 = vmax.xlane.f32.xlu0 %v7260
        %v7262 = vpop.xlane.xlu0 %7261
        %v7263 = vsel %vm981, %v7231, -inf
        %7264 = vmax.xlane.f32.xlu0 %v7263
        %v7265 = vpop.xlane.xlu0 %7264
        %v7266 = vsel %vm981, %v7236, -inf
        %7267 = vmax.xlane.f32.xlu0 %v7266
        %v7268 = vpop.xlane.xlu0 %7267
        %v7269 = vsel %vm981, %v7241, -inf
        %7270 = vmax.xlane.f32.xlu0 %v7269
        %v7271 = vpop.xlane.xlu0 %7270
        %v7272 = vsel %vm981, %v7246, -inf
        %7273 = vmax.xlane.f32.xlu0 %v7272
        %v7274 = vpop.xlane.xlu0 %7273
        %v7275 = vsel %vm981, %v7251, -inf
        %7276 = vmax.xlane.f32.xlu0 %v7275
        %v7277 = vpop.xlane.xlu0 %7276
        %v7278 = vsub.f32 %v7216, %v7256
        %v7279 = vsub.f32 %v7221, %v7259
        %v7280 = vsub.f32 %v7226, %v7262
        %v7281 = vsub.f32 %v7231, %v7265
        %v7282 = vsub.f32 %v7236, %v7268
        %v7283 = vsub.f32 %v7241, %v7271
        %v7284 = vsub.f32 %v7246, %v7274
        %v7285 = vsub.f32 %v7251, %v7277
        %v7286 = vmul.f32 %v7278, 1.442695
        %v7287 = vpow.pop %v7286
        %v7288 = vmul.f32 %v7279, 1.442695
        %v7289 = vpow.pop %v7288
        %v7290 = vmul.f32 %v7280, 1.442695
        %v7291 = vpow.pop %v7290
        %v7292 = vmul.f32 %v7281, 1.442695
        %v7293 = vpow.pop %v7292
        %v7294 = vmul.f32 %v7282, 1.442695
        %v7295 = vpow.pop %v7294
        %v7296 = vmul.f32 %v7283, 1.442695
        %v7297 = vpow.pop %v7296
        %v7298 = vmul.f32 %v7284, 1.442695
        %v7299 = vpow.pop %v7298
        %v7300 = vmul.f32 %v7285, 1.442695
        %v7301 = vpow.pop %v7300
        %v7302 = vsel %vm981, %v7287, 0.0
        %7303 = vadd.xlane.f32.xlu0 %v7302
        %v7304 = vpop.xlane.xlu0 %7303
        %v7305 = vsel %vm981, %v7289, 0.0
        %7306 = vadd.xlane.f32.xlu0 %v7305
        %v7307 = vpop.xlane.xlu0 %7306
        %v7308 = vsel %vm981, %v7291, 0.0
        %7309 = vadd.xlane.f32.xlu0 %v7308
        %v7310 = vpop.xlane.xlu0 %7309
        %v7311 = vsel %vm981, %v7293, 0.0
        %7312 = vadd.xlane.f32.xlu0 %v7311
        %v7313 = vpop.xlane.xlu0 %7312
        %v7314 = vsel %vm981, %v7295, 0.0
        %7315 = vadd.xlane.f32.xlu0 %v7314
        %v7316 = vpop.xlane.xlu0 %7315
        %v7317 = vsel %vm981, %v7297, 0.0
        %7318 = vadd.xlane.f32.xlu0 %v7317
        %v7319 = vpop.xlane.xlu0 %7318
        %v7320 = vsel %vm981, %v7299, 0.0
        %7321 = vadd.xlane.f32.xlu0 %v7320
        %v7322 = vpop.xlane.xlu0 %7321
        %v7323 = vsel %vm981, %v7301, 0.0
        %7324 = vadd.xlane.f32.xlu0 %v7323
        %v7325 = vpop.xlane.xlu0 %7324
        %v7326 = vrcp.pop %v7304
        %v7327 = vmul.f32 %v7287, %v7326
        %v7328 = vrcp.pop %v7307
        %v7329 = vmul.f32 %v7289, %v7328
        %v7330 = vrcp.pop %v7310
        %v7331 = vmul.f32 %v7291, %v7330
        %v7332 = vrcp.pop %v7313
        %v7333 = vmul.f32 %v7293, %v7332
        %v7334 = vrcp.pop %v7316
        %v7335 = vmul.f32 %v7295, %v7334
        %v7336 = vrcp.pop %v7319
        %v7337 = vmul.f32 %v7297, %v7336
        %v7338 = vrcp.pop %v7322
        %v7339 = vmul.f32 %v7299, %v7338
        %v7340 = vrcp.pop %v7325
        %v7341 = vmul.f32 %v7301, %v7340
        %s7342 = scalar_lea.vmem [#allocation6], 224
        %v7343 = vld [vmem:[%s7342] sm:$0xff]
        %v7344 = vld [vmem:[%s7342 + $0x8] sm:$0xff]
        %v7345 = vld [vmem:[%s7342 + $0x10] sm:$0xff]
        %v7346 = vld [vmem:[%s7342 + $0x18] sm:$0xff]
        %7347 = vmatprep.subr.mxu0 0.0
        %7348 = vmatpush1.msra.mxu0 %v7343
        %7349 = vmatprep.subr.mxu0 0.0
        %7350 = vmatpush1.msra.mxu0 %v7344
        %7351 = vmatprep.subr.mxu0 0.0
        %7352 = vmatpush1.msra.mxu0 %v7345
        %7353 = vmatprep.subr.mxu0 0.0
        %7354 = vmatpush1.msra.mxu0 %v7346
        %7355 = vmatprep.subr.mxu0 0.0
        %7356 = vmatpush1.msra.mxu0 0.0
        %7357 = vmatprep.subr.mxu0 0.0
        %7358 = vmatpush1.msra.mxu0 0.0
        %7359 = vmatprep.subr.mxu0 0.0
        %7360 = vmatpush1.msra.mxu0 0.0
        %7361 = vmatprep.subr.mxu0 0.0
        %7362 = vmatpush1.msra.mxu0 0.0
        %7363 = vmatprep.subr.mxu0 0.0
        %7364 = vmatpush1.msra.mxu0 0.0
        %7365 = vmatprep.subr.mxu0 0.0
        %7366 = vmatpush1.msra.mxu0 0.0
        %7367 = vmatprep.subr.mxu0 0.0
        %7368 = vmatpush1.msra.mxu0 0.0
        %7369 = vmatprep.subr.mxu0 0.0
        %7370 = vmatpush1.msra.mxu0 0.0
        %7371 = vmatprep.subr.mxu0 0.0
        %7372 = vmatpush1.msra.mxu0 0.0
        %7373 = vmatprep.subr.mxu0 0.0
        %7374 = vmatpush1.msra.mxu0 0.0
        %7375 = vmatprep.subr.mxu0 0.0
        %7376 = vmatpush1.msra.mxu0 0.0
        %7377 = vmatprep.subr.mxu0 0.0
        %7378 = vmatpush1.msra.mxu0 0.0
        %7379 = vmatprep.subr.mxu0 0.0
        %7380 = vmatpush1.msra.mxu0 0.0
        %7381 = vmatprep.subr.mxu0 0.0
        %7382 = vmatpush1.msra.mxu0 0.0
        %7383 = vmatprep.subr.mxu0 0.0
        %7384 = vmatpush1.msra.mxu0 0.0
        %7385 = vmatprep.subr.mxu0 0.0
        %7386 = vmatpush1.msra.mxu0 0.0
        %7387 = vmatprep.subr.mxu0 0.0
        %7388 = vmatpush1.msra.mxu0 0.0
        %7389 = vmatprep.subr.mxu0 0.0
        %7390 = vmatpush1.msra.mxu0 0.0
        %7391 = vmatprep.subr.mxu0 0.0
        %7392 = vmatpush1.msra.mxu0 0.0
        %7393 = vmatprep.subr.mxu0 0.0
        %7394 = vmatpush1.msra.mxu0 0.0
        %7395 = vmatprep.subr.mxu0 0.0
        %7396 = vmatpush1.msra.mxu0 0.0
        %7397 = vmatprep.subr.mxu0 0.0
        %7398 = vmatpush1.msra.mxu0 0.0
        %7399 = vmatprep.subr.mxu0 0.0
        %7400 = vmatpush1.msra.mxu0 0.0
        %7401 = vmatprep.subr.mxu0 0.0
        %7402 = vmatpush1.msra.mxu0 0.0
        %7403 = vmatprep.subr.mxu0 0.0
        %7404 = vmatpush1.msra.mxu0 0.0
        %7405 = vmatprep.subr.mxu0 0.0
        %7406 = vmatpush1.msra.mxu0 0.0
        %7407 = vmatprep.subr.mxu0 0.0
        %7408 = vmatpush1.msra.mxu0 0.0
        %7409 = vmatprep.subr.mxu0 0.0
        %7410 = vmatpush1.msra.mxu0 0.0
        %7411 = vmatprep.mubr.f32.mxu0 0.0
        %7412 = vmatmul.mubr.f32.gmra.mrb[0].mxu0 %v6580
        %v7413 = vpop.f32.mrb[0].mxu0
        %v7414 = vadd.f32 0.0, %v7413
        %v7415 = vpop.f32.mrb[0].mxu0
        %7416 = vmatprep.mubr.f32.mxu0 0.0
        %7417 = vmatmul.mubr.f32.gmra.mrb[0].mxu0 %v6583
        %v7418 = vpop.f32.mrb[0].mxu0
        %v7419 = vadd.f32 0.0, %v7418
        %v7420 = vpop.f32.mrb[0].mxu0
        %7421 = vmatprep.mubr.f32.mxu0 0.0
        %7422 = vmatmul.mubr.f32.gmra.mrb[0].mxu0 %v6586
        %v7423 = vpop.f32.mrb[0].mxu0
        %v7424 = vadd.f32 0.0, %v7423
        %v7425 = vpop.f32.mrb[0].mxu0
        %7426 = vmatprep.mubr.f32.mxu0 0.0
        %7427 = vmatmul.mubr.f32.gmra.mrb[0].mxu0 %v6589
        %v7428 = vpop.f32.mrb[0].mxu0
        %v7429 = vadd.f32 0.0, %v7428
        %v7430 = vpop.f32.mrb[0].mxu0
        %7431 = vmatprep.mubr.f32.mxu0 0.0
        %7432 = vmatmul.mubr.f32.gmra.mrb[0].mxu0 %v6592
        %v7433 = vpop.f32.mrb[0].mxu0
        %v7434 = vadd.f32 0.0, %v7433
        %v7435 = vpop.f32.mrb[0].mxu0
        %7436 = vmatprep.mubr.f32.mxu0 0.0
        %7437 = vmatmul.mubr.f32.gmra.mrb[0].mxu0 %v6595
        %v7438 = vpop.f32.mrb[0].mxu0
        %v7439 = vadd.f32 0.0, %v7438
        %v7440 = vpop.f32.mrb[0].mxu0
        %7441 = vmatprep.mubr.f32.mxu0 0.0
        %7442 = vmatmul.mubr.f32.gmra.mrb[0].mxu0 %v6598
        %v7443 = vpop.f32.mrb[0].mxu0
        %v7444 = vadd.f32 0.0, %v7443
        %v7445 = vpop.f32.mrb[0].mxu0
        %7446 = vmatprep.mubr.f32.mxu0 0.0
        %7447 = vmatmul.mubr.f32.gmra.mrb[0].mxu0 %v6601
        %v7448 = vpop.f32.mrb[0].mxu0
        %v7449 = vadd.f32 0.0, %v7448
        %v7450 = vpop.f32.mrb[0].mxu0
        %7451 = vdwg.mxu0
        %v7453 = vsel %vm981, %v7327, 0
        %v7456 = vsel %vm981, %v7329, 0
        %v7459 = vsel %vm981, %v7331, 0
        %v7462 = vsel %vm981, %v7333, 0
        %v7465 = vsel %vm981, %v7335, 0
        %v7468 = vsel %vm981, %v7337, 0
        %v7471 = vsel %vm981, %v7339, 0
        %v7474 = vsel %vm981, %v7341, 0
        %7476 = vmatprep.subr.mxu0 0.0
        %7477 = vmatpush1.msra.mxu0 %v7414
        %7478 = vmatprep.subr.mxu0 0.0
        %7479 = vmatpush1.msra.mxu0 %v7419
        %7480 = vmatprep.subr.mxu0 0.0
        %7481 = vmatpush1.msra.mxu0 %v7424
        %7482 = vmatprep.subr.mxu0 0.0
        %7483 = vmatpush1.msra.mxu0 %v7429
        %7484 = vmatprep.subr.mxu0 0.0
        %7485 = vmatpush1.msra.mxu0 %v7434
        %7486 = vmatprep.subr.mxu0 0.0
        %7487 = vmatpush1.msra.mxu0 %v7439
        %7488 = vmatprep.subr.mxu0 0.0
        %7489 = vmatpush1.msra.mxu0 %v7444
        %7490 = vmatprep.subr.mxu0 0.0
        %7491 = vmatpush1.msra.mxu0 %v7449
        %7492 = vmatprep.subr.mxu0 0.0
        %7493 = vmatpush1.msra.mxu0 0.0
        %7494 = vmatprep.subr.mxu0 0.0
        %7495 = vmatpush1.msra.mxu0 0.0
        %7496 = vmatprep.subr.mxu0 0.0
        %7497 = vmatpush1.msra.mxu0 0.0
        %7498 = vmatprep.subr.mxu0 0.0
        %7499 = vmatpush1.msra.mxu0 0.0
        %7500 = vmatprep.subr.mxu0 0.0
        %7501 = vmatpush1.msra.mxu0 0.0
        %7502 = vmatprep.subr.mxu0 0.0
        %7503 = vmatpush1.msra.mxu0 0.0
        %7504 = vmatprep.subr.mxu0 0.0
        %7505 = vmatpush1.msra.mxu0 0.0
        %7506 = vmatprep.subr.mxu0 0.0
        %7507 = vmatpush1.msra.mxu0 0.0
        %7508 = vmatprep.subr.mxu0 0.0
        %7509 = vmatpush1.msra.mxu0 0.0
        %7510 = vmatprep.subr.mxu0 0.0
        %7511 = vmatpush1.msra.mxu0 0.0
        %7512 = vmatprep.subr.mxu0 0.0
        %7513 = vmatpush1.msra.mxu0 0.0
        %7514 = vmatprep.subr.mxu0 0.0
        %7515 = vmatpush1.msra.mxu0 0.0
        %7516 = vmatprep.subr.mxu0 0.0
        %7517 = vmatpush1.msra.mxu0 0.0
        %7518 = vmatprep.subr.mxu0 0.0
        %7519 = vmatpush1.msra.mxu0 0.0
        %7520 = vmatprep.subr.mxu0 0.0
        %7521 = vmatpush1.msra.mxu0 0.0
        %7522 = vmatprep.subr.mxu0 0.0
        %7523 = vmatpush1.msra.mxu0 0.0
        %7524 = vmatprep.subr.mxu0 0.0
        %7525 = vmatpush1.msra.mxu0 0.0
        %7526 = vmatprep.subr.mxu0 0.0
        %7527 = vmatpush1.msra.mxu0 0.0
        %7528 = vmatprep.subr.mxu0 0.0
        %7529 = vmatpush1.msra.mxu0 0.0
        %7530 = vmatprep.subr.mxu0 0.0
        %7531 = vmatpush1.msra.mxu0 0.0
        %7532 = vmatprep.subr.mxu0 0.0
        %7533 = vmatpush1.msra.mxu0 0.0
        %7534 = vmatprep.subr.mxu0 0.0
        %7535 = vmatpush1.msra.mxu0 0.0
        %7536 = vmatprep.subr.mxu0 0.0
        %7537 = vmatpush1.msra.mxu0 0.0
        %7538 = vmatprep.subr.mxu0 0.0
        %7539 = vmatpush1.msra.mxu0 0.0
        %7540 = vmatprep.mubr.f32.mxu0 0.0
        %7541 = vmatmul.mubr.f32.gmra.mrb[0].mxu0 %v7453
        %v7542 = vpop.f32.mrb[0].mxu0
        %v7543 = vadd.f32 0.0, %v7542
        %v7544 = vpop.f32.mrb[0].mxu0
        %7545 = vmatprep.mubr.f32.mxu0 0.0
        %7546 = vmatmul.mubr.f32.gmra.mrb[0].mxu0 %v7456
        %v7547 = vpop.f32.mrb[0].mxu0
        %v7548 = vadd.f32 0.0, %v7547
        %v7549 = vpop.f32.mrb[0].mxu0
        %7550 = vmatprep.mubr.f32.mxu0 0.0
        %7551 = vmatmul.mubr.f32.gmra.mrb[0].mxu0 %v7459
        %v7552 = vpop.f32.mrb[0].mxu0
        %v7553 = vadd.f32 0.0, %v7552
        %v7554 = vpop.f32.mrb[0].mxu0
        %7555 = vmatprep.mubr.f32.mxu0 0.0
        %7556 = vmatmul.mubr.f32.gmra.mrb[0].mxu0 %v7462
        %v7557 = vpop.f32.mrb[0].mxu0
        %v7558 = vadd.f32 0.0, %v7557
        %v7559 = vpop.f32.mrb[0].mxu0
        %7560 = vmatprep.mubr.f32.mxu0 0.0
        %7561 = vmatmul.mubr.f32.gmra.mrb[0].mxu0 %v7465
        %v7562 = vpop.f32.mrb[0].mxu0
        %v7563 = vadd.f32 0.0, %v7562
        %v7564 = vpop.f32.mrb[0].mxu0
        %7565 = vmatprep.mubr.f32.mxu0 0.0
        %7566 = vmatmul.mubr.f32.gmra.mrb[0].mxu0 %v7468
        %v7567 = vpop.f32.mrb[0].mxu0
        %v7568 = vadd.f32 0.0, %v7567
        %v7569 = vpop.f32.mrb[0].mxu0
        %7570 = vmatprep.mubr.f32.mxu0 0.0
        %7571 = vmatmul.mubr.f32.gmra.mrb[0].mxu0 %v7471
        %v7572 = vpop.f32.mrb[0].mxu0
        %v7573 = vadd.f32 0.0, %v7572
        %v7574 = vpop.f32.mrb[0].mxu0
        %7575 = vmatprep.mubr.f32.mxu0 0.0
        %7576 = vmatmul.mubr.f32.gmra.mrb[0].mxu0 %v7474
        %v7577 = vpop.f32.mrb[0].mxu0
        %v7578 = vadd.f32 0.0, %v7577
        %v7579 = vpop.f32.mrb[0].mxu0
        %7580 = vdwg.mxu0
        %v7582 = vsel %vm981, %v6951, 0
        %v7585 = vsel %vm981, %v6953, 0
        %v7588 = vsel %vm981, %v6955, 0
        %v7591 = vsel %vm981, %v6957, 0
        %v7594 = vsel %vm981, %v6959, 0
        %v7597 = vsel %vm981, %v6961, 0
        %v7600 = vsel %vm981, %v6963, 0
        %v7603 = vsel %vm981, %v6965, 0
        %7605 = vmatprep.subr.mxu0 0.0
        %7606 = vmatpush1.msra.mxu0 %v7038
        %7607 = vmatprep.subr.mxu0 0.0
        %7608 = vmatpush1.msra.mxu0 %v7043
        %7609 = vmatprep.subr.mxu0 0.0
        %7610 = vmatpush1.msra.mxu0 %v7048
        %7611 = vmatprep.subr.mxu0 0.0
        %7612 = vmatpush1.msra.mxu0 %v7053
        %7613 = vmatprep.subr.mxu0 0.0
        %7614 = vmatpush1.msra.mxu0 %v7058
        %7615 = vmatprep.subr.mxu0 0.0
        %7616 = vmatpush1.msra.mxu0 %v7063
        %7617 = vmatprep.subr.mxu0 0.0
        %7618 = vmatpush1.msra.mxu0 %v7068
        %7619 = vmatprep.subr.mxu0 0.0
        %7620 = vmatpush1.msra.mxu0 %v7073
        %7621 = vmatprep.subr.mxu0 0.0
        %7622 = vmatpush1.msra.mxu0 0.0
        %7623 = vmatprep.subr.mxu0 0.0
        %7624 = vmatpush1.msra.mxu0 0.0
        %7625 = vmatprep.subr.mxu0 0.0
        %7626 = vmatpush1.msra.mxu0 0.0
        %7627 = vmatprep.subr.mxu0 0.0
        %7628 = vmatpush1.msra.mxu0 0.0
        %7629 = vmatprep.subr.mxu0 0.0
        %7630 = vmatpush1.msra.mxu0 0.0
        %7631 = vmatprep.subr.mxu0 0.0
        %7632 = vmatpush1.msra.mxu0 0.0
        %7633 = vmatprep.subr.mxu0 0.0
        %7634 = vmatpush1.msra.mxu0 0.0
        %7635 = vmatprep.subr.mxu0 0.0
        %7636 = vmatpush1.msra.mxu0 0.0
        %7637 = vmatprep.subr.mxu0 0.0
        %7638 = vmatpush1.msra.mxu0 0.0
        %7639 = vmatprep.subr.mxu0 0.0
        %7640 = vmatpush1.msra.mxu0 0.0
        %7641 = vmatprep.subr.mxu0 0.0
        %7642 = vmatpush1.msra.mxu0 0.0
        %7643 = vmatprep.subr.mxu0 0.0
        %7644 = vmatpush1.msra.mxu0 0.0
        %7645 = vmatprep.subr.mxu0 0.0
        %7646 = vmatpush1.msra.mxu0 0.0
        %7647 = vmatprep.subr.mxu0 0.0
        %7648 = vmatpush1.msra.mxu0 0.0
        %7649 = vmatprep.subr.mxu0 0.0
        %7650 = vmatpush1.msra.mxu0 0.0
        %7651 = vmatprep.subr.mxu0 0.0
        %7652 = vmatpush1.msra.mxu0 0.0
        %7653 = vmatprep.subr.mxu0 0.0
        %7654 = vmatpush1.msra.mxu0 0.0
        %7655 = vmatprep.subr.mxu0 0.0
        %7656 = vmatpush1.msra.mxu0 0.0
        %7657 = vmatprep.subr.mxu0 0.0
        %7658 = vmatpush1.msra.mxu0 0.0
        %7659 = vmatprep.subr.mxu0 0.0
        %7660 = vmatpush1.msra.mxu0 0.0
        %7661 = vmatprep.subr.mxu0 0.0
        %7662 = vmatpush1.msra.mxu0 0.0
        %7663 = vmatprep.subr.mxu0 0.0
        %7664 = vmatpush1.msra.mxu0 0.0
        %7665 = vmatprep.subr.mxu0 0.0
        %7666 = vmatpush1.msra.mxu0 0.0
        %7667 = vmatprep.subr.mxu0 0.0
        %7668 = vmatpush1.msra.mxu0 0.0
        %7669 = vmatprep.mubr.f32.mxu0 0.0
        %7670 = vmatmul.mubr.f32.gmra.mrb[0].mxu0 %v7582
        %v7671 = vpop.f32.mrb[0].mxu0
        %v7672 = vadd.f32 %v7543, %v7671
        %v7673 = vpop.f32.mrb[0].mxu0
        %7674 = vmatprep.mubr.f32.mxu0 0.0
        %7675 = vmatmul.mubr.f32.gmra.mrb[0].mxu0 %v7585
        %v7676 = vpop.f32.mrb[0].mxu0
        %v7677 = vadd.f32 %v7548, %v7676
        %v7678 = vpop.f32.mrb[0].mxu0
        %7679 = vmatprep.mubr.f32.mxu0 0.0
        %7680 = vmatmul.mubr.f32.gmra.mrb[0].mxu0 %v7588
        %v7681 = vpop.f32.mrb[0].mxu0
        %v7682 = vadd.f32 %v7553, %v7681
        %v7683 = vpop.f32.mrb[0].mxu0
        %7684 = vmatprep.mubr.f32.mxu0 0.0
        %7685 = vmatmul.mubr.f32.gmra.mrb[0].mxu0 %v7591
        %v7686 = vpop.f32.mrb[0].mxu0
        %v7687 = vadd.f32 %v7558, %v7686
        %v7688 = vpop.f32.mrb[0].mxu0
        %7689 = vmatprep.mubr.f32.mxu0 0.0
        %7690 = vmatmul.mubr.f32.gmra.mrb[0].mxu0 %v7594
        %v7691 = vpop.f32.mrb[0].mxu0
        %v7692 = vadd.f32 %v7563, %v7691
        %v7693 = vpop.f32.mrb[0].mxu0
        %7694 = vmatprep.mubr.f32.mxu0 0.0
        %7695 = vmatmul.mubr.f32.gmra.mrb[0].mxu0 %v7597
        %v7696 = vpop.f32.mrb[0].mxu0
        %v7697 = vadd.f32 %v7568, %v7696
        %v7698 = vpop.f32.mrb[0].mxu0
        %7699 = vmatprep.mubr.f32.mxu0 0.0
        %7700 = vmatmul.mubr.f32.gmra.mrb[0].mxu0 %v7600
        %v7701 = vpop.f32.mrb[0].mxu0
        %v7702 = vadd.f32 %v7573, %v7701
        %v7703 = vpop.f32.mrb[0].mxu0
        %7704 = vmatprep.mubr.f32.mxu0 0.0
        %7705 = vmatmul.mubr.f32.gmra.mrb[0].mxu0 %v7603
        %v7706 = vpop.f32.mrb[0].mxu0
        %v7707 = vadd.f32 %v7578, %v7706
        %v7708 = vpop.f32.mrb[0].mxu0
        %7709 = vdwg.mxu0
        %v7710 = vadd.f32 %v6422, %v7672
        %v7711 = vadd.f32 %v6423, %v7677
        %v7712 = vadd.f32 %v6424, %v7682
        %v7713 = vadd.f32 %v6425, %v7687
        %v7714 = vadd.f32 %v6426, %v7692
        %v7715 = vadd.f32 %v6427, %v7697
        %v7716 = vadd.f32 %v6428, %v7702
        %v7717 = vadd.f32 %v6429, %v7707
        %s7718 = scalar_lea.vmem %s7, 3
        %v7719 = vld [vmem:[%s7718] sm:$0x1]
        %v7721 = vlaneseq
        %v7722 = vshrl.u32 %v7721, 7
        %v7723 = vsub.s32 0, %v7722
        %v7724 = vrot.slane %v7719, %v7723
        %v7726 = vadd.f32 %v7710, %v7724
        %v7727 = vadd.f32 %v7711, %v7724
        %v7728 = vadd.f32 %v7712, %v7724
        %v7729 = vadd.f32 %v7713, %v7724
        %v7730 = vadd.f32 %v7714, %v7724
        %v7731 = vadd.f32 %v7715, %v7724
        %v7732 = vadd.f32 %v7716, %v7724
        %v7733 = vadd.f32 %v7717, %v7724
        %s7734 = scalar_lea.vmem %s8, 3
        %v7735 = vld [vmem:[%s7734] sm:$0x1]
        %s7736 = scalar_lea.vmem %s9, 3
        %v7737 = vld [vmem:[%s7736] sm:$0x1]
        %v7738 = vsel %vm537, %v7726, 0.0
        %7739 = vadd.xlane.f32.xlu0 %v7738
        %v7740 = vpop.xlane.xlu0 %7739
        %v7741 = vsel %vm537, %v7727, 0.0
        %7742 = vadd.xlane.f32.xlu0 %v7741
        %v7743 = vpop.xlane.xlu0 %7742
        %v7744 = vsel %vm537, %v7728, 0.0
        %7745 = vadd.xlane.f32.xlu0 %v7744
        %v7746 = vpop.xlane.xlu0 %7745
        %v7747 = vsel %vm537, %v7729, 0.0
        %7748 = vadd.xlane.f32.xlu0 %v7747
        %v7749 = vpop.xlane.xlu0 %7748
        %v7750 = vsel %vm537, %v7730, 0.0
        %7751 = vadd.xlane.f32.xlu0 %v7750
        %v7752 = vpop.xlane.xlu0 %7751
        %v7753 = vsel %vm537, %v7731, 0.0
        %7754 = vadd.xlane.f32.xlu0 %v7753
        %v7755 = vpop.xlane.xlu0 %7754
        %v7756 = vsel %vm537, %v7732, 0.0
        %7757 = vadd.xlane.f32.xlu0 %v7756
        %v7758 = vpop.xlane.xlu0 %7757
        %v7759 = vsel %vm537, %v7733, 0.0
        %7760 = vadd.xlane.f32.xlu0 %v7759
        %v7761 = vpop.xlane.xlu0 %7760
        %v7762 = vmul.f32 %v7740, %v562
        %v7763 = vmul.f32 %v7743, %v562
        %v7764 = vmul.f32 %v7746, %v562
        %v7765 = vmul.f32 %v7749, %v562
        %v7766 = vmul.f32 %v7752, %v562
        %v7767 = vmul.f32 %v7755, %v562
        %v7768 = vmul.f32 %v7758, %v562
        %v7769 = vmul.f32 %v7761, %v562
        %v7770 = vsub.f32 %v7726, %v7762
        %v7771 = vsub.f32 %v7727, %v7763
        %v7772 = vsub.f32 %v7728, %v7764
        %v7773 = vsub.f32 %v7729, %v7765
        %v7774 = vsub.f32 %v7730, %v7766
        %v7775 = vsub.f32 %v7731, %v7767
        %v7776 = vsub.f32 %v7732, %v7768
        %v7777 = vsub.f32 %v7733, %v7769
        %v7778 = vmul.f32 %v7770, %v7770
        %v7779 = vmul.f32 %v7771, %v7771
        %v7780 = vmul.f32 %v7772, %v7772
        %v7781 = vmul.f32 %v7773, %v7773
        %v7782 = vmul.f32 %v7774, %v7774
        %v7783 = vmul.f32 %v7775, %v7775
        %v7784 = vmul.f32 %v7776, %v7776
        %v7785 = vmul.f32 %v7777, %v7777
        %v7786 = vsel %vm537, %v7778, 0.0
        %7787 = vadd.xlane.f32.xlu0 %v7786
        %v7788 = vpop.xlane.xlu0 %7787
        %v7789 = vsel %vm537, %v7779, 0.0
        %7790 = vadd.xlane.f32.xlu0 %v7789
        %v7791 = vpop.xlane.xlu0 %7790
        %v7792 = vsel %vm537, %v7780, 0.0
        %7793 = vadd.xlane.f32.xlu0 %v7792
        %v7794 = vpop.xlane.xlu0 %7793
        %v7795 = vsel %vm537, %v7781, 0.0
        %7796 = vadd.xlane.f32.xlu0 %v7795
        %v7797 = vpop.xlane.xlu0 %7796
        %v7798 = vsel %vm537, %v7782, 0.0
        %7799 = vadd.xlane.f32.xlu0 %v7798
        %v7800 = vpop.xlane.xlu0 %7799
        %v7801 = vsel %vm537, %v7783, 0.0
        %7802 = vadd.xlane.f32.xlu0 %v7801
        %v7803 = vpop.xlane.xlu0 %7802
        %v7804 = vsel %vm537, %v7784, 0.0
        %7805 = vadd.xlane.f32.xlu0 %v7804
        %v7806 = vpop.xlane.xlu0 %7805
        %v7807 = vsel %vm537, %v7785, 0.0
        %7808 = vadd.xlane.f32.xlu0 %v7807
        %v7809 = vpop.xlane.xlu0 %7808
        %v7810 = vmul.f32 %v7788, %v562
        %v7811 = vmul.f32 %v7791, %v562
        %v7812 = vmul.f32 %v7794, %v562
        %v7813 = vmul.f32 %v7797, %v562
        %v7814 = vmul.f32 %v7800, %v562
        %v7815 = vmul.f32 %v7803, %v562
        %v7816 = vmul.f32 %v7806, %v562
        %v7817 = vmul.f32 %v7809, %v562
        %v7818 = vadd.f32 %v7810, 1e-05
        %v7819 = vadd.f32 %v7811, 1e-05
        %v7820 = vadd.f32 %v7812, 1e-05
        %v7821 = vadd.f32 %v7813, 1e-05
        %v7822 = vadd.f32 %v7814, 1e-05
        %v7823 = vadd.f32 %v7815, 1e-05
        %v7824 = vadd.f32 %v7816, 1e-05
        %v7825 = vadd.f32 %v7817, 1e-05
        %v7826 = vrsqrt.pop %v7818
        %v7827 = vrsqrt.pop %v7819
        %v7828 = vrsqrt.pop %v7820
        %v7829 = vrsqrt.pop %v7821
        %v7830 = vrsqrt.pop %v7822
        %v7831 = vrsqrt.pop %v7823
        %v7832 = vrsqrt.pop %v7824
        %v7833 = vrsqrt.pop %v7825
        %v7834 = vmul.f32 %v7770, %v7826
        %v7835 = vmul.f32 %v7771, %v7827
        %v7836 = vmul.f32 %v7772, %v7828
        %v7837 = vmul.f32 %v7773, %v7829
        %v7838 = vmul.f32 %v7774, %v7830
        %v7839 = vmul.f32 %v7775, %v7831
        %v7840 = vmul.f32 %v7776, %v7832
        %v7841 = vmul.f32 %v7777, %v7833
        %v7843 = vlaneseq
        %v7844 = vshrl.u32 %v7843, 7
        %v7845 = vsub.s32 0, %v7844
        %v7846 = vrot.slane %v7735, %v7845
        %v7848 = vmul.f32 %v7834, %v7846
        %v7849 = vmul.f32 %v7835, %v7846
        %v7850 = vmul.f32 %v7836, %v7846
        %v7851 = vmul.f32 %v7837, %v7846
        %v7852 = vmul.f32 %v7838, %v7846
        %v7853 = vmul.f32 %v7839, %v7846
        %v7854 = vmul.f32 %v7840, %v7846
        %v7855 = vmul.f32 %v7841, %v7846
        %v7857 = vlaneseq
        %v7858 = vshrl.u32 %v7857, 7
        %v7859 = vsub.s32 0, %v7858
        %v7860 = vrot.slane %v7737, %v7859
        %v7862 = vadd.f32 %v7848, %v7860
        %v7863 = vadd.f32 %v7849, %v7860
        %v7864 = vadd.f32 %v7850, %v7860
        %v7865 = vadd.f32 %v7851, %v7860
        %v7866 = vadd.f32 %v7852, %v7860
        %v7867 = vadd.f32 %v7853, %v7860
        %v7868 = vadd.f32 %v7854, %v7860
        %v7869 = vadd.f32 %v7855, %v7860
        %s7870 = scalar_lea.vmem %s10, 96
        %v7871 = vld [vmem:[%s7870] sm:$0xff]
        %v7872 = vld [vmem:[%s7870 + $0x8] sm:$0xff]
        %v7873 = vld [vmem:[%s7870 + $0x10] sm:$0xff]
        %v7874 = vld [vmem:[%s7870 + $0x18] sm:$0xff]
        %s7875 = scalar_lea.vmem %s11, 3
        %v7876 = vld [vmem:[%s7875] sm:$0x1]
        %v7878 = vlaneseq
        %v7879 = vshrl.u32 %v7878, 7
        %v7880 = vsub.s32 0, %v7879
        %v7881 = vrot.slane %v7876, %v7880
        %v7884 = vsel %vm537, %v7862, 0
        %v7887 = vsel %vm537, %v7863, 0
        %v7890 = vsel %vm537, %v7864, 0
        %v7893 = vsel %vm537, %v7865, 0
        %v7896 = vsel %vm537, %v7866, 0
        %v7899 = vsel %vm537, %v7867, 0
        %v7902 = vsel %vm537, %v7868, 0
        %v7905 = vsel %vm537, %v7869, 0
        %7907 = vmatprep.subr.mxu0 0.0
        %7908 = vmatpush1.msra.mxu0 %v7871
        %7909 = vmatprep.subr.mxu0 0.0
        %7910 = vmatpush1.msra.mxu0 %v7872
        %7911 = vmatprep.subr.mxu0 0.0
        %7912 = vmatpush1.msra.mxu0 %v7873
        %7913 = vmatprep.subr.mxu0 0.0
        %7914 = vmatpush1.msra.mxu0 %v7874
        %7915 = vmatprep.subr.mxu0 0.0
        %7916 = vmatpush1.msra.mxu0 0.0
        %7917 = vmatprep.subr.mxu0 0.0
        %7918 = vmatpush1.msra.mxu0 0.0
        %7919 = vmatprep.subr.mxu0 0.0
        %7920 = vmatpush1.msra.mxu0 0.0
        %7921 = vmatprep.subr.mxu0 0.0
        %7922 = vmatpush1.msra.mxu0 0.0
        %7923 = vmatprep.subr.mxu0 0.0
        %7924 = vmatpush1.msra.mxu0 0.0
        %7925 = vmatprep.subr.mxu0 0.0
        %7926 = vmatpush1.msra.mxu0 0.0
        %7927 = vmatprep.subr.mxu0 0.0
        %7928 = vmatpush1.msra.mxu0 0.0
        %7929 = vmatprep.subr.mxu0 0.0
        %7930 = vmatpush1.msra.mxu0 0.0
        %7931 = vmatprep.subr.mxu0 0.0
        %7932 = vmatpush1.msra.mxu0 0.0
        %7933 = vmatprep.subr.mxu0 0.0
        %7934 = vmatpush1.msra.mxu0 0.0
        %7935 = vmatprep.subr.mxu0 0.0
        %7936 = vmatpush1.msra.mxu0 0.0
        %7937 = vmatprep.subr.mxu0 0.0
        %7938 = vmatpush1.msra.mxu0 0.0
        %7939 = vmatprep.subr.mxu0 0.0
        %7940 = vmatpush1.msra.mxu0 0.0
        %7941 = vmatprep.subr.mxu0 0.0
        %7942 = vmatpush1.msra.mxu0 0.0
        %7943 = vmatprep.subr.mxu0 0.0
        %7944 = vmatpush1.msra.mxu0 0.0
        %7945 = vmatprep.subr.mxu0 0.0
        %7946 = vmatpush1.msra.mxu0 0.0
        %7947 = vmatprep.subr.mxu0 0.0
        %7948 = vmatpush1.msra.mxu0 0.0
        %7949 = vmatprep.subr.mxu0 0.0
        %7950 = vmatpush1.msra.mxu0 0.0
        %7951 = vmatprep.subr.mxu0 0.0
        %7952 = vmatpush1.msra.mxu0 0.0
        %7953 = vmatprep.subr.mxu0 0.0
        %7954 = vmatpush1.msra.mxu0 0.0
        %7955 = vmatprep.subr.mxu0 0.0
        %7956 = vmatpush1.msra.mxu0 0.0
        %7957 = vmatprep.subr.mxu0 0.0
        %7958 = vmatpush1.msra.mxu0 0.0
        %7959 = vmatprep.subr.mxu0 0.0
        %7960 = vmatpush1.msra.mxu0 0.0
        %7961 = vmatprep.subr.mxu0 0.0
        %7962 = vmatpush1.msra.mxu0 0.0
        %7963 = vmatprep.subr.mxu0 0.0
        %7964 = vmatpush1.msra.mxu0 0.0
        %7965 = vmatprep.subr.mxu0 0.0
        %7966 = vmatpush1.msra.mxu0 0.0
        %7967 = vmatprep.subr.mxu0 0.0
        %7968 = vmatpush1.msra.mxu0 0.0
        %7969 = vmatprep.subr.mxu0 0.0
        %7970 = vmatpush1.msra.mxu0 0.0
        %7971 = vmatprep.mubr.f32.mxu0 0.0
        %7972 = vmatmul.mubr.f32.gmra.mrb[0].mxu0 %v7884
        %v7973 = vpop.f32.mrb[0].mxu0
        %v7974 = vadd.f32 %v7881, %v7973
        %v7975 = vpop.f32.mrb[0].mxu0
        %7976 = vmatprep.mubr.f32.mxu0 0.0
        %7977 = vmatmul.mubr.f32.gmra.mrb[0].mxu0 %v7887
        %v7978 = vpop.f32.mrb[0].mxu0
        %v7979 = vadd.f32 %v7881, %v7978
        %v7980 = vpop.f32.mrb[0].mxu0
        %7981 = vmatprep.mubr.f32.mxu0 0.0
        %7982 = vmatmul.mubr.f32.gmra.mrb[0].mxu0 %v7890
        %v7983 = vpop.f32.mrb[0].mxu0
        %v7984 = vadd.f32 %v7881, %v7983
        %v7985 = vpop.f32.mrb[0].mxu0
        %7986 = vmatprep.mubr.f32.mxu0 0.0
        %7987 = vmatmul.mubr.f32.gmra.mrb[0].mxu0 %v7893
        %v7988 = vpop.f32.mrb[0].mxu0
        %v7989 = vadd.f32 %v7881, %v7988
        %v7990 = vpop.f32.mrb[0].mxu0
        %7991 = vmatprep.mubr.f32.mxu0 0.0
        %7992 = vmatmul.mubr.f32.gmra.mrb[0].mxu0 %v7896
        %v7993 = vpop.f32.mrb[0].mxu0
        %v7994 = vadd.f32 %v7881, %v7993
        %v7995 = vpop.f32.mrb[0].mxu0
        %7996 = vmatprep.mubr.f32.mxu0 0.0
        %7997 = vmatmul.mubr.f32.gmra.mrb[0].mxu0 %v7899
        %v7998 = vpop.f32.mrb[0].mxu0
        %v7999 = vadd.f32 %v7881, %v7998
        %v8000 = vpop.f32.mrb[0].mxu0
        %8001 = vmatprep.mubr.f32.mxu0 0.0
        %8002 = vmatmul.mubr.f32.gmra.mrb[0].mxu0 %v7902
        %v8003 = vpop.f32.mrb[0].mxu0
        %v8004 = vadd.f32 %v7881, %v8003
        %v8005 = vpop.f32.mrb[0].mxu0
        %8006 = vmatprep.mubr.f32.mxu0 0.0
        %8007 = vmatmul.mubr.f32.gmra.mrb[0].mxu0 %v7905
        %v8008 = vpop.f32.mrb[0].mxu0
        %v8009 = vadd.f32 %v7881, %v8008
        %v8010 = vpop.f32.mrb[0].mxu0
        %8011 = vdwg.mxu0
        %v8012 = vmul.f32 %v7974, 0.5
        %v8013 = vmul.f32 %v7979, 0.5
        %v8014 = vmul.f32 %v7984, 0.5
        %v8015 = vmul.f32 %v7989, 0.5
        %v8016 = vmul.f32 %v7994, 0.5
        %v8017 = vmul.f32 %v7999, 0.5
        %v8018 = vmul.f32 %v8004, 0.5
        %v8019 = vmul.f32 %v8009, 0.5
        %v8020 = vmul.f32 %v7974, 0.70710677
        %v8021 = vmul.f32 %v7979, 0.70710677
        %v8022 = vmul.f32 %v7984, 0.70710677
        %v8023 = vmul.f32 %v7989, 0.70710677
        %v8024 = vmul.f32 %v7994, 0.70710677
        %v8025 = vmul.f32 %v7999, 0.70710677
        %v8026 = vmul.f32 %v8004, 0.70710677
        %v8027 = vmul.f32 %v8009, 0.70710677
        %v8028 = vmax.f32 %v8020, -4.0
        %v8029 = vmax.f32 %v8021, -4.0
        %v8030 = vmax.f32 %v8022, -4.0
        %v8031 = vmax.f32 %v8023, -4.0
        %v8032 = vmax.f32 %v8024, -4.0
        %v8033 = vmax.f32 %v8025, -4.0
        %v8034 = vmax.f32 %v8026, -4.0
        %v8035 = vmax.f32 %v8027, -4.0
        %v8036 = vmin.f32 %v8028, 4.0
        %v8037 = vmin.f32 %v8029, 4.0
        %v8038 = vmin.f32 %v8030, 4.0
        %v8039 = vmin.f32 %v8031, 4.0
        %v8040 = vmin.f32 %v8032, 4.0
        %v8041 = vmin.f32 %v8033, 4.0
        %v8042 = vmin.f32 %v8034, 4.0
        %v8043 = vmin.f32 %v8035, 4.0
        %v8044 = vmul.f32 %v8036, %v8036
        %v8045 = vmul.f32 %v8037, %v8037
        %v8046 = vmul.f32 %v8038, %v8038
        %v8047 = vmul.f32 %v8039, %v8039
        %v8048 = vmul.f32 %v8040, %v8040
        %v8049 = vmul.f32 %v8041, %v8041
        %v8050 = vmul.f32 %v8042, %v8042
        %v8051 = vmul.f32 %v8043, %v8043
        %v8052 = vmul.f32 %v8044, -2.7261424e-10
        %v8053 = vmul.f32 %v8045, -2.7261424e-10
        %v8054 = vmul.f32 %v8046, -2.7261424e-10
        %v8055 = vmul.f32 %v8047, -2.7261424e-10
        %v8056 = vmul.f32 %v8048, -2.7261424e-10
        %v8057 = vmul.f32 %v8049, -2.7261424e-10
        %v8058 = vmul.f32 %v8050, -2.7261424e-10
        %v8059 = vmul.f32 %v8051, -2.7261424e-10
        %v8060 = vadd.f32 %v8052, 2.7706815e-08
        %v8061 = vadd.f32 %v8053, 2.7706815e-08
        %v8062 = vadd.f32 %v8054, 2.7706815e-08
        %v8063 = vadd.f32 %v8055, 2.7706815e-08
        %v8064 = vadd.f32 %v8056, 2.7706815e-08
        %v8065 = vadd.f32 %v8057, 2.7706815e-08
        %v8066 = vadd.f32 %v8058, 2.7706815e-08
        %v8067 = vadd.f32 %v8059, 2.7706815e-08
        %v8068 = vmul.f32 %v8060, %v8044
        %v8069 = vmul.f32 %v8061, %v8045
        %v8070 = vmul.f32 %v8062, %v8046
        %v8071 = vmul.f32 %v8063, %v8047
        %v8072 = vmul.f32 %v8064, %v8048
        %v8073 = vmul.f32 %v8065, %v8049
        %v8074 = vmul.f32 %v8066, %v8050
        %v8075 = vmul.f32 %v8067, %v8051
        %v8076 = vadd.f32 %v8068, -2.101024e-06
        %v8077 = vadd.f32 %v8069, -2.101024e-06
        %v8078 = vadd.f32 %v8070, -2.101024e-06
        %v8079 = vadd.f32 %v8071, -2.101024e-06
        %v8080 = vadd.f32 %v8072, -2.101024e-06
        %v8081 = vadd.f32 %v8073, -2.101024e-06
        %v8082 = vadd.f32 %v8074, -2.101024e-06
        %v8083 = vadd.f32 %v8075, -2.101024e-06
        %v8084 = vmul.f32 %v8076, %v8044
        %v8085 = vmul.f32 %v8077, %v8045
        %v8086 = vmul.f32 %v8078, %v8046
        %v8087 = vmul.f32 %v8079, %v8047
        %v8088 = vmul.f32 %v8080, %v8048
        %v8089 = vmul.f32 %v8081, %v8049
        %v8090 = vmul.f32 %v8082, %v8050
        %v8091 = vmul.f32 %v8083, %v8051
        %v8092 = vadd.f32 %v8084, -5.6925062e-05
        %v8093 = vadd.f32 %v8085, -5.6925062e-05
        %v8094 = vadd.f32 %v8086, -5.6925062e-05
        %v8095 = vadd.f32 %v8087, -5.6925062e-05
        %v8096 = vadd.f32 %v8088, -5.6925062e-05
        %v8097 = vadd.f32 %v8089, -5.6925062e-05
        %v8098 = vadd.f32 %v8090, -5.6925062e-05
        %v8099 = vadd.f32 %v8091, -5.6925062e-05
        %v8100 = vmul.f32 %v8092, %v8044
        %v8101 = vmul.f32 %v8093, %v8045
        %v8102 = vmul.f32 %v8094, %v8046
        %v8103 = vmul.f32 %v8095, %v8047
        %v8104 = vmul.f32 %v8096, %v8048
        %v8105 = vmul.f32 %v8097, %v8049
        %v8106 = vmul.f32 %v8098, %v8050
        %v8107 = vmul.f32 %v8099, %v8051
        %v8108 = vadd.f32 %v8100, -0.00073499064
        %v8109 = vadd.f32 %v8101, -0.00073499064
        %v8110 = vadd.f32 %v8102, -0.00073499064
        %v8111 = vadd.f32 %v8103, -0.00073499064
        %v8112 = vadd.f32 %v8104, -0.00073499064
        %v8113 = vadd.f32 %v8105, -0.00073499064
        %v8114 = vadd.f32 %v8106, -0.00073499064
        %v8115 = vadd.f32 %v8107, -0.00073499064
        %v8116 = vmul.f32 %v8108, %v8044
        %v8117 = vmul.f32 %v8109, %v8045
        %v8118 = vmul.f32 %v8110, %v8046
        %v8119 = vmul.f32 %v8111, %v8047
        %v8120 = vmul.f32 %v8112, %v8048
        %v8121 = vmul.f32 %v8113, %v8049
        %v8122 = vmul.f32 %v8114, %v8050
        %v8123 = vmul.f32 %v8115, %v8051
        %v8124 = vadd.f32 %v8116, -0.0029546
        %v8125 = vadd.f32 %v8117, -0.0029546
        %v8126 = vadd.f32 %v8118, -0.0029546
        %v8127 = vadd.f32 %v8119, -0.0029546
        %v8128 = vadd.f32 %v8120, -0.0029546
        %v8129 = vadd.f32 %v8121, -0.0029546
        %v8130 = vadd.f32 %v8122, -0.0029546
        %v8131 = vadd.f32 %v8123, -0.0029546
        %v8132 = vmul.f32 %v8124, %v8044
        %v8133 = vmul.f32 %v8125, %v8045
        %v8134 = vmul.f32 %v8126, %v8046
        %v8135 = vmul.f32 %v8127, %v8047
        %v8136 = vmul.f32 %v8128, %v8048
        %v8137 = vmul.f32 %v8129, %v8049
        %v8138 = vmul.f32 %v8130, %v8050
        %v8139 = vmul.f32 %v8131, %v8051
        %v8140 = vadd.f32 %v8132, -0.016096033
        %v8141 = vadd.f32 %v8133, -0.016096033
        %v8142 = vadd.f32 %v8134, -0.016096033
        %v8143 = vadd.f32 %v8135, -0.016096033
        %v8144 = vadd.f32 %v8136, -0.016096033
        %v8145 = vadd.f32 %v8137, -0.016096033
        %v8146 = vadd.f32 %v8138, -0.016096033
        %v8147 = vadd.f32 %v8139, -0.016096033
        %v8148 = vmul.f32 %v8140, %v8036
        %v8149 = vmul.f32 %v8141, %v8037
        %v8150 = vmul.f32 %v8142, %v8038
        %v8151 = vmul.f32 %v8143, %v8039
        %v8152 = vmul.f32 %v8144, %v8040
        %v8153 = vmul.f32 %v8145, %v8041
        %v8154 = vmul.f32 %v8146, %v8042
        %v8155 = vmul.f32 %v8147, %v8043
        %v8156 = vmul.f32 %v8044, -1.45660715e-05
        %v8157 = vmul.f32 %v8045, -1.45660715e-05
        %v8158 = vmul.f32 %v8046, -1.45660715e-05
        %v8159 = vmul.f32 %v8047, -1.45660715e-05
        %v8160 = vmul.f32 %v8048, -1.45660715e-05
        %v8161 = vmul.f32 %v8049, -1.45660715e-05
        %v8162 = vmul.f32 %v8050, -1.45660715e-05
        %v8163 = vmul.f32 %v8051, -1.45660715e-05
        %v8164 = vadd.f32 %v8156, -0.00021337405
        %v8165 = vadd.f32 %v8157, -0.00021337405
        %v8166 = vadd.f32 %v8158, -0.00021337405
        %v8167 = vadd.f32 %v8159, -0.00021337405
        %v8168 = vadd.f32 %v8160, -0.00021337405
        %v8169 = vadd.f32 %v8161, -0.00021337405
        %v8170 = vadd.f32 %v8162, -0.00021337405
        %v8171 = vadd.f32 %v8163, -0.00021337405
        %v8172 = vmul.f32 %v8164, %v8044
        %v8173 = vmul.f32 %v8165, %v8045
        %v8174 = vmul.f32 %v8166, %v8046
        %v8175 = vmul.f32 %v8167, %v8047
        %v8176 = vmul.f32 %v8168, %v8048
        %v8177 = vmul.f32 %v8169, %v8049
        %v8178 = vmul.f32 %v8170, %v8050
        %v8179 = vmul.f32 %v8171, %v8051
        %v8180 = vadd.f32 %v8172, -0.001682827
        %v8181 = vadd.f32 %v8173, -0.001682827
        %v8182 = vadd.f32 %v8174, -0.001682827
        %v8183 = vadd.f32 %v8175, -0.001682827
        %v8184 = vadd.f32 %v8176, -0.001682827
        %v8185 = vadd.f32 %v8177, -0.001682827
        %v8186 = vadd.f32 %v8178, -0.001682827
        %v8187 = vadd.f32 %v8179, -0.001682827
        %v8188 = vmul.f32 %v8180, %v8044
        %v8189 = vmul.f32 %v8181, %v8045
        %v8190 = vmul.f32 %v8182, %v8046
        %v8191 = vmul.f32 %v8183, %v8047
        %v8192 = vmul.f32 %v8184, %v8048
        %v8193 = vmul.f32 %v8185, %v8049
        %v8194 = vmul.f32 %v8186, %v8050
        %v8195 = vmul.f32 %v8187, %v8051
        %v8196 = vadd.f32 %v8188, -0.0073733293
        %v8197 = vadd.f32 %v8189, -0.0073733293
        %v8198 = vadd.f32 %v8190, -0.0073733293
        %v8199 = vadd.f32 %v8191, -0.0073733293
        %v8200 = vadd.f32 %v8192, -0.0073733293
        %v8201 = vadd.f32 %v8193, -0.0073733293
        %v8202 = vadd.f32 %v8194, -0.0073733293
        %v8203 = vadd.f32 %v8195, -0.0073733293
        %v8204 = vmul.f32 %v8196, %v8044
        %v8205 = vmul.f32 %v8197, %v8045
        %v8206 = vmul.f32 %v8198, %v8046
        %v8207 = vmul.f32 %v8199, %v8047
        %v8208 = vmul.f32 %v8200, %v8048
        %v8209 = vmul.f32 %v8201, %v8049
        %v8210 = vmul.f32 %v8202, %v8050
        %v8211 = vmul.f32 %v8203, %v8051
        %v8212 = vadd.f32 %v8204, -0.014264739
        %v8213 = vadd.f32 %v8205, -0.014264739
        %v8214 = vadd.f32 %v8206, -0.014264739
        %v8215 = vadd.f32 %v8207, -0.014264739
        %v8216 = vadd.f32 %v8208, -0.014264739
        %v8217 = vadd.f32 %v8209, -0.014264739
        %v8218 = vadd.f32 %v8210, -0.014264739
        %v8219 = vadd.f32 %v8211, -0.014264739
        %v8220 = vrcp.pop %v8212
        %v8221 = vmul.f32 %v8148, %v8220
        %v8222 = vrcp.pop %v8213
        %v8223 = vmul.f32 %v8149, %v8222
        %v8224 = vrcp.pop %v8214
        %v8225 = vmul.f32 %v8150, %v8224
        %v8226 = vrcp.pop %v8215
        %v8227 = vmul.f32 %v8151, %v8226
        %v8228 = vrcp.pop %v8216
        %v8229 = vmul.f32 %v8152, %v8228
        %v8230 = vrcp.pop %v8217
        %v8231 = vmul.f32 %v8153, %v8230
        %v8232 = vrcp.pop %v8218
        %v8233 = vmul.f32 %v8154, %v8232
        %v8234 = vrcp.pop %v8219
        %v8235 = vmul.f32 %v8155, %v8234
        %v8236 = vadd.f32 %v8221, 1.0
        %v8237 = vadd.f32 %v8223, 1.0
        %v8238 = vadd.f32 %v8225, 1.0
        %v8239 = vadd.f32 %v8227, 1.0
        %v8240 = vadd.f32 %v8229, 1.0
        %v8241 = vadd.f32 %v8231, 1.0
        %v8242 = vadd.f32 %v8233, 1.0
        %v8243 = vadd.f32 %v8235, 1.0
        %v8244 = vmul.f32 %v8012, %v8236
        %v8245 = vmul.f32 %v8013, %v8237
        %v8246 = vmul.f32 %v8014, %v8238
        %v8247 = vmul.f32 %v8015, %v8239
        %v8248 = vmul.f32 %v8016, %v8240
        %v8249 = vmul.f32 %v8017, %v8241
        %v8250 = vmul.f32 %v8018, %v8242
        %v8251 = vmul.f32 %v8019, %v8243
        %s8252 = scalar_lea.vmem [#allocation7], 384
        %v8253 = vld [vmem:[%s8252] sm:$0xff]
        %v8254 = vld [vmem:[%s8252 + $0x8] sm:$0xff]
        %v8255 = vld [vmem:[%s8252 + $0x10] sm:$0xff]
        %v8256 = vld [vmem:[%s8252 + $0x18] sm:$0xff]
        %v8257 = vld [vmem:[%s8252 + $0x20] sm:$0xff]
        %v8258 = vld [vmem:[%s8252 + $0x28] sm:$0xff]
        %v8259 = vld [vmem:[%s8252 + $0x30] sm:$0xff]
        %v8260 = vld [vmem:[%s8252 + $0x38] sm:$0xff]
        %v8261 = vld [vmem:[%s8252 + $0x40] sm:$0xff]
        %v8262 = vld [vmem:[%s8252 + $0x48] sm:$0xff]
        %v8263 = vld [vmem:[%s8252 + $0x50] sm:$0xff]
        %v8264 = vld [vmem:[%s8252 + $0x58] sm:$0xff]
        %v8265 = vld [vmem:[%s8252 + $0x60] sm:$0xff]
        %v8266 = vld [vmem:[%s8252 + $0x68] sm:$0xff]
        %v8267 = vld [vmem:[%s8252 + $0x70] sm:$0xff]
        %v8268 = vld [vmem:[%s8252 + $0x78] sm:$0xff]
        %8269 = vmatprep.subr.mxu0 0.0
        %8270 = vmatpush1.msra.mxu0 %v8253
        %8271 = vmatprep.subr.mxu0 0.0
        %8272 = vmatpush1.msra.mxu0 %v8254
        %8273 = vmatprep.subr.mxu0 0.0
        %8274 = vmatpush1.msra.mxu0 %v8255
        %8275 = vmatprep.subr.mxu0 0.0
        %8276 = vmatpush1.msra.mxu0 %v8256
        %8277 = vmatprep.subr.mxu0 0.0
        %8278 = vmatpush1.msra.mxu0 %v8257
        %8279 = vmatprep.subr.mxu0 0.0
        %8280 = vmatpush1.msra.mxu0 %v8258
        %8281 = vmatprep.subr.mxu0 0.0
        %8282 = vmatpush1.msra.mxu0 %v8259
        %8283 = vmatprep.subr.mxu0 0.0
        %8284 = vmatpush1.msra.mxu0 %v8260
        %8285 = vmatprep.subr.mxu0 0.0
        %8286 = vmatpush1.msra.mxu0 %v8261
        %8287 = vmatprep.subr.mxu0 0.0
        %8288 = vmatpush1.msra.mxu0 %v8262
        %8289 = vmatprep.subr.mxu0 0.0
        %8290 = vmatpush1.msra.mxu0 %v8263
        %8291 = vmatprep.subr.mxu0 0.0
        %8292 = vmatpush1.msra.mxu0 %v8264
        %8293 = vmatprep.subr.mxu0 0.0
        %8294 = vmatpush1.msra.mxu0 %v8265
        %8295 = vmatprep.subr.mxu0 0.0
        %8296 = vmatpush1.msra.mxu0 %v8266
        %8297 = vmatprep.subr.mxu0 0.0
        %8298 = vmatpush1.msra.mxu0 %v8267
        %8299 = vmatprep.subr.mxu0 0.0
        %8300 = vmatpush1.msra.mxu0 %v8268
        %8301 = vmatprep.subr.mxu0 0.0
        %8302 = vmatpush1.msra.mxu0 0.0
        %8303 = vmatprep.subr.mxu0 0.0
        %8304 = vmatpush1.msra.mxu0 0.0
        %8305 = vmatprep.subr.mxu0 0.0
        %8306 = vmatpush1.msra.mxu0 0.0
        %8307 = vmatprep.subr.mxu0 0.0
        %8308 = vmatpush1.msra.mxu0 0.0
        %8309 = vmatprep.subr.mxu0 0.0
        %8310 = vmatpush1.msra.mxu0 0.0
        %8311 = vmatprep.subr.mxu0 0.0
        %8312 = vmatpush1.msra.mxu0 0.0
        %8313 = vmatprep.subr.mxu0 0.0
        %8314 = vmatpush1.msra.mxu0 0.0
        %8315 = vmatprep.subr.mxu0 0.0
        %8316 = vmatpush1.msra.mxu0 0.0
        %8317 = vmatprep.subr.mxu0 0.0
        %8318 = vmatpush1.msra.mxu0 0.0
        %8319 = vmatprep.subr.mxu0 0.0
        %8320 = vmatpush1.msra.mxu0 0.0
        %8321 = vmatprep.subr.mxu0 0.0
        %8322 = vmatpush1.msra.mxu0 0.0
        %8323 = vmatprep.subr.mxu0 0.0
        %8324 = vmatpush1.msra.mxu0 0.0
        %8325 = vmatprep.subr.mxu0 0.0
        %8326 = vmatpush1.msra.mxu0 0.0
        %8327 = vmatprep.subr.mxu0 0.0
        %8328 = vmatpush1.msra.mxu0 0.0
        %8329 = vmatprep.subr.mxu0 0.0
        %8330 = vmatpush1.msra.mxu0 0.0
        %8331 = vmatprep.subr.mxu0 0.0
        %8332 = vmatpush1.msra.mxu0 0.0
        %8333 = vmatprep.mubr.f32.mxu0 0.0
        %8334 = vmatmul.mubr.f32.gmra.mrb[0].mxu0 %v8244
        %v8335 = vpop.f32.mrb[0].mxu0
        %v8336 = vadd.f32 0.0, %v8335
        %v8337 = vpop.f32.mrb[0].mxu0
        %8338 = vmatprep.mubr.f32.mxu0 0.0
        %8339 = vmatmul.mubr.f32.gmra.mrb[0].mxu0 %v8245
        %v8340 = vpop.f32.mrb[0].mxu0
        %v8341 = vadd.f32 0.0, %v8340
        %v8342 = vpop.f32.mrb[0].mxu0
        %8343 = vmatprep.mubr.f32.mxu0 0.0
        %8344 = vmatmul.mubr.f32.gmra.mrb[0].mxu0 %v8246
        %v8345 = vpop.f32.mrb[0].mxu0
        %v8346 = vadd.f32 0.0, %v8345
        %v8347 = vpop.f32.mrb[0].mxu0
        %8348 = vmatprep.mubr.f32.mxu0 0.0
        %8349 = vmatmul.mubr.f32.gmra.mrb[0].mxu0 %v8247
        %v8350 = vpop.f32.mrb[0].mxu0
        %v8351 = vadd.f32 0.0, %v8350
        %v8352 = vpop.f32.mrb[0].mxu0
        %8353 = vmatprep.mubr.f32.mxu0 0.0
        %8354 = vmatmul.mubr.f32.gmra.mrb[0].mxu0 %v8248
        %v8355 = vpop.f32.mrb[0].mxu0
        %v8356 = vadd.f32 0.0, %v8355
        %v8357 = vpop.f32.mrb[0].mxu0
        %8358 = vmatprep.mubr.f32.mxu0 0.0
        %8359 = vmatmul.mubr.f32.gmra.mrb[0].mxu0 %v8249
        %v8360 = vpop.f32.mrb[0].mxu0
        %v8361 = vadd.f32 0.0, %v8360
        %v8362 = vpop.f32.mrb[0].mxu0
        %8363 = vmatprep.mubr.f32.mxu0 0.0
        %8364 = vmatmul.mubr.f32.gmra.mrb[0].mxu0 %v8250
        %v8365 = vpop.f32.mrb[0].mxu0
        %v8366 = vadd.f32 0.0, %v8365
        %v8367 = vpop.f32.mrb[0].mxu0
        %8368 = vmatprep.mubr.f32.mxu0 0.0
        %8369 = vmatmul.mubr.f32.gmra.mrb[0].mxu0 %v8251
        %v8370 = vpop.f32.mrb[0].mxu0
        %v8371 = vadd.f32 0.0, %v8370
        %v8372 = vpop.f32.mrb[0].mxu0
        %8373 = vdwg.mxu0
        %v8374 = vadd.f32 %v7726, %v8336
        %v8375 = vadd.f32 %v7727, %v8341
        %v8376 = vadd.f32 %v7728, %v8346
        %v8377 = vadd.f32 %v7729, %v8351
        %v8378 = vadd.f32 %v7730, %v8356
        %v8379 = vadd.f32 %v7731, %v8361
        %v8380 = vadd.f32 %v7732, %v8366
        %v8381 = vadd.f32 %v7733, %v8371
        %s8382 = scalar_lea.vmem %s13, 3
        %v8383 = vld [vmem:[%s8382] sm:$0x1]
        %v8385 = vlaneseq
        %v8386 = vshrl.u32 %v8385, 7
        %v8387 = vsub.s32 0, %v8386
        %v8388 = vrot.slane %v8383, %v8387
        %v8390 = vadd.f32 %v8374, %v8388
        %v8391 = vadd.f32 %v8375, %v8388
        %v8392 = vadd.f32 %v8376, %v8388
        %v8393 = vadd.f32 %v8377, %v8388
        %v8394 = vadd.f32 %v8378, %v8388
        %v8395 = vadd.f32 %v8379, %v8388
        %v8396 = vadd.f32 %v8380, %v8388
        %v8397 = vadd.f32 %v8381, %v8388
        %v8398 = vmul.f32 %v8390, 0.2
        %v8399 = vmul.f32 %v8391, 0.2
        %v8400 = vmul.f32 %v8392, 0.2
        %v8401 = vmul.f32 %v8393, 0.2
        %v8402 = vmul.f32 %v8394, 0.2
        %v8403 = vmul.f32 %v8395, 0.2
        %v8404 = vmul.f32 %v8396, 0.2
        %v8405 = vmul.f32 %v8397, 0.2
        %v8406 = vadd.f32 %v8398, %v527
        %v8407 = vadd.f32 %v8399, %v528
        %v8408 = vadd.f32 %v8400, %v529
        %v8409 = vadd.f32 %v8401, %v530
        %v8410 = vadd.f32 %v8402, %v531
        %v8411 = vadd.f32 %v8403, %v532
        %v8412 = vadd.f32 %v8404, %v533
        %v8413 = vadd.f32 %v8405, %v534
        %8414 = vst.msk [vmem:[%s526] sm:$0xff] %vm537, %v8406
        %8415 = vst.msk [vmem:[%s526 + $0x8] sm:$0xff] %vm537, %v8407
        %8416 = vst.msk [vmem:[%s526 + $0x10] sm:$0xff] %vm537, %v8408
        %8417 = vst.msk [vmem:[%s526 + $0x18] sm:$0xff] %vm537, %v8409
        %8418 = vst.msk [vmem:[%s526 + $0x20] sm:$0xff] %vm537, %v8410
        %8419 = vst.msk [vmem:[%s526 + $0x28] sm:$0xff] %vm537, %v8411
        %8420 = vst.msk [vmem:[%s526 + $0x30] sm:$0xff] %vm537, %v8412
        %8421 = vst.msk [vmem:[%s526 + $0x38] sm:$0xff] %vm537, %v8413
        %p8422 = scmp.lt.s32.totalorder %s28, 1
        %s8423 = scalar_select %p8422, %s28, 1
        %s8424 = smul.addr %s8423, 8
        %s8425 = smul.addr %s8424, 8
        %s8426 = scalar_lea.vmem %s14, %s8425
        // Predicated region
        $region93: #{transformer_sequence.1} parent=75 // pred_check
          %p8427 = pneg %p345
        $region94: #{transformer_sequence.1} parent=75 // pred_check_branch
          %8429 = sbr.rel (%p8427) target = $region96
        $region95: #{transformer_sequence.1} parent=75 // pred_region
          _
        $region96: #{transformer_sequence.1} parent=75 // pred_fallthru
          _
      $region76: #{transformer_sequence.1} parent=5 // pred_fallthru
        _
      %p8430 = scmp.le.s32.totalorder 2, %s23
      // Predicated region
      $region97: #{transformer_sequence.1} parent=5 // pred_check
        %p8431 = pneg %p8430
      $region98: #{transformer_sequence.1} parent=5 // pred_check_branch
        %8433 = sbr.rel (%p8431) target = $region100
      $region99: #{transformer_sequence.1} parent=5 // pred_region
        %s8434 = ssub.s32 %s23, 2
        // Predicated region
        $region101: #{transformer_sequence.1} parent=99 // pred_check
          %p8435 = pneg %p351
        $region102: #{transformer_sequence.1} parent=99 // pred_check_branch
          %8437 = sbr.rel (%p8435) target = $region104
        $region103: #{transformer_sequence.1} parent=99 // pred_region
          %p8438 = scmp.lt.s32.totalorder %s29, 1
          %s8439 = scalar_select %p8438, %s29, 1
          %s8440 = smul.addr %s8439, 8
          %s8441 = smul.addr %s8440, 8
          %s8442 = scalar_lea.vmem %s14, %s8441
        $region104: #{transformer_sequence.1} parent=99 // pred_fallthru
          _
      $region100: #{transformer_sequence.1} parent=5 // pred_fallthru
        _
    $region6: #{transformer_sequence.1} parent=1 // loop_footer
      %s27 = sadd.s32 1, %s23
    $region7: #{transformer_sequence.1} parent=1 // loop_footer_branch
      %22 = sbr.rel target = $region3
    $region8: #{transformer_sequence.1} parent=1 // loop_exit
      _
    %8443 = vsyncpa [#allocation3], 1
    %s8444 = scalar_lea.sflag [#allocation3], 1
    %8445 = vsyncpa %s8444, 1
    %8446 = vsyncpa [#allocation5], 1
    %8447 = vsyncpa [#allocation8], 1

</llo_original>
